<compile_context>
chip_gen: v7x
topology: tpu7x:2x2x1
jax: 0.10.0
libtpu: 0.0.40
codegen_flags: <defaults>
</compile_context>

<pallas_src>
import jax
import jax.numpy as jnp
from jax.experimental import pallas as pl
from jax.experimental.pallas import tpu as pltpu

LANE = 128


def _round_up(v, m=LANE):
    return (v + m - 1) // m * m


# --------------------------------------------------------------------------- #
# Kernel 1: word-level Bi-GRU recurrence + length-masked average pooling.
#   Inputs are the pre-computed, gate-fused input projections
#     xpf/xpb: (T, N, 3*Hwp)  (x @ W_ih + b, gates ordered r|z|n)
#   plus recurrent weights.  The whole time loop runs inside one invocation
#   with h_f / h_b and the masked pooling accumulators carried as loop values.
# --------------------------------------------------------------------------- #
def _word_bigru_pool_kernel(xpf_ref, xpb_ref, len_ref,
                            whhf_ref, bhnf_ref, whhb_ref, bhnb_ref, out_ref):
    T, N, _ = xpf_ref.shape
    Hp = whhf_ref.shape[0]
    lens = len_ref[...]                                     # (N, 1) f32

    def cell(xp, h, whh_ref, bhn_ref):
        # PyTorch GRU cell, gates fused along lanes: [r | z | n], each Hp wide.
        hp = jnp.dot(h, whh_ref[...], preferred_element_type=jnp.float32)
        r = jax.nn.sigmoid(xp[:, :Hp] + hp[:, :Hp])
        z = jax.nn.sigmoid(xp[:, Hp:2 * Hp] + hp[:, Hp:2 * Hp])
        n = jnp.tanh(xp[:, 2 * Hp:] + r * (hp[:, 2 * Hp:] + bhn_ref[...]))
        return (1.0 - z) * n + z * h

    def body(t, carry):
        h_f, h_b, acc_f, acc_b = carry
        h_f = cell(xpf_ref[t], h_f, whhf_ref, bhnf_ref)          # out_f[t]
        h_b = cell(xpb_ref[T - 1 - t], h_b, whhb_ref, bhnb_ref)  # out_b[T-1-t]
        tf = t.astype(jnp.float32)
        acc_f = acc_f + jnp.where(tf < lens, h_f, 0.0)
        acc_b = acc_b + jnp.where((T - 1) - tf < lens, h_b, 0.0)
        return h_f, h_b, acc_f, acc_b

    z0 = jnp.zeros((N, Hp), jnp.float32)
    _, _, acc_f, acc_b = jax.lax.fori_loop(
        0, T, body, (z0, z0, z0, z0), unroll=T <= 16)

    # Guard against zero-length (all-padding) sentences (reference would NaN).
    inv = 1.0 / jnp.maximum(lens, 1.0)
    out_ref[:, :Hp] = acc_f * inv
    out_ref[:, Hp:] = acc_b * inv


def word_bigru_pool(xpf, xpb, seq_len, pk):
    T, N, G = xpf.shape
    Hwp = G // 3
    f, bw = pk['word_gru_f'], pk['word_gru_b']
    return pl.pallas_call(
        _word_bigru_pool_kernel,
        out_shape=jax.ShapeDtypeStruct((N, 2 * Hwp), jnp.float32),
    )(xpf, xpb, seq_len, f['whh'], f['bhn'], bw['whh'], bw['bhn'])


# --------------------------------------------------------------------------- #
# Kernel 2: sentence-level Bi-GRU + doc vector + sequential classifier.
#   * prologue: one batched (N, 2Hwp) x (2Hwp, 3Hsp) input projection per
#     direction, stored in VMEM scratch.
#   * sequential Bi-GRU over the N sentences (batch = 1), hidden state in
#     registers, per-sentence outputs written into a VMEM scratch.
#   * batched: doc = tanh(fc1(mean)), h = tanh(fc2(sent)), h@Wr, and all static
#     score terms (content + salience + position + bias).
#   * sequential novelty/probability loop with s and the probability row
#     carried as loop values; one lane-dense (1, Npad) store at the end.
# --------------------------------------------------------------------------- #
def _sent_gru_classifier_kernel(
        sent_ref, pos_ref,
        wihf_ref, whhf_ref, bxf_ref, bhnf_ref,
        wihb_ref, whhb_ref, bxb_ref, bhnb_ref,
        fc1w_ref, fc1b_ref, fc2w_ref, fc2b_ref,
        wc_ref, ws_ref, wr_ref, wp_ref, bias_ref,
        out_ref,
        xpf_sc, xpb_sc, sent_sc, h_sc, hwr_sc, stat_sc):
    N = sent_ref.shape[0]
    Hp = whhf_ref.shape[0]
    Npad = out_ref.shape[1]

    # ---- batched input projections (one MXU matmul per direction) ----------
    x = sent_ref[...]                                        # (N, 2*Hwp)
    xpf_sc[...] = (jnp.dot(x, wihf_ref[...], preferred_element_type=jnp.float32)
                   + bxf_ref[...])
    xpb_sc[...] = (jnp.dot(x, wihb_ref[...], preferred_element_type=jnp.float32)
                   + bxb_ref[...])

    def cell(xp, h, whh_ref, bhn_ref):
        hp = jnp.dot(h, whh_ref[...], preferred_element_type=jnp.float32)
        r = jax.nn.sigmoid(xp[:, :Hp] + hp[:, :Hp])
        z = jax.nn.sigmoid(xp[:, Hp:2 * Hp] + hp[:, Hp:2 * Hp])
        n = jnp.tanh(xp[:, 2 * Hp:] + r * (hp[:, 2 * Hp:] + bhn_ref[...]))
        return (1.0 - z) * n + z * h

    def gru_body(t, carry):
        h_f, h_b = carry
        h_f = cell(xpf_sc[pl.ds(t, 1), :], h_f, whhf_ref, bhnf_ref)
        h_b = cell(xpb_sc[pl.ds(N - 1 - t, 1), :], h_b, whhb_ref, bhnb_ref)
        sent_sc[pl.ds(t, 1), :Hp] = h_f
        sent_sc[pl.ds(N - 1 - t, 1), Hp:] = h_b
        return h_f, h_b

    h1 = jnp.zeros((1, Hp), jnp.float32)
    _ = jax.lax.fori_loop(0, N, gru_body, (h1, h1), unroll=N <= 16)

    # ---- doc vector and batched per-sentence affine score terms ------------
    sent2d = sent_sc[...]                                    # (N, 2*Hsp)
    doc = jnp.tanh(
        jnp.dot(jnp.mean(sent2d, axis=0, keepdims=True), fc1w_ref[...],
                preferred_element_type=jnp.float32) + fc1b_ref[...])   # (1, Hd)
    h_all = jnp.tanh(
        jnp.dot(sent2d, fc2w_ref[...], preferred_element_type=jnp.float32)
        + fc2b_ref[...])                                     # (N, Hd)
    h_sc[...] = h_all
    hwr_sc[...] = jnp.dot(h_all, wr_ref[...], preferred_element_type=jnp.float32)

    content = jnp.sum(h_all * wc_ref[...], axis=1, keepdims=True)          # Wc.h
    salience = jnp.sum(
        jnp.dot(h_all, ws_ref[...], preferred_element_type=jnp.float32) * doc,
        axis=1, keepdims=True)                                             # h'Ws doc
    pos_score = jnp.sum(pos_ref[...] * wp_ref[...], axis=1, keepdims=True) # Wp.p
    stat_sc[...] = content + salience + pos_score + bias_ref[...]          # (N, 1)

    # ---- sequential novelty loop: s and probs carried in registers ---------
    lane = jax.lax.broadcasted_iota(jnp.int32, (1, Npad), 1)

    def cls_body(i, carry):
        s, probs = carry
        h_i = h_sc[pl.ds(i, 1), :]                           # (1, Hd)
        hwr_i = hwr_sc[pl.ds(i, 1), :]                       # (1, Hd)
        stat_i = stat_sc[pl.ds(i, 1), :]                     # (1, 1)
        novelty = -jnp.sum(hwr_i * jnp.tanh(s), axis=1, keepdims=True)
        prob = jax.nn.sigmoid(stat_i + novelty)              # (1, 1)
        s = s + h_i * prob
        probs = jnp.where(lane == i, prob, probs)
        return s, probs

    s0 = jnp.zeros((1, h_sc.shape[1]), jnp.float32)
    p0 = jnp.zeros((1, Npad), jnp.float32)
    _, probs = jax.lax.fori_loop(0, N, cls_body, (s0, p0), unroll=N <= 16)
    out_ref[...] = probs


def sent_gru_classifier(sent_feat, pos_emb, pk):
    N = sent_feat.shape[0]
    Hsp = pk['sent_gru_f']['whh'].shape[0]
    Hdp = pk['fc2_w'].shape[1]
    Npad = _round_up(N)
    f, bw = pk['sent_gru_f'], pk['sent_gru_b']
    return pl.pallas_call(
        _sent_gru_classifier_kernel,
        out_shape=jax.ShapeDtypeStruct((1, Npad), jnp.float32),
        scratch_shapes=[
            pltpu.VMEM((N, 3 * Hsp), jnp.float32),   # fwd input projections
            pltpu.VMEM((N, 3 * Hsp), jnp.float32),   # bwd input projections
            pltpu.VMEM((N, 2 * Hsp), jnp.float32),   # sentence GRU outputs
            pltpu.VMEM((N, Hdp), jnp.float32),       # h = tanh(fc2(sent))
            pltpu.VMEM((N, Hdp), jnp.float32),       # h @ Wr
            pltpu.VMEM((N, 1), jnp.float32),         # static scores
        ],
    )(sent_feat, pos_emb,
      f['wih'], f['whh'], f['bx'], f['bhn'],
      bw['wih'], bw['whh'], bw['bx'], bw['bhn'],
      pk['fc1_w'], pk['fc1_b'], pk['fc2_w'], pk['fc2_b'],
      pk['Wc'], pk['Ws'], pk['Wr'], pk['Wp'], pk['b'])


# --------------------------------------------------------------------------- #
# Full forward pass
# --------------------------------------------------------------------------- #
def summarunner_forward(tokens, pk):
    # tokens: (N_sent, max_words) int32, 0 = padding token id.
    N, T = tokens.shape
    if N > pk['pos_emb'].shape[0]:
        raise ValueError("number of sentences exceeds position_size")

    seq_len = jnp.sum(jnp.sign(tokens), axis=1).astype(jnp.float32).reshape(N, 1)

    # Glue: embedding gather + batched, gate-fused word-GRU input projections
    # (one well-shaped XLA matmul per direction).
    word_feat = jnp.take(pk['word_emb'], tokens, axis=0)          # (N, T, Ep)
    x_tne = jnp.transpose(word_feat, (1, 0, 2))                   # (T, N, Ep)
    xpf = jnp.einsum('tne,eg->tng', x_tne, pk['word_gru_f']['wih']) \
        + pk['word_gru_f']['bx']
    xpb = jnp.einsum('tne,eg->tng', x_tne, pk['word_gru_b']['wih']) \
        + pk['word_gru_b']['bx']

    sent_feat = word_bigru_pool(xpf, xpb, seq_len, pk)            # (N, 2*Hwp)

    pos_emb = pk['pos_emb'][:N]                                   # (N, Pp)
    probs_row = sent_gru_classifier(sent_feat, pos_emb, pk)       # (1, Npad)
    return probs_row[0, :N].reshape(N, 1)


# --------------------------------------------------------------------------- #
# Parameter construction (logical PyTorch-style shapes) and lane-padded packing
# --------------------------------------------------------------------------- #
def init_params(key, *, vocab_size, embedding_dim, position_size, position_dim,
                word_hidden, sent_hidden):
    keys = iter(jax.random.split(key, 64))

    def nrm(shape, scale=0.1):
        return (scale * jax.random.normal(next(keys), shape)).astype(jnp.float32)

    def gru(in_dim, hidden):
        return {
            'wih_f': nrm((3, in_dim, hidden)), 'whh_f': nrm((3, hidden, hidden)),
            'bih_f': nrm((3, hidden)),         'bhh_f': nrm((3, hidden)),
            'wih_b': nrm((3, in_dim, hidden)), 'whh_b': nrm((3, hidden, hidden)),
            'bih_b': nrm((3, hidden)),         'bhh_b': nrm((3, hidden)),
        }

    return {
        'word_emb': nrm((vocab_size, embedding_dim), 0.5),
        'pos_emb': nrm((position_size, position_dim), 0.5),
        'word_gru': gru(embedding_dim, word_hidden),
        'sent_gru': gru(2 * word_hidden, sent_hidden),
        'fc1_w_t': nrm((2 * sent_hidden, 100)), 'fc1_b': nrm((100,)),
        'fc2_w_t': nrm((2 * sent_hidden, 100)), 'fc2_b': nrm((100,)),
        'Wc': nrm((1, 100)), 'Ws': nrm((100, 100)), 'Wr': nrm((100, 100)),
        'Wp': nrm((1, position_dim)), 'b': nrm((1, 1)),
    }


def _pad2d(x, rows, cols):
    return jnp.pad(x, ((0, rows - x.shape[0]), (0, cols - x.shape[1])))


def _pack_rows_blocked(w, in_blocks, out_cols):
    """Pad a (sum(sizes), C) matrix to (sum(padded), out_cols), block by block."""
    parts, off = [], 0
    for size, padded in in_blocks:
        parts.append(_pad2d(w[off:off + size], padded, out_cols))
        off += size
    return jnp.concatenate(parts, axis=0)


def _pack_gru_dir(wih, whh, bih, bhh, in_blocks, Hp):
    # Fuse gates r|z|n along lanes and zero-pad hidden dim to Hp.
    H = whh.shape[-1]
    wih_p = jnp.concatenate(
        [_pack_rows_blocked(wih[g], in_blocks, Hp) for g in range(3)], axis=1)
    whh_p = jnp.concatenate([_pad2d(whh[g], Hp, Hp) for g in range(3)], axis=1)

    def padb(v):
        return jnp.pad(v.reshape(1, H), ((0, 0), (0, Hp - H)))

    # r,z biases pre-summed (b_ih + b_hh); n keeps b_ih in bx and b_hh separate.
    bx = jnp.concatenate(
        [padb(bih[0] + bhh[0]), padb(bih[1] + bhh[1]), padb(bih[2])], axis=1)
    return {'wih': wih_p, 'whh': whh_p, 'bx': bx, 'bhn': padb(bhh[2])}


def pack_params(p):
    E = p['word_emb'].shape[1]
    Hw = p['word_gru']['whh_f'].shape[-1]
    Hs = p['sent_gru']['whh_f'].shape[-1]
    Hd = p['Wc'].shape[1]
    Pd = p['Wp'].shape[1]
    Ep, Hwp, Hsp, Hdp, Pp = (_round_up(v) for v in (E, Hw, Hs, Hd, Pd))

    def gru_dirs(g, in_blocks, Hp):
        return (_pack_gru_dir(g['wih_f'], g['whh_f'], g['bih_f'], g['bhh_f'],
                              in_blocks, Hp),
                _pack_gru_dir(g['wih_b'], g['whh_b'], g['bih_b'], g['bhh_b'],
                              in_blocks, Hp))

    wgf, wgb = gru_dirs(p['word_gru'], [(E, Ep)], Hwp)
    sgf, sgb = gru_dirs(p['sent_gru'], [(Hw, Hwp), (Hw, Hwp)], Hsp)
    sent_blocks = [(Hs, Hsp), (Hs, Hsp)]

    return {
        'word_emb': _pad2d(p['word_emb'], p['word_emb'].shape[0], Ep),
        'pos_emb': _pad2d(p['pos_emb'], p['pos_emb'].shape[0], Pp),
        'word_gru_f': wgf, 'word_gru_b': wgb,
        'sent_gru_f': sgf, 'sent_gru_b': sgb,
        'fc1_w': _pack_rows_blocked(p['fc1_w_t'], sent_blocks, Hdp),
        'fc1_b': jnp.pad(p['fc1_b'].reshape(1, Hd), ((0, 0), (0, Hdp - Hd))),
        'fc2_w': _pack_rows_blocked(p['fc2_w_t'], sent_blocks, Hdp),
        'fc2_b': jnp.pad(p['fc2_b'].reshape(1, Hd), ((0, 0), (0, Hdp - Hd))),
        'Wc': _pad2d(p['Wc'], 1, Hdp),
        'Ws': _pad2d(p['Ws'], Hdp, Hdp),
        'Wr': _pad2d(p['Wr'], Hdp, Hdp),
        'Wp': _pad2d(p['Wp'], 1, Pp),
        'b': p['b'],
    }


if __name__ == "__main__":
    # Small shapes consistent with the module: fc1/fc2 are Linear(400, 100) and
    # Wp is (1, 50), so sent_GRU_hidden_units=200 and position_dim=50 are fixed.
    N_SENT, MAX_WORDS = 4, 8
    VOCAB, EMB = 50, 32
    WORD_H, SENT_H = 16, 200
    POS_SIZE, POS_DIM = 16, 50

    key = jax.random.PRNGKey(0)
    k_tok, k_param = jax.random.split(key)
    params = init_params(k_param, vocab_size=VOCAB, embedding_dim=EMB,
                         position_size=POS_SIZE, position_dim=POS_DIM,
                         word_hidden=WORD_H, sent_hidden=SENT_H)
    packed = pack_params(params)

    tokens = jax.random.randint(k_tok, (N_SENT, MAX_WORDS), 1, VOCAB,
                                dtype=jnp.int32)
    lengths = jnp.array([8, 5, 7, 3], dtype=jnp.int32)
    pad_mask = jnp.arange(MAX_WORDS)[None, :] < lengths[:, None]
    tokens = jnp.where(pad_mask, tokens, 0)          # 0 = padding token id

    probs = jax.jit(summarunner_forward)(tokens, packed)
    probs = jax.block_until_ready(probs)
    assert probs.shape == (N_SENT, 1)
    assert bool(jnp.all(jnp.isfinite(probs)))
    print("KERNEL_OK")
</pallas_src>

<mosaic_0001>
module attributes {stable_mosaic.version = 11 : i64} {
  func.func @_sent_gru_classifier_kernel(%arg0: memref<4x256xf32, #tpu.memory_space<vmem>>, %arg1: memref<4x128xf32, #tpu.memory_space<vmem>>, %arg2: memref<256x768xf32, #tpu.memory_space<vmem>>, %arg3: memref<256x768xf32, #tpu.memory_space<vmem>>, %arg4: memref<1x768xf32, #tpu.memory_space<vmem>>, %arg5: memref<1x256xf32, #tpu.memory_space<vmem>>, %arg6: memref<256x768xf32, #tpu.memory_space<vmem>>, %arg7: memref<256x768xf32, #tpu.memory_space<vmem>>, %arg8: memref<1x768xf32, #tpu.memory_space<vmem>>, %arg9: memref<1x256xf32, #tpu.memory_space<vmem>>, %arg10: memref<512x128xf32, #tpu.memory_space<vmem>>, %arg11: memref<1x128xf32, #tpu.memory_space<vmem>>, %arg12: memref<512x128xf32, #tpu.memory_space<vmem>>, %arg13: memref<1x128xf32, #tpu.memory_space<vmem>>, %arg14: memref<1x128xf32, #tpu.memory_space<vmem>>, %arg15: memref<128x128xf32, #tpu.memory_space<vmem>>, %arg16: memref<128x128xf32, #tpu.memory_space<vmem>>, %arg17: memref<1x128xf32, #tpu.memory_space<vmem>>, %arg18: memref<1x1xf32, #tpu.memory_space<vmem>>, %arg19: memref<1x128xf32, #tpu.memory_space<vmem>>, %arg20: memref<4x768xf32, #tpu.memory_space<vmem>>, %arg21: memref<4x768xf32, #tpu.memory_space<vmem>>, %arg22: memref<4x512xf32, #tpu.memory_space<vmem>>, %arg23: memref<4x128xf32, #tpu.memory_space<vmem>>, %arg24: memref<4x128xf32, #tpu.memory_space<vmem>>, %arg25: memref<4x1xf32, #tpu.memory_space<vmem>>) attributes {dimension_semantics = [], scalar_prefetch = 0 : i64, scratch_operands = 6 : i64, tpu.core_type = #tpu.core_type<tc>} {
    %c0 = arith.constant 0 : index
    %c0_0 = arith.constant 0 : index
    %0 = vector.load %arg0[%c0, %c0_0] : memref<4x256xf32, #tpu.memory_space<vmem>>, vector<4x256xf32>
    %c0_1 = arith.constant 0 : index
    %c0_2 = arith.constant 0 : index
    %1 = vector.load %arg2[%c0_1, %c0_2] : memref<256x768xf32, #tpu.memory_space<vmem>>, vector<256x768xf32>
    %cst = arith.constant dense<0.000000e+00> : vector<4x768xf32>
    %2 = tpu.matmul %0, %1, %cst {dimension_numbers = #tpu.dot_dimension_numbers<[1], [0], [0], [1], [0, 0, 1, 1], [], []>} : vector<4x256xf32>, vector<256x768xf32>, vector<4x768xf32> -> vector<4x768xf32>
    %c0_3 = arith.constant 0 : index
    %c0_4 = arith.constant 0 : index
    %3 = vector.load %arg4[%c0_3, %c0_4] : memref<1x768xf32, #tpu.memory_space<vmem>>, vector<1x768xf32>
    %4 = vector.broadcast %3 : vector<1x768xf32> to vector<4x768xf32>
    %5 = arith.addf %2, %4 : vector<4x768xf32>
    %c0_5 = arith.constant 0 : index
    %c0_6 = arith.constant 0 : index
    %6 = vector.load %arg20[%c0_5, %c0_6] : memref<4x768xf32, #tpu.memory_space<vmem>>, vector<4x768xf32>
    tpu.vector_store %arg20[%c0_5, %c0_6], %5 {strides = array<i32>} : memref<4x768xf32, #tpu.memory_space<vmem>>, vector<4x768xf32>,
    %c0_7 = arith.constant 0 : index
    %c0_8 = arith.constant 0 : index
    %7 = vector.load %arg6[%c0_7, %c0_8] : memref<256x768xf32, #tpu.memory_space<vmem>>, vector<256x768xf32>
    %cst_9 = arith.constant dense<0.000000e+00> : vector<4x768xf32>
    %8 = tpu.matmul %0, %7, %cst_9 {dimension_numbers = #tpu.dot_dimension_numbers<[1], [0], [0], [1], [0, 0, 1, 1], [], []>} : vector<4x256xf32>, vector<256x768xf32>, vector<4x768xf32> -> vector<4x768xf32>
    %c0_10 = arith.constant 0 : index
    %c0_11 = arith.constant 0 : index
    %9 = vector.load %arg8[%c0_10, %c0_11] : memref<1x768xf32, #tpu.memory_space<vmem>>, vector<1x768xf32>
    %10 = vector.broadcast %9 : vector<1x768xf32> to vector<4x768xf32>
    %11 = arith.addf %8, %10 : vector<4x768xf32>
    %c0_12 = arith.constant 0 : index
    %c0_13 = arith.constant 0 : index
    %12 = vector.load %arg21[%c0_12, %c0_13] : memref<4x768xf32, #tpu.memory_space<vmem>>, vector<4x768xf32>
    tpu.vector_store %arg21[%c0_12, %c0_13], %11 {strides = array<i32>} : memref<4x768xf32, #tpu.memory_space<vmem>>, vector<4x768xf32>,
    %cst_14 = arith.constant 0.000000e+00 : f32
    %13 = vector.broadcast %cst_14 : f32 to vector<1x256xf32>
    %c0_i32 = arith.constant 0 : i32
    %14 = arith.index_cast %c0_i32 : i32 to index
    %c0_15 = arith.constant 0 : index
    %15 = vector.load %arg20[%14, %c0_15] : memref<4x768xf32, #tpu.memory_space<vmem>>, vector<1x768xf32>
    %c0_16 = arith.constant 0 : index
    %c0_17 = arith.constant 0 : index
    %16 = vector.load %arg3[%c0_16, %c0_17] : memref<256x768xf32, #tpu.memory_space<vmem>>, vector<256x768xf32>
    %cst_18 = arith.constant dense<0.000000e+00> : vector<1x768xf32>
    %17 = tpu.matmul %13, %16, %cst_18 {dimension_numbers = #tpu.dot_dimension_numbers<[1], [0], [0], [1], [0, 0, 1, 1], [], []>} : vector<1x256xf32>, vector<256x768xf32>, vector<1x768xf32> -> vector<1x768xf32>
    %18 = vector.extract_strided_slice %15 {offsets = [0, 0], sizes = [1, 256], strides = [1, 1]} : vector<1x768xf32> to vector<1x256xf32>
    %19 = vector.extract_strided_slice %17 {offsets = [0, 0], sizes = [1, 256], strides = [1, 1]} : vector<1x768xf32> to vector<1x256xf32>
    %20 = arith.addf %18, %19 : vector<1x256xf32>
    %21 = arith.negf %20 : vector<1x256xf32>
    %22 = math.exp %21 : vector<1x256xf32>
    %cst_19 = arith.constant 1.000000e+00 : f32
    %23 = vector.broadcast %cst_19 : f32 to vector<1x256xf32>
    %24 = arith.addf %23, %22 : vector<1x256xf32>
    %25 = arith.divf %23, %24 : vector<1x256xf32>
    %26 = vector.extract_strided_slice %15 {offsets = [0, 256], sizes = [1, 256], strides = [1, 1]} : vector<1x768xf32> to vector<1x256xf32>
    %27 = vector.extract_strided_slice %17 {offsets = [0, 256], sizes = [1, 256], strides = [1, 1]} : vector<1x768xf32> to vector<1x256xf32>
    %28 = arith.addf %26, %27 : vector<1x256xf32>
    %29 = arith.negf %28 : vector<1x256xf32>
    %30 = math.exp %29 : vector<1x256xf32>
    %cst_20 = arith.constant 1.000000e+00 : f32
    %31 = vector.broadcast %cst_20 : f32 to vector<1x256xf32>
    %32 = arith.addf %31, %30 : vector<1x256xf32>
    %33 = arith.divf %31, %32 : vector<1x256xf32>
    %34 = vector.extract_strided_slice %15 {offsets = [0, 512], sizes = [1, 256], strides = [1, 1]} : vector<1x768xf32> to vector<1x256xf32>
    %35 = vector.extract_strided_slice %17 {offsets = [0, 512], sizes = [1, 256], strides = [1, 1]} : vector<1x768xf32> to vector<1x256xf32>
    %c0_21 = arith.constant 0 : index
    %c0_22 = arith.constant 0 : index
    %36 = vector.load %arg5[%c0_21, %c0_22] : memref<1x256xf32, #tpu.memory_space<vmem>>, vector<1x256xf32>
    %37 = arith.addf %35, %36 : vector<1x256xf32>
    %38 = arith.mulf %25, %37 : vector<1x256xf32>
    %39 = arith.addf %34, %38 : vector<1x256xf32>
    %40 = math.tanh %39 : vector<1x256xf32>
    %cst_23 = arith.constant 1.000000e+00 : f32
    %41 = vector.broadcast %cst_23 : f32 to vector<1x256xf32>
    %42 = arith.subf %41, %33 : vector<1x256xf32>
    %43 = arith.mulf %42, %40 : vector<1x256xf32>
    %44 = arith.mulf %33, %13 : vector<1x256xf32>
    %45 = arith.addf %43, %44 : vector<1x256xf32>
    %c3_i32 = arith.constant 3 : i32
    %46 = arith.subi %c3_i32, %c0_i32 : i32
    %47 = arith.index_cast %46 : i32 to index
    %c0_24 = arith.constant 0 : index
    %48 = vector.load %arg21[%47, %c0_24] : memref<4x768xf32, #tpu.memory_space<vmem>>, vector<1x768xf32>
    %c0_25 = arith.constant 0 : index
    %c0_26 = arith.constant 0 : index
    %49 = vector.load %arg7[%c0_25, %c0_26] : memref<256x768xf32, #tpu.memory_space<vmem>>, vector<256x768xf32>
    %cst_27 = arith.constant dense<0.000000e+00> : vector<1x768xf32>
    %50 = tpu.matmul %13, %49, %cst_27 {dimension_numbers = #tpu.dot_dimension_numbers<[1], [0], [0], [1], [0, 0, 1, 1], [], []>} : vector<1x256xf32>, vector<256x768xf32>, vector<1x768xf32> -> vector<1x768xf32>
    %51 = vector.extract_strided_slice %48 {offsets = [0, 0], sizes = [1, 256], strides = [1, 1]} : vector<1x768xf32> to vector<1x256xf32>
    %52 = vector.extract_strided_slice %50 {offsets = [0, 0], sizes = [1, 256], strides = [1, 1]} : vector<1x768xf32> to vector<1x256xf32>
    %53 = arith.addf %51, %52 : vector<1x256xf32>
    %54 = arith.negf %53 : vector<1x256xf32>
    %55 = math.exp %54 : vector<1x256xf32>
    %cst_28 = arith.constant 1.000000e+00 : f32
    %56 = vector.broadcast %cst_28 : f32 to vector<1x256xf32>
    %57 = arith.addf %56, %55 : vector<1x256xf32>
    %58 = arith.divf %56, %57 : vector<1x256xf32>
    %59 = vector.extract_strided_slice %48 {offsets = [0, 256], sizes = [1, 256], strides = [1, 1]} : vector<1x768xf32> to vector<1x256xf32>
    %60 = vector.extract_strided_slice %50 {offsets = [0, 256], sizes = [1, 256], strides = [1, 1]} : vector<1x768xf32> to vector<1x256xf32>
    %61 = arith.addf %59, %60 : vector<1x256xf32>
    %62 = arith.negf %61 : vector<1x256xf32>
    %63 = math.exp %62 : vector<1x256xf32>
    %cst_29 = arith.constant 1.000000e+00 : f32
    %64 = vector.broadcast %cst_29 : f32 to vector<1x256xf32>
    %65 = arith.addf %64, %63 : vector<1x256xf32>
    %66 = arith.divf %64, %65 : vector<1x256xf32>
    %67 = vector.extract_strided_slice %48 {offsets = [0, 512], sizes = [1, 256], strides = [1, 1]} : vector<1x768xf32> to vector<1x256xf32>
    %68 = vector.extract_strided_slice %50 {offsets = [0, 512], sizes = [1, 256], strides = [1, 1]} : vector<1x768xf32> to vector<1x256xf32>
    %c0_30 = arith.constant 0 : index
    %c0_31 = arith.constant 0 : index
    %69 = vector.load %arg9[%c0_30, %c0_31] : memref<1x256xf32, #tpu.memory_space<vmem>>, vector<1x256xf32>
    %70 = arith.addf %68, %69 : vector<1x256xf32>
    %71 = arith.mulf %58, %70 : vector<1x256xf32>
    %72 = arith.addf %67, %71 : vector<1x256xf32>
    %73 = math.tanh %72 : vector<1x256xf32>
    %cst_32 = arith.constant 1.000000e+00 : f32
    %74 = vector.broadcast %cst_32 : f32 to vector<1x256xf32>
    %75 = arith.subf %74, %66 : vector<1x256xf32>
    %76 = arith.mulf %75, %73 : vector<1x256xf32>
    %77 = arith.mulf %66, %13 : vector<1x256xf32>
    %78 = arith.addf %76, %77 : vector<1x256xf32>
    %79 = arith.index_cast %c0_i32 : i32 to index
    %c0_33 = arith.constant 0 : index
    %80 = vector.load %arg22[%79, %c0_33] : memref<4x512xf32, #tpu.memory_space<vmem>>, vector<1x256xf32>
    tpu.vector_store %arg22[%79, %c0_33], %45 {strides = array<i32>} : memref<4x512xf32, #tpu.memory_space<vmem>>, vector<1x256xf32>,
    %c3_i32_34 = arith.constant 3 : i32
    %81 = arith.subi %c3_i32_34, %c0_i32 : i32
    %82 = arith.index_cast %81 : i32 to index
    %c256 = arith.constant 256 : index
    %83 = vector.load %arg22[%82, %c256] : memref<4x512xf32, #tpu.memory_space<vmem>>, vector<1x256xf32>
    tpu.vector_store %arg22[%82, %c256], %78 {strides = array<i32>} : memref<4x512xf32, #tpu.memory_space<vmem>>, vector<1x256xf32>,
    %c1_i32 = arith.constant 1 : i32
    %84 = arith.index_cast %c1_i32 : i32 to index
    %c0_35 = arith.constant 0 : index
    %85 = vector.load %arg20[%84, %c0_35] : memref<4x768xf32, #tpu.memory_space<vmem>>, vector<1x768xf32>
    %c0_36 = arith.constant 0 : index
    %c0_37 = arith.constant 0 : index
    %86 = vector.load %arg3[%c0_36, %c0_37] : memref<256x768xf32, #tpu.memory_space<vmem>>, vector<256x768xf32>
    %cst_38 = arith.constant dense<0.000000e+00> : vector<1x768xf32>
    %87 = tpu.matmul %45, %86, %cst_38 {dimension_numbers = #tpu.dot_dimension_numbers<[1], [0], [0], [1], [0, 0, 1, 1], [], []>} : vector<1x256xf32>, vector<256x768xf32>, vector<1x768xf32> -> vector<1x768xf32>
    %88 = vector.extract_strided_slice %85 {offsets = [0, 0], sizes = [1, 256], strides = [1, 1]} : vector<1x768xf32> to vector<1x256xf32>
    %89 = vector.extract_strided_slice %87 {offsets = [0, 0], sizes = [1, 256], strides = [1, 1]} : vector<1x768xf32> to vector<1x256xf32>
    %90 = arith.addf %88, %89 : vector<1x256xf32>
    %91 = arith.negf %90 : vector<1x256xf32>
    %92 = math.exp %91 : vector<1x256xf32>
    %cst_39 = arith.constant 1.000000e+00 : f32
    %93 = vector.broadcast %cst_39 : f32 to vector<1x256xf32>
    %94 = arith.addf %93, %92 : vector<1x256xf32>
    %95 = arith.divf %93, %94 : vector<1x256xf32>
    %96 = vector.extract_strided_slice %85 {offsets = [0, 256], sizes = [1, 256], strides = [1, 1]} : vector<1x768xf32> to vector<1x256xf32>
    %97 = vector.extract_strided_slice %87 {offsets = [0, 256], sizes = [1, 256], strides = [1, 1]} : vector<1x768xf32> to vector<1x256xf32>
    %98 = arith.addf %96, %97 : vector<1x256xf32>
    %99 = arith.negf %98 : vector<1x256xf32>
    %100 = math.exp %99 : vector<1x256xf32>
    %cst_40 = arith.constant 1.000000e+00 : f32
    %101 = vector.broadcast %cst_40 : f32 to vector<1x256xf32>
    %102 = arith.addf %101, %100 : vector<1x256xf32>
    %103 = arith.divf %101, %102 : vector<1x256xf32>
    %104 = vector.extract_strided_slice %85 {offsets = [0, 512], sizes = [1, 256], strides = [1, 1]} : vector<1x768xf32> to vector<1x256xf32>
    %105 = vector.extract_strided_slice %87 {offsets = [0, 512], sizes = [1, 256], strides = [1, 1]} : vector<1x768xf32> to vector<1x256xf32>
    %c0_41 = arith.constant 0 : index
    %c0_42 = arith.constant 0 : index
    %106 = vector.load %arg5[%c0_41, %c0_42] : memref<1x256xf32, #tpu.memory_space<vmem>>, vector<1x256xf32>
    %107 = arith.addf %105, %106 : vector<1x256xf32>
    %108 = arith.mulf %95, %107 : vector<1x256xf32>
    %109 = arith.addf %104, %108 : vector<1x256xf32>
    %110 = math.tanh %109 : vector<1x256xf32>
    %cst_43 = arith.constant 1.000000e+00 : f32
    %111 = vector.broadcast %cst_43 : f32 to vector<1x256xf32>
    %112 = arith.subf %111, %103 : vector<1x256xf32>
    %113 = arith.mulf %112, %110 : vector<1x256xf32>
    %114 = arith.mulf %103, %45 : vector<1x256xf32>
    %115 = arith.addf %113, %114 : vector<1x256xf32>
    %c3_i32_44 = arith.constant 3 : i32
    %116 = arith.subi %c3_i32_44, %c1_i32 : i32
    %117 = arith.index_cast %116 : i32 to index
    %c0_45 = arith.constant 0 : index
    %118 = vector.load %arg21[%117, %c0_45] : memref<4x768xf32, #tpu.memory_space<vmem>>, vector<1x768xf32>
    %c0_46 = arith.constant 0 : index
    %c0_47 = arith.constant 0 : index
    %119 = vector.load %arg7[%c0_46, %c0_47] : memref<256x768xf32, #tpu.memory_space<vmem>>, vector<256x768xf32>
    %cst_48 = arith.constant dense<0.000000e+00> : vector<1x768xf32>
    %120 = tpu.matmul %78, %119, %cst_48 {dimension_numbers = #tpu.dot_dimension_numbers<[1], [0], [0], [1], [0, 0, 1, 1], [], []>} : vector<1x256xf32>, vector<256x768xf32>, vector<1x768xf32> -> vector<1x768xf32>
    %121 = vector.extract_strided_slice %118 {offsets = [0, 0], sizes = [1, 256], strides = [1, 1]} : vector<1x768xf32> to vector<1x256xf32>
    %122 = vector.extract_strided_slice %120 {offsets = [0, 0], sizes = [1, 256], strides = [1, 1]} : vector<1x768xf32> to vector<1x256xf32>
    %123 = arith.addf %121, %122 : vector<1x256xf32>
    %124 = arith.negf %123 : vector<1x256xf32>
    %125 = math.exp %124 : vector<1x256xf32>
    %cst_49 = arith.constant 1.000000e+00 : f32
    %126 = vector.broadcast %cst_49 : f32 to vector<1x256xf32>
    %127 = arith.addf %126, %125 : vector<1x256xf32>
    %128 = arith.divf %126, %127 : vector<1x256xf32>
    %129 = vector.extract_strided_slice %118 {offsets = [0, 256], sizes = [1, 256], strides = [1, 1]} : vector<1x768xf32> to vector<1x256xf32>
    %130 = vector.extract_strided_slice %120 {offsets = [0, 256], sizes = [1, 256], strides = [1, 1]} : vector<1x768xf32> to vector<1x256xf32>
    %131 = arith.addf %129, %130 : vector<1x256xf32>
    %132 = arith.negf %131 : vector<1x256xf32>
    %133 = math.exp %132 : vector<1x256xf32>
    %cst_50 = arith.constant 1.000000e+00 : f32
    %134 = vector.broadcast %cst_50 : f32 to vector<1x256xf32>
    %135 = arith.addf %134, %133 : vector<1x256xf32>
    %136 = arith.divf %134, %135 : vector<1x256xf32>
    %137 = vector.extract_strided_slice %118 {offsets = [0, 512], sizes = [1, 256], strides = [1, 1]} : vector<1x768xf32> to vector<1x256xf32>
    %138 = vector.extract_strided_slice %120 {offsets = [0, 512], sizes = [1, 256], strides = [1, 1]} : vector<1x768xf32> to vector<1x256xf32>
    %c0_51 = arith.constant 0 : index
    %c0_52 = arith.constant 0 : index
    %139 = vector.load %arg9[%c0_51, %c0_52] : memref<1x256xf32, #tpu.memory_space<vmem>>, vector<1x256xf32>
    %140 = arith.addf %138, %139 : vector<1x256xf32>
    %141 = arith.mulf %128, %140 : vector<1x256xf32>
    %142 = arith.addf %137, %141 : vector<1x256xf32>
    %143 = math.tanh %142 : vector<1x256xf32>
    %cst_53 = arith.constant 1.000000e+00 : f32
    %144 = vector.broadcast %cst_53 : f32 to vector<1x256xf32>
    %145 = arith.subf %144, %136 : vector<1x256xf32>
    %146 = arith.mulf %145, %143 : vector<1x256xf32>
    %147 = arith.mulf %136, %78 : vector<1x256xf32>
    %148 = arith.addf %146, %147 : vector<1x256xf32>
    %149 = arith.index_cast %c1_i32 : i32 to index
    %c0_54 = arith.constant 0 : index
    %150 = vector.load %arg22[%149, %c0_54] : memref<4x512xf32, #tpu.memory_space<vmem>>, vector<1x256xf32>
    tpu.vector_store %arg22[%149, %c0_54], %115 {strides = array<i32>} : memref<4x512xf32, #tpu.memory_space<vmem>>, vector<1x256xf32>,
    %c3_i32_55 = arith.constant 3 : i32
    %151 = arith.subi %c3_i32_55, %c1_i32 : i32
    %152 = arith.index_cast %151 : i32 to index
    %c256_56 = arith.constant 256 : index
    %153 = vector.load %arg22[%152, %c256_56] : memref<4x512xf32, #tpu.memory_space<vmem>>, vector<1x256xf32>
    tpu.vector_store %arg22[%152, %c256_56], %148 {strides = array<i32>} : memref<4x512xf32, #tpu.memory_space<vmem>>, vector<1x256xf32>,
    %c2_i32 = arith.constant 2 : i32
    %154 = arith.index_cast %c2_i32 : i32 to index
    %c0_57 = arith.constant 0 : index
    %155 = vector.load %arg20[%154, %c0_57] : memref<4x768xf32, #tpu.memory_space<vmem>>, vector<1x768xf32>
    %c0_58 = arith.constant 0 : index
    %c0_59 = arith.constant 0 : index
    %156 = vector.load %arg3[%c0_58, %c0_59] : memref<256x768xf32, #tpu.memory_space<vmem>>, vector<256x768xf32>
    %cst_60 = arith.constant dense<0.000000e+00> : vector<1x768xf32>
    %157 = tpu.matmul %115, %156, %cst_60 {dimension_numbers = #tpu.dot_dimension_numbers<[1], [0], [0], [1], [0, 0, 1, 1], [], []>} : vector<1x256xf32>, vector<256x768xf32>, vector<1x768xf32> -> vector<1x768xf32>
    %158 = vector.extract_strided_slice %155 {offsets = [0, 0], sizes = [1, 256], strides = [1, 1]} : vector<1x768xf32> to vector<1x256xf32>
    %159 = vector.extract_strided_slice %157 {offsets = [0, 0], sizes = [1, 256], strides = [1, 1]} : vector<1x768xf32> to vector<1x256xf32>
    %160 = arith.addf %158, %159 : vector<1x256xf32>
    %161 = arith.negf %160 : vector<1x256xf32>
    %162 = math.exp %161 : vector<1x256xf32>
    %cst_61 = arith.constant 1.000000e+00 : f32
    %163 = vector.broadcast %cst_61 : f32 to vector<1x256xf32>
    %164 = arith.addf %163, %162 : vector<1x256xf32>
    %165 = arith.divf %163, %164 : vector<1x256xf32>
    %166 = vector.extract_strided_slice %155 {offsets = [0, 256], sizes = [1, 256], strides = [1, 1]} : vector<1x768xf32> to vector<1x256xf32>
    %167 = vector.extract_strided_slice %157 {offsets = [0, 256], sizes = [1, 256], strides = [1, 1]} : vector<1x768xf32> to vector<1x256xf32>
    %168 = arith.addf %166, %167 : vector<1x256xf32>
    %169 = arith.negf %168 : vector<1x256xf32>
    %170 = math.exp %169 : vector<1x256xf32>
    %cst_62 = arith.constant 1.000000e+00 : f32
    %171 = vector.broadcast %cst_62 : f32 to vector<1x256xf32>
    %172 = arith.addf %171, %170 : vector<1x256xf32>
    %173 = arith.divf %171, %172 : vector<1x256xf32>
    %174 = vector.extract_strided_slice %155 {offsets = [0, 512], sizes = [1, 256], strides = [1, 1]} : vector<1x768xf32> to vector<1x256xf32>
    %175 = vector.extract_strided_slice %157 {offsets = [0, 512], sizes = [1, 256], strides = [1, 1]} : vector<1x768xf32> to vector<1x256xf32>
    %c0_63 = arith.constant 0 : index
    %c0_64 = arith.constant 0 : index
    %176 = vector.load %arg5[%c0_63, %c0_64] : memref<1x256xf32, #tpu.memory_space<vmem>>, vector<1x256xf32>
    %177 = arith.addf %175, %176 : vector<1x256xf32>
    %178 = arith.mulf %165, %177 : vector<1x256xf32>
    %179 = arith.addf %174, %178 : vector<1x256xf32>
    %180 = math.tanh %179 : vector<1x256xf32>
    %cst_65 = arith.constant 1.000000e+00 : f32
    %181 = vector.broadcast %cst_65 : f32 to vector<1x256xf32>
    %182 = arith.subf %181, %173 : vector<1x256xf32>
    %183 = arith.mulf %182, %180 : vector<1x256xf32>
    %184 = arith.mulf %173, %115 : vector<1x256xf32>
    %185 = arith.addf %183, %184 : vector<1x256xf32>
    %c3_i32_66 = arith.constant 3 : i32
    %186 = arith.subi %c3_i32_66, %c2_i32 : i32
    %187 = arith.index_cast %186 : i32 to index
    %c0_67 = arith.constant 0 : index
    %188 = vector.load %arg21[%187, %c0_67] : memref<4x768xf32, #tpu.memory_space<vmem>>, vector<1x768xf32>
    %c0_68 = arith.constant 0 : index
    %c0_69 = arith.constant 0 : index
    %189 = vector.load %arg7[%c0_68, %c0_69] : memref<256x768xf32, #tpu.memory_space<vmem>>, vector<256x768xf32>
    %cst_70 = arith.constant dense<0.000000e+00> : vector<1x768xf32>
    %190 = tpu.matmul %148, %189, %cst_70 {dimension_numbers = #tpu.dot_dimension_numbers<[1], [0], [0], [1], [0, 0, 1, 1], [], []>} : vector<1x256xf32>, vector<256x768xf32>, vector<1x768xf32> -> vector<1x768xf32>
    %191 = vector.extract_strided_slice %188 {offsets = [0, 0], sizes = [1, 256], strides = [1, 1]} : vector<1x768xf32> to vector<1x256xf32>
    %192 = vector.extract_strided_slice %190 {offsets = [0, 0], sizes = [1, 256], strides = [1, 1]} : vector<1x768xf32> to vector<1x256xf32>
    %193 = arith.addf %191, %192 : vector<1x256xf32>
    %194 = arith.negf %193 : vector<1x256xf32>
    %195 = math.exp %194 : vector<1x256xf32>
    %cst_71 = arith.constant 1.000000e+00 : f32
    %196 = vector.broadcast %cst_71 : f32 to vector<1x256xf32>
    %197 = arith.addf %196, %195 : vector<1x256xf32>
    %198 = arith.divf %196, %197 : vector<1x256xf32>
    %199 = vector.extract_strided_slice %188 {offsets = [0, 256], sizes = [1, 256], strides = [1, 1]} : vector<1x768xf32> to vector<1x256xf32>
    %200 = vector.extract_strided_slice %190 {offsets = [0, 256], sizes = [1, 256], strides = [1, 1]} : vector<1x768xf32> to vector<1x256xf32>
    %201 = arith.addf %199, %200 : vector<1x256xf32>
    %202 = arith.negf %201 : vector<1x256xf32>
    %203 = math.exp %202 : vector<1x256xf32>
    %cst_72 = arith.constant 1.000000e+00 : f32
    %204 = vector.broadcast %cst_72 : f32 to vector<1x256xf32>
    %205 = arith.addf %204, %203 : vector<1x256xf32>
    %206 = arith.divf %204, %205 : vector<1x256xf32>
    %207 = vector.extract_strided_slice %188 {offsets = [0, 512], sizes = [1, 256], strides = [1, 1]} : vector<1x768xf32> to vector<1x256xf32>
    %208 = vector.extract_strided_slice %190 {offsets = [0, 512], sizes = [1, 256], strides = [1, 1]} : vector<1x768xf32> to vector<1x256xf32>
    %c0_73 = arith.constant 0 : index
    %c0_74 = arith.constant 0 : index
    %209 = vector.load %arg9[%c0_73, %c0_74] : memref<1x256xf32, #tpu.memory_space<vmem>>, vector<1x256xf32>
    %210 = arith.addf %208, %209 : vector<1x256xf32>
    %211 = arith.mulf %198, %210 : vector<1x256xf32>
    %212 = arith.addf %207, %211 : vector<1x256xf32>
    %213 = math.tanh %212 : vector<1x256xf32>
    %cst_75 = arith.constant 1.000000e+00 : f32
    %214 = vector.broadcast %cst_75 : f32 to vector<1x256xf32>
    %215 = arith.subf %214, %206 : vector<1x256xf32>
    %216 = arith.mulf %215, %213 : vector<1x256xf32>
    %217 = arith.mulf %206, %148 : vector<1x256xf32>
    %218 = arith.addf %216, %217 : vector<1x256xf32>
    %219 = arith.index_cast %c2_i32 : i32 to index
    %c0_76 = arith.constant 0 : index
    %220 = vector.load %arg22[%219, %c0_76] : memref<4x512xf32, #tpu.memory_space<vmem>>, vector<1x256xf32>
    tpu.vector_store %arg22[%219, %c0_76], %185 {strides = array<i32>} : memref<4x512xf32, #tpu.memory_space<vmem>>, vector<1x256xf32>,
    %c3_i32_77 = arith.constant 3 : i32
    %221 = arith.subi %c3_i32_77, %c2_i32 : i32
    %222 = arith.index_cast %221 : i32 to index
    %c256_78 = arith.constant 256 : index
    %223 = vector.load %arg22[%222, %c256_78] : memref<4x512xf32, #tpu.memory_space<vmem>>, vector<1x256xf32>
    tpu.vector_store %arg22[%222, %c256_78], %218 {strides = array<i32>} : memref<4x512xf32, #tpu.memory_space<vmem>>, vector<1x256xf32>,
    %c3_i32_79 = arith.constant 3 : i32
    %224 = arith.index_cast %c3_i32_79 : i32 to index
    %c0_80 = arith.constant 0 : index
    %225 = vector.load %arg20[%224, %c0_80] : memref<4x768xf32, #tpu.memory_space<vmem>>, vector<1x768xf32>
    %c0_81 = arith.constant 0 : index
    %c0_82 = arith.constant 0 : index
    %226 = vector.load %arg3[%c0_81, %c0_82] : memref<256x768xf32, #tpu.memory_space<vmem>>, vector<256x768xf32>
    %cst_83 = arith.constant dense<0.000000e+00> : vector<1x768xf32>
    %227 = tpu.matmul %185, %226, %cst_83 {dimension_numbers = #tpu.dot_dimension_numbers<[1], [0], [0], [1], [0, 0, 1, 1], [], []>} : vector<1x256xf32>, vector<256x768xf32>, vector<1x768xf32> -> vector<1x768xf32>
    %228 = vector.extract_strided_slice %225 {offsets = [0, 0], sizes = [1, 256], strides = [1, 1]} : vector<1x768xf32> to vector<1x256xf32>
    %229 = vector.extract_strided_slice %227 {offsets = [0, 0], sizes = [1, 256], strides = [1, 1]} : vector<1x768xf32> to vector<1x256xf32>
    %230 = arith.addf %228, %229 : vector<1x256xf32>
    %231 = arith.negf %230 : vector<1x256xf32>
    %232 = math.exp %231 : vector<1x256xf32>
    %cst_84 = arith.constant 1.000000e+00 : f32
    %233 = vector.broadcast %cst_84 : f32 to vector<1x256xf32>
    %234 = arith.addf %233, %232 : vector<1x256xf32>
    %235 = arith.divf %233, %234 : vector<1x256xf32>
    %236 = vector.extract_strided_slice %225 {offsets = [0, 256], sizes = [1, 256], strides = [1, 1]} : vector<1x768xf32> to vector<1x256xf32>
    %237 = vector.extract_strided_slice %227 {offsets = [0, 256], sizes = [1, 256], strides = [1, 1]} : vector<1x768xf32> to vector<1x256xf32>
    %238 = arith.addf %236, %237 : vector<1x256xf32>
    %239 = arith.negf %238 : vector<1x256xf32>
    %240 = math.exp %239 : vector<1x256xf32>
    %cst_85 = arith.constant 1.000000e+00 : f32
    %241 = vector.broadcast %cst_85 : f32 to vector<1x256xf32>
    %242 = arith.addf %241, %240 : vector<1x256xf32>
    %243 = arith.divf %241, %242 : vector<1x256xf32>
    %244 = vector.extract_strided_slice %225 {offsets = [0, 512], sizes = [1, 256], strides = [1, 1]} : vector<1x768xf32> to vector<1x256xf32>
    %245 = vector.extract_strided_slice %227 {offsets = [0, 512], sizes = [1, 256], strides = [1, 1]} : vector<1x768xf32> to vector<1x256xf32>
    %c0_86 = arith.constant 0 : index
    %c0_87 = arith.constant 0 : index
    %246 = vector.load %arg5[%c0_86, %c0_87] : memref<1x256xf32, #tpu.memory_space<vmem>>, vector<1x256xf32>
    %247 = arith.addf %245, %246 : vector<1x256xf32>
    %248 = arith.mulf %235, %247 : vector<1x256xf32>
    %249 = arith.addf %244, %248 : vector<1x256xf32>
    %250 = math.tanh %249 : vector<1x256xf32>
    %cst_88 = arith.constant 1.000000e+00 : f32
    %251 = vector.broadcast %cst_88 : f32 to vector<1x256xf32>
    %252 = arith.subf %251, %243 : vector<1x256xf32>
    %253 = arith.mulf %252, %250 : vector<1x256xf32>
    %254 = arith.mulf %243, %185 : vector<1x256xf32>
    %255 = arith.addf %253, %254 : vector<1x256xf32>
    %c3_i32_89 = arith.constant 3 : i32
    %256 = arith.subi %c3_i32_89, %c3_i32_79 : i32
    %257 = arith.index_cast %256 : i32 to index
    %c0_90 = arith.constant 0 : index
    %258 = vector.load %arg21[%257, %c0_90] : memref<4x768xf32, #tpu.memory_space<vmem>>, vector<1x768xf32>
    %c0_91 = arith.constant 0 : index
    %c0_92 = arith.constant 0 : index
    %259 = vector.load %arg7[%c0_91, %c0_92] : memref<256x768xf32, #tpu.memory_space<vmem>>, vector<256x768xf32>
    %cst_93 = arith.constant dense<0.000000e+00> : vector<1x768xf32>
    %260 = tpu.matmul %218, %259, %cst_93 {dimension_numbers = #tpu.dot_dimension_numbers<[1], [0], [0], [1], [0, 0, 1, 1], [], []>} : vector<1x256xf32>, vector<256x768xf32>, vector<1x768xf32> -> vector<1x768xf32>
    %261 = vector.extract_strided_slice %258 {offsets = [0, 0], sizes = [1, 256], strides = [1, 1]} : vector<1x768xf32> to vector<1x256xf32>
    %262 = vector.extract_strided_slice %260 {offsets = [0, 0], sizes = [1, 256], strides = [1, 1]} : vector<1x768xf32> to vector<1x256xf32>
    %263 = arith.addf %261, %262 : vector<1x256xf32>
    %264 = arith.negf %263 : vector<1x256xf32>
    %265 = math.exp %264 : vector<1x256xf32>
    %cst_94 = arith.constant 1.000000e+00 : f32
    %266 = vector.broadcast %cst_94 : f32 to vector<1x256xf32>
    %267 = arith.addf %266, %265 : vector<1x256xf32>
    %268 = arith.divf %266, %267 : vector<1x256xf32>
    %269 = vector.extract_strided_slice %258 {offsets = [0, 256], sizes = [1, 256], strides = [1, 1]} : vector<1x768xf32> to vector<1x256xf32>
    %270 = vector.extract_strided_slice %260 {offsets = [0, 256], sizes = [1, 256], strides = [1, 1]} : vector<1x768xf32> to vector<1x256xf32>
    %271 = arith.addf %269, %270 : vector<1x256xf32>
    %272 = arith.negf %271 : vector<1x256xf32>
    %273 = math.exp %272 : vector<1x256xf32>
    %cst_95 = arith.constant 1.000000e+00 : f32
    %274 = vector.broadcast %cst_95 : f32 to vector<1x256xf32>
    %275 = arith.addf %274, %273 : vector<1x256xf32>
    %276 = arith.divf %274, %275 : vector<1x256xf32>
    %277 = vector.extract_strided_slice %258 {offsets = [0, 512], sizes = [1, 256], strides = [1, 1]} : vector<1x768xf32> to vector<1x256xf32>
    %278 = vector.extract_strided_slice %260 {offsets = [0, 512], sizes = [1, 256], strides = [1, 1]} : vector<1x768xf32> to vector<1x256xf32>
    %c0_96 = arith.constant 0 : index
    %c0_97 = arith.constant 0 : index
    %279 = vector.load %arg9[%c0_96, %c0_97] : memref<1x256xf32, #tpu.memory_space<vmem>>, vector<1x256xf32>
    %280 = arith.addf %278, %279 : vector<1x256xf32>
    %281 = arith.mulf %268, %280 : vector<1x256xf32>
    %282 = arith.addf %277, %281 : vector<1x256xf32>
    %283 = math.tanh %282 : vector<1x256xf32>
    %cst_98 = arith.constant 1.000000e+00 : f32
    %284 = vector.broadcast %cst_98 : f32 to vector<1x256xf32>
    %285 = arith.subf %284, %276 : vector<1x256xf32>
    %286 = arith.mulf %285, %283 : vector<1x256xf32>
    %287 = arith.mulf %276, %218 : vector<1x256xf32>
    %288 = arith.addf %286, %287 : vector<1x256xf32>
    %289 = arith.index_cast %c3_i32_79 : i32 to index
    %c0_99 = arith.constant 0 : index
    %290 = vector.load %arg22[%289, %c0_99] : memref<4x512xf32, #tpu.memory_space<vmem>>, vector<1x256xf32>
    tpu.vector_store %arg22[%289, %c0_99], %255 {strides = array<i32>} : memref<4x512xf32, #tpu.memory_space<vmem>>, vector<1x256xf32>,
    %c3_i32_100 = arith.constant 3 : i32
    %291 = arith.subi %c3_i32_100, %c3_i32_79 : i32
    %292 = arith.index_cast %291 : i32 to index
    %c256_101 = arith.constant 256 : index
    %293 = vector.load %arg22[%292, %c256_101] : memref<4x512xf32, #tpu.memory_space<vmem>>, vector<1x256xf32>
    tpu.vector_store %arg22[%292, %c256_101], %288 {strides = array<i32>} : memref<4x512xf32, #tpu.memory_space<vmem>>, vector<1x256xf32>,
    %c4_i32 = arith.constant 4 : i32
    %c0_102 = arith.constant 0 : index
    %c0_103 = arith.constant 0 : index
    %294 = vector.load %arg22[%c0_102, %c0_103] : memref<4x512xf32, #tpu.memory_space<vmem>>, vector<4x512xf32>
    %cst_104 = arith.constant dense<0.000000e+00> : vector<512xf32>
    %295 = vector.multi_reduction <add>, %294, %cst_104 [0] : vector<4x512xf32> to vector<512xf32>
    %296 = vector.shape_cast %295 : vector<512xf32> to vector<1x512xf32>
    %cst_105 = arith.constant 4.000000e+00 : f32
    %297 = vector.broadcast %cst_105 : f32 to vector<1x512xf32>
    %298 = arith.divf %296, %297 : vector<1x512xf32>
    %c0_106 = arith.constant 0 : index
    %c0_107 = arith.constant 0 : index
    %299 = vector.load %arg10[%c0_106, %c0_107] : memref<512x128xf32, #tpu.memory_space<vmem>>, vector<512x128xf32>
    %cst_108 = arith.constant dense<0.000000e+00> : vector<1x128xf32>
    %300 = tpu.matmul %298, %299, %cst_108 {dimension_numbers = #tpu.dot_dimension_numbers<[1], [0], [0], [1], [0, 0, 1, 1], [], []>} : vector<1x512xf32>, vector<512x128xf32>, vector<1x128xf32> -> vector<1x128xf32>
    %c0_109 = arith.constant 0 : index
    %c0_110 = arith.constant 0 : index
    %301 = vector.load %arg11[%c0_109, %c0_110] : memref<1x128xf32, #tpu.memory_space<vmem>>, vector<1x128xf32>
    %302 = arith.addf %300, %301 : vector<1x128xf32>
    %303 = math.tanh %302 : vector<1x128xf32>
    %c0_111 = arith.constant 0 : index
    %c0_112 = arith.constant 0 : index
    %304 = vector.load %arg12[%c0_111, %c0_112] : memref<512x128xf32, #tpu.memory_space<vmem>>, vector<512x128xf32>
    %cst_113 = arith.constant dense<0.000000e+00> : vector<4x128xf32>
    %305 = tpu.matmul %294, %304, %cst_113 {dimension_numbers = #tpu.dot_dimension_numbers<[1], [0], [0], [1], [0, 0, 1, 1], [], []>} : vector<4x512xf32>, vector<512x128xf32>, vector<4x128xf32> -> vector<4x128xf32>
    %c0_114 = arith.constant 0 : index
    %c0_115 = arith.constant 0 : index
    %306 = vector.load %arg13[%c0_114, %c0_115] : memref<1x128xf32, #tpu.memory_space<vmem>>, vector<1x128xf32>
    %307 = vector.broadcast %306 : vector<1x128xf32> to vector<4x128xf32>
    %308 = arith.addf %305, %307 : vector<4x128xf32>
    %309 = math.tanh %308 : vector<4x128xf32>
    %c0_116 = arith.constant 0 : index
    %c0_117 = arith.constant 0 : index
    %310 = vector.load %arg23[%c0_116, %c0_117] : memref<4x128xf32, #tpu.memory_space<vmem>>, vector<4x128xf32>
    tpu.vector_store %arg23[%c0_116, %c0_117], %309 {strides = array<i32>} : memref<4x128xf32, #tpu.memory_space<vmem>>, vector<4x128xf32>,
    %c0_118 = arith.constant 0 : index
    %c0_119 = arith.constant 0 : index
    %311 = vector.load %arg16[%c0_118, %c0_119] : memref<128x128xf32, #tpu.memory_space<vmem>>, vector<128x128xf32>
    %cst_120 = arith.constant dense<0.000000e+00> : vector<4x128xf32>
    %312 = tpu.matmul %309, %311, %cst_120 {dimension_numbers = #tpu.dot_dimension_numbers<[1], [0], [0], [1], [0, 0, 1, 1], [], []>} : vector<4x128xf32>, vector<128x128xf32>, vector<4x128xf32> -> vector<4x128xf32>
    %c0_121 = arith.constant 0 : index
    %c0_122 = arith.constant 0 : index
    %313 = vector.load %arg24[%c0_121, %c0_122] : memref<4x128xf32, #tpu.memory_space<vmem>>, vector<4x128xf32>
    tpu.vector_store %arg24[%c0_121, %c0_122], %312 {strides = array<i32>} : memref<4x128xf32, #tpu.memory_space<vmem>>, vector<4x128xf32>,
    %c0_123 = arith.constant 0 : index
    %c0_124 = arith.constant 0 : index
    %314 = vector.load %arg14[%c0_123, %c0_124] : memref<1x128xf32, #tpu.memory_space<vmem>>, vector<1x128xf32>
    %315 = vector.broadcast %314 : vector<1x128xf32> to vector<4x128xf32>
    %316 = arith.mulf %309, %315 : vector<4x128xf32>
    %cst_125 = arith.constant dense<0.000000e+00> : vector<4xf32>
    %317 = vector.multi_reduction <add>, %316, %cst_125 [1] : vector<4x128xf32> to vector<4xf32>
    %318 = vector.shape_cast %317 : vector<4xf32> to vector<4x1xf32>
    %c0_126 = arith.constant 0 : index
    %c0_127 = arith.constant 0 : index
    %319 = vector.load %arg15[%c0_126, %c0_127] : memref<128x128xf32, #tpu.memory_space<vmem>>, vector<128x128xf32>
    %cst_128 = arith.constant dense<0.000000e+00> : vector<4x128xf32>
    %320 = tpu.matmul %309, %319, %cst_128 {dimension_numbers = #tpu.dot_dimension_numbers<[1], [0], [0], [1], [0, 0, 1, 1], [], []>} : vector<4x128xf32>, vector<128x128xf32>, vector<4x128xf32> -> vector<4x128xf32>
    %321 = vector.broadcast %303 : vector<1x128xf32> to vector<4x128xf32>
    %322 = arith.mulf %320, %321 : vector<4x128xf32>
    %cst_129 = arith.constant dense<0.000000e+00> : vector<4xf32>
    %323 = vector.multi_reduction <add>, %322, %cst_129 [1] : vector<4x128xf32> to vector<4xf32>
    %324 = vector.shape_cast %323 : vector<4xf32> to vector<4x1xf32>
    %c0_130 = arith.constant 0 : index
    %c0_131 = arith.constant 0 : index
    %325 = vector.load %arg1[%c0_130, %c0_131] : memref<4x128xf32, #tpu.memory_space<vmem>>, vector<4x128xf32>
    %c0_132 = arith.constant 0 : index
    %c0_133 = arith.constant 0 : index
    %326 = vector.load %arg17[%c0_132, %c0_133] : memref<1x128xf32, #tpu.memory_space<vmem>>, vector<1x128xf32>
    %327 = vector.broadcast %326 : vector<1x128xf32> to vector<4x128xf32>
    %328 = arith.mulf %325, %327 : vector<4x128xf32>
    %cst_134 = arith.constant dense<0.000000e+00> : vector<4xf32>
    %329 = vector.multi_reduction <add>, %328, %cst_134 [1] : vector<4x128xf32> to vector<4xf32>
    %330 = vector.shape_cast %329 : vector<4xf32> to vector<4x1xf32>
    %331 = arith.addf %318, %324 : vector<4x1xf32>
    %332 = arith.addf %331, %330 : vector<4x1xf32>
    %c0_135 = arith.constant 0 : index
    %c0_136 = arith.constant 0 : index
    %333 = vector.load %arg18[%c0_135, %c0_136] : memref<1x1xf32, #tpu.memory_space<vmem>>, vector<1x1xf32>
    %334 = vector.broadcast %333 : vector<1x1xf32> to vector<4x1xf32>
    %335 = arith.addf %332, %334 : vector<4x1xf32>
    %c0_137 = arith.constant 0 : index
    %c0_138 = arith.constant 0 : index
    %336 = vector.load %arg25[%c0_137, %c0_138] : memref<4x1xf32, #tpu.memory_space<vmem>>, vector<4x1xf32>
    tpu.vector_store %arg25[%c0_137, %c0_138], %335 {strides = array<i32>} : memref<4x1xf32, #tpu.memory_space<vmem>>, vector<4x1xf32>,
    %337 = tpu.iota {dimensions = array<i32: 1>} : vector<1x128xi32>
    %cst_139 = arith.constant 0.000000e+00 : f32
    %338 = vector.broadcast %cst_139 : f32 to vector<1x128xf32>
    %cst_140 = arith.constant 0.000000e+00 : f32
    %339 = vector.broadcast %cst_140 : f32 to vector<1x128xf32>
    %c0_i32_141 = arith.constant 0 : i32
    %340 = arith.index_cast %c0_i32_141 : i32 to index
    %c0_142 = arith.constant 0 : index
    %341 = vector.load %arg23[%340, %c0_142] : memref<4x128xf32, #tpu.memory_space<vmem>>, vector<1x128xf32>
    %342 = arith.index_cast %c0_i32_141 : i32 to index
    %c0_143 = arith.constant 0 : index
    %343 = vector.load %arg24[%342, %c0_143] : memref<4x128xf32, #tpu.memory_space<vmem>>, vector<1x128xf32>
    %344 = arith.index_cast %c0_i32_141 : i32 to index
    %c0_144 = arith.constant 0 : index
    %345 = vector.load %arg25[%344, %c0_144] : memref<4x1xf32, #tpu.memory_space<vmem>>, vector<1x1xf32>
    %346 = math.tanh %338 : vector<1x128xf32>
    %347 = arith.mulf %343, %346 : vector<1x128xf32>
    %cst_145 = arith.constant dense<0.000000e+00> : vector<1xf32>
    %348 = vector.multi_reduction <add>, %347, %cst_145 [1] : vector<1x128xf32> to vector<1xf32>
    %349 = vector.shape_cast %348 : vector<1xf32> to vector<1x1xf32>
    %cst_146 = arith.constant 0.000000e+00 : f32
    %350 = vector.broadcast %cst_146 : f32 to vector<1x1xf32>
    %351 = arith.subf %350, %349 : vector<1x1xf32>
    %352 = arith.addf %345, %351 : vector<1x1xf32>
    %353 = arith.negf %352 : vector<1x1xf32>
    %354 = math.exp %353 : vector<1x1xf32>
    %cst_147 = arith.constant 1.000000e+00 : f32
    %355 = vector.broadcast %cst_147 : f32 to vector<1x1xf32>
    %356 = arith.addf %355, %354 : vector<1x1xf32>
    %357 = arith.divf %355, %356 : vector<1x1xf32>
    %358 = vector.broadcast %357 : vector<1x1xf32> to vector<1x128xf32>
    %359 = arith.mulf %341, %358 : vector<1x128xf32>
    %360 = arith.addf %338, %359 : vector<1x128xf32>
    %361 = vector.broadcast %c0_i32_141 : i32 to vector<1x128xi32>
    %362 = arith.cmpi eq, %337, %361 : vector<1x128xi32>
    %363 = vector.shape_cast %357 : vector<1x1xf32> to vector<1x1xf32>
    %364 = vector.broadcast %363 : vector<1x1xf32> to vector<1x128xf32>
    %365 = arith.select %362, %364, %339 : vector<1x128xi1>, vector<1x128xf32>
    %c1_i32_148 = arith.constant 1 : i32
    %366 = arith.index_cast %c1_i32_148 : i32 to index
    %c0_149 = arith.constant 0 : index
    %367 = vector.load %arg23[%366, %c0_149] : memref<4x128xf32, #tpu.memory_space<vmem>>, vector<1x128xf32>
    %368 = arith.index_cast %c1_i32_148 : i32 to index
    %c0_150 = arith.constant 0 : index
    %369 = vector.load %arg24[%368, %c0_150] : memref<4x128xf32, #tpu.memory_space<vmem>>, vector<1x128xf32>
    %370 = arith.index_cast %c1_i32_148 : i32 to index
    %c0_151 = arith.constant 0 : index
    %371 = vector.load %arg25[%370, %c0_151] : memref<4x1xf32, #tpu.memory_space<vmem>>, vector<1x1xf32>
    %372 = math.tanh %360 : vector<1x128xf32>
    %373 = arith.mulf %369, %372 : vector<1x128xf32>
    %cst_152 = arith.constant dense<0.000000e+00> : vector<1xf32>
    %374 = vector.multi_reduction <add>, %373, %cst_152 [1] : vector<1x128xf32> to vector<1xf32>
    %375 = vector.shape_cast %374 : vector<1xf32> to vector<1x1xf32>
    %cst_153 = arith.constant 0.000000e+00 : f32
    %376 = vector.broadcast %cst_153 : f32 to vector<1x1xf32>
    %377 = arith.subf %376, %375 : vector<1x1xf32>
    %378 = arith.addf %371, %377 : vector<1x1xf32>
    %379 = arith.negf %378 : vector<1x1xf32>
    %380 = math.exp %379 : vector<1x1xf32>
    %cst_154 = arith.constant 1.000000e+00 : f32
    %381 = vector.broadcast %cst_154 : f32 to vector<1x1xf32>
    %382 = arith.addf %381, %380 : vector<1x1xf32>
    %383 = arith.divf %381, %382 : vector<1x1xf32>
    %384 = vector.broadcast %383 : vector<1x1xf32> to vector<1x128xf32>
    %385 = arith.mulf %367, %384 : vector<1x128xf32>
    %386 = arith.addf %360, %385 : vector<1x128xf32>
    %387 = vector.broadcast %c1_i32_148 : i32 to vector<1x128xi32>
    %388 = arith.cmpi eq, %337, %387 : vector<1x128xi32>
    %389 = vector.shape_cast %383 : vector<1x1xf32> to vector<1x1xf32>
    %390 = vector.broadcast %389 : vector<1x1xf32> to vector<1x128xf32>
    %391 = arith.select %388, %390, %365 : vector<1x128xi1>, vector<1x128xf32>
    %c2_i32_155 = arith.constant 2 : i32
    %392 = arith.index_cast %c2_i32_155 : i32 to index
    %c0_156 = arith.constant 0 : index
    %393 = vector.load %arg23[%392, %c0_156] : memref<4x128xf32, #tpu.memory_space<vmem>>, vector<1x128xf32>
    %394 = arith.index_cast %c2_i32_155 : i32 to index
    %c0_157 = arith.constant 0 : index
    %395 = vector.load %arg24[%394, %c0_157] : memref<4x128xf32, #tpu.memory_space<vmem>>, vector<1x128xf32>
    %396 = arith.index_cast %c2_i32_155 : i32 to index
    %c0_158 = arith.constant 0 : index
    %397 = vector.load %arg25[%396, %c0_158] : memref<4x1xf32, #tpu.memory_space<vmem>>, vector<1x1xf32>
    %398 = math.tanh %386 : vector<1x128xf32>
    %399 = arith.mulf %395, %398 : vector<1x128xf32>
    %cst_159 = arith.constant dense<0.000000e+00> : vector<1xf32>
    %400 = vector.multi_reduction <add>, %399, %cst_159 [1] : vector<1x128xf32> to vector<1xf32>
    %401 = vector.shape_cast %400 : vector<1xf32> to vector<1x1xf32>
    %cst_160 = arith.constant 0.000000e+00 : f32
    %402 = vector.broadcast %cst_160 : f32 to vector<1x1xf32>
    %403 = arith.subf %402, %401 : vector<1x1xf32>
    %404 = arith.addf %397, %403 : vector<1x1xf32>
    %405 = arith.negf %404 : vector<1x1xf32>
    %406 = math.exp %405 : vector<1x1xf32>
    %cst_161 = arith.constant 1.000000e+00 : f32
    %407 = vector.broadcast %cst_161 : f32 to vector<1x1xf32>
    %408 = arith.addf %407, %406 : vector<1x1xf32>
    %409 = arith.divf %407, %408 : vector<1x1xf32>
    %410 = vector.broadcast %409 : vector<1x1xf32> to vector<1x128xf32>
    %411 = arith.mulf %393, %410 : vector<1x128xf32>
    %412 = arith.addf %386, %411 : vector<1x128xf32>
    %413 = vector.broadcast %c2_i32_155 : i32 to vector<1x128xi32>
    %414 = arith.cmpi eq, %337, %413 : vector<1x128xi32>
    %415 = vector.shape_cast %409 : vector<1x1xf32> to vector<1x1xf32>
    %416 = vector.broadcast %415 : vector<1x1xf32> to vector<1x128xf32>
    %417 = arith.select %414, %416, %391 : vector<1x128xi1>, vector<1x128xf32>
    %c3_i32_162 = arith.constant 3 : i32
    %418 = arith.index_cast %c3_i32_162 : i32 to index
    %c0_163 = arith.constant 0 : index
    %419 = vector.load %arg23[%418, %c0_163] : memref<4x128xf32, #tpu.memory_space<vmem>>, vector<1x128xf32>
    %420 = arith.index_cast %c3_i32_162 : i32 to index
    %c0_164 = arith.constant 0 : index
    %421 = vector.load %arg24[%420, %c0_164] : memref<4x128xf32, #tpu.memory_space<vmem>>, vector<1x128xf32>
    %422 = arith.index_cast %c3_i32_162 : i32 to index
    %c0_165 = arith.constant 0 : index
    %423 = vector.load %arg25[%422, %c0_165] : memref<4x1xf32, #tpu.memory_space<vmem>>, vector<1x1xf32>
    %424 = math.tanh %412 : vector<1x128xf32>
    %425 = arith.mulf %421, %424 : vector<1x128xf32>
    %cst_166 = arith.constant dense<0.000000e+00> : vector<1xf32>
    %426 = vector.multi_reduction <add>, %425, %cst_166 [1] : vector<1x128xf32> to vector<1xf32>
    %427 = vector.shape_cast %426 : vector<1xf32> to vector<1x1xf32>
    %cst_167 = arith.constant 0.000000e+00 : f32
    %428 = vector.broadcast %cst_167 : f32 to vector<1x1xf32>
    %429 = arith.subf %428, %427 : vector<1x1xf32>
    %430 = arith.addf %423, %429 : vector<1x1xf32>
    %431 = arith.negf %430 : vector<1x1xf32>
    %432 = math.exp %431 : vector<1x1xf32>
    %cst_168 = arith.constant 1.000000e+00 : f32
    %433 = vector.broadcast %cst_168 : f32 to vector<1x1xf32>
    %434 = arith.addf %433, %432 : vector<1x1xf32>
    %435 = arith.divf %433, %434 : vector<1x1xf32>
    %436 = vector.broadcast %435 : vector<1x1xf32> to vector<1x128xf32>
    %437 = arith.mulf %419, %436 : vector<1x128xf32>
    %438 = arith.addf %412, %437 : vector<1x128xf32>
    %439 = vector.broadcast %c3_i32_162 : i32 to vector<1x128xi32>
    %440 = arith.cmpi eq, %337, %439 : vector<1x128xi32>
    %441 = vector.shape_cast %435 : vector<1x1xf32> to vector<1x1xf32>
    %442 = vector.broadcast %441 : vector<1x1xf32> to vector<1x128xf32>
    %443 = arith.select %440, %442, %417 : vector<1x128xi1>, vector<1x128xf32>
    %c4_i32_169 = arith.constant 4 : i32
    %c0_170 = arith.constant 0 : index
    %c0_171 = arith.constant 0 : index
    %444 = vector.load %arg19[%c0_170, %c0_171] : memref<1x128xf32, #tpu.memory_space<vmem>>, vector<1x128xf32>
    tpu.vector_store %arg19[%c0_170, %c0_171], %443 {strides = array<i32>} : memref<1x128xf32, #tpu.memory_space<vmem>>, vector<1x128xf32>,
    return
  }
}

module attributes {stable_mosaic.version = 11 : i64} {
  func.func @_word_bigru_pool_kernel(%arg0: memref<8x4x384xf32, #tpu.memory_space<vmem>>, %arg1: memref<8x4x384xf32, #tpu.memory_space<vmem>>, %arg2: memref<4x1xf32, #tpu.memory_space<vmem>>, %arg3: memref<128x384xf32, #tpu.memory_space<vmem>>, %arg4: memref<1x128xf32, #tpu.memory_space<vmem>>, %arg5: memref<128x384xf32, #tpu.memory_space<vmem>>, %arg6: memref<1x128xf32, #tpu.memory_space<vmem>>, %arg7: memref<4x256xf32, #tpu.memory_space<vmem>>) attributes {dimension_semantics = [], scalar_prefetch = 0 : i64, scratch_operands = 0 : i64, tpu.core_type = #tpu.core_type<tc>} {
    %c0 = arith.constant 0 : index
    %c0_0 = arith.constant 0 : index
    %0 = vector.load %arg2[%c0, %c0_0] : memref<4x1xf32, #tpu.memory_space<vmem>>, vector<4x1xf32>
    %cst = arith.constant 0.000000e+00 : f32
    %1 = vector.broadcast %cst : f32 to vector<4x128xf32>
    %c0_i32 = arith.constant 0 : i32
    %2 = arith.index_cast %c0_i32 : i32 to index
    %c0_1 = arith.constant 0 : index
    %c0_2 = arith.constant 0 : index
    %3 = vector.load %arg0[%2, %c0_1, %c0_2] : memref<8x4x384xf32, #tpu.memory_space<vmem>>, vector<1x4x384xf32>
    %4 = vector.shape_cast %3 : vector<1x4x384xf32> to vector<4x384xf32>
    %c0_3 = arith.constant 0 : index
    %c0_4 = arith.constant 0 : index
    %5 = vector.load %arg3[%c0_3, %c0_4] : memref<128x384xf32, #tpu.memory_space<vmem>>, vector<128x384xf32>
    %cst_5 = arith.constant dense<0.000000e+00> : vector<4x384xf32>
    %6 = tpu.matmul %1, %5, %cst_5 {dimension_numbers = #tpu.dot_dimension_numbers<[1], [0], [0], [1], [0, 0, 1, 1], [], []>} : vector<4x128xf32>, vector<128x384xf32>, vector<4x384xf32> -> vector<4x384xf32>
    %7 = vector.extract_strided_slice %4 {offsets = [0, 0], sizes = [4, 128], strides = [1, 1]} : vector<4x384xf32> to vector<4x128xf32>
    %8 = vector.extract_strided_slice %6 {offsets = [0, 0], sizes = [4, 128], strides = [1, 1]} : vector<4x384xf32> to vector<4x128xf32>
    %9 = arith.addf %7, %8 : vector<4x128xf32>
    %10 = arith.negf %9 : vector<4x128xf32>
    %11 = math.exp %10 : vector<4x128xf32>
    %cst_6 = arith.constant 1.000000e+00 : f32
    %12 = vector.broadcast %cst_6 : f32 to vector<4x128xf32>
    %13 = arith.addf %12, %11 : vector<4x128xf32>
    %14 = arith.divf %12, %13 : vector<4x128xf32>
    %15 = vector.extract_strided_slice %4 {offsets = [0, 128], sizes = [4, 128], strides = [1, 1]} : vector<4x384xf32> to vector<4x128xf32>
    %16 = vector.extract_strided_slice %6 {offsets = [0, 128], sizes = [4, 128], strides = [1, 1]} : vector<4x384xf32> to vector<4x128xf32>
    %17 = arith.addf %15, %16 : vector<4x128xf32>
    %18 = arith.negf %17 : vector<4x128xf32>
    %19 = math.exp %18 : vector<4x128xf32>
    %cst_7 = arith.constant 1.000000e+00 : f32
    %20 = vector.broadcast %cst_7 : f32 to vector<4x128xf32>
    %21 = arith.addf %20, %19 : vector<4x128xf32>
    %22 = arith.divf %20, %21 : vector<4x128xf32>
    %23 = vector.extract_strided_slice %4 {offsets = [0, 256], sizes = [4, 128], strides = [1, 1]} : vector<4x384xf32> to vector<4x128xf32>
    %24 = vector.extract_strided_slice %6 {offsets = [0, 256], sizes = [4, 128], strides = [1, 1]} : vector<4x384xf32> to vector<4x128xf32>
    %c0_8 = arith.constant 0 : index
    %c0_9 = arith.constant 0 : index
    %25 = vector.load %arg4[%c0_8, %c0_9] : memref<1x128xf32, #tpu.memory_space<vmem>>, vector<1x128xf32>
    %26 = vector.broadcast %25 : vector<1x128xf32> to vector<4x128xf32>
    %27 = arith.addf %24, %26 : vector<4x128xf32>
    %28 = arith.mulf %14, %27 : vector<4x128xf32>
    %29 = arith.addf %23, %28 : vector<4x128xf32>
    %30 = math.tanh %29 : vector<4x128xf32>
    %cst_10 = arith.constant 1.000000e+00 : f32
    %31 = vector.broadcast %cst_10 : f32 to vector<4x128xf32>
    %32 = arith.subf %31, %22 : vector<4x128xf32>
    %33 = arith.mulf %32, %30 : vector<4x128xf32>
    %34 = arith.mulf %22, %1 : vector<4x128xf32>
    %35 = arith.addf %33, %34 : vector<4x128xf32>
    %c7_i32 = arith.constant 7 : i32
    %36 = arith.subi %c7_i32, %c0_i32 : i32
    %37 = arith.index_cast %36 : i32 to index
    %c0_11 = arith.constant 0 : index
    %c0_12 = arith.constant 0 : index
    %38 = vector.load %arg1[%37, %c0_11, %c0_12] : memref<8x4x384xf32, #tpu.memory_space<vmem>>, vector<1x4x384xf32>
    %39 = vector.shape_cast %38 : vector<1x4x384xf32> to vector<4x384xf32>
    %c0_13 = arith.constant 0 : index
    %c0_14 = arith.constant 0 : index
    %40 = vector.load %arg5[%c0_13, %c0_14] : memref<128x384xf32, #tpu.memory_space<vmem>>, vector<128x384xf32>
    %cst_15 = arith.constant dense<0.000000e+00> : vector<4x384xf32>
    %41 = tpu.matmul %1, %40, %cst_15 {dimension_numbers = #tpu.dot_dimension_numbers<[1], [0], [0], [1], [0, 0, 1, 1], [], []>} : vector<4x128xf32>, vector<128x384xf32>, vector<4x384xf32> -> vector<4x384xf32>
    %42 = vector.extract_strided_slice %39 {offsets = [0, 0], sizes = [4, 128], strides = [1, 1]} : vector<4x384xf32> to vector<4x128xf32>
    %43 = vector.extract_strided_slice %41 {offsets = [0, 0], sizes = [4, 128], strides = [1, 1]} : vector<4x384xf32> to vector<4x128xf32>
    %44 = arith.addf %42, %43 : vector<4x128xf32>
    %45 = arith.negf %44 : vector<4x128xf32>
    %46 = math.exp %45 : vector<4x128xf32>
    %cst_16 = arith.constant 1.000000e+00 : f32
    %47 = vector.broadcast %cst_16 : f32 to vector<4x128xf32>
    %48 = arith.addf %47, %46 : vector<4x128xf32>
    %49 = arith.divf %47, %48 : vector<4x128xf32>
    %50 = vector.extract_strided_slice %39 {offsets = [0, 128], sizes = [4, 128], strides = [1, 1]} : vector<4x384xf32> to vector<4x128xf32>
    %51 = vector.extract_strided_slice %41 {offsets = [0, 128], sizes = [4, 128], strides = [1, 1]} : vector<4x384xf32> to vector<4x128xf32>
    %52 = arith.addf %50, %51 : vector<4x128xf32>
    %53 = arith.negf %52 : vector<4x128xf32>
    %54 = math.exp %53 : vector<4x128xf32>
    %cst_17 = arith.constant 1.000000e+00 : f32
    %55 = vector.broadcast %cst_17 : f32 to vector<4x128xf32>
    %56 = arith.addf %55, %54 : vector<4x128xf32>
    %57 = arith.divf %55, %56 : vector<4x128xf32>
    %58 = vector.extract_strided_slice %39 {offsets = [0, 256], sizes = [4, 128], strides = [1, 1]} : vector<4x384xf32> to vector<4x128xf32>
    %59 = vector.extract_strided_slice %41 {offsets = [0, 256], sizes = [4, 128], strides = [1, 1]} : vector<4x384xf32> to vector<4x128xf32>
    %c0_18 = arith.constant 0 : index
    %c0_19 = arith.constant 0 : index
    %60 = vector.load %arg6[%c0_18, %c0_19] : memref<1x128xf32, #tpu.memory_space<vmem>>, vector<1x128xf32>
    %61 = vector.broadcast %60 : vector<1x128xf32> to vector<4x128xf32>
    %62 = arith.addf %59, %61 : vector<4x128xf32>
    %63 = arith.mulf %49, %62 : vector<4x128xf32>
    %64 = arith.addf %58, %63 : vector<4x128xf32>
    %65 = math.tanh %64 : vector<4x128xf32>
    %cst_20 = arith.constant 1.000000e+00 : f32
    %66 = vector.broadcast %cst_20 : f32 to vector<4x128xf32>
    %67 = arith.subf %66, %57 : vector<4x128xf32>
    %68 = arith.mulf %67, %65 : vector<4x128xf32>
    %69 = arith.mulf %57, %1 : vector<4x128xf32>
    %70 = arith.addf %68, %69 : vector<4x128xf32>
    %71 = arith.sitofp %c0_i32 : i32 to f32
    %72 = vector.broadcast %71 : f32 to vector<4x1xf32>
    %73 = arith.cmpf olt, %72, %0 : vector<4x1xf32>
    %cst_21 = arith.constant 0.000000e+00 : f32
    %74 = vector.shape_cast %73 : vector<4x1xi1> to vector<4x1xi1>
    %75 = vector.broadcast %74 : vector<4x1xi1> to vector<4x128xi1>
    %76 = vector.broadcast %cst_21 : f32 to vector<4x128xf32>
    %77 = arith.select %75, %35, %76 : vector<4x128xi1>, vector<4x128xf32>
    %78 = arith.addf %1, %77 : vector<4x128xf32>
    %cst_22 = arith.constant 7.000000e+00 : f32
    %79 = arith.subf %cst_22, %71 : f32
    %80 = vector.broadcast %79 : f32 to vector<4x1xf32>
    %81 = arith.cmpf olt, %80, %0 : vector<4x1xf32>
    %cst_23 = arith.constant 0.000000e+00 : f32
    %82 = vector.shape_cast %81 : vector<4x1xi1> to vector<4x1xi1>
    %83 = vector.broadcast %82 : vector<4x1xi1> to vector<4x128xi1>
    %84 = vector.broadcast %cst_23 : f32 to vector<4x128xf32>
    %85 = arith.select %83, %70, %84 : vector<4x128xi1>, vector<4x128xf32>
    %86 = arith.addf %1, %85 : vector<4x128xf32>
    %c1_i32 = arith.constant 1 : i32
    %87 = arith.index_cast %c1_i32 : i32 to index
    %c0_24 = arith.constant 0 : index
    %c0_25 = arith.constant 0 : index
    %88 = vector.load %arg0[%87, %c0_24, %c0_25] : memref<8x4x384xf32, #tpu.memory_space<vmem>>, vector<1x4x384xf32>
    %89 = vector.shape_cast %88 : vector<1x4x384xf32> to vector<4x384xf32>
    %c0_26 = arith.constant 0 : index
    %c0_27 = arith.constant 0 : index
    %90 = vector.load %arg3[%c0_26, %c0_27] : memref<128x384xf32, #tpu.memory_space<vmem>>, vector<128x384xf32>
    %cst_28 = arith.constant dense<0.000000e+00> : vector<4x384xf32>
    %91 = tpu.matmul %35, %90, %cst_28 {dimension_numbers = #tpu.dot_dimension_numbers<[1], [0], [0], [1], [0, 0, 1, 1], [], []>} : vector<4x128xf32>, vector<128x384xf32>, vector<4x384xf32> -> vector<4x384xf32>
    %92 = vector.extract_strided_slice %89 {offsets = [0, 0], sizes = [4, 128], strides = [1, 1]} : vector<4x384xf32> to vector<4x128xf32>
    %93 = vector.extract_strided_slice %91 {offsets = [0, 0], sizes = [4, 128], strides = [1, 1]} : vector<4x384xf32> to vector<4x128xf32>
    %94 = arith.addf %92, %93 : vector<4x128xf32>
    %95 = arith.negf %94 : vector<4x128xf32>
    %96 = math.exp %95 : vector<4x128xf32>
    %cst_29 = arith.constant 1.000000e+00 : f32
    %97 = vector.broadcast %cst_29 : f32 to vector<4x128xf32>
    %98 = arith.addf %97, %96 : vector<4x128xf32>
    %99 = arith.divf %97, %98 : vector<4x128xf32>
    %100 = vector.extract_strided_slice %89 {offsets = [0, 128], sizes = [4, 128], strides = [1, 1]} : vector<4x384xf32> to vector<4x128xf32>
    %101 = vector.extract_strided_slice %91 {offsets = [0, 128], sizes = [4, 128], strides = [1, 1]} : vector<4x384xf32> to vector<4x128xf32>
    %102 = arith.addf %100, %101 : vector<4x128xf32>
    %103 = arith.negf %102 : vector<4x128xf32>
    %104 = math.exp %103 : vector<4x128xf32>
    %cst_30 = arith.constant 1.000000e+00 : f32
    %105 = vector.broadcast %cst_30 : f32 to vector<4x128xf32>
    %106 = arith.addf %105, %104 : vector<4x128xf32>
    %107 = arith.divf %105, %106 : vector<4x128xf32>
    %108 = vector.extract_strided_slice %89 {offsets = [0, 256], sizes = [4, 128], strides = [1, 1]} : vector<4x384xf32> to vector<4x128xf32>
    %109 = vector.extract_strided_slice %91 {offsets = [0, 256], sizes = [4, 128], strides = [1, 1]} : vector<4x384xf32> to vector<4x128xf32>
    %c0_31 = arith.constant 0 : index
    %c0_32 = arith.constant 0 : index
    %110 = vector.load %arg4[%c0_31, %c0_32] : memref<1x128xf32, #tpu.memory_space<vmem>>, vector<1x128xf32>
    %111 = vector.broadcast %110 : vector<1x128xf32> to vector<4x128xf32>
    %112 = arith.addf %109, %111 : vector<4x128xf32>
    %113 = arith.mulf %99, %112 : vector<4x128xf32>
    %114 = arith.addf %108, %113 : vector<4x128xf32>
    %115 = math.tanh %114 : vector<4x128xf32>
    %cst_33 = arith.constant 1.000000e+00 : f32
    %116 = vector.broadcast %cst_33 : f32 to vector<4x128xf32>
    %117 = arith.subf %116, %107 : vector<4x128xf32>
    %118 = arith.mulf %117, %115 : vector<4x128xf32>
    %119 = arith.mulf %107, %35 : vector<4x128xf32>
    %120 = arith.addf %118, %119 : vector<4x128xf32>
    %c7_i32_34 = arith.constant 7 : i32
    %121 = arith.subi %c7_i32_34, %c1_i32 : i32
    %122 = arith.index_cast %121 : i32 to index
    %c0_35 = arith.constant 0 : index
    %c0_36 = arith.constant 0 : index
    %123 = vector.load %arg1[%122, %c0_35, %c0_36] : memref<8x4x384xf32, #tpu.memory_space<vmem>>, vector<1x4x384xf32>
    %124 = vector.shape_cast %123 : vector<1x4x384xf32> to vector<4x384xf32>
    %c0_37 = arith.constant 0 : index
    %c0_38 = arith.constant 0 : index
    %125 = vector.load %arg5[%c0_37, %c0_38] : memref<128x384xf32, #tpu.memory_space<vmem>>, vector<128x384xf32>
    %cst_39 = arith.constant dense<0.000000e+00> : vector<4x384xf32>
    %126 = tpu.matmul %70, %125, %cst_39 {dimension_numbers = #tpu.dot_dimension_numbers<[1], [0], [0], [1], [0, 0, 1, 1], [], []>} : vector<4x128xf32>, vector<128x384xf32>, vector<4x384xf32> -> vector<4x384xf32>
    %127 = vector.extract_strided_slice %124 {offsets = [0, 0], sizes = [4, 128], strides = [1, 1]} : vector<4x384xf32> to vector<4x128xf32>
    %128 = vector.extract_strided_slice %126 {offsets = [0, 0], sizes = [4, 128], strides = [1, 1]} : vector<4x384xf32> to vector<4x128xf32>
    %129 = arith.addf %127, %128 : vector<4x128xf32>
    %130 = arith.negf %129 : vector<4x128xf32>
    %131 = math.exp %130 : vector<4x128xf32>
    %cst_40 = arith.constant 1.000000e+00 : f32
    %132 = vector.broadcast %cst_40 : f32 to vector<4x128xf32>
    %133 = arith.addf %132, %131 : vector<4x128xf32>
    %134 = arith.divf %132, %133 : vector<4x128xf32>
    %135 = vector.extract_strided_slice %124 {offsets = [0, 128], sizes = [4, 128], strides = [1, 1]} : vector<4x384xf32> to vector<4x128xf32>
    %136 = vector.extract_strided_slice %126 {offsets = [0, 128], sizes = [4, 128], strides = [1, 1]} : vector<4x384xf32> to vector<4x128xf32>
    %137 = arith.addf %135, %136 : vector<4x128xf32>
    %138 = arith.negf %137 : vector<4x128xf32>
    %139 = math.exp %138 : vector<4x128xf32>
    %cst_41 = arith.constant 1.000000e+00 : f32
    %140 = vector.broadcast %cst_41 : f32 to vector<4x128xf32>
    %141 = arith.addf %140, %139 : vector<4x128xf32>
    %142 = arith.divf %140, %141 : vector<4x128xf32>
    %143 = vector.extract_strided_slice %124 {offsets = [0, 256], sizes = [4, 128], strides = [1, 1]} : vector<4x384xf32> to vector<4x128xf32>
    %144 = vector.extract_strided_slice %126 {offsets = [0, 256], sizes = [4, 128], strides = [1, 1]} : vector<4x384xf32> to vector<4x128xf32>
    %c0_42 = arith.constant 0 : index
    %c0_43 = arith.constant 0 : index
    %145 = vector.load %arg6[%c0_42, %c0_43] : memref<1x128xf32, #tpu.memory_space<vmem>>, vector<1x128xf32>
    %146 = vector.broadcast %145 : vector<1x128xf32> to vector<4x128xf32>
    %147 = arith.addf %144, %146 : vector<4x128xf32>
    %148 = arith.mulf %134, %147 : vector<4x128xf32>
    %149 = arith.addf %143, %148 : vector<4x128xf32>
    %150 = math.tanh %149 : vector<4x128xf32>
    %cst_44 = arith.constant 1.000000e+00 : f32
    %151 = vector.broadcast %cst_44 : f32 to vector<4x128xf32>
    %152 = arith.subf %151, %142 : vector<4x128xf32>
    %153 = arith.mulf %152, %150 : vector<4x128xf32>
    %154 = arith.mulf %142, %70 : vector<4x128xf32>
    %155 = arith.addf %153, %154 : vector<4x128xf32>
    %156 = arith.sitofp %c1_i32 : i32 to f32
    %157 = vector.broadcast %156 : f32 to vector<4x1xf32>
    %158 = arith.cmpf olt, %157, %0 : vector<4x1xf32>
    %cst_45 = arith.constant 0.000000e+00 : f32
    %159 = vector.shape_cast %158 : vector<4x1xi1> to vector<4x1xi1>
    %160 = vector.broadcast %159 : vector<4x1xi1> to vector<4x128xi1>
    %161 = vector.broadcast %cst_45 : f32 to vector<4x128xf32>
    %162 = arith.select %160, %120, %161 : vector<4x128xi1>, vector<4x128xf32>
    %163 = arith.addf %78, %162 : vector<4x128xf32>
    %cst_46 = arith.constant 7.000000e+00 : f32
    %164 = arith.subf %cst_46, %156 : f32
    %165 = vector.broadcast %164 : f32 to vector<4x1xf32>
    %166 = arith.cmpf olt, %165, %0 : vector<4x1xf32>
    %cst_47 = arith.constant 0.000000e+00 : f32
    %167 = vector.shape_cast %166 : vector<4x1xi1> to vector<4x1xi1>
    %168 = vector.broadcast %167 : vector<4x1xi1> to vector<4x128xi1>
    %169 = vector.broadcast %cst_47 : f32 to vector<4x128xf32>
    %170 = arith.select %168, %155, %169 : vector<4x128xi1>, vector<4x128xf32>
    %171 = arith.addf %86, %170 : vector<4x128xf32>
    %c2_i32 = arith.constant 2 : i32
    %172 = arith.index_cast %c2_i32 : i32 to index
    %c0_48 = arith.constant 0 : index
    %c0_49 = arith.constant 0 : index
    %173 = vector.load %arg0[%172, %c0_48, %c0_49] : memref<8x4x384xf32, #tpu.memory_space<vmem>>, vector<1x4x384xf32>
    %174 = vector.shape_cast %173 : vector<1x4x384xf32> to vector<4x384xf32>
    %c0_50 = arith.constant 0 : index
    %c0_51 = arith.constant 0 : index
    %175 = vector.load %arg3[%c0_50, %c0_51] : memref<128x384xf32, #tpu.memory_space<vmem>>, vector<128x384xf32>
    %cst_52 = arith.constant dense<0.000000e+00> : vector<4x384xf32>
    %176 = tpu.matmul %120, %175, %cst_52 {dimension_numbers = #tpu.dot_dimension_numbers<[1], [0], [0], [1], [0, 0, 1, 1], [], []>} : vector<4x128xf32>, vector<128x384xf32>, vector<4x384xf32> -> vector<4x384xf32>
    %177 = vector.extract_strided_slice %174 {offsets = [0, 0], sizes = [4, 128], strides = [1, 1]} : vector<4x384xf32> to vector<4x128xf32>
    %178 = vector.extract_strided_slice %176 {offsets = [0, 0], sizes = [4, 128], strides = [1, 1]} : vector<4x384xf32> to vector<4x128xf32>
    %179 = arith.addf %177, %178 : vector<4x128xf32>
    %180 = arith.negf %179 : vector<4x128xf32>
    %181 = math.exp %180 : vector<4x128xf32>
    %cst_53 = arith.constant 1.000000e+00 : f32
    %182 = vector.broadcast %cst_53 : f32 to vector<4x128xf32>
    %183 = arith.addf %182, %181 : vector<4x128xf32>
    %184 = arith.divf %182, %183 : vector<4x128xf32>
    %185 = vector.extract_strided_slice %174 {offsets = [0, 128], sizes = [4, 128], strides = [1, 1]} : vector<4x384xf32> to vector<4x128xf32>
    %186 = vector.extract_strided_slice %176 {offsets = [0, 128], sizes = [4, 128], strides = [1, 1]} : vector<4x384xf32> to vector<4x128xf32>
    %187 = arith.addf %185, %186 : vector<4x128xf32>
    %188 = arith.negf %187 : vector<4x128xf32>
    %189 = math.exp %188 : vector<4x128xf32>
    %cst_54 = arith.constant 1.000000e+00 : f32
    %190 = vector.broadcast %cst_54 : f32 to vector<4x128xf32>
    %191 = arith.addf %190, %189 : vector<4x128xf32>
    %192 = arith.divf %190, %191 : vector<4x128xf32>
    %193 = vector.extract_strided_slice %174 {offsets = [0, 256], sizes = [4, 128], strides = [1, 1]} : vector<4x384xf32> to vector<4x128xf32>
    %194 = vector.extract_strided_slice %176 {offsets = [0, 256], sizes = [4, 128], strides = [1, 1]} : vector<4x384xf32> to vector<4x128xf32>
    %c0_55 = arith.constant 0 : index
    %c0_56 = arith.constant 0 : index
    %195 = vector.load %arg4[%c0_55, %c0_56] : memref<1x128xf32, #tpu.memory_space<vmem>>, vector<1x128xf32>
    %196 = vector.broadcast %195 : vector<1x128xf32> to vector<4x128xf32>
    %197 = arith.addf %194, %196 : vector<4x128xf32>
    %198 = arith.mulf %184, %197 : vector<4x128xf32>
    %199 = arith.addf %193, %198 : vector<4x128xf32>
    %200 = math.tanh %199 : vector<4x128xf32>
    %cst_57 = arith.constant 1.000000e+00 : f32
    %201 = vector.broadcast %cst_57 : f32 to vector<4x128xf32>
    %202 = arith.subf %201, %192 : vector<4x128xf32>
    %203 = arith.mulf %202, %200 : vector<4x128xf32>
    %204 = arith.mulf %192, %120 : vector<4x128xf32>
    %205 = arith.addf %203, %204 : vector<4x128xf32>
    %c7_i32_58 = arith.constant 7 : i32
    %206 = arith.subi %c7_i32_58, %c2_i32 : i32
    %207 = arith.index_cast %206 : i32 to index
    %c0_59 = arith.constant 0 : index
    %c0_60 = arith.constant 0 : index
    %208 = vector.load %arg1[%207, %c0_59, %c0_60] : memref<8x4x384xf32, #tpu.memory_space<vmem>>, vector<1x4x384xf32>
    %209 = vector.shape_cast %208 : vector<1x4x384xf32> to vector<4x384xf32>
    %c0_61 = arith.constant 0 : index
    %c0_62 = arith.constant 0 : index
    %210 = vector.load %arg5[%c0_61, %c0_62] : memref<128x384xf32, #tpu.memory_space<vmem>>, vector<128x384xf32>
    %cst_63 = arith.constant dense<0.000000e+00> : vector<4x384xf32>
    %211 = tpu.matmul %155, %210, %cst_63 {dimension_numbers = #tpu.dot_dimension_numbers<[1], [0], [0], [1], [0, 0, 1, 1], [], []>} : vector<4x128xf32>, vector<128x384xf32>, vector<4x384xf32> -> vector<4x384xf32>
    %212 = vector.extract_strided_slice %209 {offsets = [0, 0], sizes = [4, 128], strides = [1, 1]} : vector<4x384xf32> to vector<4x128xf32>
    %213 = vector.extract_strided_slice %211 {offsets = [0, 0], sizes = [4, 128], strides = [1, 1]} : vector<4x384xf32> to vector<4x128xf32>
    %214 = arith.addf %212, %213 : vector<4x128xf32>
    %215 = arith.negf %214 : vector<4x128xf32>
    %216 = math.exp %215 : vector<4x128xf32>
    %cst_64 = arith.constant 1.000000e+00 : f32
    %217 = vector.broadcast %cst_64 : f32 to vector<4x128xf32>
    %218 = arith.addf %217, %216 : vector<4x128xf32>
    %219 = arith.divf %217, %218 : vector<4x128xf32>
    %220 = vector.extract_strided_slice %209 {offsets = [0, 128], sizes = [4, 128], strides = [1, 1]} : vector<4x384xf32> to vector<4x128xf32>
    %221 = vector.extract_strided_slice %211 {offsets = [0, 128], sizes = [4, 128], strides = [1, 1]} : vector<4x384xf32> to vector<4x128xf32>
    %222 = arith.addf %220, %221 : vector<4x128xf32>
    %223 = arith.negf %222 : vector<4x128xf32>
    %224 = math.exp %223 : vector<4x128xf32>
    %cst_65 = arith.constant 1.000000e+00 : f32
    %225 = vector.broadcast %cst_65 : f32 to vector<4x128xf32>
    %226 = arith.addf %225, %224 : vector<4x128xf32>
    %227 = arith.divf %225, %226 : vector<4x128xf32>
    %228 = vector.extract_strided_slice %209 {offsets = [0, 256], sizes = [4, 128], strides = [1, 1]} : vector<4x384xf32> to vector<4x128xf32>
    %229 = vector.extract_strided_slice %211 {offsets = [0, 256], sizes = [4, 128], strides = [1, 1]} : vector<4x384xf32> to vector<4x128xf32>
    %c0_66 = arith.constant 0 : index
    %c0_67 = arith.constant 0 : index
    %230 = vector.load %arg6[%c0_66, %c0_67] : memref<1x128xf32, #tpu.memory_space<vmem>>, vector<1x128xf32>
    %231 = vector.broadcast %230 : vector<1x128xf32> to vector<4x128xf32>
    %232 = arith.addf %229, %231 : vector<4x128xf32>
    %233 = arith.mulf %219, %232 : vector<4x128xf32>
    %234 = arith.addf %228, %233 : vector<4x128xf32>
    %235 = math.tanh %234 : vector<4x128xf32>
    %cst_68 = arith.constant 1.000000e+00 : f32
    %236 = vector.broadcast %cst_68 : f32 to vector<4x128xf32>
    %237 = arith.subf %236, %227 : vector<4x128xf32>
    %238 = arith.mulf %237, %235 : vector<4x128xf32>
    %239 = arith.mulf %227, %155 : vector<4x128xf32>
    %240 = arith.addf %238, %239 : vector<4x128xf32>
    %241 = arith.sitofp %c2_i32 : i32 to f32
    %242 = vector.broadcast %241 : f32 to vector<4x1xf32>
    %243 = arith.cmpf olt, %242, %0 : vector<4x1xf32>
    %cst_69 = arith.constant 0.000000e+00 : f32
    %244 = vector.shape_cast %243 : vector<4x1xi1> to vector<4x1xi1>
    %245 = vector.broadcast %244 : vector<4x1xi1> to vector<4x128xi1>
    %246 = vector.broadcast %cst_69 : f32 to vector<4x128xf32>
    %247 = arith.select %245, %205, %246 : vector<4x128xi1>, vector<4x128xf32>
    %248 = arith.addf %163, %247 : vector<4x128xf32>
    %cst_70 = arith.constant 7.000000e+00 : f32
    %249 = arith.subf %cst_70, %241 : f32
    %250 = vector.broadcast %249 : f32 to vector<4x1xf32>
    %251 = arith.cmpf olt, %250, %0 : vector<4x1xf32>
    %cst_71 = arith.constant 0.000000e+00 : f32
    %252 = vector.shape_cast %251 : vector<4x1xi1> to vector<4x1xi1>
    %253 = vector.broadcast %252 : vector<4x1xi1> to vector<4x128xi1>
    %254 = vector.broadcast %cst_71 : f32 to vector<4x128xf32>
    %255 = arith.select %253, %240, %254 : vector<4x128xi1>, vector<4x128xf32>
    %256 = arith.addf %171, %255 : vector<4x128xf32>
    %c3_i32 = arith.constant 3 : i32
    %257 = arith.index_cast %c3_i32 : i32 to index
    %c0_72 = arith.constant 0 : index
    %c0_73 = arith.constant 0 : index
    %258 = vector.load %arg0[%257, %c0_72, %c0_73] : memref<8x4x384xf32, #tpu.memory_space<vmem>>, vector<1x4x384xf32>
    %259 = vector.shape_cast %258 : vector<1x4x384xf32> to vector<4x384xf32>
    %c0_74 = arith.constant 0 : index
    %c0_75 = arith.constant 0 : index
    %260 = vector.load %arg3[%c0_74, %c0_75] : memref<128x384xf32, #tpu.memory_space<vmem>>, vector<128x384xf32>
    %cst_76 = arith.constant dense<0.000000e+00> : vector<4x384xf32>
    %261 = tpu.matmul %205, %260, %cst_76 {dimension_numbers = #tpu.dot_dimension_numbers<[1], [0], [0], [1], [0, 0, 1, 1], [], []>} : vector<4x128xf32>, vector<128x384xf32>, vector<4x384xf32> -> vector<4x384xf32>
    %262 = vector.extract_strided_slice %259 {offsets = [0, 0], sizes = [4, 128], strides = [1, 1]} : vector<4x384xf32> to vector<4x128xf32>
    %263 = vector.extract_strided_slice %261 {offsets = [0, 0], sizes = [4, 128], strides = [1, 1]} : vector<4x384xf32> to vector<4x128xf32>
    %264 = arith.addf %262, %263 : vector<4x128xf32>
    %265 = arith.negf %264 : vector<4x128xf32>
    %266 = math.exp %265 : vector<4x128xf32>
    %cst_77 = arith.constant 1.000000e+00 : f32
    %267 = vector.broadcast %cst_77 : f32 to vector<4x128xf32>
    %268 = arith.addf %267, %266 : vector<4x128xf32>
    %269 = arith.divf %267, %268 : vector<4x128xf32>
    %270 = vector.extract_strided_slice %259 {offsets = [0, 128], sizes = [4, 128], strides = [1, 1]} : vector<4x384xf32> to vector<4x128xf32>
    %271 = vector.extract_strided_slice %261 {offsets = [0, 128], sizes = [4, 128], strides = [1, 1]} : vector<4x384xf32> to vector<4x128xf32>
    %272 = arith.addf %270, %271 : vector<4x128xf32>
    %273 = arith.negf %272 : vector<4x128xf32>
    %274 = math.exp %273 : vector<4x128xf32>
    %cst_78 = arith.constant 1.000000e+00 : f32
    %275 = vector.broadcast %cst_78 : f32 to vector<4x128xf32>
    %276 = arith.addf %275, %274 : vector<4x128xf32>
    %277 = arith.divf %275, %276 : vector<4x128xf32>
    %278 = vector.extract_strided_slice %259 {offsets = [0, 256], sizes = [4, 128], strides = [1, 1]} : vector<4x384xf32> to vector<4x128xf32>
    %279 = vector.extract_strided_slice %261 {offsets = [0, 256], sizes = [4, 128], strides = [1, 1]} : vector<4x384xf32> to vector<4x128xf32>
    %c0_79 = arith.constant 0 : index
    %c0_80 = arith.constant 0 : index
    %280 = vector.load %arg4[%c0_79, %c0_80] : memref<1x128xf32, #tpu.memory_space<vmem>>, vector<1x128xf32>
    %281 = vector.broadcast %280 : vector<1x128xf32> to vector<4x128xf32>
    %282 = arith.addf %279, %281 : vector<4x128xf32>
    %283 = arith.mulf %269, %282 : vector<4x128xf32>
    %284 = arith.addf %278, %283 : vector<4x128xf32>
    %285 = math.tanh %284 : vector<4x128xf32>
    %cst_81 = arith.constant 1.000000e+00 : f32
    %286 = vector.broadcast %cst_81 : f32 to vector<4x128xf32>
    %287 = arith.subf %286, %277 : vector<4x128xf32>
    %288 = arith.mulf %287, %285 : vector<4x128xf32>
    %289 = arith.mulf %277, %205 : vector<4x128xf32>
    %290 = arith.addf %288, %289 : vector<4x128xf32>
    %c7_i32_82 = arith.constant 7 : i32
    %291 = arith.subi %c7_i32_82, %c3_i32 : i32
    %292 = arith.index_cast %291 : i32 to index
    %c0_83 = arith.constant 0 : index
    %c0_84 = arith.constant 0 : index
    %293 = vector.load %arg1[%292, %c0_83, %c0_84] : memref<8x4x384xf32, #tpu.memory_space<vmem>>, vector<1x4x384xf32>
    %294 = vector.shape_cast %293 : vector<1x4x384xf32> to vector<4x384xf32>
    %c0_85 = arith.constant 0 : index
    %c0_86 = arith.constant 0 : index
    %295 = vector.load %arg5[%c0_85, %c0_86] : memref<128x384xf32, #tpu.memory_space<vmem>>, vector<128x384xf32>
    %cst_87 = arith.constant dense<0.000000e+00> : vector<4x384xf32>
    %296 = tpu.matmul %240, %295, %cst_87 {dimension_numbers = #tpu.dot_dimension_numbers<[1], [0], [0], [1], [0, 0, 1, 1], [], []>} : vector<4x128xf32>, vector<128x384xf32>, vector<4x384xf32> -> vector<4x384xf32>
    %297 = vector.extract_strided_slice %294 {offsets = [0, 0], sizes = [4, 128], strides = [1, 1]} : vector<4x384xf32> to vector<4x128xf32>
    %298 = vector.extract_strided_slice %296 {offsets = [0, 0], sizes = [4, 128], strides = [1, 1]} : vector<4x384xf32> to vector<4x128xf32>
    %299 = arith.addf %297, %298 : vector<4x128xf32>
    %300 = arith.negf %299 : vector<4x128xf32>
    %301 = math.exp %300 : vector<4x128xf32>
    %cst_88 = arith.constant 1.000000e+00 : f32
    %302 = vector.broadcast %cst_88 : f32 to vector<4x128xf32>
    %303 = arith.addf %302, %301 : vector<4x128xf32>
    %304 = arith.divf %302, %303 : vector<4x128xf32>
    %305 = vector.extract_strided_slice %294 {offsets = [0, 128], sizes = [4, 128], strides = [1, 1]} : vector<4x384xf32> to vector<4x128xf32>
    %306 = vector.extract_strided_slice %296 {offsets = [0, 128], sizes = [4, 128], strides = [1, 1]} : vector<4x384xf32> to vector<4x128xf32>
    %307 = arith.addf %305, %306 : vector<4x128xf32>
    %308 = arith.negf %307 : vector<4x128xf32>
    %309 = math.exp %308 : vector<4x128xf32>
    %cst_89 = arith.constant 1.000000e+00 : f32
    %310 = vector.broadcast %cst_89 : f32 to vector<4x128xf32>
    %311 = arith.addf %310, %309 : vector<4x128xf32>
    %312 = arith.divf %310, %311 : vector<4x128xf32>
    %313 = vector.extract_strided_slice %294 {offsets = [0, 256], sizes = [4, 128], strides = [1, 1]} : vector<4x384xf32> to vector<4x128xf32>
    %314 = vector.extract_strided_slice %296 {offsets = [0, 256], sizes = [4, 128], strides = [1, 1]} : vector<4x384xf32> to vector<4x128xf32>
    %c0_90 = arith.constant 0 : index
    %c0_91 = arith.constant 0 : index
    %315 = vector.load %arg6[%c0_90, %c0_91] : memref<1x128xf32, #tpu.memory_space<vmem>>, vector<1x128xf32>
    %316 = vector.broadcast %315 : vector<1x128xf32> to vector<4x128xf32>
    %317 = arith.addf %314, %316 : vector<4x128xf32>
    %318 = arith.mulf %304, %317 : vector<4x128xf32>
    %319 = arith.addf %313, %318 : vector<4x128xf32>
    %320 = math.tanh %319 : vector<4x128xf32>
    %cst_92 = arith.constant 1.000000e+00 : f32
    %321 = vector.broadcast %cst_92 : f32 to vector<4x128xf32>
    %322 = arith.subf %321, %312 : vector<4x128xf32>
    %323 = arith.mulf %322, %320 : vector<4x128xf32>
    %324 = arith.mulf %312, %240 : vector<4x128xf32>
    %325 = arith.addf %323, %324 : vector<4x128xf32>
    %326 = arith.sitofp %c3_i32 : i32 to f32
    %327 = vector.broadcast %326 : f32 to vector<4x1xf32>
    %328 = arith.cmpf olt, %327, %0 : vector<4x1xf32>
    %cst_93 = arith.constant 0.000000e+00 : f32
    %329 = vector.shape_cast %328 : vector<4x1xi1> to vector<4x1xi1>
    %330 = vector.broadcast %329 : vector<4x1xi1> to vector<4x128xi1>
    %331 = vector.broadcast %cst_93 : f32 to vector<4x128xf32>
    %332 = arith.select %330, %290, %331 : vector<4x128xi1>, vector<4x128xf32>
    %333 = arith.addf %248, %332 : vector<4x128xf32>
    %cst_94 = arith.constant 7.000000e+00 : f32
    %334 = arith.subf %cst_94, %326 : f32
    %335 = vector.broadcast %334 : f32 to vector<4x1xf32>
    %336 = arith.cmpf olt, %335, %0 : vector<4x1xf32>
    %cst_95 = arith.constant 0.000000e+00 : f32
    %337 = vector.shape_cast %336 : vector<4x1xi1> to vector<4x1xi1>
    %338 = vector.broadcast %337 : vector<4x1xi1> to vector<4x128xi1>
    %339 = vector.broadcast %cst_95 : f32 to vector<4x128xf32>
    %340 = arith.select %338, %325, %339 : vector<4x128xi1>, vector<4x128xf32>
    %341 = arith.addf %256, %340 : vector<4x128xf32>
    %c4_i32 = arith.constant 4 : i32
    %342 = arith.index_cast %c4_i32 : i32 to index
    %c0_96 = arith.constant 0 : index
    %c0_97 = arith.constant 0 : index
    %343 = vector.load %arg0[%342, %c0_96, %c0_97] : memref<8x4x384xf32, #tpu.memory_space<vmem>>, vector<1x4x384xf32>
    %344 = vector.shape_cast %343 : vector<1x4x384xf32> to vector<4x384xf32>
    %c0_98 = arith.constant 0 : index
    %c0_99 = arith.constant 0 : index
    %345 = vector.load %arg3[%c0_98, %c0_99] : memref<128x384xf32, #tpu.memory_space<vmem>>, vector<128x384xf32>
    %cst_100 = arith.constant dense<0.000000e+00> : vector<4x384xf32>
    %346 = tpu.matmul %290, %345, %cst_100 {dimension_numbers = #tpu.dot_dimension_numbers<[1], [0], [0], [1], [0, 0, 1, 1], [], []>} : vector<4x128xf32>, vector<128x384xf32>, vector<4x384xf32> -> vector<4x384xf32>
    %347 = vector.extract_strided_slice %344 {offsets = [0, 0], sizes = [4, 128], strides = [1, 1]} : vector<4x384xf32> to vector<4x128xf32>
    %348 = vector.extract_strided_slice %346 {offsets = [0, 0], sizes = [4, 128], strides = [1, 1]} : vector<4x384xf32> to vector<4x128xf32>
    %349 = arith.addf %347, %348 : vector<4x128xf32>
    %350 = arith.negf %349 : vector<4x128xf32>
    %351 = math.exp %350 : vector<4x128xf32>
    %cst_101 = arith.constant 1.000000e+00 : f32
    %352 = vector.broadcast %cst_101 : f32 to vector<4x128xf32>
    %353 = arith.addf %352, %351 : vector<4x128xf32>
    %354 = arith.divf %352, %353 : vector<4x128xf32>
    %355 = vector.extract_strided_slice %344 {offsets = [0, 128], sizes = [4, 128], strides = [1, 1]} : vector<4x384xf32> to vector<4x128xf32>
    %356 = vector.extract_strided_slice %346 {offsets = [0, 128], sizes = [4, 128], strides = [1, 1]} : vector<4x384xf32> to vector<4x128xf32>
    %357 = arith.addf %355, %356 : vector<4x128xf32>
    %358 = arith.negf %357 : vector<4x128xf32>
    %359 = math.exp %358 : vector<4x128xf32>
    %cst_102 = arith.constant 1.000000e+00 : f32
    %360 = vector.broadcast %cst_102 : f32 to vector<4x128xf32>
    %361 = arith.addf %360, %359 : vector<4x128xf32>
    %362 = arith.divf %360, %361 : vector<4x128xf32>
    %363 = vector.extract_strided_slice %344 {offsets = [0, 256], sizes = [4, 128], strides = [1, 1]} : vector<4x384xf32> to vector<4x128xf32>
    %364 = vector.extract_strided_slice %346 {offsets = [0, 256], sizes = [4, 128], strides = [1, 1]} : vector<4x384xf32> to vector<4x128xf32>
    %c0_103 = arith.constant 0 : index
    %c0_104 = arith.constant 0 : index
    %365 = vector.load %arg4[%c0_103, %c0_104] : memref<1x128xf32, #tpu.memory_space<vmem>>, vector<1x128xf32>
    %366 = vector.broadcast %365 : vector<1x128xf32> to vector<4x128xf32>
    %367 = arith.addf %364, %366 : vector<4x128xf32>
    %368 = arith.mulf %354, %367 : vector<4x128xf32>
    %369 = arith.addf %363, %368 : vector<4x128xf32>
    %370 = math.tanh %369 : vector<4x128xf32>
    %cst_105 = arith.constant 1.000000e+00 : f32
    %371 = vector.broadcast %cst_105 : f32 to vector<4x128xf32>
    %372 = arith.subf %371, %362 : vector<4x128xf32>
    %373 = arith.mulf %372, %370 : vector<4x128xf32>
    %374 = arith.mulf %362, %290 : vector<4x128xf32>
    %375 = arith.addf %373, %374 : vector<4x128xf32>
    %c7_i32_106 = arith.constant 7 : i32
    %376 = arith.subi %c7_i32_106, %c4_i32 : i32
    %377 = arith.index_cast %376 : i32 to index
    %c0_107 = arith.constant 0 : index
    %c0_108 = arith.constant 0 : index
    %378 = vector.load %arg1[%377, %c0_107, %c0_108] : memref<8x4x384xf32, #tpu.memory_space<vmem>>, vector<1x4x384xf32>
    %379 = vector.shape_cast %378 : vector<1x4x384xf32> to vector<4x384xf32>
    %c0_109 = arith.constant 0 : index
    %c0_110 = arith.constant 0 : index
    %380 = vector.load %arg5[%c0_109, %c0_110] : memref<128x384xf32, #tpu.memory_space<vmem>>, vector<128x384xf32>
    %cst_111 = arith.constant dense<0.000000e+00> : vector<4x384xf32>
    %381 = tpu.matmul %325, %380, %cst_111 {dimension_numbers = #tpu.dot_dimension_numbers<[1], [0], [0], [1], [0, 0, 1, 1], [], []>} : vector<4x128xf32>, vector<128x384xf32>, vector<4x384xf32> -> vector<4x384xf32>
    %382 = vector.extract_strided_slice %379 {offsets = [0, 0], sizes = [4, 128], strides = [1, 1]} : vector<4x384xf32> to vector<4x128xf32>
    %383 = vector.extract_strided_slice %381 {offsets = [0, 0], sizes = [4, 128], strides = [1, 1]} : vector<4x384xf32> to vector<4x128xf32>
    %384 = arith.addf %382, %383 : vector<4x128xf32>
    %385 = arith.negf %384 : vector<4x128xf32>
    %386 = math.exp %385 : vector<4x128xf32>
    %cst_112 = arith.constant 1.000000e+00 : f32
    %387 = vector.broadcast %cst_112 : f32 to vector<4x128xf32>
    %388 = arith.addf %387, %386 : vector<4x128xf32>
    %389 = arith.divf %387, %388 : vector<4x128xf32>
    %390 = vector.extract_strided_slice %379 {offsets = [0, 128], sizes = [4, 128], strides = [1, 1]} : vector<4x384xf32> to vector<4x128xf32>
    %391 = vector.extract_strided_slice %381 {offsets = [0, 128], sizes = [4, 128], strides = [1, 1]} : vector<4x384xf32> to vector<4x128xf32>
    %392 = arith.addf %390, %391 : vector<4x128xf32>
    %393 = arith.negf %392 : vector<4x128xf32>
    %394 = math.exp %393 : vector<4x128xf32>
    %cst_113 = arith.constant 1.000000e+00 : f32
    %395 = vector.broadcast %cst_113 : f32 to vector<4x128xf32>
    %396 = arith.addf %395, %394 : vector<4x128xf32>
    %397 = arith.divf %395, %396 : vector<4x128xf32>
    %398 = vector.extract_strided_slice %379 {offsets = [0, 256], sizes = [4, 128], strides = [1, 1]} : vector<4x384xf32> to vector<4x128xf32>
    %399 = vector.extract_strided_slice %381 {offsets = [0, 256], sizes = [4, 128], strides = [1, 1]} : vector<4x384xf32> to vector<4x128xf32>
    %c0_114 = arith.constant 0 : index
    %c0_115 = arith.constant 0 : index
    %400 = vector.load %arg6[%c0_114, %c0_115] : memref<1x128xf32, #tpu.memory_space<vmem>>, vector<1x128xf32>
    %401 = vector.broadcast %400 : vector<1x128xf32> to vector<4x128xf32>
    %402 = arith.addf %399, %401 : vector<4x128xf32>
    %403 = arith.mulf %389, %402 : vector<4x128xf32>
    %404 = arith.addf %398, %403 : vector<4x128xf32>
    %405 = math.tanh %404 : vector<4x128xf32>
    %cst_116 = arith.constant 1.000000e+00 : f32
    %406 = vector.broadcast %cst_116 : f32 to vector<4x128xf32>
    %407 = arith.subf %406, %397 : vector<4x128xf32>
    %408 = arith.mulf %407, %405 : vector<4x128xf32>
    %409 = arith.mulf %397, %325 : vector<4x128xf32>
    %410 = arith.addf %408, %409 : vector<4x128xf32>
    %411 = arith.sitofp %c4_i32 : i32 to f32
    %412 = vector.broadcast %411 : f32 to vector<4x1xf32>
    %413 = arith.cmpf olt, %412, %0 : vector<4x1xf32>
    %cst_117 = arith.constant 0.000000e+00 : f32
    %414 = vector.shape_cast %413 : vector<4x1xi1> to vector<4x1xi1>
    %415 = vector.broadcast %414 : vector<4x1xi1> to vector<4x128xi1>
    %416 = vector.broadcast %cst_117 : f32 to vector<4x128xf32>
    %417 = arith.select %415, %375, %416 : vector<4x128xi1>, vector<4x128xf32>
    %418 = arith.addf %333, %417 : vector<4x128xf32>
    %cst_118 = arith.constant 7.000000e+00 : f32
    %419 = arith.subf %cst_118, %411 : f32
    %420 = vector.broadcast %419 : f32 to vector<4x1xf32>
    %421 = arith.cmpf olt, %420, %0 : vector<4x1xf32>
    %cst_119 = arith.constant 0.000000e+00 : f32
    %422 = vector.shape_cast %421 : vector<4x1xi1> to vector<4x1xi1>
    %423 = vector.broadcast %422 : vector<4x1xi1> to vector<4x128xi1>
    %424 = vector.broadcast %cst_119 : f32 to vector<4x128xf32>
    %425 = arith.select %423, %410, %424 : vector<4x128xi1>, vector<4x128xf32>
    %426 = arith.addf %341, %425 : vector<4x128xf32>
    %c5_i32 = arith.constant 5 : i32
    %427 = arith.index_cast %c5_i32 : i32 to index
    %c0_120 = arith.constant 0 : index
    %c0_121 = arith.constant 0 : index
    %428 = vector.load %arg0[%427, %c0_120, %c0_121] : memref<8x4x384xf32, #tpu.memory_space<vmem>>, vector<1x4x384xf32>
    %429 = vector.shape_cast %428 : vector<1x4x384xf32> to vector<4x384xf32>
    %c0_122 = arith.constant 0 : index
    %c0_123 = arith.constant 0 : index
    %430 = vector.load %arg3[%c0_122, %c0_123] : memref<128x384xf32, #tpu.memory_space<vmem>>, vector<128x384xf32>
    %cst_124 = arith.constant dense<0.000000e+00> : vector<4x384xf32>
    %431 = tpu.matmul %375, %430, %cst_124 {dimension_numbers = #tpu.dot_dimension_numbers<[1], [0], [0], [1], [0, 0, 1, 1], [], []>} : vector<4x128xf32>, vector<128x384xf32>, vector<4x384xf32> -> vector<4x384xf32>
    %432 = vector.extract_strided_slice %429 {offsets = [0, 0], sizes = [4, 128], strides = [1, 1]} : vector<4x384xf32> to vector<4x128xf32>
    %433 = vector.extract_strided_slice %431 {offsets = [0, 0], sizes = [4, 128], strides = [1, 1]} : vector<4x384xf32> to vector<4x128xf32>
    %434 = arith.addf %432, %433 : vector<4x128xf32>
    %435 = arith.negf %434 : vector<4x128xf32>
    %436 = math.exp %435 : vector<4x128xf32>
    %cst_125 = arith.constant 1.000000e+00 : f32
    %437 = vector.broadcast %cst_125 : f32 to vector<4x128xf32>
    %438 = arith.addf %437, %436 : vector<4x128xf32>
    %439 = arith.divf %437, %438 : vector<4x128xf32>
    %440 = vector.extract_strided_slice %429 {offsets = [0, 128], sizes = [4, 128], strides = [1, 1]} : vector<4x384xf32> to vector<4x128xf32>
    %441 = vector.extract_strided_slice %431 {offsets = [0, 128], sizes = [4, 128], strides = [1, 1]} : vector<4x384xf32> to vector<4x128xf32>
    %442 = arith.addf %440, %441 : vector<4x128xf32>
    %443 = arith.negf %442 : vector<4x128xf32>
    %444 = math.exp %443 : vector<4x128xf32>
    %cst_126 = arith.constant 1.000000e+00 : f32
    %445 = vector.broadcast %cst_126 : f32 to vector<4x128xf32>
    %446 = arith.addf %445, %444 : vector<4x128xf32>
    %447 = arith.divf %445, %446 : vector<4x128xf32>
    %448 = vector.extract_strided_slice %429 {offsets = [0, 256], sizes = [4, 128], strides = [1, 1]} : vector<4x384xf32> to vector<4x128xf32>
    %449 = vector.extract_strided_slice %431 {offsets = [0, 256], sizes = [4, 128], strides = [1, 1]} : vector<4x384xf32> to vector<4x128xf32>
    %c0_127 = arith.constant 0 : index
    %c0_128 = arith.constant 0 : index
    %450 = vector.load %arg4[%c0_127, %c0_128] : memref<1x128xf32, #tpu.memory_space<vmem>>, vector<1x128xf32>
    %451 = vector.broadcast %450 : vector<1x128xf32> to vector<4x128xf32>
    %452 = arith.addf %449, %451 : vector<4x128xf32>
    %453 = arith.mulf %439, %452 : vector<4x128xf32>
    %454 = arith.addf %448, %453 : vector<4x128xf32>
    %455 = math.tanh %454 : vector<4x128xf32>
    %cst_129 = arith.constant 1.000000e+00 : f32
    %456 = vector.broadcast %cst_129 : f32 to vector<4x128xf32>
    %457 = arith.subf %456, %447 : vector<4x128xf32>
    %458 = arith.mulf %457, %455 : vector<4x128xf32>
    %459 = arith.mulf %447, %375 : vector<4x128xf32>
    %460 = arith.addf %458, %459 : vector<4x128xf32>
    %c7_i32_130 = arith.constant 7 : i32
    %461 = arith.subi %c7_i32_130, %c5_i32 : i32
    %462 = arith.index_cast %461 : i32 to index
    %c0_131 = arith.constant 0 : index
    %c0_132 = arith.constant 0 : index
    %463 = vector.load %arg1[%462, %c0_131, %c0_132] : memref<8x4x384xf32, #tpu.memory_space<vmem>>, vector<1x4x384xf32>
    %464 = vector.shape_cast %463 : vector<1x4x384xf32> to vector<4x384xf32>
    %c0_133 = arith.constant 0 : index
    %c0_134 = arith.constant 0 : index
    %465 = vector.load %arg5[%c0_133, %c0_134] : memref<128x384xf32, #tpu.memory_space<vmem>>, vector<128x384xf32>
    %cst_135 = arith.constant dense<0.000000e+00> : vector<4x384xf32>
    %466 = tpu.matmul %410, %465, %cst_135 {dimension_numbers = #tpu.dot_dimension_numbers<[1], [0], [0], [1], [0, 0, 1, 1], [], []>} : vector<4x128xf32>, vector<128x384xf32>, vector<4x384xf32> -> vector<4x384xf32>
    %467 = vector.extract_strided_slice %464 {offsets = [0, 0], sizes = [4, 128], strides = [1, 1]} : vector<4x384xf32> to vector<4x128xf32>
    %468 = vector.extract_strided_slice %466 {offsets = [0, 0], sizes = [4, 128], strides = [1, 1]} : vector<4x384xf32> to vector<4x128xf32>
    %469 = arith.addf %467, %468 : vector<4x128xf32>
    %470 = arith.negf %469 : vector<4x128xf32>
    %471 = math.exp %470 : vector<4x128xf32>
    %cst_136 = arith.constant 1.000000e+00 : f32
    %472 = vector.broadcast %cst_136 : f32 to vector<4x128xf32>
    %473 = arith.addf %472, %471 : vector<4x128xf32>
    %474 = arith.divf %472, %473 : vector<4x128xf32>
    %475 = vector.extract_strided_slice %464 {offsets = [0, 128], sizes = [4, 128], strides = [1, 1]} : vector<4x384xf32> to vector<4x128xf32>
    %476 = vector.extract_strided_slice %466 {offsets = [0, 128], sizes = [4, 128], strides = [1, 1]} : vector<4x384xf32> to vector<4x128xf32>
    %477 = arith.addf %475, %476 : vector<4x128xf32>
    %478 = arith.negf %477 : vector<4x128xf32>
    %479 = math.exp %478 : vector<4x128xf32>
    %cst_137 = arith.constant 1.000000e+00 : f32
    %480 = vector.broadcast %cst_137 : f32 to vector<4x128xf32>
    %481 = arith.addf %480, %479 : vector<4x128xf32>
    %482 = arith.divf %480, %481 : vector<4x128xf32>
    %483 = vector.extract_strided_slice %464 {offsets = [0, 256], sizes = [4, 128], strides = [1, 1]} : vector<4x384xf32> to vector<4x128xf32>
    %484 = vector.extract_strided_slice %466 {offsets = [0, 256], sizes = [4, 128], strides = [1, 1]} : vector<4x384xf32> to vector<4x128xf32>
    %c0_138 = arith.constant 0 : index
    %c0_139 = arith.constant 0 : index
    %485 = vector.load %arg6[%c0_138, %c0_139] : memref<1x128xf32, #tpu.memory_space<vmem>>, vector<1x128xf32>
    %486 = vector.broadcast %485 : vector<1x128xf32> to vector<4x128xf32>
    %487 = arith.addf %484, %486 : vector<4x128xf32>
    %488 = arith.mulf %474, %487 : vector<4x128xf32>
    %489 = arith.addf %483, %488 : vector<4x128xf32>
    %490 = math.tanh %489 : vector<4x128xf32>
    %cst_140 = arith.constant 1.000000e+00 : f32
    %491 = vector.broadcast %cst_140 : f32 to vector<4x128xf32>
    %492 = arith.subf %491, %482 : vector<4x128xf32>
    %493 = arith.mulf %492, %490 : vector<4x128xf32>
    %494 = arith.mulf %482, %410 : vector<4x128xf32>
    %495 = arith.addf %493, %494 : vector<4x128xf32>
    %496 = arith.sitofp %c5_i32 : i32 to f32
    %497 = vector.broadcast %496 : f32 to vector<4x1xf32>
    %498 = arith.cmpf olt, %497, %0 : vector<4x1xf32>
    %cst_141 = arith.constant 0.000000e+00 : f32
    %499 = vector.shape_cast %498 : vector<4x1xi1> to vector<4x1xi1>
    %500 = vector.broadcast %499 : vector<4x1xi1> to vector<4x128xi1>
    %501 = vector.broadcast %cst_141 : f32 to vector<4x128xf32>
    %502 = arith.select %500, %460, %501 : vector<4x128xi1>, vector<4x128xf32>
    %503 = arith.addf %418, %502 : vector<4x128xf32>
    %cst_142 = arith.constant 7.000000e+00 : f32
    %504 = arith.subf %cst_142, %496 : f32
    %505 = vector.broadcast %504 : f32 to vector<4x1xf32>
    %506 = arith.cmpf olt, %505, %0 : vector<4x1xf32>
    %cst_143 = arith.constant 0.000000e+00 : f32
    %507 = vector.shape_cast %506 : vector<4x1xi1> to vector<4x1xi1>
    %508 = vector.broadcast %507 : vector<4x1xi1> to vector<4x128xi1>
    %509 = vector.broadcast %cst_143 : f32 to vector<4x128xf32>
    %510 = arith.select %508, %495, %509 : vector<4x128xi1>, vector<4x128xf32>
    %511 = arith.addf %426, %510 : vector<4x128xf32>
    %c6_i32 = arith.constant 6 : i32
    %512 = arith.index_cast %c6_i32 : i32 to index
    %c0_144 = arith.constant 0 : index
    %c0_145 = arith.constant 0 : index
    %513 = vector.load %arg0[%512, %c0_144, %c0_145] : memref<8x4x384xf32, #tpu.memory_space<vmem>>, vector<1x4x384xf32>
    %514 = vector.shape_cast %513 : vector<1x4x384xf32> to vector<4x384xf32>
    %c0_146 = arith.constant 0 : index
    %c0_147 = arith.constant 0 : index
    %515 = vector.load %arg3[%c0_146, %c0_147] : memref<128x384xf32, #tpu.memory_space<vmem>>, vector<128x384xf32>
    %cst_148 = arith.constant dense<0.000000e+00> : vector<4x384xf32>
    %516 = tpu.matmul %460, %515, %cst_148 {dimension_numbers = #tpu.dot_dimension_numbers<[1], [0], [0], [1], [0, 0, 1, 1], [], []>} : vector<4x128xf32>, vector<128x384xf32>, vector<4x384xf32> -> vector<4x384xf32>
    %517 = vector.extract_strided_slice %514 {offsets = [0, 0], sizes = [4, 128], strides = [1, 1]} : vector<4x384xf32> to vector<4x128xf32>
    %518 = vector.extract_strided_slice %516 {offsets = [0, 0], sizes = [4, 128], strides = [1, 1]} : vector<4x384xf32> to vector<4x128xf32>
    %519 = arith.addf %517, %518 : vector<4x128xf32>
    %520 = arith.negf %519 : vector<4x128xf32>
    %521 = math.exp %520 : vector<4x128xf32>
    %cst_149 = arith.constant 1.000000e+00 : f32
    %522 = vector.broadcast %cst_149 : f32 to vector<4x128xf32>
    %523 = arith.addf %522, %521 : vector<4x128xf32>
    %524 = arith.divf %522, %523 : vector<4x128xf32>
    %525 = vector.extract_strided_slice %514 {offsets = [0, 128], sizes = [4, 128], strides = [1, 1]} : vector<4x384xf32> to vector<4x128xf32>
    %526 = vector.extract_strided_slice %516 {offsets = [0, 128], sizes = [4, 128], strides = [1, 1]} : vector<4x384xf32> to vector<4x128xf32>
    %527 = arith.addf %525, %526 : vector<4x128xf32>
    %528 = arith.negf %527 : vector<4x128xf32>
    %529 = math.exp %528 : vector<4x128xf32>
    %cst_150 = arith.constant 1.000000e+00 : f32
    %530 = vector.broadcast %cst_150 : f32 to vector<4x128xf32>
    %531 = arith.addf %530, %529 : vector<4x128xf32>
    %532 = arith.divf %530, %531 : vector<4x128xf32>
    %533 = vector.extract_strided_slice %514 {offsets = [0, 256], sizes = [4, 128], strides = [1, 1]} : vector<4x384xf32> to vector<4x128xf32>
    %534 = vector.extract_strided_slice %516 {offsets = [0, 256], sizes = [4, 128], strides = [1, 1]} : vector<4x384xf32> to vector<4x128xf32>
    %c0_151 = arith.constant 0 : index
    %c0_152 = arith.constant 0 : index
    %535 = vector.load %arg4[%c0_151, %c0_152] : memref<1x128xf32, #tpu.memory_space<vmem>>, vector<1x128xf32>
    %536 = vector.broadcast %535 : vector<1x128xf32> to vector<4x128xf32>
    %537 = arith.addf %534, %536 : vector<4x128xf32>
    %538 = arith.mulf %524, %537 : vector<4x128xf32>
    %539 = arith.addf %533, %538 : vector<4x128xf32>
    %540 = math.tanh %539 : vector<4x128xf32>
    %cst_153 = arith.constant 1.000000e+00 : f32
    %541 = vector.broadcast %cst_153 : f32 to vector<4x128xf32>
    %542 = arith.subf %541, %532 : vector<4x128xf32>
    %543 = arith.mulf %542, %540 : vector<4x128xf32>
    %544 = arith.mulf %532, %460 : vector<4x128xf32>
    %545 = arith.addf %543, %544 : vector<4x128xf32>
    %c7_i32_154 = arith.constant 7 : i32
    %546 = arith.subi %c7_i32_154, %c6_i32 : i32
    %547 = arith.index_cast %546 : i32 to index
    %c0_155 = arith.constant 0 : index
    %c0_156 = arith.constant 0 : index
    %548 = vector.load %arg1[%547, %c0_155, %c0_156] : memref<8x4x384xf32, #tpu.memory_space<vmem>>, vector<1x4x384xf32>
    %549 = vector.shape_cast %548 : vector<1x4x384xf32> to vector<4x384xf32>
    %c0_157 = arith.constant 0 : index
    %c0_158 = arith.constant 0 : index
    %550 = vector.load %arg5[%c0_157, %c0_158] : memref<128x384xf32, #tpu.memory_space<vmem>>, vector<128x384xf32>
    %cst_159 = arith.constant dense<0.000000e+00> : vector<4x384xf32>
    %551 = tpu.matmul %495, %550, %cst_159 {dimension_numbers = #tpu.dot_dimension_numbers<[1], [0], [0], [1], [0, 0, 1, 1], [], []>} : vector<4x128xf32>, vector<128x384xf32>, vector<4x384xf32> -> vector<4x384xf32>
    %552 = vector.extract_strided_slice %549 {offsets = [0, 0], sizes = [4, 128], strides = [1, 1]} : vector<4x384xf32> to vector<4x128xf32>
    %553 = vector.extract_strided_slice %551 {offsets = [0, 0], sizes = [4, 128], strides = [1, 1]} : vector<4x384xf32> to vector<4x128xf32>
    %554 = arith.addf %552, %553 : vector<4x128xf32>
    %555 = arith.negf %554 : vector<4x128xf32>
    %556 = math.exp %555 : vector<4x128xf32>
    %cst_160 = arith.constant 1.000000e+00 : f32
    %557 = vector.broadcast %cst_160 : f32 to vector<4x128xf32>
    %558 = arith.addf %557, %556 : vector<4x128xf32>
    %559 = arith.divf %557, %558 : vector<4x128xf32>
    %560 = vector.extract_strided_slice %549 {offsets = [0, 128], sizes = [4, 128], strides = [1, 1]} : vector<4x384xf32> to vector<4x128xf32>
    %561 = vector.extract_strided_slice %551 {offsets = [0, 128], sizes = [4, 128], strides = [1, 1]} : vector<4x384xf32> to vector<4x128xf32>
    %562 = arith.addf %560, %561 : vector<4x128xf32>
    %563 = arith.negf %562 : vector<4x128xf32>
    %564 = math.exp %563 : vector<4x128xf32>
    %cst_161 = arith.constant 1.000000e+00 : f32
    %565 = vector.broadcast %cst_161 : f32 to vector<4x128xf32>
    %566 = arith.addf %565, %564 : vector<4x128xf32>
    %567 = arith.divf %565, %566 : vector<4x128xf32>
    %568 = vector.extract_strided_slice %549 {offsets = [0, 256], sizes = [4, 128], strides = [1, 1]} : vector<4x384xf32> to vector<4x128xf32>
    %569 = vector.extract_strided_slice %551 {offsets = [0, 256], sizes = [4, 128], strides = [1, 1]} : vector<4x384xf32> to vector<4x128xf32>
    %c0_162 = arith.constant 0 : index
    %c0_163 = arith.constant 0 : index
    %570 = vector.load %arg6[%c0_162, %c0_163] : memref<1x128xf32, #tpu.memory_space<vmem>>, vector<1x128xf32>
    %571 = vector.broadcast %570 : vector<1x128xf32> to vector<4x128xf32>
    %572 = arith.addf %569, %571 : vector<4x128xf32>
    %573 = arith.mulf %559, %572 : vector<4x128xf32>
    %574 = arith.addf %568, %573 : vector<4x128xf32>
    %575 = math.tanh %574 : vector<4x128xf32>
    %cst_164 = arith.constant 1.000000e+00 : f32
    %576 = vector.broadcast %cst_164 : f32 to vector<4x128xf32>
    %577 = arith.subf %576, %567 : vector<4x128xf32>
    %578 = arith.mulf %577, %575 : vector<4x128xf32>
    %579 = arith.mulf %567, %495 : vector<4x128xf32>
    %580 = arith.addf %578, %579 : vector<4x128xf32>
    %581 = arith.sitofp %c6_i32 : i32 to f32
    %582 = vector.broadcast %581 : f32 to vector<4x1xf32>
    %583 = arith.cmpf olt, %582, %0 : vector<4x1xf32>
    %cst_165 = arith.constant 0.000000e+00 : f32
    %584 = vector.shape_cast %583 : vector<4x1xi1> to vector<4x1xi1>
    %585 = vector.broadcast %584 : vector<4x1xi1> to vector<4x128xi1>
    %586 = vector.broadcast %cst_165 : f32 to vector<4x128xf32>
    %587 = arith.select %585, %545, %586 : vector<4x128xi1>, vector<4x128xf32>
    %588 = arith.addf %503, %587 : vector<4x128xf32>
    %cst_166 = arith.constant 7.000000e+00 : f32
    %589 = arith.subf %cst_166, %581 : f32
    %590 = vector.broadcast %589 : f32 to vector<4x1xf32>
    %591 = arith.cmpf olt, %590, %0 : vector<4x1xf32>
    %cst_167 = arith.constant 0.000000e+00 : f32
    %592 = vector.shape_cast %591 : vector<4x1xi1> to vector<4x1xi1>
    %593 = vector.broadcast %592 : vector<4x1xi1> to vector<4x128xi1>
    %594 = vector.broadcast %cst_167 : f32 to vector<4x128xf32>
    %595 = arith.select %593, %580, %594 : vector<4x128xi1>, vector<4x128xf32>
    %596 = arith.addf %511, %595 : vector<4x128xf32>
    %c7_i32_168 = arith.constant 7 : i32
    %597 = arith.index_cast %c7_i32_168 : i32 to index
    %c0_169 = arith.constant 0 : index
    %c0_170 = arith.constant 0 : index
    %598 = vector.load %arg0[%597, %c0_169, %c0_170] : memref<8x4x384xf32, #tpu.memory_space<vmem>>, vector<1x4x384xf32>
    %599 = vector.shape_cast %598 : vector<1x4x384xf32> to vector<4x384xf32>
    %c0_171 = arith.constant 0 : index
    %c0_172 = arith.constant 0 : index
    %600 = vector.load %arg3[%c0_171, %c0_172] : memref<128x384xf32, #tpu.memory_space<vmem>>, vector<128x384xf32>
    %cst_173 = arith.constant dense<0.000000e+00> : vector<4x384xf32>
    %601 = tpu.matmul %545, %600, %cst_173 {dimension_numbers = #tpu.dot_dimension_numbers<[1], [0], [0], [1], [0, 0, 1, 1], [], []>} : vector<4x128xf32>, vector<128x384xf32>, vector<4x384xf32> -> vector<4x384xf32>
    %602 = vector.extract_strided_slice %599 {offsets = [0, 0], sizes = [4, 128], strides = [1, 1]} : vector<4x384xf32> to vector<4x128xf32>
    %603 = vector.extract_strided_slice %601 {offsets = [0, 0], sizes = [4, 128], strides = [1, 1]} : vector<4x384xf32> to vector<4x128xf32>
    %604 = arith.addf %602, %603 : vector<4x128xf32>
    %605 = arith.negf %604 : vector<4x128xf32>
    %606 = math.exp %605 : vector<4x128xf32>
    %cst_174 = arith.constant 1.000000e+00 : f32
    %607 = vector.broadcast %cst_174 : f32 to vector<4x128xf32>
    %608 = arith.addf %607, %606 : vector<4x128xf32>
    %609 = arith.divf %607, %608 : vector<4x128xf32>
    %610 = vector.extract_strided_slice %599 {offsets = [0, 128], sizes = [4, 128], strides = [1, 1]} : vector<4x384xf32> to vector<4x128xf32>
    %611 = vector.extract_strided_slice %601 {offsets = [0, 128], sizes = [4, 128], strides = [1, 1]} : vector<4x384xf32> to vector<4x128xf32>
    %612 = arith.addf %610, %611 : vector<4x128xf32>
    %613 = arith.negf %612 : vector<4x128xf32>
    %614 = math.exp %613 : vector<4x128xf32>
    %cst_175 = arith.constant 1.000000e+00 : f32
    %615 = vector.broadcast %cst_175 : f32 to vector<4x128xf32>
    %616 = arith.addf %615, %614 : vector<4x128xf32>
    %617 = arith.divf %615, %616 : vector<4x128xf32>
    %618 = vector.extract_strided_slice %599 {offsets = [0, 256], sizes = [4, 128], strides = [1, 1]} : vector<4x384xf32> to vector<4x128xf32>
    %619 = vector.extract_strided_slice %601 {offsets = [0, 256], sizes = [4, 128], strides = [1, 1]} : vector<4x384xf32> to vector<4x128xf32>
    %c0_176 = arith.constant 0 : index
    %c0_177 = arith.constant 0 : index
    %620 = vector.load %arg4[%c0_176, %c0_177] : memref<1x128xf32, #tpu.memory_space<vmem>>, vector<1x128xf32>
    %621 = vector.broadcast %620 : vector<1x128xf32> to vector<4x128xf32>
    %622 = arith.addf %619, %621 : vector<4x128xf32>
    %623 = arith.mulf %609, %622 : vector<4x128xf32>
    %624 = arith.addf %618, %623 : vector<4x128xf32>
    %625 = math.tanh %624 : vector<4x128xf32>
    %cst_178 = arith.constant 1.000000e+00 : f32
    %626 = vector.broadcast %cst_178 : f32 to vector<4x128xf32>
    %627 = arith.subf %626, %617 : vector<4x128xf32>
    %628 = arith.mulf %627, %625 : vector<4x128xf32>
    %629 = arith.mulf %617, %545 : vector<4x128xf32>
    %630 = arith.addf %628, %629 : vector<4x128xf32>
    %c7_i32_179 = arith.constant 7 : i32
    %631 = arith.subi %c7_i32_179, %c7_i32_168 : i32
    %632 = arith.index_cast %631 : i32 to index
    %c0_180 = arith.constant 0 : index
    %c0_181 = arith.constant 0 : index
    %633 = vector.load %arg1[%632, %c0_180, %c0_181] : memref<8x4x384xf32, #tpu.memory_space<vmem>>, vector<1x4x384xf32>
    %634 = vector.shape_cast %633 : vector<1x4x384xf32> to vector<4x384xf32>
    %c0_182 = arith.constant 0 : index
    %c0_183 = arith.constant 0 : index
    %635 = vector.load %arg5[%c0_182, %c0_183] : memref<128x384xf32, #tpu.memory_space<vmem>>, vector<128x384xf32>
    %cst_184 = arith.constant dense<0.000000e+00> : vector<4x384xf32>
    %636 = tpu.matmul %580, %635, %cst_184 {dimension_numbers = #tpu.dot_dimension_numbers<[1], [0], [0], [1], [0, 0, 1, 1], [], []>} : vector<4x128xf32>, vector<128x384xf32>, vector<4x384xf32> -> vector<4x384xf32>
    %637 = vector.extract_strided_slice %634 {offsets = [0, 0], sizes = [4, 128], strides = [1, 1]} : vector<4x384xf32> to vector<4x128xf32>
    %638 = vector.extract_strided_slice %636 {offsets = [0, 0], sizes = [4, 128], strides = [1, 1]} : vector<4x384xf32> to vector<4x128xf32>
    %639 = arith.addf %637, %638 : vector<4x128xf32>
    %640 = arith.negf %639 : vector<4x128xf32>
    %641 = math.exp %640 : vector<4x128xf32>
    %cst_185 = arith.constant 1.000000e+00 : f32
    %642 = vector.broadcast %cst_185 : f32 to vector<4x128xf32>
    %643 = arith.addf %642, %641 : vector<4x128xf32>
    %644 = arith.divf %642, %643 : vector<4x128xf32>
    %645 = vector.extract_strided_slice %634 {offsets = [0, 128], sizes = [4, 128], strides = [1, 1]} : vector<4x384xf32> to vector<4x128xf32>
    %646 = vector.extract_strided_slice %636 {offsets = [0, 128], sizes = [4, 128], strides = [1, 1]} : vector<4x384xf32> to vector<4x128xf32>
    %647 = arith.addf %645, %646 : vector<4x128xf32>
    %648 = arith.negf %647 : vector<4x128xf32>
    %649 = math.exp %648 : vector<4x128xf32>
    %cst_186 = arith.constant 1.000000e+00 : f32
    %650 = vector.broadcast %cst_186 : f32 to vector<4x128xf32>
    %651 = arith.addf %650, %649 : vector<4x128xf32>
    %652 = arith.divf %650, %651 : vector<4x128xf32>
    %653 = vector.extract_strided_slice %634 {offsets = [0, 256], sizes = [4, 128], strides = [1, 1]} : vector<4x384xf32> to vector<4x128xf32>
    %654 = vector.extract_strided_slice %636 {offsets = [0, 256], sizes = [4, 128], strides = [1, 1]} : vector<4x384xf32> to vector<4x128xf32>
    %c0_187 = arith.constant 0 : index
    %c0_188 = arith.constant 0 : index
    %655 = vector.load %arg6[%c0_187, %c0_188] : memref<1x128xf32, #tpu.memory_space<vmem>>, vector<1x128xf32>
    %656 = vector.broadcast %655 : vector<1x128xf32> to vector<4x128xf32>
    %657 = arith.addf %654, %656 : vector<4x128xf32>
    %658 = arith.mulf %644, %657 : vector<4x128xf32>
    %659 = arith.addf %653, %658 : vector<4x128xf32>
    %660 = math.tanh %659 : vector<4x128xf32>
    %cst_189 = arith.constant 1.000000e+00 : f32
    %661 = vector.broadcast %cst_189 : f32 to vector<4x128xf32>
    %662 = arith.subf %661, %652 : vector<4x128xf32>
    %663 = arith.mulf %662, %660 : vector<4x128xf32>
    %664 = arith.mulf %652, %580 : vector<4x128xf32>
    %665 = arith.addf %663, %664 : vector<4x128xf32>
    %666 = arith.sitofp %c7_i32_168 : i32 to f32
    %667 = vector.broadcast %666 : f32 to vector<4x1xf32>
    %668 = arith.cmpf olt, %667, %0 : vector<4x1xf32>
    %cst_190 = arith.constant 0.000000e+00 : f32
    %669 = vector.shape_cast %668 : vector<4x1xi1> to vector<4x1xi1>
    %670 = vector.broadcast %669 : vector<4x1xi1> to vector<4x128xi1>
    %671 = vector.broadcast %cst_190 : f32 to vector<4x128xf32>
    %672 = arith.select %670, %630, %671 : vector<4x128xi1>, vector<4x128xf32>
    %673 = arith.addf %588, %672 : vector<4x128xf32>
    %cst_191 = arith.constant 7.000000e+00 : f32
    %674 = arith.subf %cst_191, %666 : f32
    %675 = vector.broadcast %674 : f32 to vector<4x1xf32>
    %676 = arith.cmpf olt, %675, %0 : vector<4x1xf32>
    %cst_192 = arith.constant 0.000000e+00 : f32
    %677 = vector.shape_cast %676 : vector<4x1xi1> to vector<4x1xi1>
    %678 = vector.broadcast %677 : vector<4x1xi1> to vector<4x128xi1>
    %679 = vector.broadcast %cst_192 : f32 to vector<4x128xf32>
    %680 = arith.select %678, %665, %679 : vector<4x128xi1>, vector<4x128xf32>
    %681 = arith.addf %596, %680 : vector<4x128xf32>
    %c8_i32 = arith.constant 8 : i32
    %cst_193 = arith.constant 1.000000e+00 : f32
    %682 = vector.broadcast %cst_193 : f32 to vector<4x1xf32>
    %683 = arith.maximumf %0, %682 : vector<4x1xf32>
    %cst_194 = arith.constant 1.000000e+00 : f32
    %684 = vector.broadcast %cst_194 : f32 to vector<4x1xf32>
    %685 = arith.divf %684, %683 : vector<4x1xf32>
    %686 = vector.broadcast %685 : vector<4x1xf32> to vector<4x128xf32>
    %687 = arith.mulf %673, %686 : vector<4x128xf32>
    %c0_195 = arith.constant 0 : index
    %c0_196 = arith.constant 0 : index
    %688 = vector.load %arg7[%c0_195, %c0_196] : memref<4x256xf32, #tpu.memory_space<vmem>>, vector<4x128xf32>
    tpu.vector_store %arg7[%c0_195, %c0_196], %687 {strides = array<i32>} : memref<4x256xf32, #tpu.memory_space<vmem>>, vector<4x128xf32>,
    %689 = vector.broadcast %685 : vector<4x1xf32> to vector<4x128xf32>
    %690 = arith.mulf %681, %689 : vector<4x128xf32>
    %c0_197 = arith.constant 0 : index
    %c128 = arith.constant 128 : index
    %691 = vector.load %arg7[%c0_197, %c128] : memref<4x256xf32, #tpu.memory_space<vmem>>, vector<4x128xf32>
    tpu.vector_store %arg7[%c0_197, %c128], %690 {strides = array<i32>} : memref<4x256xf32, #tpu.memory_space<vmem>>, vector<4x128xf32>,
    return
  }
}

</mosaic_0001>

<llo_original>
// kernel: summarunner_forward.2
$region0: #{summarunner_forward.2}
  #allocation0 [shape = 'u32[]', space=smem, size = 0x4, offset = 0x4, fixed_abs, tag = 'smem constant byte address 0x4 - core index']
  #allocation1 [shape = 'u32[144,128]{1,0:T(1,128)}', space=vmem, size = 0x12000, scoped, tag = 'internal scratch']
  %s0 = inlined_call_operand.vmem [shape: f32[8,4,384], index: 0, kind: input, shape index: {}]
  %s1 = inlined_call_operand.vmem [shape: f32[8,4,384], index: 1, kind: input, shape index: {}]
  %s2 = inlined_call_operand.vmem [shape: f32[4,1], index: 2, kind: input, shape index: {}]
  %s3 = inlined_call_operand.hbm [shape: f32[128,384], index: 3, kind: input, shape index: {}]
  %s4 = inlined_call_operand.vmem [shape: f32[1,128], index: 4, kind: input, shape index: {}]
  %s5 = inlined_call_operand.hbm [shape: f32[128,384], index: 5, kind: input, shape index: {}]
  %s6 = inlined_call_operand.vmem [shape: f32[1,128], index: 6, kind: input, shape index: {}]
  %s7 = inlined_call_operand.vmem [shape: f32[4,256], index: 7, kind: output, shape index: {}]
  %s8 = sld [smem:[#allocation0]]
  $region46: #{summarunner_forward.2} parent=0
    _
  %s10 = ssub.s32 1, %s8
  %s11 = scalar_select 0, %s10, %s8
  $region1: #{summarunner_forward.2} parent=0
    #allocation2 [shape = 'u8[196608]{0}', space=vmem, size = 0x30000, scoped, tag = 'input window, operand 3, single buffered']
    #allocation3 [shape = 's32[1]{0}', space=sflag, size = 0x4, scoped, tag = 'scoped memory for summarunner_forward.2']
    #allocation4 [shape = 'u8[196608]{0}', space=vmem, size = 0x30000, scoped, tag = 'input window, operand 5, single buffered']
    #allocation5 [shape = 's32[1]{0}', space=sflag, size = 0x4, scoped, tag = 'scoped memory for summarunner_forward.2']
    %12 = vsyncpa [#allocation3], 0
    %13 = vsyncpa [#allocation5], 0
    // Predicated region
    $region2: #{summarunner_forward.2} parent=1 // pred_check
      _
    $region3: #{summarunner_forward.2} parent=1 // pred_check_branch
      %15 = sbr.rel (0) target = $region5
    $region4: #{summarunner_forward.2} parent=1 // pred_region
      _
    $region5: #{summarunner_forward.2} parent=1 // pred_fallthru
      _
    // Predicated region
    $region6: #{summarunner_forward.2} parent=1 // pred_check
      _
    $region7: #{summarunner_forward.2} parent=1 // pred_check_branch
      %17 = sbr.rel (0) target = $region9
    $region8: #{summarunner_forward.2} parent=1 // pred_region
      _
    $region9: #{summarunner_forward.2} parent=1 // pred_fallthru
      _
    // Predicated region
    $region10: #{summarunner_forward.2} parent=1 // pred_check
      _
    $region11: #{summarunner_forward.2} parent=1 // pred_check_branch
      %19 = sbr.rel (0) target = $region13
    $region12: #{summarunner_forward.2} parent=1 // pred_region
      _
    $region13: #{summarunner_forward.2} parent=1 // pred_fallthru
      _
    // Predicated region
    $region14: #{summarunner_forward.2} parent=1 // pred_check
      _
    $region15: #{summarunner_forward.2} parent=1 // pred_check_branch
      %21 = sbr.rel (0) target = $region17
    $region16: #{summarunner_forward.2} parent=1 // pred_region
      %s23 = ssub.s32 6144, 6144
      %24 = vsyncadd [#allocation3], %s23
      %s25 = sshll.u32 [#allocation2], 4
      %s26 = int_to_ptr.vmem [resolvable:$true] %s25
      %31 = dma.hbm_to_vmem [thread:$0]  %s3, 6144, %s26, [#allocation3], 384, 384, 24
    $region17: #{summarunner_forward.2} parent=1 // pred_fallthru
      _
    // Predicated region
    $region18: #{summarunner_forward.2} parent=1 // pred_check
      _
    $region19: #{summarunner_forward.2} parent=1 // pred_check_branch
      %33 = sbr.rel (0) target = $region21
    $region20: #{summarunner_forward.2} parent=1 // pred_region
      _
    $region21: #{summarunner_forward.2} parent=1 // pred_fallthru
      _
    // Predicated region
    $region22: #{summarunner_forward.2} parent=1 // pred_check
      _
    $region23: #{summarunner_forward.2} parent=1 // pred_check_branch
      %35 = sbr.rel (0) target = $region25
    $region24: #{summarunner_forward.2} parent=1 // pred_region
      %s37 = ssub.s32 6144, 6144
      %38 = vsyncadd [#allocation5], %s37
      %s39 = sshll.u32 [#allocation4], 4
      %s40 = int_to_ptr.vmem [resolvable:$true] %s39
      %45 = dma.hbm_to_vmem [thread:$0]  %s5, 6144, %s40, [#allocation5], 384, 384, 24
    $region25: #{summarunner_forward.2} parent=1 // pred_fallthru
      _
    // Predicated region
    $region26: #{summarunner_forward.2} parent=1 // pred_check
      _
    $region27: #{summarunner_forward.2} parent=1 // pred_check_branch
      %47 = sbr.rel (0) target = $region29
    $region28: #{summarunner_forward.2} parent=1 // pred_region
      _
    $region29: #{summarunner_forward.2} parent=1 // pred_fallthru
      _
    // Predicated region
    $region30: #{summarunner_forward.2} parent=1 // pred_check
      _
    $region31: #{summarunner_forward.2} parent=1 // pred_check_branch
      %49 = sbr.rel (0) target = $region33
    $region32: #{summarunner_forward.2} parent=1 // pred_region
      %50 = dma.done [#allocation3], 6144
    $region33: #{summarunner_forward.2} parent=1 // pred_fallthru
      _
    // Predicated region
    $region34: #{summarunner_forward.2} parent=1 // pred_check
      _
    $region35: #{summarunner_forward.2} parent=1 // pred_check_branch
      %52 = sbr.rel (0) target = $region37
    $region36: #{summarunner_forward.2} parent=1 // pred_region
      %53 = dma.done [#allocation5], 6144
    $region37: #{summarunner_forward.2} parent=1 // pred_fallthru
      _
    %v54 = vld [vmem:[%s2] sm:$0xf]
    %v55 = vld [vmem:[%s0] sm:$0xff]
    %v56 = vld [vmem:[%s0 + $0x8] sm:$0xf]
    %v57 = vld [vmem:[#allocation2] sm:$0xff]
    %v58 = vld [vmem:[#allocation2 + $0x8] sm:$0xff]
    %v59 = vld [vmem:[#allocation2 + $0x10] sm:$0xff]
    %v60 = vld [vmem:[#allocation2 + $0x18] sm:$0xff]
    %v61 = vld [vmem:[#allocation2 + $0x20] sm:$0xff]
    %v62 = vld [vmem:[#allocation2 + $0x28] sm:$0xff]
    %v63 = vld [vmem:[#allocation2 + $0x30] sm:$0xff]
    %v64 = vld [vmem:[#allocation2 + $0x38] sm:$0xff]
    %v65 = vld [vmem:[#allocation2 + $0x40] sm:$0xff]
    %v66 = vld [vmem:[#allocation2 + $0x48] sm:$0xff]
    %v67 = vld [vmem:[#allocation2 + $0x50] sm:$0xff]
    %v68 = vld [vmem:[#allocation2 + $0x58] sm:$0xff]
    %v69 = vld [vmem:[#allocation2 + $0x60] sm:$0xff]
    %v70 = vld [vmem:[#allocation2 + $0x68] sm:$0xff]
    %v71 = vld [vmem:[#allocation2 + $0x70] sm:$0xff]
    %v72 = vld [vmem:[#allocation2 + $0x78] sm:$0xff]
    %v73 = vld [vmem:[#allocation2 + $0x80] sm:$0xff]
    %v74 = vld [vmem:[#allocation2 + $0x88] sm:$0xff]
    %v75 = vld [vmem:[#allocation2 + $0x90] sm:$0xff]
    %v76 = vld [vmem:[#allocation2 + $0x98] sm:$0xff]
    %v77 = vld [vmem:[#allocation2 + $0xa0] sm:$0xff]
    %v78 = vld [vmem:[#allocation2 + $0xa8] sm:$0xff]
    %v79 = vld [vmem:[#allocation2 + $0xb0] sm:$0xff]
    %v80 = vld [vmem:[#allocation2 + $0xb8] sm:$0xff]
    %v81 = vld [vmem:[#allocation2 + $0xc0] sm:$0xff]
    %v82 = vld [vmem:[#allocation2 + $0xc8] sm:$0xff]
    %v83 = vld [vmem:[#allocation2 + $0xd0] sm:$0xff]
    %v84 = vld [vmem:[#allocation2 + $0xd8] sm:$0xff]
    %v85 = vld [vmem:[#allocation2 + $0xe0] sm:$0xff]
    %v86 = vld [vmem:[#allocation2 + $0xe8] sm:$0xff]
    %v87 = vld [vmem:[#allocation2 + $0xf0] sm:$0xff]
    %v88 = vld [vmem:[#allocation2 + $0xf8] sm:$0xff]
    %v89 = vld [vmem:[#allocation2 + $0x100] sm:$0xff]
    %v90 = vld [vmem:[#allocation2 + $0x108] sm:$0xff]
    %v91 = vld [vmem:[#allocation2 + $0x110] sm:$0xff]
    %v92 = vld [vmem:[#allocation2 + $0x118] sm:$0xff]
    %v93 = vld [vmem:[#allocation2 + $0x120] sm:$0xff]
    %v94 = vld [vmem:[#allocation2 + $0x128] sm:$0xff]
    %v95 = vld [vmem:[#allocation2 + $0x130] sm:$0xff]
    %v96 = vld [vmem:[#allocation2 + $0x138] sm:$0xff]
    %v97 = vld [vmem:[#allocation2 + $0x140] sm:$0xff]
    %v98 = vld [vmem:[#allocation2 + $0x148] sm:$0xff]
    %v99 = vld [vmem:[#allocation2 + $0x150] sm:$0xff]
    %v100 = vld [vmem:[#allocation2 + $0x158] sm:$0xff]
    %v101 = vld [vmem:[#allocation2 + $0x160] sm:$0xff]
    %v102 = vld [vmem:[#allocation2 + $0x168] sm:$0xff]
    %v103 = vld [vmem:[#allocation2 + $0x170] sm:$0xff]
    %v104 = vld [vmem:[#allocation2 + $0x178] sm:$0xff]
    %105 = vmatprep.subr.mxu0 %v58
    %106 = vmatpush1.msra.mxu0 %v57
    %107 = vmatprep.subr.mxu0 %v61
    %108 = vmatpush1.msra.mxu0 %v60
    %109 = vmatprep.subr.mxu0 %v64
    %110 = vmatpush1.msra.mxu0 %v63
    %111 = vmatprep.subr.mxu0 %v67
    %112 = vmatpush1.msra.mxu0 %v66
    %113 = vmatprep.subr.mxu0 %v70
    %114 = vmatpush1.msra.mxu0 %v69
    %115 = vmatprep.subr.mxu0 %v73
    %116 = vmatpush1.msra.mxu0 %v72
    %117 = vmatprep.subr.mxu0 %v76
    %118 = vmatpush1.msra.mxu0 %v75
    %119 = vmatprep.subr.mxu0 %v79
    %120 = vmatpush1.msra.mxu0 %v78
    %121 = vmatprep.subr.mxu0 %v82
    %122 = vmatpush1.msra.mxu0 %v81
    %123 = vmatprep.subr.mxu0 %v85
    %124 = vmatpush1.msra.mxu0 %v84
    %125 = vmatprep.subr.mxu0 %v88
    %126 = vmatpush1.msra.mxu0 %v87
    %127 = vmatprep.subr.mxu0 %v91
    %128 = vmatpush1.msra.mxu0 %v90
    %129 = vmatprep.subr.mxu0 %v94
    %130 = vmatpush1.msra.mxu0 %v93
    %131 = vmatprep.subr.mxu0 %v97
    %132 = vmatpush1.msra.mxu0 %v96
    %133 = vmatprep.subr.mxu0 %v100
    %134 = vmatpush1.msra.mxu0 %v99
    %135 = vmatprep.subr.mxu0 %v103
    %136 = vmatpush1.msra.mxu0 %v102
    %137 = vmatprep.subr.mxu0 0.0
    %138 = vmatpush1.msra.mxu0 0.0
    %139 = vmatprep.subr.mxu0 0.0
    %140 = vmatpush1.msra.mxu0 0.0
    %141 = vmatprep.subr.mxu0 0.0
    %142 = vmatpush1.msra.mxu0 0.0
    %143 = vmatprep.subr.mxu0 0.0
    %144 = vmatpush1.msra.mxu0 0.0
    %145 = vmatprep.subr.mxu0 0.0
    %146 = vmatpush1.msra.mxu0 0.0
    %147 = vmatprep.subr.mxu0 0.0
    %148 = vmatpush1.msra.mxu0 0.0
    %149 = vmatprep.subr.mxu0 0.0
    %150 = vmatpush1.msra.mxu0 0.0
    %151 = vmatprep.subr.mxu0 0.0
    %152 = vmatpush1.msra.mxu0 0.0
    %153 = vmatprep.subr.mxu0 0.0
    %154 = vmatpush1.msra.mxu0 0.0
    %155 = vmatprep.subr.mxu0 0.0
    %156 = vmatpush1.msra.mxu0 0.0
    %157 = vmatprep.subr.mxu0 0.0
    %158 = vmatpush1.msra.mxu0 0.0
    %159 = vmatprep.subr.mxu0 0.0
    %160 = vmatpush1.msra.mxu0 0.0
    %161 = vmatprep.subr.mxu0 0.0
    %162 = vmatpush1.msra.mxu0 0.0
    %163 = vmatprep.subr.mxu0 0.0
    %164 = vmatpush1.msra.mxu0 0.0
    %165 = vmatprep.subr.mxu0 0.0
    %166 = vmatpush1.msra.mxu0 0.0
    %167 = vmatprep.subr.mxu0 0.0
    %168 = vmatpush1.msra.mxu0 0.0
    %169 = vmatprep.mubr.f32.mxu0 0.0
    %170 = vmatmul.mubr.f32.gmra.mrb[0].mxu0 0.0
    %v171 = vpop.f32.mrb[0].mxu0
    %v172 = vadd.f32 0.0, %v171
    %v173 = vpop.f32.mrb[0].mxu0
    %v174 = vadd.f32 0.0, %v173
    %175 = vdwg.mxu0
    %176 = vmatprep.subr.mxu0 0.0
    %177 = vmatpush1.msra.mxu0 %v59
    %178 = vmatprep.subr.mxu0 0.0
    %179 = vmatpush1.msra.mxu0 %v62
    %180 = vmatprep.subr.mxu0 0.0
    %181 = vmatpush1.msra.mxu0 %v65
    %182 = vmatprep.subr.mxu0 0.0
    %183 = vmatpush1.msra.mxu0 %v68
    %184 = vmatprep.subr.mxu0 0.0
    %185 = vmatpush1.msra.mxu0 %v71
    %186 = vmatprep.subr.mxu0 0.0
    %187 = vmatpush1.msra.mxu0 %v74
    %188 = vmatprep.subr.mxu0 0.0
    %189 = vmatpush1.msra.mxu0 %v77
    %190 = vmatprep.subr.mxu0 0.0
    %191 = vmatpush1.msra.mxu0 %v80
    %192 = vmatprep.subr.mxu0 0.0
    %193 = vmatpush1.msra.mxu0 %v83
    %194 = vmatprep.subr.mxu0 0.0
    %195 = vmatpush1.msra.mxu0 %v86
    %196 = vmatprep.subr.mxu0 0.0
    %197 = vmatpush1.msra.mxu0 %v89
    %198 = vmatprep.subr.mxu0 0.0
    %199 = vmatpush1.msra.mxu0 %v92
    %200 = vmatprep.subr.mxu0 0.0
    %201 = vmatpush1.msra.mxu0 %v95
    %202 = vmatprep.subr.mxu0 0.0
    %203 = vmatpush1.msra.mxu0 %v98
    %204 = vmatprep.subr.mxu0 0.0
    %205 = vmatpush1.msra.mxu0 %v101
    %206 = vmatprep.subr.mxu0 0.0
    %207 = vmatpush1.msra.mxu0 %v104
    %208 = vmatprep.subr.mxu0 0.0
    %209 = vmatpush1.msra.mxu0 0.0
    %210 = vmatprep.subr.mxu0 0.0
    %211 = vmatpush1.msra.mxu0 0.0
    %212 = vmatprep.subr.mxu0 0.0
    %213 = vmatpush1.msra.mxu0 0.0
    %214 = vmatprep.subr.mxu0 0.0
    %215 = vmatpush1.msra.mxu0 0.0
    %216 = vmatprep.subr.mxu0 0.0
    %217 = vmatpush1.msra.mxu0 0.0
    %218 = vmatprep.subr.mxu0 0.0
    %219 = vmatpush1.msra.mxu0 0.0
    %220 = vmatprep.subr.mxu0 0.0
    %221 = vmatpush1.msra.mxu0 0.0
    %222 = vmatprep.subr.mxu0 0.0
    %223 = vmatpush1.msra.mxu0 0.0
    %224 = vmatprep.subr.mxu0 0.0
    %225 = vmatpush1.msra.mxu0 0.0
    %226 = vmatprep.subr.mxu0 0.0
    %227 = vmatpush1.msra.mxu0 0.0
    %228 = vmatprep.subr.mxu0 0.0
    %229 = vmatpush1.msra.mxu0 0.0
    %230 = vmatprep.subr.mxu0 0.0
    %231 = vmatpush1.msra.mxu0 0.0
    %232 = vmatprep.subr.mxu0 0.0
    %233 = vmatpush1.msra.mxu0 0.0
    %234 = vmatprep.subr.mxu0 0.0
    %235 = vmatpush1.msra.mxu0 0.0
    %236 = vmatprep.subr.mxu0 0.0
    %237 = vmatpush1.msra.mxu0 0.0
    %238 = vmatprep.subr.mxu0 0.0
    %239 = vmatpush1.msra.mxu0 0.0
    %240 = vmatprep.mubr.f32.mxu0 0.0
    %241 = vmatmul.mubr.f32.gmra.mrb[0].mxu0 0.0
    %v242 = vpop.f32.mrb[0].mxu0
    %v243 = vadd.f32 0.0, %v242
    %v244 = vpop.f32.mrb[0].mxu0
    %245 = vdwg.mxu0
    %v246 = vadd.f32 %v55, %v172
    %v247 = vxor.u32 %v246, 2147483648
    %v248 = vmul.f32 %v247, 1.442695
    %v249 = vpow.pop %v248
    %v250 = vadd.f32 %v249, 1.0
    %v251 = vrcp.pop %v250
    %v252 = vmul.f32 1.0, %v251
    %v254 = vrot.slane %v55, 4
    %v256 = vadd.f32 %v254, %v174
    %v257 = vxor.u32 %v256, 2147483648
    %v258 = vmul.f32 %v257, 1.442695
    %v259 = vpow.pop %v258
    %v260 = vadd.f32 %v259, 1.0
    %v261 = vrcp.pop %v260
    %v262 = vmul.f32 1.0, %v261
    %v263 = vld [vmem:[%s4] sm:$0x1]
    %v265 = vlaneseq
    %v266 = vshrl.u32 %v265, 7
    %v267 = vsub.s32 0, %v266
    %v268 = vrot.slane %v263, %v267
    %v270 = vadd.f32 %v243, %v268
    %v271 = vmul.f32 %v252, %v270
    %v272 = vadd.f32 %v56, %v271
    %v273 = vtanh.pop %v272
    %v274 = vsub.f32 1.0, %v262
    %v275 = vmul.f32 %v274, %v273
    %v276 = vmul.f32 %v262, 0.0
    %v277 = vadd.f32 %v275, %v276
    %s278 = scalar_lea.vmem %s1, 84
    %v279 = vld [vmem:[%s278] sm:$0xff]
    %v280 = vld [vmem:[%s278 + $0x8] sm:$0xf]
    %v281 = vld [vmem:[#allocation4] sm:$0xff]
    %v282 = vld [vmem:[#allocation4 + $0x8] sm:$0xff]
    %v283 = vld [vmem:[#allocation4 + $0x10] sm:$0xff]
    %v284 = vld [vmem:[#allocation4 + $0x18] sm:$0xff]
    %v285 = vld [vmem:[#allocation4 + $0x20] sm:$0xff]
    %v286 = vld [vmem:[#allocation4 + $0x28] sm:$0xff]
    %v287 = vld [vmem:[#allocation4 + $0x30] sm:$0xff]
    %v288 = vld [vmem:[#allocation4 + $0x38] sm:$0xff]
    %v289 = vld [vmem:[#allocation4 + $0x40] sm:$0xff]
    %v290 = vld [vmem:[#allocation4 + $0x48] sm:$0xff]
    %v291 = vld [vmem:[#allocation4 + $0x50] sm:$0xff]
    %v292 = vld [vmem:[#allocation4 + $0x58] sm:$0xff]
    %v293 = vld [vmem:[#allocation4 + $0x60] sm:$0xff]
    %v294 = vld [vmem:[#allocation4 + $0x68] sm:$0xff]
    %v295 = vld [vmem:[#allocation4 + $0x70] sm:$0xff]
    %v296 = vld [vmem:[#allocation4 + $0x78] sm:$0xff]
    %v297 = vld [vmem:[#allocation4 + $0x80] sm:$0xff]
    %v298 = vld [vmem:[#allocation4 + $0x88] sm:$0xff]
    %v299 = vld [vmem:[#allocation4 + $0x90] sm:$0xff]
    %v300 = vld [vmem:[#allocation4 + $0x98] sm:$0xff]
    %v301 = vld [vmem:[#allocation4 + $0xa0] sm:$0xff]
    %v302 = vld [vmem:[#allocation4 + $0xa8] sm:$0xff]
    %v303 = vld [vmem:[#allocation4 + $0xb0] sm:$0xff]
    %v304 = vld [vmem:[#allocation4 + $0xb8] sm:$0xff]
    %v305 = vld [vmem:[#allocation4 + $0xc0] sm:$0xff]
    %v306 = vld [vmem:[#allocation4 + $0xc8] sm:$0xff]
    %v307 = vld [vmem:[#allocation4 + $0xd0] sm:$0xff]
    %v308 = vld [vmem:[#allocation4 + $0xd8] sm:$0xff]
    %v309 = vld [vmem:[#allocation4 + $0xe0] sm:$0xff]
    %v310 = vld [vmem:[#allocation4 + $0xe8] sm:$0xff]
    %v311 = vld [vmem:[#allocation4 + $0xf0] sm:$0xff]
    %v312 = vld [vmem:[#allocation4 + $0xf8] sm:$0xff]
    %v313 = vld [vmem:[#allocation4 + $0x100] sm:$0xff]
    %v314 = vld [vmem:[#allocation4 + $0x108] sm:$0xff]
    %v315 = vld [vmem:[#allocation4 + $0x110] sm:$0xff]
    %v316 = vld [vmem:[#allocation4 + $0x118] sm:$0xff]
    %v317 = vld [vmem:[#allocation4 + $0x120] sm:$0xff]
    %v318 = vld [vmem:[#allocation4 + $0x128] sm:$0xff]
    %v319 = vld [vmem:[#allocation4 + $0x130] sm:$0xff]
    %v320 = vld [vmem:[#allocation4 + $0x138] sm:$0xff]
    %v321 = vld [vmem:[#allocation4 + $0x140] sm:$0xff]
    %v322 = vld [vmem:[#allocation4 + $0x148] sm:$0xff]
    %v323 = vld [vmem:[#allocation4 + $0x150] sm:$0xff]
    %v324 = vld [vmem:[#allocation4 + $0x158] sm:$0xff]
    %v325 = vld [vmem:[#allocation4 + $0x160] sm:$0xff]
    %v326 = vld [vmem:[#allocation4 + $0x168] sm:$0xff]
    %v327 = vld [vmem:[#allocation4 + $0x170] sm:$0xff]
    %v328 = vld [vmem:[#allocation4 + $0x178] sm:$0xff]
    %329 = vmatprep.subr.mxu0 %v282
    %330 = vmatpush1.msra.mxu0 %v281
    %331 = vmatprep.subr.mxu0 %v285
    %332 = vmatpush1.msra.mxu0 %v284
    %333 = vmatprep.subr.mxu0 %v288
    %334 = vmatpush1.msra.mxu0 %v287
    %335 = vmatprep.subr.mxu0 %v291
    %336 = vmatpush1.msra.mxu0 %v290
    %337 = vmatprep.subr.mxu0 %v294
    %338 = vmatpush1.msra.mxu0 %v293
    %339 = vmatprep.subr.mxu0 %v297
    %340 = vmatpush1.msra.mxu0 %v296
    %341 = vmatprep.subr.mxu0 %v300
    %342 = vmatpush1.msra.mxu0 %v299
    %343 = vmatprep.subr.mxu0 %v303
    %344 = vmatpush1.msra.mxu0 %v302
    %345 = vmatprep.subr.mxu0 %v306
    %346 = vmatpush1.msra.mxu0 %v305
    %347 = vmatprep.subr.mxu0 %v309
    %348 = vmatpush1.msra.mxu0 %v308
    %349 = vmatprep.subr.mxu0 %v312
    %350 = vmatpush1.msra.mxu0 %v311
    %351 = vmatprep.subr.mxu0 %v315
    %352 = vmatpush1.msra.mxu0 %v314
    %353 = vmatprep.subr.mxu0 %v318
    %354 = vmatpush1.msra.mxu0 %v317
    %355 = vmatprep.subr.mxu0 %v321
    %356 = vmatpush1.msra.mxu0 %v320
    %357 = vmatprep.subr.mxu0 %v324
    %358 = vmatpush1.msra.mxu0 %v323
    %359 = vmatprep.subr.mxu0 %v327
    %360 = vmatpush1.msra.mxu0 %v326
    %361 = vmatprep.subr.mxu0 0.0
    %362 = vmatpush1.msra.mxu0 0.0
    %363 = vmatprep.subr.mxu0 0.0
    %364 = vmatpush1.msra.mxu0 0.0
    %365 = vmatprep.subr.mxu0 0.0
    %366 = vmatpush1.msra.mxu0 0.0
    %367 = vmatprep.subr.mxu0 0.0
    %368 = vmatpush1.msra.mxu0 0.0
    %369 = vmatprep.subr.mxu0 0.0
    %370 = vmatpush1.msra.mxu0 0.0
    %371 = vmatprep.subr.mxu0 0.0
    %372 = vmatpush1.msra.mxu0 0.0
    %373 = vmatprep.subr.mxu0 0.0
    %374 = vmatpush1.msra.mxu0 0.0
    %375 = vmatprep.subr.mxu0 0.0
    %376 = vmatpush1.msra.mxu0 0.0
    %377 = vmatprep.subr.mxu0 0.0
    %378 = vmatpush1.msra.mxu0 0.0
    %379 = vmatprep.subr.mxu0 0.0
    %380 = vmatpush1.msra.mxu0 0.0
    %381 = vmatprep.subr.mxu0 0.0
    %382 = vmatpush1.msra.mxu0 0.0
    %383 = vmatprep.subr.mxu0 0.0
    %384 = vmatpush1.msra.mxu0 0.0
    %385 = vmatprep.subr.mxu0 0.0
    %386 = vmatpush1.msra.mxu0 0.0
    %387 = vmatprep.subr.mxu0 0.0
    %388 = vmatpush1.msra.mxu0 0.0
    %389 = vmatprep.subr.mxu0 0.0
    %390 = vmatpush1.msra.mxu0 0.0
    %391 = vmatprep.subr.mxu0 0.0
    %392 = vmatpush1.msra.mxu0 0.0
    %393 = vmatprep.mubr.f32.mxu0 0.0
    %394 = vmatmul.mubr.f32.gmra.mrb[0].mxu0 0.0
    %v395 = vpop.f32.mrb[0].mxu0
    %v396 = vadd.f32 0.0, %v395
    %v397 = vpop.f32.mrb[0].mxu0
    %v398 = vadd.f32 0.0, %v397
    %399 = vdwg.mxu0
    %400 = vmatprep.subr.mxu0 0.0
    %401 = vmatpush1.msra.mxu0 %v283
    %402 = vmatprep.subr.mxu0 0.0
    %403 = vmatpush1.msra.mxu0 %v286
    %404 = vmatprep.subr.mxu0 0.0
    %405 = vmatpush1.msra.mxu0 %v289
    %406 = vmatprep.subr.mxu0 0.0
    %407 = vmatpush1.msra.mxu0 %v292
    %408 = vmatprep.subr.mxu0 0.0
    %409 = vmatpush1.msra.mxu0 %v295
    %410 = vmatprep.subr.mxu0 0.0
    %411 = vmatpush1.msra.mxu0 %v298
    %412 = vmatprep.subr.mxu0 0.0
    %413 = vmatpush1.msra.mxu0 %v301
    %414 = vmatprep.subr.mxu0 0.0
    %415 = vmatpush1.msra.mxu0 %v304
    %416 = vmatprep.subr.mxu0 0.0
    %417 = vmatpush1.msra.mxu0 %v307
    %418 = vmatprep.subr.mxu0 0.0
    %419 = vmatpush1.msra.mxu0 %v310
    %420 = vmatprep.subr.mxu0 0.0
    %421 = vmatpush1.msra.mxu0 %v313
    %422 = vmatprep.subr.mxu0 0.0
    %423 = vmatpush1.msra.mxu0 %v316
    %424 = vmatprep.subr.mxu0 0.0
    %425 = vmatpush1.msra.mxu0 %v319
    %426 = vmatprep.subr.mxu0 0.0
    %427 = vmatpush1.msra.mxu0 %v322
    %428 = vmatprep.subr.mxu0 0.0
    %429 = vmatpush1.msra.mxu0 %v325
    %430 = vmatprep.subr.mxu0 0.0
    %431 = vmatpush1.msra.mxu0 %v328
    %432 = vmatprep.subr.mxu0 0.0
    %433 = vmatpush1.msra.mxu0 0.0
    %434 = vmatprep.subr.mxu0 0.0
    %435 = vmatpush1.msra.mxu0 0.0
    %436 = vmatprep.subr.mxu0 0.0
    %437 = vmatpush1.msra.mxu0 0.0
    %438 = vmatprep.subr.mxu0 0.0
    %439 = vmatpush1.msra.mxu0 0.0
    %440 = vmatprep.subr.mxu0 0.0
    %441 = vmatpush1.msra.mxu0 0.0
    %442 = vmatprep.subr.mxu0 0.0
    %443 = vmatpush1.msra.mxu0 0.0
    %444 = vmatprep.subr.mxu0 0.0
    %445 = vmatpush1.msra.mxu0 0.0
    %446 = vmatprep.subr.mxu0 0.0
    %447 = vmatpush1.msra.mxu0 0.0
    %448 = vmatprep.subr.mxu0 0.0
    %449 = vmatpush1.msra.mxu0 0.0
    %450 = vmatprep.subr.mxu0 0.0
    %451 = vmatpush1.msra.mxu0 0.0
    %452 = vmatprep.subr.mxu0 0.0
    %453 = vmatpush1.msra.mxu0 0.0
    %454 = vmatprep.subr.mxu0 0.0
    %455 = vmatpush1.msra.mxu0 0.0
    %456 = vmatprep.subr.mxu0 0.0
    %457 = vmatpush1.msra.mxu0 0.0
    %458 = vmatprep.subr.mxu0 0.0
    %459 = vmatpush1.msra.mxu0 0.0
    %460 = vmatprep.subr.mxu0 0.0
    %461 = vmatpush1.msra.mxu0 0.0
    %462 = vmatprep.subr.mxu0 0.0
    %463 = vmatpush1.msra.mxu0 0.0
    %464 = vmatprep.mubr.f32.mxu0 0.0
    %465 = vmatmul.mubr.f32.gmra.mrb[0].mxu0 0.0
    %v466 = vpop.f32.mrb[0].mxu0
    %v467 = vadd.f32 0.0, %v466
    %v468 = vpop.f32.mrb[0].mxu0
    %469 = vdwg.mxu0
    %v470 = vadd.f32 %v279, %v396
    %v471 = vxor.u32 %v470, 2147483648
    %v472 = vmul.f32 %v471, 1.442695
    %v473 = vpow.pop %v472
    %v474 = vadd.f32 %v473, 1.0
    %v475 = vrcp.pop %v474
    %v476 = vmul.f32 1.0, %v475
    %v478 = vrot.slane %v279, 4
    %v480 = vadd.f32 %v478, %v398
    %v481 = vxor.u32 %v480, 2147483648
    %v482 = vmul.f32 %v481, 1.442695
    %v483 = vpow.pop %v482
    %v484 = vadd.f32 %v483, 1.0
    %v485 = vrcp.pop %v484
    %v486 = vmul.f32 1.0, %v485
    %v487 = vld [vmem:[%s6] sm:$0x1]
    %v489 = vlaneseq
    %v490 = vshrl.u32 %v489, 7
    %v491 = vsub.s32 0, %v490
    %v492 = vrot.slane %v487, %v491
    %v494 = vadd.f32 %v467, %v492
    %v495 = vmul.f32 %v476, %v494
    %v496 = vadd.f32 %v280, %v495
    %v497 = vtanh.pop %v496
    %v498 = vsub.f32 1.0, %v486
    %v499 = vmul.f32 %v498, %v497
    %v500 = vmul.f32 %v486, 0.0
    %v501 = vadd.f32 %v499, %v500
    %vm502 = vcmp.lt.f32.partialorder 0.0, %v54
    %v503 = vsel %vm502, 1, 0
    %504 = vset.pattern.permute.xlu0 0
    %505 = vperm.xlu0 %504, %v503
    %v506 = vpop.permute.xlu0 %505
    %vm507 = vcmp.eq.s32.totalorder %v506, 1
    %v508 = vsel %vm507, %v277, 0.0
    %v509 = vadd.f32 %v508, 0.0
    %vm510 = vcmp.lt.f32.partialorder 7.0, %v54
    %v511 = vsel %vm510, 1, 0
    %512 = vset.pattern.permute.xlu0 0
    %513 = vperm.xlu0 %512, %v511
    %v514 = vpop.permute.xlu0 %513
    %vm515 = vcmp.eq.s32.totalorder %v514, 1
    %v516 = vsel %vm515, %v501, 0.0
    %v517 = vadd.f32 %v516, 0.0
    %s518 = scalar_lea.vmem %s0, 12
    %v519 = vld [vmem:[%s518] sm:$0xff]
    %v520 = vld [vmem:[%s518 + $0x8] sm:$0xf]
    %521 = vmatprep.subr.mxu0 %v58
    %522 = vmatpush1.msra.mxu0 %v57
    %523 = vmatprep.subr.mxu0 %v61
    %524 = vmatpush1.msra.mxu0 %v60
    %525 = vmatprep.subr.mxu0 %v64
    %526 = vmatpush1.msra.mxu0 %v63
    %527 = vmatprep.subr.mxu0 %v67
    %528 = vmatpush1.msra.mxu0 %v66
    %529 = vmatprep.subr.mxu0 %v70
    %530 = vmatpush1.msra.mxu0 %v69
    %531 = vmatprep.subr.mxu0 %v73
    %532 = vmatpush1.msra.mxu0 %v72
    %533 = vmatprep.subr.mxu0 %v76
    %534 = vmatpush1.msra.mxu0 %v75
    %535 = vmatprep.subr.mxu0 %v79
    %536 = vmatpush1.msra.mxu0 %v78
    %537 = vmatprep.subr.mxu0 %v82
    %538 = vmatpush1.msra.mxu0 %v81
    %539 = vmatprep.subr.mxu0 %v85
    %540 = vmatpush1.msra.mxu0 %v84
    %541 = vmatprep.subr.mxu0 %v88
    %542 = vmatpush1.msra.mxu0 %v87
    %543 = vmatprep.subr.mxu0 %v91
    %544 = vmatpush1.msra.mxu0 %v90
    %545 = vmatprep.subr.mxu0 %v94
    %546 = vmatpush1.msra.mxu0 %v93
    %547 = vmatprep.subr.mxu0 %v97
    %548 = vmatpush1.msra.mxu0 %v96
    %549 = vmatprep.subr.mxu0 %v100
    %550 = vmatpush1.msra.mxu0 %v99
    %551 = vmatprep.subr.mxu0 %v103
    %552 = vmatpush1.msra.mxu0 %v102
    %553 = vmatprep.subr.mxu0 0.0
    %554 = vmatpush1.msra.mxu0 0.0
    %555 = vmatprep.subr.mxu0 0.0
    %556 = vmatpush1.msra.mxu0 0.0
    %557 = vmatprep.subr.mxu0 0.0
    %558 = vmatpush1.msra.mxu0 0.0
    %559 = vmatprep.subr.mxu0 0.0
    %560 = vmatpush1.msra.mxu0 0.0
    %561 = vmatprep.subr.mxu0 0.0
    %562 = vmatpush1.msra.mxu0 0.0
    %563 = vmatprep.subr.mxu0 0.0
    %564 = vmatpush1.msra.mxu0 0.0
    %565 = vmatprep.subr.mxu0 0.0
    %566 = vmatpush1.msra.mxu0 0.0
    %567 = vmatprep.subr.mxu0 0.0
    %568 = vmatpush1.msra.mxu0 0.0
    %569 = vmatprep.subr.mxu0 0.0
    %570 = vmatpush1.msra.mxu0 0.0
    %571 = vmatprep.subr.mxu0 0.0
    %572 = vmatpush1.msra.mxu0 0.0
    %573 = vmatprep.subr.mxu0 0.0
    %574 = vmatpush1.msra.mxu0 0.0
    %575 = vmatprep.subr.mxu0 0.0
    %576 = vmatpush1.msra.mxu0 0.0
    %577 = vmatprep.subr.mxu0 0.0
    %578 = vmatpush1.msra.mxu0 0.0
    %579 = vmatprep.subr.mxu0 0.0
    %580 = vmatpush1.msra.mxu0 0.0
    %581 = vmatprep.subr.mxu0 0.0
    %582 = vmatpush1.msra.mxu0 0.0
    %583 = vmatprep.subr.mxu0 0.0
    %584 = vmatpush1.msra.mxu0 0.0
    %585 = vmatprep.mubr.f32.mxu0 0.0
    %586 = vmatmul.mubr.f32.gmra.mrb[0].mxu0 %v277
    %v587 = vpop.f32.mrb[0].mxu0
    %v588 = vadd.f32 0.0, %v587
    %v589 = vpop.f32.mrb[0].mxu0
    %v590 = vadd.f32 0.0, %v589
    %591 = vdwg.mxu0
    %592 = vmatprep.subr.mxu0 0.0
    %593 = vmatpush1.msra.mxu0 %v59
    %594 = vmatprep.subr.mxu0 0.0
    %595 = vmatpush1.msra.mxu0 %v62
    %596 = vmatprep.subr.mxu0 0.0
    %597 = vmatpush1.msra.mxu0 %v65
    %598 = vmatprep.subr.mxu0 0.0
    %599 = vmatpush1.msra.mxu0 %v68
    %600 = vmatprep.subr.mxu0 0.0
    %601 = vmatpush1.msra.mxu0 %v71
    %602 = vmatprep.subr.mxu0 0.0
    %603 = vmatpush1.msra.mxu0 %v74
    %604 = vmatprep.subr.mxu0 0.0
    %605 = vmatpush1.msra.mxu0 %v77
    %606 = vmatprep.subr.mxu0 0.0
    %607 = vmatpush1.msra.mxu0 %v80
    %608 = vmatprep.subr.mxu0 0.0
    %609 = vmatpush1.msra.mxu0 %v83
    %610 = vmatprep.subr.mxu0 0.0
    %611 = vmatpush1.msra.mxu0 %v86
    %612 = vmatprep.subr.mxu0 0.0
    %613 = vmatpush1.msra.mxu0 %v89
    %614 = vmatprep.subr.mxu0 0.0
    %615 = vmatpush1.msra.mxu0 %v92
    %616 = vmatprep.subr.mxu0 0.0
    %617 = vmatpush1.msra.mxu0 %v95
    %618 = vmatprep.subr.mxu0 0.0
    %619 = vmatpush1.msra.mxu0 %v98
    %620 = vmatprep.subr.mxu0 0.0
    %621 = vmatpush1.msra.mxu0 %v101
    %622 = vmatprep.subr.mxu0 0.0
    %623 = vmatpush1.msra.mxu0 %v104
    %624 = vmatprep.subr.mxu0 0.0
    %625 = vmatpush1.msra.mxu0 0.0
    %626 = vmatprep.subr.mxu0 0.0
    %627 = vmatpush1.msra.mxu0 0.0
    %628 = vmatprep.subr.mxu0 0.0
    %629 = vmatpush1.msra.mxu0 0.0
    %630 = vmatprep.subr.mxu0 0.0
    %631 = vmatpush1.msra.mxu0 0.0
    %632 = vmatprep.subr.mxu0 0.0
    %633 = vmatpush1.msra.mxu0 0.0
    %634 = vmatprep.subr.mxu0 0.0
    %635 = vmatpush1.msra.mxu0 0.0
    %636 = vmatprep.subr.mxu0 0.0
    %637 = vmatpush1.msra.mxu0 0.0
    %638 = vmatprep.subr.mxu0 0.0
    %639 = vmatpush1.msra.mxu0 0.0
    %640 = vmatprep.subr.mxu0 0.0
    %641 = vmatpush1.msra.mxu0 0.0
    %642 = vmatprep.subr.mxu0 0.0
    %643 = vmatpush1.msra.mxu0 0.0
    %644 = vmatprep.subr.mxu0 0.0
    %645 = vmatpush1.msra.mxu0 0.0
    %646 = vmatprep.subr.mxu0 0.0
    %647 = vmatpush1.msra.mxu0 0.0
    %648 = vmatprep.subr.mxu0 0.0
    %649 = vmatpush1.msra.mxu0 0.0
    %650 = vmatprep.subr.mxu0 0.0
    %651 = vmatpush1.msra.mxu0 0.0
    %652 = vmatprep.subr.mxu0 0.0
    %653 = vmatpush1.msra.mxu0 0.0
    %654 = vmatprep.subr.mxu0 0.0
    %655 = vmatpush1.msra.mxu0 0.0
    %656 = vmatprep.mubr.f32.mxu0 0.0
    %657 = vmatmul.mubr.f32.gmra.mrb[0].mxu0 %v277
    %v658 = vpop.f32.mrb[0].mxu0
    %v659 = vadd.f32 0.0, %v658
    %v660 = vpop.f32.mrb[0].mxu0
    %661 = vdwg.mxu0
    %v662 = vadd.f32 %v519, %v588
    %v663 = vxor.u32 %v662, 2147483648
    %v664 = vmul.f32 %v663, 1.442695
    %v665 = vpow.pop %v664
    %v666 = vadd.f32 %v665, 1.0
    %v667 = vrcp.pop %v666
    %v668 = vmul.f32 1.0, %v667
    %v670 = vrot.slane %v519, 4
    %v672 = vadd.f32 %v670, %v590
    %v673 = vxor.u32 %v672, 2147483648
    %v674 = vmul.f32 %v673, 1.442695
    %v675 = vpow.pop %v674
    %v676 = vadd.f32 %v675, 1.0
    %v677 = vrcp.pop %v676
    %v678 = vmul.f32 1.0, %v677
    %v679 = vadd.f32 %v659, %v268
    %v680 = vmul.f32 %v668, %v679
    %v681 = vadd.f32 %v520, %v680
    %v682 = vtanh.pop %v681
    %v683 = vsub.f32 1.0, %v678
    %v684 = vmul.f32 %v683, %v682
    %v685 = vmul.f32 %v678, %v277
    %v686 = vadd.f32 %v684, %v685
    %s687 = scalar_lea.vmem %s1, 72
    %v688 = vld [vmem:[%s687] sm:$0xff]
    %v689 = vld [vmem:[%s687 + $0x8] sm:$0xf]
    %690 = vmatprep.subr.mxu0 %v282
    %691 = vmatpush1.msra.mxu0 %v281
    %692 = vmatprep.subr.mxu0 %v285
    %693 = vmatpush1.msra.mxu0 %v284
    %694 = vmatprep.subr.mxu0 %v288
    %695 = vmatpush1.msra.mxu0 %v287
    %696 = vmatprep.subr.mxu0 %v291
    %697 = vmatpush1.msra.mxu0 %v290
    %698 = vmatprep.subr.mxu0 %v294
    %699 = vmatpush1.msra.mxu0 %v293
    %700 = vmatprep.subr.mxu0 %v297
    %701 = vmatpush1.msra.mxu0 %v296
    %702 = vmatprep.subr.mxu0 %v300
    %703 = vmatpush1.msra.mxu0 %v299
    %704 = vmatprep.subr.mxu0 %v303
    %705 = vmatpush1.msra.mxu0 %v302
    %706 = vmatprep.subr.mxu0 %v306
    %707 = vmatpush1.msra.mxu0 %v305
    %708 = vmatprep.subr.mxu0 %v309
    %709 = vmatpush1.msra.mxu0 %v308
    %710 = vmatprep.subr.mxu0 %v312
    %711 = vmatpush1.msra.mxu0 %v311
    %712 = vmatprep.subr.mxu0 %v315
    %713 = vmatpush1.msra.mxu0 %v314
    %714 = vmatprep.subr.mxu0 %v318
    %715 = vmatpush1.msra.mxu0 %v317
    %716 = vmatprep.subr.mxu0 %v321
    %717 = vmatpush1.msra.mxu0 %v320
    %718 = vmatprep.subr.mxu0 %v324
    %719 = vmatpush1.msra.mxu0 %v323
    %720 = vmatprep.subr.mxu0 %v327
    %721 = vmatpush1.msra.mxu0 %v326
    %722 = vmatprep.subr.mxu0 0.0
    %723 = vmatpush1.msra.mxu0 0.0
    %724 = vmatprep.subr.mxu0 0.0
    %725 = vmatpush1.msra.mxu0 0.0
    %726 = vmatprep.subr.mxu0 0.0
    %727 = vmatpush1.msra.mxu0 0.0
    %728 = vmatprep.subr.mxu0 0.0
    %729 = vmatpush1.msra.mxu0 0.0
    %730 = vmatprep.subr.mxu0 0.0
    %731 = vmatpush1.msra.mxu0 0.0
    %732 = vmatprep.subr.mxu0 0.0
    %733 = vmatpush1.msra.mxu0 0.0
    %734 = vmatprep.subr.mxu0 0.0
    %735 = vmatpush1.msra.mxu0 0.0
    %736 = vmatprep.subr.mxu0 0.0
    %737 = vmatpush1.msra.mxu0 0.0
    %738 = vmatprep.subr.mxu0 0.0
    %739 = vmatpush1.msra.mxu0 0.0
    %740 = vmatprep.subr.mxu0 0.0
    %741 = vmatpush1.msra.mxu0 0.0
    %742 = vmatprep.subr.mxu0 0.0
    %743 = vmatpush1.msra.mxu0 0.0
    %744 = vmatprep.subr.mxu0 0.0
    %745 = vmatpush1.msra.mxu0 0.0
    %746 = vmatprep.subr.mxu0 0.0
    %747 = vmatpush1.msra.mxu0 0.0
    %748 = vmatprep.subr.mxu0 0.0
    %749 = vmatpush1.msra.mxu0 0.0
    %750 = vmatprep.subr.mxu0 0.0
    %751 = vmatpush1.msra.mxu0 0.0
    %752 = vmatprep.subr.mxu0 0.0
    %753 = vmatpush1.msra.mxu0 0.0
    %754 = vmatprep.mubr.f32.mxu0 0.0
    %755 = vmatmul.mubr.f32.gmra.mrb[0].mxu0 %v501
    %v756 = vpop.f32.mrb[0].mxu0
    %v757 = vadd.f32 0.0, %v756
    %v758 = vpop.f32.mrb[0].mxu0
    %v759 = vadd.f32 0.0, %v758
    %760 = vdwg.mxu0
    %761 = vmatprep.subr.mxu0 0.0
    %762 = vmatpush1.msra.mxu0 %v283
    %763 = vmatprep.subr.mxu0 0.0
    %764 = vmatpush1.msra.mxu0 %v286
    %765 = vmatprep.subr.mxu0 0.0
    %766 = vmatpush1.msra.mxu0 %v289
    %767 = vmatprep.subr.mxu0 0.0
    %768 = vmatpush1.msra.mxu0 %v292
    %769 = vmatprep.subr.mxu0 0.0
    %770 = vmatpush1.msra.mxu0 %v295
    %771 = vmatprep.subr.mxu0 0.0
    %772 = vmatpush1.msra.mxu0 %v298
    %773 = vmatprep.subr.mxu0 0.0
    %774 = vmatpush1.msra.mxu0 %v301
    %775 = vmatprep.subr.mxu0 0.0
    %776 = vmatpush1.msra.mxu0 %v304
    %777 = vmatprep.subr.mxu0 0.0
    %778 = vmatpush1.msra.mxu0 %v307
    %779 = vmatprep.subr.mxu0 0.0
    %780 = vmatpush1.msra.mxu0 %v310
    %781 = vmatprep.subr.mxu0 0.0
    %782 = vmatpush1.msra.mxu0 %v313
    %783 = vmatprep.subr.mxu0 0.0
    %784 = vmatpush1.msra.mxu0 %v316
    %785 = vmatprep.subr.mxu0 0.0
    %786 = vmatpush1.msra.mxu0 %v319
    %787 = vmatprep.subr.mxu0 0.0
    %788 = vmatpush1.msra.mxu0 %v322
    %789 = vmatprep.subr.mxu0 0.0
    %790 = vmatpush1.msra.mxu0 %v325
    %791 = vmatprep.subr.mxu0 0.0
    %792 = vmatpush1.msra.mxu0 %v328
    %793 = vmatprep.subr.mxu0 0.0
    %794 = vmatpush1.msra.mxu0 0.0
    %795 = vmatprep.subr.mxu0 0.0
    %796 = vmatpush1.msra.mxu0 0.0
    %797 = vmatprep.subr.mxu0 0.0
    %798 = vmatpush1.msra.mxu0 0.0
    %799 = vmatprep.subr.mxu0 0.0
    %800 = vmatpush1.msra.mxu0 0.0
    %801 = vmatprep.subr.mxu0 0.0
    %802 = vmatpush1.msra.mxu0 0.0
    %803 = vmatprep.subr.mxu0 0.0
    %804 = vmatpush1.msra.mxu0 0.0
    %805 = vmatprep.subr.mxu0 0.0
    %806 = vmatpush1.msra.mxu0 0.0
    %807 = vmatprep.subr.mxu0 0.0
    %808 = vmatpush1.msra.mxu0 0.0
    %809 = vmatprep.subr.mxu0 0.0
    %810 = vmatpush1.msra.mxu0 0.0
    %811 = vmatprep.subr.mxu0 0.0
    %812 = vmatpush1.msra.mxu0 0.0
    %813 = vmatprep.subr.mxu0 0.0
    %814 = vmatpush1.msra.mxu0 0.0
    %815 = vmatprep.subr.mxu0 0.0
    %816 = vmatpush1.msra.mxu0 0.0
    %817 = vmatprep.subr.mxu0 0.0
    %818 = vmatpush1.msra.mxu0 0.0
    %819 = vmatprep.subr.mxu0 0.0
    %820 = vmatpush1.msra.mxu0 0.0
    %821 = vmatprep.subr.mxu0 0.0
    %822 = vmatpush1.msra.mxu0 0.0
    %823 = vmatprep.subr.mxu0 0.0
    %824 = vmatpush1.msra.mxu0 0.0
    %825 = vmatprep.mubr.f32.mxu0 0.0
    %826 = vmatmul.mubr.f32.gmra.mrb[0].mxu0 %v501
    %v827 = vpop.f32.mrb[0].mxu0
    %v828 = vadd.f32 0.0, %v827
    %v829 = vpop.f32.mrb[0].mxu0
    %830 = vdwg.mxu0
    %v831 = vadd.f32 %v688, %v757
    %v832 = vxor.u32 %v831, 2147483648
    %v833 = vmul.f32 %v832, 1.442695
    %v834 = vpow.pop %v833
    %v835 = vadd.f32 %v834, 1.0
    %v836 = vrcp.pop %v835
    %v837 = vmul.f32 1.0, %v836
    %v839 = vrot.slane %v688, 4
    %v841 = vadd.f32 %v839, %v759
    %v842 = vxor.u32 %v841, 2147483648
    %v843 = vmul.f32 %v842, 1.442695
    %v844 = vpow.pop %v843
    %v845 = vadd.f32 %v844, 1.0
    %v846 = vrcp.pop %v845
    %v847 = vmul.f32 1.0, %v846
    %v848 = vadd.f32 %v828, %v492
    %v849 = vmul.f32 %v837, %v848
    %v850 = vadd.f32 %v689, %v849
    %v851 = vtanh.pop %v850
    %v852 = vsub.f32 1.0, %v847
    %v853 = vmul.f32 %v852, %v851
    %v854 = vmul.f32 %v847, %v501
    %v855 = vadd.f32 %v853, %v854
    %vm856 = vcmp.lt.f32.partialorder 1.0, %v54
    %v857 = vsel %vm856, 1, 0
    %858 = vset.pattern.permute.xlu0 0
    %859 = vperm.xlu0 %858, %v857
    %v860 = vpop.permute.xlu0 %859
    %vm861 = vcmp.eq.s32.totalorder %v860, 1
    %v862 = vsel %vm861, %v686, 0.0
    %v863 = vadd.f32 %v509, %v862
    %vm864 = vcmp.lt.f32.partialorder 6.0, %v54
    %v865 = vsel %vm864, 1, 0
    %866 = vset.pattern.permute.xlu0 0
    %867 = vperm.xlu0 %866, %v865
    %v868 = vpop.permute.xlu0 %867
    %vm869 = vcmp.eq.s32.totalorder %v868, 1
    %v870 = vsel %vm869, %v855, 0.0
    %v871 = vadd.f32 %v517, %v870
    %s872 = scalar_lea.vmem %s0, 24
    %v873 = vld [vmem:[%s872] sm:$0xff]
    %v874 = vld [vmem:[%s872 + $0x8] sm:$0xf]
    %875 = vmatprep.subr.mxu0 %v58
    %876 = vmatpush1.msra.mxu0 %v57
    %877 = vmatprep.subr.mxu0 %v61
    %878 = vmatpush1.msra.mxu0 %v60
    %879 = vmatprep.subr.mxu0 %v64
    %880 = vmatpush1.msra.mxu0 %v63
    %881 = vmatprep.subr.mxu0 %v67
    %882 = vmatpush1.msra.mxu0 %v66
    %883 = vmatprep.subr.mxu0 %v70
    %884 = vmatpush1.msra.mxu0 %v69
    %885 = vmatprep.subr.mxu0 %v73
    %886 = vmatpush1.msra.mxu0 %v72
    %887 = vmatprep.subr.mxu0 %v76
    %888 = vmatpush1.msra.mxu0 %v75
    %889 = vmatprep.subr.mxu0 %v79
    %890 = vmatpush1.msra.mxu0 %v78
    %891 = vmatprep.subr.mxu0 %v82
    %892 = vmatpush1.msra.mxu0 %v81
    %893 = vmatprep.subr.mxu0 %v85
    %894 = vmatpush1.msra.mxu0 %v84
    %895 = vmatprep.subr.mxu0 %v88
    %896 = vmatpush1.msra.mxu0 %v87
    %897 = vmatprep.subr.mxu0 %v91
    %898 = vmatpush1.msra.mxu0 %v90
    %899 = vmatprep.subr.mxu0 %v94
    %900 = vmatpush1.msra.mxu0 %v93
    %901 = vmatprep.subr.mxu0 %v97
    %902 = vmatpush1.msra.mxu0 %v96
    %903 = vmatprep.subr.mxu0 %v100
    %904 = vmatpush1.msra.mxu0 %v99
    %905 = vmatprep.subr.mxu0 %v103
    %906 = vmatpush1.msra.mxu0 %v102
    %907 = vmatprep.subr.mxu0 0.0
    %908 = vmatpush1.msra.mxu0 0.0
    %909 = vmatprep.subr.mxu0 0.0
    %910 = vmatpush1.msra.mxu0 0.0
    %911 = vmatprep.subr.mxu0 0.0
    %912 = vmatpush1.msra.mxu0 0.0
    %913 = vmatprep.subr.mxu0 0.0
    %914 = vmatpush1.msra.mxu0 0.0
    %915 = vmatprep.subr.mxu0 0.0
    %916 = vmatpush1.msra.mxu0 0.0
    %917 = vmatprep.subr.mxu0 0.0
    %918 = vmatpush1.msra.mxu0 0.0
    %919 = vmatprep.subr.mxu0 0.0
    %920 = vmatpush1.msra.mxu0 0.0
    %921 = vmatprep.subr.mxu0 0.0
    %922 = vmatpush1.msra.mxu0 0.0
    %923 = vmatprep.subr.mxu0 0.0
    %924 = vmatpush1.msra.mxu0 0.0
    %925 = vmatprep.subr.mxu0 0.0
    %926 = vmatpush1.msra.mxu0 0.0
    %927 = vmatprep.subr.mxu0 0.0
    %928 = vmatpush1.msra.mxu0 0.0
    %929 = vmatprep.subr.mxu0 0.0
    %930 = vmatpush1.msra.mxu0 0.0
    %931 = vmatprep.subr.mxu0 0.0
    %932 = vmatpush1.msra.mxu0 0.0
    %933 = vmatprep.subr.mxu0 0.0
    %934 = vmatpush1.msra.mxu0 0.0
    %935 = vmatprep.subr.mxu0 0.0
    %936 = vmatpush1.msra.mxu0 0.0
    %937 = vmatprep.subr.mxu0 0.0
    %938 = vmatpush1.msra.mxu0 0.0
    %939 = vmatprep.mubr.f32.mxu0 0.0
    %940 = vmatmul.mubr.f32.gmra.mrb[0].mxu0 %v686
    %v941 = vpop.f32.mrb[0].mxu0
    %v942 = vadd.f32 0.0, %v941
    %v943 = vpop.f32.mrb[0].mxu0
    %v944 = vadd.f32 0.0, %v943
    %945 = vdwg.mxu0
    %946 = vmatprep.subr.mxu0 0.0
    %947 = vmatpush1.msra.mxu0 %v59
    %948 = vmatprep.subr.mxu0 0.0
    %949 = vmatpush1.msra.mxu0 %v62
    %950 = vmatprep.subr.mxu0 0.0
    %951 = vmatpush1.msra.mxu0 %v65
    %952 = vmatprep.subr.mxu0 0.0
    %953 = vmatpush1.msra.mxu0 %v68
    %954 = vmatprep.subr.mxu0 0.0
    %955 = vmatpush1.msra.mxu0 %v71
    %956 = vmatprep.subr.mxu0 0.0
    %957 = vmatpush1.msra.mxu0 %v74
    %958 = vmatprep.subr.mxu0 0.0
    %959 = vmatpush1.msra.mxu0 %v77
    %960 = vmatprep.subr.mxu0 0.0
    %961 = vmatpush1.msra.mxu0 %v80
    %962 = vmatprep.subr.mxu0 0.0
    %963 = vmatpush1.msra.mxu0 %v83
    %964 = vmatprep.subr.mxu0 0.0
    %965 = vmatpush1.msra.mxu0 %v86
    %966 = vmatprep.subr.mxu0 0.0
    %967 = vmatpush1.msra.mxu0 %v89
    %968 = vmatprep.subr.mxu0 0.0
    %969 = vmatpush1.msra.mxu0 %v92
    %970 = vmatprep.subr.mxu0 0.0
    %971 = vmatpush1.msra.mxu0 %v95
    %972 = vmatprep.subr.mxu0 0.0
    %973 = vmatpush1.msra.mxu0 %v98
    %974 = vmatprep.subr.mxu0 0.0
    %975 = vmatpush1.msra.mxu0 %v101
    %976 = vmatprep.subr.mxu0 0.0
    %977 = vmatpush1.msra.mxu0 %v104
    %978 = vmatprep.subr.mxu0 0.0
    %979 = vmatpush1.msra.mxu0 0.0
    %980 = vmatprep.subr.mxu0 0.0
    %981 = vmatpush1.msra.mxu0 0.0
    %982 = vmatprep.subr.mxu0 0.0
    %983 = vmatpush1.msra.mxu0 0.0
    %984 = vmatprep.subr.mxu0 0.0
    %985 = vmatpush1.msra.mxu0 0.0
    %986 = vmatprep.subr.mxu0 0.0
    %987 = vmatpush1.msra.mxu0 0.0
    %988 = vmatprep.subr.mxu0 0.0
    %989 = vmatpush1.msra.mxu0 0.0
    %990 = vmatprep.subr.mxu0 0.0
    %991 = vmatpush1.msra.mxu0 0.0
    %992 = vmatprep.subr.mxu0 0.0
    %993 = vmatpush1.msra.mxu0 0.0
    %994 = vmatprep.subr.mxu0 0.0
    %995 = vmatpush1.msra.mxu0 0.0
    %996 = vmatprep.subr.mxu0 0.0
    %997 = vmatpush1.msra.mxu0 0.0
    %998 = vmatprep.subr.mxu0 0.0
    %999 = vmatpush1.msra.mxu0 0.0
    %1000 = vmatprep.subr.mxu0 0.0
    %1001 = vmatpush1.msra.mxu0 0.0
    %1002 = vmatprep.subr.mxu0 0.0
    %1003 = vmatpush1.msra.mxu0 0.0
    %1004 = vmatprep.subr.mxu0 0.0
    %1005 = vmatpush1.msra.mxu0 0.0
    %1006 = vmatprep.subr.mxu0 0.0
    %1007 = vmatpush1.msra.mxu0 0.0
    %1008 = vmatprep.subr.mxu0 0.0
    %1009 = vmatpush1.msra.mxu0 0.0
    %1010 = vmatprep.mubr.f32.mxu0 0.0
    %1011 = vmatmul.mubr.f32.gmra.mrb[0].mxu0 %v686
    %v1012 = vpop.f32.mrb[0].mxu0
    %v1013 = vadd.f32 0.0, %v1012
    %v1014 = vpop.f32.mrb[0].mxu0
    %1015 = vdwg.mxu0
    %v1016 = vadd.f32 %v873, %v942
    %v1017 = vxor.u32 %v1016, 2147483648
    %v1018 = vmul.f32 %v1017, 1.442695
    %v1019 = vpow.pop %v1018
    %v1020 = vadd.f32 %v1019, 1.0
    %v1021 = vrcp.pop %v1020
    %v1022 = vmul.f32 1.0, %v1021
    %v1024 = vrot.slane %v873, 4
    %v1026 = vadd.f32 %v1024, %v944
    %v1027 = vxor.u32 %v1026, 2147483648
    %v1028 = vmul.f32 %v1027, 1.442695
    %v1029 = vpow.pop %v1028
    %v1030 = vadd.f32 %v1029, 1.0
    %v1031 = vrcp.pop %v1030
    %v1032 = vmul.f32 1.0, %v1031
    %v1033 = vadd.f32 %v1013, %v268
    %v1034 = vmul.f32 %v1022, %v1033
    %v1035 = vadd.f32 %v874, %v1034
    %v1036 = vtanh.pop %v1035
    %v1037 = vsub.f32 1.0, %v1032
    %v1038 = vmul.f32 %v1037, %v1036
    %v1039 = vmul.f32 %v1032, %v686
    %v1040 = vadd.f32 %v1038, %v1039
    %s1041 = scalar_lea.vmem %s1, 60
    %v1042 = vld [vmem:[%s1041] sm:$0xff]
    %v1043 = vld [vmem:[%s1041 + $0x8] sm:$0xf]
    %1044 = vmatprep.subr.mxu0 %v282
    %1045 = vmatpush1.msra.mxu0 %v281
    %1046 = vmatprep.subr.mxu0 %v285
    %1047 = vmatpush1.msra.mxu0 %v284
    %1048 = vmatprep.subr.mxu0 %v288
    %1049 = vmatpush1.msra.mxu0 %v287
    %1050 = vmatprep.subr.mxu0 %v291
    %1051 = vmatpush1.msra.mxu0 %v290
    %1052 = vmatprep.subr.mxu0 %v294
    %1053 = vmatpush1.msra.mxu0 %v293
    %1054 = vmatprep.subr.mxu0 %v297
    %1055 = vmatpush1.msra.mxu0 %v296
    %1056 = vmatprep.subr.mxu0 %v300
    %1057 = vmatpush1.msra.mxu0 %v299
    %1058 = vmatprep.subr.mxu0 %v303
    %1059 = vmatpush1.msra.mxu0 %v302
    %1060 = vmatprep.subr.mxu0 %v306
    %1061 = vmatpush1.msra.mxu0 %v305
    %1062 = vmatprep.subr.mxu0 %v309
    %1063 = vmatpush1.msra.mxu0 %v308
    %1064 = vmatprep.subr.mxu0 %v312
    %1065 = vmatpush1.msra.mxu0 %v311
    %1066 = vmatprep.subr.mxu0 %v315
    %1067 = vmatpush1.msra.mxu0 %v314
    %1068 = vmatprep.subr.mxu0 %v318
    %1069 = vmatpush1.msra.mxu0 %v317
    %1070 = vmatprep.subr.mxu0 %v321
    %1071 = vmatpush1.msra.mxu0 %v320
    %1072 = vmatprep.subr.mxu0 %v324
    %1073 = vmatpush1.msra.mxu0 %v323
    %1074 = vmatprep.subr.mxu0 %v327
    %1075 = vmatpush1.msra.mxu0 %v326
    %1076 = vmatprep.subr.mxu0 0.0
    %1077 = vmatpush1.msra.mxu0 0.0
    %1078 = vmatprep.subr.mxu0 0.0
    %1079 = vmatpush1.msra.mxu0 0.0
    %1080 = vmatprep.subr.mxu0 0.0
    %1081 = vmatpush1.msra.mxu0 0.0
    %1082 = vmatprep.subr.mxu0 0.0
    %1083 = vmatpush1.msra.mxu0 0.0
    %1084 = vmatprep.subr.mxu0 0.0
    %1085 = vmatpush1.msra.mxu0 0.0
    %1086 = vmatprep.subr.mxu0 0.0
    %1087 = vmatpush1.msra.mxu0 0.0
    %1088 = vmatprep.subr.mxu0 0.0
    %1089 = vmatpush1.msra.mxu0 0.0
    %1090 = vmatprep.subr.mxu0 0.0
    %1091 = vmatpush1.msra.mxu0 0.0
    %1092 = vmatprep.subr.mxu0 0.0
    %1093 = vmatpush1.msra.mxu0 0.0
    %1094 = vmatprep.subr.mxu0 0.0
    %1095 = vmatpush1.msra.mxu0 0.0
    %1096 = vmatprep.subr.mxu0 0.0
    %1097 = vmatpush1.msra.mxu0 0.0
    %1098 = vmatprep.subr.mxu0 0.0
    %1099 = vmatpush1.msra.mxu0 0.0
    %1100 = vmatprep.subr.mxu0 0.0
    %1101 = vmatpush1.msra.mxu0 0.0
    %1102 = vmatprep.subr.mxu0 0.0
    %1103 = vmatpush1.msra.mxu0 0.0
    %1104 = vmatprep.subr.mxu0 0.0
    %1105 = vmatpush1.msra.mxu0 0.0
    %1106 = vmatprep.subr.mxu0 0.0
    %1107 = vmatpush1.msra.mxu0 0.0
    %1108 = vmatprep.mubr.f32.mxu0 0.0
    %1109 = vmatmul.mubr.f32.gmra.mrb[0].mxu0 %v855
    %v1110 = vpop.f32.mrb[0].mxu0
    %v1111 = vadd.f32 0.0, %v1110
    %v1112 = vpop.f32.mrb[0].mxu0
    %v1113 = vadd.f32 0.0, %v1112
    %1114 = vdwg.mxu0
    %1115 = vmatprep.subr.mxu0 0.0
    %1116 = vmatpush1.msra.mxu0 %v283
    %1117 = vmatprep.subr.mxu0 0.0
    %1118 = vmatpush1.msra.mxu0 %v286
    %1119 = vmatprep.subr.mxu0 0.0
    %1120 = vmatpush1.msra.mxu0 %v289
    %1121 = vmatprep.subr.mxu0 0.0
    %1122 = vmatpush1.msra.mxu0 %v292
    %1123 = vmatprep.subr.mxu0 0.0
    %1124 = vmatpush1.msra.mxu0 %v295
    %1125 = vmatprep.subr.mxu0 0.0
    %1126 = vmatpush1.msra.mxu0 %v298
    %1127 = vmatprep.subr.mxu0 0.0
    %1128 = vmatpush1.msra.mxu0 %v301
    %1129 = vmatprep.subr.mxu0 0.0
    %1130 = vmatpush1.msra.mxu0 %v304
    %1131 = vmatprep.subr.mxu0 0.0
    %1132 = vmatpush1.msra.mxu0 %v307
    %1133 = vmatprep.subr.mxu0 0.0
    %1134 = vmatpush1.msra.mxu0 %v310
    %1135 = vmatprep.subr.mxu0 0.0
    %1136 = vmatpush1.msra.mxu0 %v313
    %1137 = vmatprep.subr.mxu0 0.0
    %1138 = vmatpush1.msra.mxu0 %v316
    %1139 = vmatprep.subr.mxu0 0.0
    %1140 = vmatpush1.msra.mxu0 %v319
    %1141 = vmatprep.subr.mxu0 0.0
    %1142 = vmatpush1.msra.mxu0 %v322
    %1143 = vmatprep.subr.mxu0 0.0
    %1144 = vmatpush1.msra.mxu0 %v325
    %1145 = vmatprep.subr.mxu0 0.0
    %1146 = vmatpush1.msra.mxu0 %v328
    %1147 = vmatprep.subr.mxu0 0.0
    %1148 = vmatpush1.msra.mxu0 0.0
    %1149 = vmatprep.subr.mxu0 0.0
    %1150 = vmatpush1.msra.mxu0 0.0
    %1151 = vmatprep.subr.mxu0 0.0
    %1152 = vmatpush1.msra.mxu0 0.0
    %1153 = vmatprep.subr.mxu0 0.0
    %1154 = vmatpush1.msra.mxu0 0.0
    %1155 = vmatprep.subr.mxu0 0.0
    %1156 = vmatpush1.msra.mxu0 0.0
    %1157 = vmatprep.subr.mxu0 0.0
    %1158 = vmatpush1.msra.mxu0 0.0
    %1159 = vmatprep.subr.mxu0 0.0
    %1160 = vmatpush1.msra.mxu0 0.0
    %1161 = vmatprep.subr.mxu0 0.0
    %1162 = vmatpush1.msra.mxu0 0.0
    %1163 = vmatprep.subr.mxu0 0.0
    %1164 = vmatpush1.msra.mxu0 0.0
    %1165 = vmatprep.subr.mxu0 0.0
    %1166 = vmatpush1.msra.mxu0 0.0
    %1167 = vmatprep.subr.mxu0 0.0
    %1168 = vmatpush1.msra.mxu0 0.0
    %1169 = vmatprep.subr.mxu0 0.0
    %1170 = vmatpush1.msra.mxu0 0.0
    %1171 = vmatprep.subr.mxu0 0.0
    %1172 = vmatpush1.msra.mxu0 0.0
    %1173 = vmatprep.subr.mxu0 0.0
    %1174 = vmatpush1.msra.mxu0 0.0
    %1175 = vmatprep.subr.mxu0 0.0
    %1176 = vmatpush1.msra.mxu0 0.0
    %1177 = vmatprep.subr.mxu0 0.0
    %1178 = vmatpush1.msra.mxu0 0.0
    %1179 = vmatprep.mubr.f32.mxu0 0.0
    %1180 = vmatmul.mubr.f32.gmra.mrb[0].mxu0 %v855
    %v1181 = vpop.f32.mrb[0].mxu0
    %v1182 = vadd.f32 0.0, %v1181
    %v1183 = vpop.f32.mrb[0].mxu0
    %1184 = vdwg.mxu0
    %v1185 = vadd.f32 %v1042, %v1111
    %v1186 = vxor.u32 %v1185, 2147483648
    %v1187 = vmul.f32 %v1186, 1.442695
    %v1188 = vpow.pop %v1187
    %v1189 = vadd.f32 %v1188, 1.0
    %v1190 = vrcp.pop %v1189
    %v1191 = vmul.f32 1.0, %v1190
    %v1193 = vrot.slane %v1042, 4
    %v1195 = vadd.f32 %v1193, %v1113
    %v1196 = vxor.u32 %v1195, 2147483648
    %v1197 = vmul.f32 %v1196, 1.442695
    %v1198 = vpow.pop %v1197
    %v1199 = vadd.f32 %v1198, 1.0
    %v1200 = vrcp.pop %v1199
    %v1201 = vmul.f32 1.0, %v1200
    %v1202 = vadd.f32 %v1182, %v492
    %v1203 = vmul.f32 %v1191, %v1202
    %v1204 = vadd.f32 %v1043, %v1203
    %v1205 = vtanh.pop %v1204
    %v1206 = vsub.f32 1.0, %v1201
    %v1207 = vmul.f32 %v1206, %v1205
    %v1208 = vmul.f32 %v1201, %v855
    %v1209 = vadd.f32 %v1207, %v1208
    %vm1210 = vcmp.lt.f32.partialorder 2.0, %v54
    %v1211 = vsel %vm1210, 1, 0
    %1212 = vset.pattern.permute.xlu0 0
    %1213 = vperm.xlu0 %1212, %v1211
    %v1214 = vpop.permute.xlu0 %1213
    %vm1215 = vcmp.eq.s32.totalorder %v1214, 1
    %v1216 = vsel %vm1215, %v1040, 0.0
    %v1217 = vadd.f32 %v863, %v1216
    %vm1218 = vcmp.lt.f32.partialorder 5.0, %v54
    %v1219 = vsel %vm1218, 1, 0
    %1220 = vset.pattern.permute.xlu0 0
    %1221 = vperm.xlu0 %1220, %v1219
    %v1222 = vpop.permute.xlu0 %1221
    %vm1223 = vcmp.eq.s32.totalorder %v1222, 1
    %v1224 = vsel %vm1223, %v1209, 0.0
    %v1225 = vadd.f32 %v871, %v1224
    %s1226 = scalar_lea.vmem %s0, 36
    %v1227 = vld [vmem:[%s1226] sm:$0xff]
    %v1228 = vld [vmem:[%s1226 + $0x8] sm:$0xf]
    %1229 = vmatprep.subr.mxu0 %v58
    %1230 = vmatpush1.msra.mxu0 %v57
    %1231 = vmatprep.subr.mxu0 %v61
    %1232 = vmatpush1.msra.mxu0 %v60
    %1233 = vmatprep.subr.mxu0 %v64
    %1234 = vmatpush1.msra.mxu0 %v63
    %1235 = vmatprep.subr.mxu0 %v67
    %1236 = vmatpush1.msra.mxu0 %v66
    %1237 = vmatprep.subr.mxu0 %v70
    %1238 = vmatpush1.msra.mxu0 %v69
    %1239 = vmatprep.subr.mxu0 %v73
    %1240 = vmatpush1.msra.mxu0 %v72
    %1241 = vmatprep.subr.mxu0 %v76
    %1242 = vmatpush1.msra.mxu0 %v75
    %1243 = vmatprep.subr.mxu0 %v79
    %1244 = vmatpush1.msra.mxu0 %v78
    %1245 = vmatprep.subr.mxu0 %v82
    %1246 = vmatpush1.msra.mxu0 %v81
    %1247 = vmatprep.subr.mxu0 %v85
    %1248 = vmatpush1.msra.mxu0 %v84
    %1249 = vmatprep.subr.mxu0 %v88
    %1250 = vmatpush1.msra.mxu0 %v87
    %1251 = vmatprep.subr.mxu0 %v91
    %1252 = vmatpush1.msra.mxu0 %v90
    %1253 = vmatprep.subr.mxu0 %v94
    %1254 = vmatpush1.msra.mxu0 %v93
    %1255 = vmatprep.subr.mxu0 %v97
    %1256 = vmatpush1.msra.mxu0 %v96
    %1257 = vmatprep.subr.mxu0 %v100
    %1258 = vmatpush1.msra.mxu0 %v99
    %1259 = vmatprep.subr.mxu0 %v103
    %1260 = vmatpush1.msra.mxu0 %v102
    %1261 = vmatprep.subr.mxu0 0.0
    %1262 = vmatpush1.msra.mxu0 0.0
    %1263 = vmatprep.subr.mxu0 0.0
    %1264 = vmatpush1.msra.mxu0 0.0
    %1265 = vmatprep.subr.mxu0 0.0
    %1266 = vmatpush1.msra.mxu0 0.0
    %1267 = vmatprep.subr.mxu0 0.0
    %1268 = vmatpush1.msra.mxu0 0.0
    %1269 = vmatprep.subr.mxu0 0.0
    %1270 = vmatpush1.msra.mxu0 0.0
    %1271 = vmatprep.subr.mxu0 0.0
    %1272 = vmatpush1.msra.mxu0 0.0
    %1273 = vmatprep.subr.mxu0 0.0
    %1274 = vmatpush1.msra.mxu0 0.0
    %1275 = vmatprep.subr.mxu0 0.0
    %1276 = vmatpush1.msra.mxu0 0.0
    %1277 = vmatprep.subr.mxu0 0.0
    %1278 = vmatpush1.msra.mxu0 0.0
    %1279 = vmatprep.subr.mxu0 0.0
    %1280 = vmatpush1.msra.mxu0 0.0
    %1281 = vmatprep.subr.mxu0 0.0
    %1282 = vmatpush1.msra.mxu0 0.0
    %1283 = vmatprep.subr.mxu0 0.0
    %1284 = vmatpush1.msra.mxu0 0.0
    %1285 = vmatprep.subr.mxu0 0.0
    %1286 = vmatpush1.msra.mxu0 0.0
    %1287 = vmatprep.subr.mxu0 0.0
    %1288 = vmatpush1.msra.mxu0 0.0
    %1289 = vmatprep.subr.mxu0 0.0
    %1290 = vmatpush1.msra.mxu0 0.0
    %1291 = vmatprep.subr.mxu0 0.0
    %1292 = vmatpush1.msra.mxu0 0.0
    %1293 = vmatprep.mubr.f32.mxu0 0.0
    %1294 = vmatmul.mubr.f32.gmra.mrb[0].mxu0 %v1040
    %v1295 = vpop.f32.mrb[0].mxu0
    %v1296 = vadd.f32 0.0, %v1295
    %v1297 = vpop.f32.mrb[0].mxu0
    %v1298 = vadd.f32 0.0, %v1297
    %1299 = vdwg.mxu0
    %1300 = vmatprep.subr.mxu0 0.0
    %1301 = vmatpush1.msra.mxu0 %v59
    %1302 = vmatprep.subr.mxu0 0.0
    %1303 = vmatpush1.msra.mxu0 %v62
    %1304 = vmatprep.subr.mxu0 0.0
    %1305 = vmatpush1.msra.mxu0 %v65
    %1306 = vmatprep.subr.mxu0 0.0
    %1307 = vmatpush1.msra.mxu0 %v68
    %1308 = vmatprep.subr.mxu0 0.0
    %1309 = vmatpush1.msra.mxu0 %v71
    %1310 = vmatprep.subr.mxu0 0.0
    %1311 = vmatpush1.msra.mxu0 %v74
    %1312 = vmatprep.subr.mxu0 0.0
    %1313 = vmatpush1.msra.mxu0 %v77
    %1314 = vmatprep.subr.mxu0 0.0
    %1315 = vmatpush1.msra.mxu0 %v80
    %1316 = vmatprep.subr.mxu0 0.0
    %1317 = vmatpush1.msra.mxu0 %v83
    %1318 = vmatprep.subr.mxu0 0.0
    %1319 = vmatpush1.msra.mxu0 %v86
    %1320 = vmatprep.subr.mxu0 0.0
    %1321 = vmatpush1.msra.mxu0 %v89
    %1322 = vmatprep.subr.mxu0 0.0
    %1323 = vmatpush1.msra.mxu0 %v92
    %1324 = vmatprep.subr.mxu0 0.0
    %1325 = vmatpush1.msra.mxu0 %v95
    %1326 = vmatprep.subr.mxu0 0.0
    %1327 = vmatpush1.msra.mxu0 %v98
    %1328 = vmatprep.subr.mxu0 0.0
    %1329 = vmatpush1.msra.mxu0 %v101
    %1330 = vmatprep.subr.mxu0 0.0
    %1331 = vmatpush1.msra.mxu0 %v104
    %1332 = vmatprep.subr.mxu0 0.0
    %1333 = vmatpush1.msra.mxu0 0.0
    %1334 = vmatprep.subr.mxu0 0.0
    %1335 = vmatpush1.msra.mxu0 0.0
    %1336 = vmatprep.subr.mxu0 0.0
    %1337 = vmatpush1.msra.mxu0 0.0
    %1338 = vmatprep.subr.mxu0 0.0
    %1339 = vmatpush1.msra.mxu0 0.0
    %1340 = vmatprep.subr.mxu0 0.0
    %1341 = vmatpush1.msra.mxu0 0.0
    %1342 = vmatprep.subr.mxu0 0.0
    %1343 = vmatpush1.msra.mxu0 0.0
    %1344 = vmatprep.subr.mxu0 0.0
    %1345 = vmatpush1.msra.mxu0 0.0
    %1346 = vmatprep.subr.mxu0 0.0
    %1347 = vmatpush1.msra.mxu0 0.0
    %1348 = vmatprep.subr.mxu0 0.0
    %1349 = vmatpush1.msra.mxu0 0.0
    %1350 = vmatprep.subr.mxu0 0.0
    %1351 = vmatpush1.msra.mxu0 0.0
    %1352 = vmatprep.subr.mxu0 0.0
    %1353 = vmatpush1.msra.mxu0 0.0
    %1354 = vmatprep.subr.mxu0 0.0
    %1355 = vmatpush1.msra.mxu0 0.0
    %1356 = vmatprep.subr.mxu0 0.0
    %1357 = vmatpush1.msra.mxu0 0.0
    %1358 = vmatprep.subr.mxu0 0.0
    %1359 = vmatpush1.msra.mxu0 0.0
    %1360 = vmatprep.subr.mxu0 0.0
    %1361 = vmatpush1.msra.mxu0 0.0
    %1362 = vmatprep.subr.mxu0 0.0
    %1363 = vmatpush1.msra.mxu0 0.0
    %1364 = vmatprep.mubr.f32.mxu0 0.0
    %1365 = vmatmul.mubr.f32.gmra.mrb[0].mxu0 %v1040
    %v1366 = vpop.f32.mrb[0].mxu0
    %v1367 = vadd.f32 0.0, %v1366
    %v1368 = vpop.f32.mrb[0].mxu0
    %1369 = vdwg.mxu0
    %v1370 = vadd.f32 %v1227, %v1296
    %v1371 = vxor.u32 %v1370, 2147483648
    %v1372 = vmul.f32 %v1371, 1.442695
    %v1373 = vpow.pop %v1372
    %v1374 = vadd.f32 %v1373, 1.0
    %v1375 = vrcp.pop %v1374
    %v1376 = vmul.f32 1.0, %v1375
    %v1378 = vrot.slane %v1227, 4
    %v1380 = vadd.f32 %v1378, %v1298
    %v1381 = vxor.u32 %v1380, 2147483648
    %v1382 = vmul.f32 %v1381, 1.442695
    %v1383 = vpow.pop %v1382
    %v1384 = vadd.f32 %v1383, 1.0
    %v1385 = vrcp.pop %v1384
    %v1386 = vmul.f32 1.0, %v1385
    %v1387 = vadd.f32 %v1367, %v268
    %v1388 = vmul.f32 %v1376, %v1387
    %v1389 = vadd.f32 %v1228, %v1388
    %v1390 = vtanh.pop %v1389
    %v1391 = vsub.f32 1.0, %v1386
    %v1392 = vmul.f32 %v1391, %v1390
    %v1393 = vmul.f32 %v1386, %v1040
    %v1394 = vadd.f32 %v1392, %v1393
    %s1395 = scalar_lea.vmem %s1, 48
    %v1396 = vld [vmem:[%s1395] sm:$0xff]
    %v1397 = vld [vmem:[%s1395 + $0x8] sm:$0xf]
    %1398 = vmatprep.subr.mxu0 %v282
    %1399 = vmatpush1.msra.mxu0 %v281
    %1400 = vmatprep.subr.mxu0 %v285
    %1401 = vmatpush1.msra.mxu0 %v284
    %1402 = vmatprep.subr.mxu0 %v288
    %1403 = vmatpush1.msra.mxu0 %v287
    %1404 = vmatprep.subr.mxu0 %v291
    %1405 = vmatpush1.msra.mxu0 %v290
    %1406 = vmatprep.subr.mxu0 %v294
    %1407 = vmatpush1.msra.mxu0 %v293
    %1408 = vmatprep.subr.mxu0 %v297
    %1409 = vmatpush1.msra.mxu0 %v296
    %1410 = vmatprep.subr.mxu0 %v300
    %1411 = vmatpush1.msra.mxu0 %v299
    %1412 = vmatprep.subr.mxu0 %v303
    %1413 = vmatpush1.msra.mxu0 %v302
    %1414 = vmatprep.subr.mxu0 %v306
    %1415 = vmatpush1.msra.mxu0 %v305
    %1416 = vmatprep.subr.mxu0 %v309
    %1417 = vmatpush1.msra.mxu0 %v308
    %1418 = vmatprep.subr.mxu0 %v312
    %1419 = vmatpush1.msra.mxu0 %v311
    %1420 = vmatprep.subr.mxu0 %v315
    %1421 = vmatpush1.msra.mxu0 %v314
    %1422 = vmatprep.subr.mxu0 %v318
    %1423 = vmatpush1.msra.mxu0 %v317
    %1424 = vmatprep.subr.mxu0 %v321
    %1425 = vmatpush1.msra.mxu0 %v320
    %1426 = vmatprep.subr.mxu0 %v324
    %1427 = vmatpush1.msra.mxu0 %v323
    %1428 = vmatprep.subr.mxu0 %v327
    %1429 = vmatpush1.msra.mxu0 %v326
    %1430 = vmatprep.subr.mxu0 0.0
    %1431 = vmatpush1.msra.mxu0 0.0
    %1432 = vmatprep.subr.mxu0 0.0
    %1433 = vmatpush1.msra.mxu0 0.0
    %1434 = vmatprep.subr.mxu0 0.0
    %1435 = vmatpush1.msra.mxu0 0.0
    %1436 = vmatprep.subr.mxu0 0.0
    %1437 = vmatpush1.msra.mxu0 0.0
    %1438 = vmatprep.subr.mxu0 0.0
    %1439 = vmatpush1.msra.mxu0 0.0
    %1440 = vmatprep.subr.mxu0 0.0
    %1441 = vmatpush1.msra.mxu0 0.0
    %1442 = vmatprep.subr.mxu0 0.0
    %1443 = vmatpush1.msra.mxu0 0.0
    %1444 = vmatprep.subr.mxu0 0.0
    %1445 = vmatpush1.msra.mxu0 0.0
    %1446 = vmatprep.subr.mxu0 0.0
    %1447 = vmatpush1.msra.mxu0 0.0
    %1448 = vmatprep.subr.mxu0 0.0
    %1449 = vmatpush1.msra.mxu0 0.0
    %1450 = vmatprep.subr.mxu0 0.0
    %1451 = vmatpush1.msra.mxu0 0.0
    %1452 = vmatprep.subr.mxu0 0.0
    %1453 = vmatpush1.msra.mxu0 0.0
    %1454 = vmatprep.subr.mxu0 0.0
    %1455 = vmatpush1.msra.mxu0 0.0
    %1456 = vmatprep.subr.mxu0 0.0
    %1457 = vmatpush1.msra.mxu0 0.0
    %1458 = vmatprep.subr.mxu0 0.0
    %1459 = vmatpush1.msra.mxu0 0.0
    %1460 = vmatprep.subr.mxu0 0.0
    %1461 = vmatpush1.msra.mxu0 0.0
    %1462 = vmatprep.mubr.f32.mxu0 0.0
    %1463 = vmatmul.mubr.f32.gmra.mrb[0].mxu0 %v1209
    %v1464 = vpop.f32.mrb[0].mxu0
    %v1465 = vadd.f32 0.0, %v1464
    %v1466 = vpop.f32.mrb[0].mxu0
    %v1467 = vadd.f32 0.0, %v1466
    %1468 = vdwg.mxu0
    %1469 = vmatprep.subr.mxu0 0.0
    %1470 = vmatpush1.msra.mxu0 %v283
    %1471 = vmatprep.subr.mxu0 0.0
    %1472 = vmatpush1.msra.mxu0 %v286
    %1473 = vmatprep.subr.mxu0 0.0
    %1474 = vmatpush1.msra.mxu0 %v289
    %1475 = vmatprep.subr.mxu0 0.0
    %1476 = vmatpush1.msra.mxu0 %v292
    %1477 = vmatprep.subr.mxu0 0.0
    %1478 = vmatpush1.msra.mxu0 %v295
    %1479 = vmatprep.subr.mxu0 0.0
    %1480 = vmatpush1.msra.mxu0 %v298
    %1481 = vmatprep.subr.mxu0 0.0
    %1482 = vmatpush1.msra.mxu0 %v301
    %1483 = vmatprep.subr.mxu0 0.0
    %1484 = vmatpush1.msra.mxu0 %v304
    %1485 = vmatprep.subr.mxu0 0.0
    %1486 = vmatpush1.msra.mxu0 %v307
    %1487 = vmatprep.subr.mxu0 0.0
    %1488 = vmatpush1.msra.mxu0 %v310
    %1489 = vmatprep.subr.mxu0 0.0
    %1490 = vmatpush1.msra.mxu0 %v313
    %1491 = vmatprep.subr.mxu0 0.0
    %1492 = vmatpush1.msra.mxu0 %v316
    %1493 = vmatprep.subr.mxu0 0.0
    %1494 = vmatpush1.msra.mxu0 %v319
    %1495 = vmatprep.subr.mxu0 0.0
    %1496 = vmatpush1.msra.mxu0 %v322
    %1497 = vmatprep.subr.mxu0 0.0
    %1498 = vmatpush1.msra.mxu0 %v325
    %1499 = vmatprep.subr.mxu0 0.0
    %1500 = vmatpush1.msra.mxu0 %v328
    %1501 = vmatprep.subr.mxu0 0.0
    %1502 = vmatpush1.msra.mxu0 0.0
    %1503 = vmatprep.subr.mxu0 0.0
    %1504 = vmatpush1.msra.mxu0 0.0
    %1505 = vmatprep.subr.mxu0 0.0
    %1506 = vmatpush1.msra.mxu0 0.0
    %1507 = vmatprep.subr.mxu0 0.0
    %1508 = vmatpush1.msra.mxu0 0.0
    %1509 = vmatprep.subr.mxu0 0.0
    %1510 = vmatpush1.msra.mxu0 0.0
    %1511 = vmatprep.subr.mxu0 0.0
    %1512 = vmatpush1.msra.mxu0 0.0
    %1513 = vmatprep.subr.mxu0 0.0
    %1514 = vmatpush1.msra.mxu0 0.0
    %1515 = vmatprep.subr.mxu0 0.0
    %1516 = vmatpush1.msra.mxu0 0.0
    %1517 = vmatprep.subr.mxu0 0.0
    %1518 = vmatpush1.msra.mxu0 0.0
    %1519 = vmatprep.subr.mxu0 0.0
    %1520 = vmatpush1.msra.mxu0 0.0
    %1521 = vmatprep.subr.mxu0 0.0
    %1522 = vmatpush1.msra.mxu0 0.0
    %1523 = vmatprep.subr.mxu0 0.0
    %1524 = vmatpush1.msra.mxu0 0.0
    %1525 = vmatprep.subr.mxu0 0.0
    %1526 = vmatpush1.msra.mxu0 0.0
    %1527 = vmatprep.subr.mxu0 0.0
    %1528 = vmatpush1.msra.mxu0 0.0
    %1529 = vmatprep.subr.mxu0 0.0
    %1530 = vmatpush1.msra.mxu0 0.0
    %1531 = vmatprep.subr.mxu0 0.0
    %1532 = vmatpush1.msra.mxu0 0.0
    %1533 = vmatprep.mubr.f32.mxu0 0.0
    %1534 = vmatmul.mubr.f32.gmra.mrb[0].mxu0 %v1209
    %v1535 = vpop.f32.mrb[0].mxu0
    %v1536 = vadd.f32 0.0, %v1535
    %v1537 = vpop.f32.mrb[0].mxu0
    %1538 = vdwg.mxu0
    %v1539 = vadd.f32 %v1396, %v1465
    %v1540 = vxor.u32 %v1539, 2147483648
    %v1541 = vmul.f32 %v1540, 1.442695
    %v1542 = vpow.pop %v1541
    %v1543 = vadd.f32 %v1542, 1.0
    %v1544 = vrcp.pop %v1543
    %v1545 = vmul.f32 1.0, %v1544
    %v1547 = vrot.slane %v1396, 4
    %v1549 = vadd.f32 %v1547, %v1467
    %v1550 = vxor.u32 %v1549, 2147483648
    %v1551 = vmul.f32 %v1550, 1.442695
    %v1552 = vpow.pop %v1551
    %v1553 = vadd.f32 %v1552, 1.0
    %v1554 = vrcp.pop %v1553
    %v1555 = vmul.f32 1.0, %v1554
    %v1556 = vadd.f32 %v1536, %v492
    %v1557 = vmul.f32 %v1545, %v1556
    %v1558 = vadd.f32 %v1397, %v1557
    %v1559 = vtanh.pop %v1558
    %v1560 = vsub.f32 1.0, %v1555
    %v1561 = vmul.f32 %v1560, %v1559
    %v1562 = vmul.f32 %v1555, %v1209
    %v1563 = vadd.f32 %v1561, %v1562
    %vm1564 = vcmp.lt.f32.partialorder 3.0, %v54
    %v1565 = vsel %vm1564, 1, 0
    %1566 = vset.pattern.permute.xlu0 0
    %1567 = vperm.xlu0 %1566, %v1565
    %v1568 = vpop.permute.xlu0 %1567
    %vm1569 = vcmp.eq.s32.totalorder %v1568, 1
    %v1570 = vsel %vm1569, %v1394, 0.0
    %v1571 = vadd.f32 %v1217, %v1570
    %vm1572 = vcmp.lt.f32.partialorder 4.0, %v54
    %v1573 = vsel %vm1572, 1, 0
    %1574 = vset.pattern.permute.xlu0 0
    %1575 = vperm.xlu0 %1574, %v1573
    %v1576 = vpop.permute.xlu0 %1575
    %vm1577 = vcmp.eq.s32.totalorder %v1576, 1
    %v1578 = vsel %vm1577, %v1563, 0.0
    %v1579 = vadd.f32 %v1225, %v1578
    %s1580 = scalar_lea.vmem %s0, 48
    %v1581 = vld [vmem:[%s1580] sm:$0xff]
    %v1582 = vld [vmem:[%s1580 + $0x8] sm:$0xf]
    %1583 = vmatprep.subr.mxu0 %v58
    %1584 = vmatpush1.msra.mxu0 %v57
    %1585 = vmatprep.subr.mxu0 %v61
    %1586 = vmatpush1.msra.mxu0 %v60
    %1587 = vmatprep.subr.mxu0 %v64
    %1588 = vmatpush1.msra.mxu0 %v63
    %1589 = vmatprep.subr.mxu0 %v67
    %1590 = vmatpush1.msra.mxu0 %v66
    %1591 = vmatprep.subr.mxu0 %v70
    %1592 = vmatpush1.msra.mxu0 %v69
    %1593 = vmatprep.subr.mxu0 %v73
    %1594 = vmatpush1.msra.mxu0 %v72
    %1595 = vmatprep.subr.mxu0 %v76
    %1596 = vmatpush1.msra.mxu0 %v75
    %1597 = vmatprep.subr.mxu0 %v79
    %1598 = vmatpush1.msra.mxu0 %v78
    %1599 = vmatprep.subr.mxu0 %v82
    %1600 = vmatpush1.msra.mxu0 %v81
    %1601 = vmatprep.subr.mxu0 %v85
    %1602 = vmatpush1.msra.mxu0 %v84
    %1603 = vmatprep.subr.mxu0 %v88
    %1604 = vmatpush1.msra.mxu0 %v87
    %1605 = vmatprep.subr.mxu0 %v91
    %1606 = vmatpush1.msra.mxu0 %v90
    %1607 = vmatprep.subr.mxu0 %v94
    %1608 = vmatpush1.msra.mxu0 %v93
    %1609 = vmatprep.subr.mxu0 %v97
    %1610 = vmatpush1.msra.mxu0 %v96
    %1611 = vmatprep.subr.mxu0 %v100
    %1612 = vmatpush1.msra.mxu0 %v99
    %1613 = vmatprep.subr.mxu0 %v103
    %1614 = vmatpush1.msra.mxu0 %v102
    %1615 = vmatprep.subr.mxu0 0.0
    %1616 = vmatpush1.msra.mxu0 0.0
    %1617 = vmatprep.subr.mxu0 0.0
    %1618 = vmatpush1.msra.mxu0 0.0
    %1619 = vmatprep.subr.mxu0 0.0
    %1620 = vmatpush1.msra.mxu0 0.0
    %1621 = vmatprep.subr.mxu0 0.0
    %1622 = vmatpush1.msra.mxu0 0.0
    %1623 = vmatprep.subr.mxu0 0.0
    %1624 = vmatpush1.msra.mxu0 0.0
    %1625 = vmatprep.subr.mxu0 0.0
    %1626 = vmatpush1.msra.mxu0 0.0
    %1627 = vmatprep.subr.mxu0 0.0
    %1628 = vmatpush1.msra.mxu0 0.0
    %1629 = vmatprep.subr.mxu0 0.0
    %1630 = vmatpush1.msra.mxu0 0.0
    %1631 = vmatprep.subr.mxu0 0.0
    %1632 = vmatpush1.msra.mxu0 0.0
    %1633 = vmatprep.subr.mxu0 0.0
    %1634 = vmatpush1.msra.mxu0 0.0
    %1635 = vmatprep.subr.mxu0 0.0
    %1636 = vmatpush1.msra.mxu0 0.0
    %1637 = vmatprep.subr.mxu0 0.0
    %1638 = vmatpush1.msra.mxu0 0.0
    %1639 = vmatprep.subr.mxu0 0.0
    %1640 = vmatpush1.msra.mxu0 0.0
    %1641 = vmatprep.subr.mxu0 0.0
    %1642 = vmatpush1.msra.mxu0 0.0
    %1643 = vmatprep.subr.mxu0 0.0
    %1644 = vmatpush1.msra.mxu0 0.0
    %1645 = vmatprep.subr.mxu0 0.0
    %1646 = vmatpush1.msra.mxu0 0.0
    %1647 = vmatprep.mubr.f32.mxu0 0.0
    %1648 = vmatmul.mubr.f32.gmra.mrb[0].mxu0 %v1394
    %v1649 = vpop.f32.mrb[0].mxu0
    %v1650 = vadd.f32 0.0, %v1649
    %v1651 = vpop.f32.mrb[0].mxu0
    %v1652 = vadd.f32 0.0, %v1651
    %1653 = vdwg.mxu0
    %1654 = vmatprep.subr.mxu0 0.0
    %1655 = vmatpush1.msra.mxu0 %v59
    %1656 = vmatprep.subr.mxu0 0.0
    %1657 = vmatpush1.msra.mxu0 %v62
    %1658 = vmatprep.subr.mxu0 0.0
    %1659 = vmatpush1.msra.mxu0 %v65
    %1660 = vmatprep.subr.mxu0 0.0
    %1661 = vmatpush1.msra.mxu0 %v68
    %1662 = vmatprep.subr.mxu0 0.0
    %1663 = vmatpush1.msra.mxu0 %v71
    %1664 = vmatprep.subr.mxu0 0.0
    %1665 = vmatpush1.msra.mxu0 %v74
    %1666 = vmatprep.subr.mxu0 0.0
    %1667 = vmatpush1.msra.mxu0 %v77
    %1668 = vmatprep.subr.mxu0 0.0
    %1669 = vmatpush1.msra.mxu0 %v80
    %1670 = vmatprep.subr.mxu0 0.0
    %1671 = vmatpush1.msra.mxu0 %v83
    %1672 = vmatprep.subr.mxu0 0.0
    %1673 = vmatpush1.msra.mxu0 %v86
    %1674 = vmatprep.subr.mxu0 0.0
    %1675 = vmatpush1.msra.mxu0 %v89
    %1676 = vmatprep.subr.mxu0 0.0
    %1677 = vmatpush1.msra.mxu0 %v92
    %1678 = vmatprep.subr.mxu0 0.0
    %1679 = vmatpush1.msra.mxu0 %v95
    %1680 = vmatprep.subr.mxu0 0.0
    %1681 = vmatpush1.msra.mxu0 %v98
    %1682 = vmatprep.subr.mxu0 0.0
    %1683 = vmatpush1.msra.mxu0 %v101
    %1684 = vmatprep.subr.mxu0 0.0
    %1685 = vmatpush1.msra.mxu0 %v104
    %1686 = vmatprep.subr.mxu0 0.0
    %1687 = vmatpush1.msra.mxu0 0.0
    %1688 = vmatprep.subr.mxu0 0.0
    %1689 = vmatpush1.msra.mxu0 0.0
    %1690 = vmatprep.subr.mxu0 0.0
    %1691 = vmatpush1.msra.mxu0 0.0
    %1692 = vmatprep.subr.mxu0 0.0
    %1693 = vmatpush1.msra.mxu0 0.0
    %1694 = vmatprep.subr.mxu0 0.0
    %1695 = vmatpush1.msra.mxu0 0.0
    %1696 = vmatprep.subr.mxu0 0.0
    %1697 = vmatpush1.msra.mxu0 0.0
    %1698 = vmatprep.subr.mxu0 0.0
    %1699 = vmatpush1.msra.mxu0 0.0
    %1700 = vmatprep.subr.mxu0 0.0
    %1701 = vmatpush1.msra.mxu0 0.0
    %1702 = vmatprep.subr.mxu0 0.0
    %1703 = vmatpush1.msra.mxu0 0.0
    %1704 = vmatprep.subr.mxu0 0.0
    %1705 = vmatpush1.msra.mxu0 0.0
    %1706 = vmatprep.subr.mxu0 0.0
    %1707 = vmatpush1.msra.mxu0 0.0
    %1708 = vmatprep.subr.mxu0 0.0
    %1709 = vmatpush1.msra.mxu0 0.0
    %1710 = vmatprep.subr.mxu0 0.0
    %1711 = vmatpush1.msra.mxu0 0.0
    %1712 = vmatprep.subr.mxu0 0.0
    %1713 = vmatpush1.msra.mxu0 0.0
    %1714 = vmatprep.subr.mxu0 0.0
    %1715 = vmatpush1.msra.mxu0 0.0
    %1716 = vmatprep.subr.mxu0 0.0
    %1717 = vmatpush1.msra.mxu0 0.0
    %1718 = vmatprep.mubr.f32.mxu0 0.0
    %1719 = vmatmul.mubr.f32.gmra.mrb[0].mxu0 %v1394
    %v1720 = vpop.f32.mrb[0].mxu0
    %v1721 = vadd.f32 0.0, %v1720
    %v1722 = vpop.f32.mrb[0].mxu0
    %1723 = vdwg.mxu0
    %v1724 = vadd.f32 %v1581, %v1650
    %v1725 = vxor.u32 %v1724, 2147483648
    %v1726 = vmul.f32 %v1725, 1.442695
    %v1727 = vpow.pop %v1726
    %v1728 = vadd.f32 %v1727, 1.0
    %v1729 = vrcp.pop %v1728
    %v1730 = vmul.f32 1.0, %v1729
    %v1732 = vrot.slane %v1581, 4
    %v1734 = vadd.f32 %v1732, %v1652
    %v1735 = vxor.u32 %v1734, 2147483648
    %v1736 = vmul.f32 %v1735, 1.442695
    %v1737 = vpow.pop %v1736
    %v1738 = vadd.f32 %v1737, 1.0
    %v1739 = vrcp.pop %v1738
    %v1740 = vmul.f32 1.0, %v1739
    %v1741 = vadd.f32 %v1721, %v268
    %v1742 = vmul.f32 %v1730, %v1741
    %v1743 = vadd.f32 %v1582, %v1742
    %v1744 = vtanh.pop %v1743
    %v1745 = vsub.f32 1.0, %v1740
    %v1746 = vmul.f32 %v1745, %v1744
    %v1747 = vmul.f32 %v1740, %v1394
    %v1748 = vadd.f32 %v1746, %v1747
    %s1749 = scalar_lea.vmem %s1, 36
    %v1750 = vld [vmem:[%s1749] sm:$0xff]
    %v1751 = vld [vmem:[%s1749 + $0x8] sm:$0xf]
    %1752 = vmatprep.subr.mxu0 %v282
    %1753 = vmatpush1.msra.mxu0 %v281
    %1754 = vmatprep.subr.mxu0 %v285
    %1755 = vmatpush1.msra.mxu0 %v284
    %1756 = vmatprep.subr.mxu0 %v288
    %1757 = vmatpush1.msra.mxu0 %v287
    %1758 = vmatprep.subr.mxu0 %v291
    %1759 = vmatpush1.msra.mxu0 %v290
    %1760 = vmatprep.subr.mxu0 %v294
    %1761 = vmatpush1.msra.mxu0 %v293
    %1762 = vmatprep.subr.mxu0 %v297
    %1763 = vmatpush1.msra.mxu0 %v296
    %1764 = vmatprep.subr.mxu0 %v300
    %1765 = vmatpush1.msra.mxu0 %v299
    %1766 = vmatprep.subr.mxu0 %v303
    %1767 = vmatpush1.msra.mxu0 %v302
    %1768 = vmatprep.subr.mxu0 %v306
    %1769 = vmatpush1.msra.mxu0 %v305
    %1770 = vmatprep.subr.mxu0 %v309
    %1771 = vmatpush1.msra.mxu0 %v308
    %1772 = vmatprep.subr.mxu0 %v312
    %1773 = vmatpush1.msra.mxu0 %v311
    %1774 = vmatprep.subr.mxu0 %v315
    %1775 = vmatpush1.msra.mxu0 %v314
    %1776 = vmatprep.subr.mxu0 %v318
    %1777 = vmatpush1.msra.mxu0 %v317
    %1778 = vmatprep.subr.mxu0 %v321
    %1779 = vmatpush1.msra.mxu0 %v320
    %1780 = vmatprep.subr.mxu0 %v324
    %1781 = vmatpush1.msra.mxu0 %v323
    %1782 = vmatprep.subr.mxu0 %v327
    %1783 = vmatpush1.msra.mxu0 %v326
    %1784 = vmatprep.subr.mxu0 0.0
    %1785 = vmatpush1.msra.mxu0 0.0
    %1786 = vmatprep.subr.mxu0 0.0
    %1787 = vmatpush1.msra.mxu0 0.0
    %1788 = vmatprep.subr.mxu0 0.0
    %1789 = vmatpush1.msra.mxu0 0.0
    %1790 = vmatprep.subr.mxu0 0.0
    %1791 = vmatpush1.msra.mxu0 0.0
    %1792 = vmatprep.subr.mxu0 0.0
    %1793 = vmatpush1.msra.mxu0 0.0
    %1794 = vmatprep.subr.mxu0 0.0
    %1795 = vmatpush1.msra.mxu0 0.0
    %1796 = vmatprep.subr.mxu0 0.0
    %1797 = vmatpush1.msra.mxu0 0.0
    %1798 = vmatprep.subr.mxu0 0.0
    %1799 = vmatpush1.msra.mxu0 0.0
    %1800 = vmatprep.subr.mxu0 0.0
    %1801 = vmatpush1.msra.mxu0 0.0
    %1802 = vmatprep.subr.mxu0 0.0
    %1803 = vmatpush1.msra.mxu0 0.0
    %1804 = vmatprep.subr.mxu0 0.0
    %1805 = vmatpush1.msra.mxu0 0.0
    %1806 = vmatprep.subr.mxu0 0.0
    %1807 = vmatpush1.msra.mxu0 0.0
    %1808 = vmatprep.subr.mxu0 0.0
    %1809 = vmatpush1.msra.mxu0 0.0
    %1810 = vmatprep.subr.mxu0 0.0
    %1811 = vmatpush1.msra.mxu0 0.0
    %1812 = vmatprep.subr.mxu0 0.0
    %1813 = vmatpush1.msra.mxu0 0.0
    %1814 = vmatprep.subr.mxu0 0.0
    %1815 = vmatpush1.msra.mxu0 0.0
    %1816 = vmatprep.mubr.f32.mxu0 0.0
    %1817 = vmatmul.mubr.f32.gmra.mrb[0].mxu0 %v1563
    %v1818 = vpop.f32.mrb[0].mxu0
    %v1819 = vadd.f32 0.0, %v1818
    %v1820 = vpop.f32.mrb[0].mxu0
    %v1821 = vadd.f32 0.0, %v1820
    %1822 = vdwg.mxu0
    %1823 = vmatprep.subr.mxu0 0.0
    %1824 = vmatpush1.msra.mxu0 %v283
    %1825 = vmatprep.subr.mxu0 0.0
    %1826 = vmatpush1.msra.mxu0 %v286
    %1827 = vmatprep.subr.mxu0 0.0
    %1828 = vmatpush1.msra.mxu0 %v289
    %1829 = vmatprep.subr.mxu0 0.0
    %1830 = vmatpush1.msra.mxu0 %v292
    %1831 = vmatprep.subr.mxu0 0.0
    %1832 = vmatpush1.msra.mxu0 %v295
    %1833 = vmatprep.subr.mxu0 0.0
    %1834 = vmatpush1.msra.mxu0 %v298
    %1835 = vmatprep.subr.mxu0 0.0
    %1836 = vmatpush1.msra.mxu0 %v301
    %1837 = vmatprep.subr.mxu0 0.0
    %1838 = vmatpush1.msra.mxu0 %v304
    %1839 = vmatprep.subr.mxu0 0.0
    %1840 = vmatpush1.msra.mxu0 %v307
    %1841 = vmatprep.subr.mxu0 0.0
    %1842 = vmatpush1.msra.mxu0 %v310
    %1843 = vmatprep.subr.mxu0 0.0
    %1844 = vmatpush1.msra.mxu0 %v313
    %1845 = vmatprep.subr.mxu0 0.0
    %1846 = vmatpush1.msra.mxu0 %v316
    %1847 = vmatprep.subr.mxu0 0.0
    %1848 = vmatpush1.msra.mxu0 %v319
    %1849 = vmatprep.subr.mxu0 0.0
    %1850 = vmatpush1.msra.mxu0 %v322
    %1851 = vmatprep.subr.mxu0 0.0
    %1852 = vmatpush1.msra.mxu0 %v325
    %1853 = vmatprep.subr.mxu0 0.0
    %1854 = vmatpush1.msra.mxu0 %v328
    %1855 = vmatprep.subr.mxu0 0.0
    %1856 = vmatpush1.msra.mxu0 0.0
    %1857 = vmatprep.subr.mxu0 0.0
    %1858 = vmatpush1.msra.mxu0 0.0
    %1859 = vmatprep.subr.mxu0 0.0
    %1860 = vmatpush1.msra.mxu0 0.0
    %1861 = vmatprep.subr.mxu0 0.0
    %1862 = vmatpush1.msra.mxu0 0.0
    %1863 = vmatprep.subr.mxu0 0.0
    %1864 = vmatpush1.msra.mxu0 0.0
    %1865 = vmatprep.subr.mxu0 0.0
    %1866 = vmatpush1.msra.mxu0 0.0
    %1867 = vmatprep.subr.mxu0 0.0
    %1868 = vmatpush1.msra.mxu0 0.0
    %1869 = vmatprep.subr.mxu0 0.0
    %1870 = vmatpush1.msra.mxu0 0.0
    %1871 = vmatprep.subr.mxu0 0.0
    %1872 = vmatpush1.msra.mxu0 0.0
    %1873 = vmatprep.subr.mxu0 0.0
    %1874 = vmatpush1.msra.mxu0 0.0
    %1875 = vmatprep.subr.mxu0 0.0
    %1876 = vmatpush1.msra.mxu0 0.0
    %1877 = vmatprep.subr.mxu0 0.0
    %1878 = vmatpush1.msra.mxu0 0.0
    %1879 = vmatprep.subr.mxu0 0.0
    %1880 = vmatpush1.msra.mxu0 0.0
    %1881 = vmatprep.subr.mxu0 0.0
    %1882 = vmatpush1.msra.mxu0 0.0
    %1883 = vmatprep.subr.mxu0 0.0
    %1884 = vmatpush1.msra.mxu0 0.0
    %1885 = vmatprep.subr.mxu0 0.0
    %1886 = vmatpush1.msra.mxu0 0.0
    %1887 = vmatprep.mubr.f32.mxu0 0.0
    %1888 = vmatmul.mubr.f32.gmra.mrb[0].mxu0 %v1563
    %v1889 = vpop.f32.mrb[0].mxu0
    %v1890 = vadd.f32 0.0, %v1889
    %v1891 = vpop.f32.mrb[0].mxu0
    %1892 = vdwg.mxu0
    %v1893 = vadd.f32 %v1750, %v1819
    %v1894 = vxor.u32 %v1893, 2147483648
    %v1895 = vmul.f32 %v1894, 1.442695
    %v1896 = vpow.pop %v1895
    %v1897 = vadd.f32 %v1896, 1.0
    %v1898 = vrcp.pop %v1897
    %v1899 = vmul.f32 1.0, %v1898
    %v1901 = vrot.slane %v1750, 4
    %v1903 = vadd.f32 %v1901, %v1821
    %v1904 = vxor.u32 %v1903, 2147483648
    %v1905 = vmul.f32 %v1904, 1.442695
    %v1906 = vpow.pop %v1905
    %v1907 = vadd.f32 %v1906, 1.0
    %v1908 = vrcp.pop %v1907
    %v1909 = vmul.f32 1.0, %v1908
    %v1910 = vadd.f32 %v1890, %v492
    %v1911 = vmul.f32 %v1899, %v1910
    %v1912 = vadd.f32 %v1751, %v1911
    %v1913 = vtanh.pop %v1912
    %v1914 = vsub.f32 1.0, %v1909
    %v1915 = vmul.f32 %v1914, %v1913
    %v1916 = vmul.f32 %v1909, %v1563
    %v1917 = vadd.f32 %v1915, %v1916
    %v1918 = vsel %vm1577, %v1748, 0.0
    %v1919 = vadd.f32 %v1571, %v1918
    %v1920 = vsel %vm1569, %v1917, 0.0
    %v1921 = vadd.f32 %v1579, %v1920
    %s1922 = scalar_lea.vmem %s0, 60
    %v1923 = vld [vmem:[%s1922] sm:$0xff]
    %v1924 = vld [vmem:[%s1922 + $0x8] sm:$0xf]
    %1925 = vmatprep.subr.mxu0 %v58
    %1926 = vmatpush1.msra.mxu0 %v57
    %1927 = vmatprep.subr.mxu0 %v61
    %1928 = vmatpush1.msra.mxu0 %v60
    %1929 = vmatprep.subr.mxu0 %v64
    %1930 = vmatpush1.msra.mxu0 %v63
    %1931 = vmatprep.subr.mxu0 %v67
    %1932 = vmatpush1.msra.mxu0 %v66
    %1933 = vmatprep.subr.mxu0 %v70
    %1934 = vmatpush1.msra.mxu0 %v69
    %1935 = vmatprep.subr.mxu0 %v73
    %1936 = vmatpush1.msra.mxu0 %v72
    %1937 = vmatprep.subr.mxu0 %v76
    %1938 = vmatpush1.msra.mxu0 %v75
    %1939 = vmatprep.subr.mxu0 %v79
    %1940 = vmatpush1.msra.mxu0 %v78
    %1941 = vmatprep.subr.mxu0 %v82
    %1942 = vmatpush1.msra.mxu0 %v81
    %1943 = vmatprep.subr.mxu0 %v85
    %1944 = vmatpush1.msra.mxu0 %v84
    %1945 = vmatprep.subr.mxu0 %v88
    %1946 = vmatpush1.msra.mxu0 %v87
    %1947 = vmatprep.subr.mxu0 %v91
    %1948 = vmatpush1.msra.mxu0 %v90
    %1949 = vmatprep.subr.mxu0 %v94
    %1950 = vmatpush1.msra.mxu0 %v93
    %1951 = vmatprep.subr.mxu0 %v97
    %1952 = vmatpush1.msra.mxu0 %v96
    %1953 = vmatprep.subr.mxu0 %v100
    %1954 = vmatpush1.msra.mxu0 %v99
    %1955 = vmatprep.subr.mxu0 %v103
    %1956 = vmatpush1.msra.mxu0 %v102
    %1957 = vmatprep.subr.mxu0 0.0
    %1958 = vmatpush1.msra.mxu0 0.0
    %1959 = vmatprep.subr.mxu0 0.0
    %1960 = vmatpush1.msra.mxu0 0.0
    %1961 = vmatprep.subr.mxu0 0.0
    %1962 = vmatpush1.msra.mxu0 0.0
    %1963 = vmatprep.subr.mxu0 0.0
    %1964 = vmatpush1.msra.mxu0 0.0
    %1965 = vmatprep.subr.mxu0 0.0
    %1966 = vmatpush1.msra.mxu0 0.0
    %1967 = vmatprep.subr.mxu0 0.0
    %1968 = vmatpush1.msra.mxu0 0.0
    %1969 = vmatprep.subr.mxu0 0.0
    %1970 = vmatpush1.msra.mxu0 0.0
    %1971 = vmatprep.subr.mxu0 0.0
    %1972 = vmatpush1.msra.mxu0 0.0
    %1973 = vmatprep.subr.mxu0 0.0
    %1974 = vmatpush1.msra.mxu0 0.0
    %1975 = vmatprep.subr.mxu0 0.0
    %1976 = vmatpush1.msra.mxu0 0.0
    %1977 = vmatprep.subr.mxu0 0.0
    %1978 = vmatpush1.msra.mxu0 0.0
    %1979 = vmatprep.subr.mxu0 0.0
    %1980 = vmatpush1.msra.mxu0 0.0
    %1981 = vmatprep.subr.mxu0 0.0
    %1982 = vmatpush1.msra.mxu0 0.0
    %1983 = vmatprep.subr.mxu0 0.0
    %1984 = vmatpush1.msra.mxu0 0.0
    %1985 = vmatprep.subr.mxu0 0.0
    %1986 = vmatpush1.msra.mxu0 0.0
    %1987 = vmatprep.subr.mxu0 0.0
    %1988 = vmatpush1.msra.mxu0 0.0
    %1989 = vmatprep.mubr.f32.mxu0 0.0
    %1990 = vmatmul.mubr.f32.gmra.mrb[0].mxu0 %v1748
    %v1991 = vpop.f32.mrb[0].mxu0
    %v1992 = vadd.f32 0.0, %v1991
    %v1993 = vpop.f32.mrb[0].mxu0
    %v1994 = vadd.f32 0.0, %v1993
    %1995 = vdwg.mxu0
    %1996 = vmatprep.subr.mxu0 0.0
    %1997 = vmatpush1.msra.mxu0 %v59
    %1998 = vmatprep.subr.mxu0 0.0
    %1999 = vmatpush1.msra.mxu0 %v62
    %2000 = vmatprep.subr.mxu0 0.0
    %2001 = vmatpush1.msra.mxu0 %v65
    %2002 = vmatprep.subr.mxu0 0.0
    %2003 = vmatpush1.msra.mxu0 %v68
    %2004 = vmatprep.subr.mxu0 0.0
    %2005 = vmatpush1.msra.mxu0 %v71
    %2006 = vmatprep.subr.mxu0 0.0
    %2007 = vmatpush1.msra.mxu0 %v74
    %2008 = vmatprep.subr.mxu0 0.0
    %2009 = vmatpush1.msra.mxu0 %v77
    %2010 = vmatprep.subr.mxu0 0.0
    %2011 = vmatpush1.msra.mxu0 %v80
    %2012 = vmatprep.subr.mxu0 0.0
    %2013 = vmatpush1.msra.mxu0 %v83
    %2014 = vmatprep.subr.mxu0 0.0
    %2015 = vmatpush1.msra.mxu0 %v86
    %2016 = vmatprep.subr.mxu0 0.0
    %2017 = vmatpush1.msra.mxu0 %v89
    %2018 = vmatprep.subr.mxu0 0.0
    %2019 = vmatpush1.msra.mxu0 %v92
    %2020 = vmatprep.subr.mxu0 0.0
    %2021 = vmatpush1.msra.mxu0 %v95
    %2022 = vmatprep.subr.mxu0 0.0
    %2023 = vmatpush1.msra.mxu0 %v98
    %2024 = vmatprep.subr.mxu0 0.0
    %2025 = vmatpush1.msra.mxu0 %v101
    %2026 = vmatprep.subr.mxu0 0.0
    %2027 = vmatpush1.msra.mxu0 %v104
    %2028 = vmatprep.subr.mxu0 0.0
    %2029 = vmatpush1.msra.mxu0 0.0
    %2030 = vmatprep.subr.mxu0 0.0
    %2031 = vmatpush1.msra.mxu0 0.0
    %2032 = vmatprep.subr.mxu0 0.0
    %2033 = vmatpush1.msra.mxu0 0.0
    %2034 = vmatprep.subr.mxu0 0.0
    %2035 = vmatpush1.msra.mxu0 0.0
    %2036 = vmatprep.subr.mxu0 0.0
    %2037 = vmatpush1.msra.mxu0 0.0
    %2038 = vmatprep.subr.mxu0 0.0
    %2039 = vmatpush1.msra.mxu0 0.0
    %2040 = vmatprep.subr.mxu0 0.0
    %2041 = vmatpush1.msra.mxu0 0.0
    %2042 = vmatprep.subr.mxu0 0.0
    %2043 = vmatpush1.msra.mxu0 0.0
    %2044 = vmatprep.subr.mxu0 0.0
    %2045 = vmatpush1.msra.mxu0 0.0
    %2046 = vmatprep.subr.mxu0 0.0
    %2047 = vmatpush1.msra.mxu0 0.0
    %2048 = vmatprep.subr.mxu0 0.0
    %2049 = vmatpush1.msra.mxu0 0.0
    %2050 = vmatprep.subr.mxu0 0.0
    %2051 = vmatpush1.msra.mxu0 0.0
    %2052 = vmatprep.subr.mxu0 0.0
    %2053 = vmatpush1.msra.mxu0 0.0
    %2054 = vmatprep.subr.mxu0 0.0
    %2055 = vmatpush1.msra.mxu0 0.0
    %2056 = vmatprep.subr.mxu0 0.0
    %2057 = vmatpush1.msra.mxu0 0.0
    %2058 = vmatprep.subr.mxu0 0.0
    %2059 = vmatpush1.msra.mxu0 0.0
    %2060 = vmatprep.mubr.f32.mxu0 0.0
    %2061 = vmatmul.mubr.f32.gmra.mrb[0].mxu0 %v1748
    %v2062 = vpop.f32.mrb[0].mxu0
    %v2063 = vadd.f32 0.0, %v2062
    %v2064 = vpop.f32.mrb[0].mxu0
    %2065 = vdwg.mxu0
    %v2066 = vadd.f32 %v1923, %v1992
    %v2067 = vxor.u32 %v2066, 2147483648
    %v2068 = vmul.f32 %v2067, 1.442695
    %v2069 = vpow.pop %v2068
    %v2070 = vadd.f32 %v2069, 1.0
    %v2071 = vrcp.pop %v2070
    %v2072 = vmul.f32 1.0, %v2071
    %v2074 = vrot.slane %v1923, 4
    %v2076 = vadd.f32 %v2074, %v1994
    %v2077 = vxor.u32 %v2076, 2147483648
    %v2078 = vmul.f32 %v2077, 1.442695
    %v2079 = vpow.pop %v2078
    %v2080 = vadd.f32 %v2079, 1.0
    %v2081 = vrcp.pop %v2080
    %v2082 = vmul.f32 1.0, %v2081
    %v2083 = vadd.f32 %v2063, %v268
    %v2084 = vmul.f32 %v2072, %v2083
    %v2085 = vadd.f32 %v1924, %v2084
    %v2086 = vtanh.pop %v2085
    %v2087 = vsub.f32 1.0, %v2082
    %v2088 = vmul.f32 %v2087, %v2086
    %v2089 = vmul.f32 %v2082, %v1748
    %v2090 = vadd.f32 %v2088, %v2089
    %s2091 = scalar_lea.vmem %s1, 24
    %v2092 = vld [vmem:[%s2091] sm:$0xff]
    %v2093 = vld [vmem:[%s2091 + $0x8] sm:$0xf]
    %2094 = vmatprep.subr.mxu0 %v282
    %2095 = vmatpush1.msra.mxu0 %v281
    %2096 = vmatprep.subr.mxu0 %v285
    %2097 = vmatpush1.msra.mxu0 %v284
    %2098 = vmatprep.subr.mxu0 %v288
    %2099 = vmatpush1.msra.mxu0 %v287
    %2100 = vmatprep.subr.mxu0 %v291
    %2101 = vmatpush1.msra.mxu0 %v290
    %2102 = vmatprep.subr.mxu0 %v294
    %2103 = vmatpush1.msra.mxu0 %v293
    %2104 = vmatprep.subr.mxu0 %v297
    %2105 = vmatpush1.msra.mxu0 %v296
    %2106 = vmatprep.subr.mxu0 %v300
    %2107 = vmatpush1.msra.mxu0 %v299
    %2108 = vmatprep.subr.mxu0 %v303
    %2109 = vmatpush1.msra.mxu0 %v302
    %2110 = vmatprep.subr.mxu0 %v306
    %2111 = vmatpush1.msra.mxu0 %v305
    %2112 = vmatprep.subr.mxu0 %v309
    %2113 = vmatpush1.msra.mxu0 %v308
    %2114 = vmatprep.subr.mxu0 %v312
    %2115 = vmatpush1.msra.mxu0 %v311
    %2116 = vmatprep.subr.mxu0 %v315
    %2117 = vmatpush1.msra.mxu0 %v314
    %2118 = vmatprep.subr.mxu0 %v318
    %2119 = vmatpush1.msra.mxu0 %v317
    %2120 = vmatprep.subr.mxu0 %v321
    %2121 = vmatpush1.msra.mxu0 %v320
    %2122 = vmatprep.subr.mxu0 %v324
    %2123 = vmatpush1.msra.mxu0 %v323
    %2124 = vmatprep.subr.mxu0 %v327
    %2125 = vmatpush1.msra.mxu0 %v326
    %2126 = vmatprep.subr.mxu0 0.0
    %2127 = vmatpush1.msra.mxu0 0.0
    %2128 = vmatprep.subr.mxu0 0.0
    %2129 = vmatpush1.msra.mxu0 0.0
    %2130 = vmatprep.subr.mxu0 0.0
    %2131 = vmatpush1.msra.mxu0 0.0
    %2132 = vmatprep.subr.mxu0 0.0
    %2133 = vmatpush1.msra.mxu0 0.0
    %2134 = vmatprep.subr.mxu0 0.0
    %2135 = vmatpush1.msra.mxu0 0.0
    %2136 = vmatprep.subr.mxu0 0.0
    %2137 = vmatpush1.msra.mxu0 0.0
    %2138 = vmatprep.subr.mxu0 0.0
    %2139 = vmatpush1.msra.mxu0 0.0
    %2140 = vmatprep.subr.mxu0 0.0
    %2141 = vmatpush1.msra.mxu0 0.0
    %2142 = vmatprep.subr.mxu0 0.0
    %2143 = vmatpush1.msra.mxu0 0.0
    %2144 = vmatprep.subr.mxu0 0.0
    %2145 = vmatpush1.msra.mxu0 0.0
    %2146 = vmatprep.subr.mxu0 0.0
    %2147 = vmatpush1.msra.mxu0 0.0
    %2148 = vmatprep.subr.mxu0 0.0
    %2149 = vmatpush1.msra.mxu0 0.0
    %2150 = vmatprep.subr.mxu0 0.0
    %2151 = vmatpush1.msra.mxu0 0.0
    %2152 = vmatprep.subr.mxu0 0.0
    %2153 = vmatpush1.msra.mxu0 0.0
    %2154 = vmatprep.subr.mxu0 0.0
    %2155 = vmatpush1.msra.mxu0 0.0
    %2156 = vmatprep.subr.mxu0 0.0
    %2157 = vmatpush1.msra.mxu0 0.0
    %2158 = vmatprep.mubr.f32.mxu0 0.0
    %2159 = vmatmul.mubr.f32.gmra.mrb[0].mxu0 %v1917
    %v2160 = vpop.f32.mrb[0].mxu0
    %v2161 = vadd.f32 0.0, %v2160
    %v2162 = vpop.f32.mrb[0].mxu0
    %v2163 = vadd.f32 0.0, %v2162
    %2164 = vdwg.mxu0
    %2165 = vmatprep.subr.mxu0 0.0
    %2166 = vmatpush1.msra.mxu0 %v283
    %2167 = vmatprep.subr.mxu0 0.0
    %2168 = vmatpush1.msra.mxu0 %v286
    %2169 = vmatprep.subr.mxu0 0.0
    %2170 = vmatpush1.msra.mxu0 %v289
    %2171 = vmatprep.subr.mxu0 0.0
    %2172 = vmatpush1.msra.mxu0 %v292
    %2173 = vmatprep.subr.mxu0 0.0
    %2174 = vmatpush1.msra.mxu0 %v295
    %2175 = vmatprep.subr.mxu0 0.0
    %2176 = vmatpush1.msra.mxu0 %v298
    %2177 = vmatprep.subr.mxu0 0.0
    %2178 = vmatpush1.msra.mxu0 %v301
    %2179 = vmatprep.subr.mxu0 0.0
    %2180 = vmatpush1.msra.mxu0 %v304
    %2181 = vmatprep.subr.mxu0 0.0
    %2182 = vmatpush1.msra.mxu0 %v307
    %2183 = vmatprep.subr.mxu0 0.0
    %2184 = vmatpush1.msra.mxu0 %v310
    %2185 = vmatprep.subr.mxu0 0.0
    %2186 = vmatpush1.msra.mxu0 %v313
    %2187 = vmatprep.subr.mxu0 0.0
    %2188 = vmatpush1.msra.mxu0 %v316
    %2189 = vmatprep.subr.mxu0 0.0
    %2190 = vmatpush1.msra.mxu0 %v319
    %2191 = vmatprep.subr.mxu0 0.0
    %2192 = vmatpush1.msra.mxu0 %v322
    %2193 = vmatprep.subr.mxu0 0.0
    %2194 = vmatpush1.msra.mxu0 %v325
    %2195 = vmatprep.subr.mxu0 0.0
    %2196 = vmatpush1.msra.mxu0 %v328
    %2197 = vmatprep.subr.mxu0 0.0
    %2198 = vmatpush1.msra.mxu0 0.0
    %2199 = vmatprep.subr.mxu0 0.0
    %2200 = vmatpush1.msra.mxu0 0.0
    %2201 = vmatprep.subr.mxu0 0.0
    %2202 = vmatpush1.msra.mxu0 0.0
    %2203 = vmatprep.subr.mxu0 0.0
    %2204 = vmatpush1.msra.mxu0 0.0
    %2205 = vmatprep.subr.mxu0 0.0
    %2206 = vmatpush1.msra.mxu0 0.0
    %2207 = vmatprep.subr.mxu0 0.0
    %2208 = vmatpush1.msra.mxu0 0.0
    %2209 = vmatprep.subr.mxu0 0.0
    %2210 = vmatpush1.msra.mxu0 0.0
    %2211 = vmatprep.subr.mxu0 0.0
    %2212 = vmatpush1.msra.mxu0 0.0
    %2213 = vmatprep.subr.mxu0 0.0
    %2214 = vmatpush1.msra.mxu0 0.0
    %2215 = vmatprep.subr.mxu0 0.0
    %2216 = vmatpush1.msra.mxu0 0.0
    %2217 = vmatprep.subr.mxu0 0.0
    %2218 = vmatpush1.msra.mxu0 0.0
    %2219 = vmatprep.subr.mxu0 0.0
    %2220 = vmatpush1.msra.mxu0 0.0
    %2221 = vmatprep.subr.mxu0 0.0
    %2222 = vmatpush1.msra.mxu0 0.0
    %2223 = vmatprep.subr.mxu0 0.0
    %2224 = vmatpush1.msra.mxu0 0.0
    %2225 = vmatprep.subr.mxu0 0.0
    %2226 = vmatpush1.msra.mxu0 0.0
    %2227 = vmatprep.subr.mxu0 0.0
    %2228 = vmatpush1.msra.mxu0 0.0
    %2229 = vmatprep.mubr.f32.mxu0 0.0
    %2230 = vmatmul.mubr.f32.gmra.mrb[0].mxu0 %v1917
    %v2231 = vpop.f32.mrb[0].mxu0
    %v2232 = vadd.f32 0.0, %v2231
    %v2233 = vpop.f32.mrb[0].mxu0
    %2234 = vdwg.mxu0
    %v2235 = vadd.f32 %v2092, %v2161
    %v2236 = vxor.u32 %v2235, 2147483648
    %v2237 = vmul.f32 %v2236, 1.442695
    %v2238 = vpow.pop %v2237
    %v2239 = vadd.f32 %v2238, 1.0
    %v2240 = vrcp.pop %v2239
    %v2241 = vmul.f32 1.0, %v2240
    %v2243 = vrot.slane %v2092, 4
    %v2245 = vadd.f32 %v2243, %v2163
    %v2246 = vxor.u32 %v2245, 2147483648
    %v2247 = vmul.f32 %v2246, 1.442695
    %v2248 = vpow.pop %v2247
    %v2249 = vadd.f32 %v2248, 1.0
    %v2250 = vrcp.pop %v2249
    %v2251 = vmul.f32 1.0, %v2250
    %v2252 = vadd.f32 %v2232, %v492
    %v2253 = vmul.f32 %v2241, %v2252
    %v2254 = vadd.f32 %v2093, %v2253
    %v2255 = vtanh.pop %v2254
    %v2256 = vsub.f32 1.0, %v2251
    %v2257 = vmul.f32 %v2256, %v2255
    %v2258 = vmul.f32 %v2251, %v1917
    %v2259 = vadd.f32 %v2257, %v2258
    %v2260 = vsel %vm1223, %v2090, 0.0
    %v2261 = vadd.f32 %v1919, %v2260
    %v2262 = vsel %vm1215, %v2259, 0.0
    %v2263 = vadd.f32 %v1921, %v2262
    %s2264 = scalar_lea.vmem %s0, 72
    %v2265 = vld [vmem:[%s2264] sm:$0xff]
    %v2266 = vld [vmem:[%s2264 + $0x8] sm:$0xf]
    %2267 = vmatprep.subr.mxu0 %v58
    %2268 = vmatpush1.msra.mxu0 %v57
    %2269 = vmatprep.subr.mxu0 %v61
    %2270 = vmatpush1.msra.mxu0 %v60
    %2271 = vmatprep.subr.mxu0 %v64
    %2272 = vmatpush1.msra.mxu0 %v63
    %2273 = vmatprep.subr.mxu0 %v67
    %2274 = vmatpush1.msra.mxu0 %v66
    %2275 = vmatprep.subr.mxu0 %v70
    %2276 = vmatpush1.msra.mxu0 %v69
    %2277 = vmatprep.subr.mxu0 %v73
    %2278 = vmatpush1.msra.mxu0 %v72
    %2279 = vmatprep.subr.mxu0 %v76
    %2280 = vmatpush1.msra.mxu0 %v75
    %2281 = vmatprep.subr.mxu0 %v79
    %2282 = vmatpush1.msra.mxu0 %v78
    %2283 = vmatprep.subr.mxu0 %v82
    %2284 = vmatpush1.msra.mxu0 %v81
    %2285 = vmatprep.subr.mxu0 %v85
    %2286 = vmatpush1.msra.mxu0 %v84
    %2287 = vmatprep.subr.mxu0 %v88
    %2288 = vmatpush1.msra.mxu0 %v87
    %2289 = vmatprep.subr.mxu0 %v91
    %2290 = vmatpush1.msra.mxu0 %v90
    %2291 = vmatprep.subr.mxu0 %v94
    %2292 = vmatpush1.msra.mxu0 %v93
    %2293 = vmatprep.subr.mxu0 %v97
    %2294 = vmatpush1.msra.mxu0 %v96
    %2295 = vmatprep.subr.mxu0 %v100
    %2296 = vmatpush1.msra.mxu0 %v99
    %2297 = vmatprep.subr.mxu0 %v103
    %2298 = vmatpush1.msra.mxu0 %v102
    %2299 = vmatprep.subr.mxu0 0.0
    %2300 = vmatpush1.msra.mxu0 0.0
    %2301 = vmatprep.subr.mxu0 0.0
    %2302 = vmatpush1.msra.mxu0 0.0
    %2303 = vmatprep.subr.mxu0 0.0
    %2304 = vmatpush1.msra.mxu0 0.0
    %2305 = vmatprep.subr.mxu0 0.0
    %2306 = vmatpush1.msra.mxu0 0.0
    %2307 = vmatprep.subr.mxu0 0.0
    %2308 = vmatpush1.msra.mxu0 0.0
    %2309 = vmatprep.subr.mxu0 0.0
    %2310 = vmatpush1.msra.mxu0 0.0
    %2311 = vmatprep.subr.mxu0 0.0
    %2312 = vmatpush1.msra.mxu0 0.0
    %2313 = vmatprep.subr.mxu0 0.0
    %2314 = vmatpush1.msra.mxu0 0.0
    %2315 = vmatprep.subr.mxu0 0.0
    %2316 = vmatpush1.msra.mxu0 0.0
    %2317 = vmatprep.subr.mxu0 0.0
    %2318 = vmatpush1.msra.mxu0 0.0
    %2319 = vmatprep.subr.mxu0 0.0
    %2320 = vmatpush1.msra.mxu0 0.0
    %2321 = vmatprep.subr.mxu0 0.0
    %2322 = vmatpush1.msra.mxu0 0.0
    %2323 = vmatprep.subr.mxu0 0.0
    %2324 = vmatpush1.msra.mxu0 0.0
    %2325 = vmatprep.subr.mxu0 0.0
    %2326 = vmatpush1.msra.mxu0 0.0
    %2327 = vmatprep.subr.mxu0 0.0
    %2328 = vmatpush1.msra.mxu0 0.0
    %2329 = vmatprep.subr.mxu0 0.0
    %2330 = vmatpush1.msra.mxu0 0.0
    %2331 = vmatprep.mubr.f32.mxu0 0.0
    %2332 = vmatmul.mubr.f32.gmra.mrb[0].mxu0 %v2090
    %v2333 = vpop.f32.mrb[0].mxu0
    %v2334 = vadd.f32 0.0, %v2333
    %v2335 = vpop.f32.mrb[0].mxu0
    %v2336 = vadd.f32 0.0, %v2335
    %2337 = vdwg.mxu0
    %2338 = vmatprep.subr.mxu0 0.0
    %2339 = vmatpush1.msra.mxu0 %v59
    %2340 = vmatprep.subr.mxu0 0.0
    %2341 = vmatpush1.msra.mxu0 %v62
    %2342 = vmatprep.subr.mxu0 0.0
    %2343 = vmatpush1.msra.mxu0 %v65
    %2344 = vmatprep.subr.mxu0 0.0
    %2345 = vmatpush1.msra.mxu0 %v68
    %2346 = vmatprep.subr.mxu0 0.0
    %2347 = vmatpush1.msra.mxu0 %v71
    %2348 = vmatprep.subr.mxu0 0.0
    %2349 = vmatpush1.msra.mxu0 %v74
    %2350 = vmatprep.subr.mxu0 0.0
    %2351 = vmatpush1.msra.mxu0 %v77
    %2352 = vmatprep.subr.mxu0 0.0
    %2353 = vmatpush1.msra.mxu0 %v80
    %2354 = vmatprep.subr.mxu0 0.0
    %2355 = vmatpush1.msra.mxu0 %v83
    %2356 = vmatprep.subr.mxu0 0.0
    %2357 = vmatpush1.msra.mxu0 %v86
    %2358 = vmatprep.subr.mxu0 0.0
    %2359 = vmatpush1.msra.mxu0 %v89
    %2360 = vmatprep.subr.mxu0 0.0
    %2361 = vmatpush1.msra.mxu0 %v92
    %2362 = vmatprep.subr.mxu0 0.0
    %2363 = vmatpush1.msra.mxu0 %v95
    %2364 = vmatprep.subr.mxu0 0.0
    %2365 = vmatpush1.msra.mxu0 %v98
    %2366 = vmatprep.subr.mxu0 0.0
    %2367 = vmatpush1.msra.mxu0 %v101
    %2368 = vmatprep.subr.mxu0 0.0
    %2369 = vmatpush1.msra.mxu0 %v104
    %2370 = vmatprep.subr.mxu0 0.0
    %2371 = vmatpush1.msra.mxu0 0.0
    %2372 = vmatprep.subr.mxu0 0.0
    %2373 = vmatpush1.msra.mxu0 0.0
    %2374 = vmatprep.subr.mxu0 0.0
    %2375 = vmatpush1.msra.mxu0 0.0
    %2376 = vmatprep.subr.mxu0 0.0
    %2377 = vmatpush1.msra.mxu0 0.0
    %2378 = vmatprep.subr.mxu0 0.0
    %2379 = vmatpush1.msra.mxu0 0.0
    %2380 = vmatprep.subr.mxu0 0.0
    %2381 = vmatpush1.msra.mxu0 0.0
    %2382 = vmatprep.subr.mxu0 0.0
    %2383 = vmatpush1.msra.mxu0 0.0
    %2384 = vmatprep.subr.mxu0 0.0
    %2385 = vmatpush1.msra.mxu0 0.0
    %2386 = vmatprep.subr.mxu0 0.0
    %2387 = vmatpush1.msra.mxu0 0.0
    %2388 = vmatprep.subr.mxu0 0.0
    %2389 = vmatpush1.msra.mxu0 0.0
    %2390 = vmatprep.subr.mxu0 0.0
    %2391 = vmatpush1.msra.mxu0 0.0
    %2392 = vmatprep.subr.mxu0 0.0
    %2393 = vmatpush1.msra.mxu0 0.0
    %2394 = vmatprep.subr.mxu0 0.0
    %2395 = vmatpush1.msra.mxu0 0.0
    %2396 = vmatprep.subr.mxu0 0.0
    %2397 = vmatpush1.msra.mxu0 0.0
    %2398 = vmatprep.subr.mxu0 0.0
    %2399 = vmatpush1.msra.mxu0 0.0
    %2400 = vmatprep.subr.mxu0 0.0
    %2401 = vmatpush1.msra.mxu0 0.0
    %2402 = vmatprep.mubr.f32.mxu0 0.0
    %2403 = vmatmul.mubr.f32.gmra.mrb[0].mxu0 %v2090
    %v2404 = vpop.f32.mrb[0].mxu0
    %v2405 = vadd.f32 0.0, %v2404
    %v2406 = vpop.f32.mrb[0].mxu0
    %2407 = vdwg.mxu0
    %v2408 = vadd.f32 %v2265, %v2334
    %v2409 = vxor.u32 %v2408, 2147483648
    %v2410 = vmul.f32 %v2409, 1.442695
    %v2411 = vpow.pop %v2410
    %v2412 = vadd.f32 %v2411, 1.0
    %v2413 = vrcp.pop %v2412
    %v2414 = vmul.f32 1.0, %v2413
    %v2416 = vrot.slane %v2265, 4
    %v2418 = vadd.f32 %v2416, %v2336
    %v2419 = vxor.u32 %v2418, 2147483648
    %v2420 = vmul.f32 %v2419, 1.442695
    %v2421 = vpow.pop %v2420
    %v2422 = vadd.f32 %v2421, 1.0
    %v2423 = vrcp.pop %v2422
    %v2424 = vmul.f32 1.0, %v2423
    %v2425 = vadd.f32 %v2405, %v268
    %v2426 = vmul.f32 %v2414, %v2425
    %v2427 = vadd.f32 %v2266, %v2426
    %v2428 = vtanh.pop %v2427
    %v2429 = vsub.f32 1.0, %v2424
    %v2430 = vmul.f32 %v2429, %v2428
    %v2431 = vmul.f32 %v2424, %v2090
    %v2432 = vadd.f32 %v2430, %v2431
    %s2433 = scalar_lea.vmem %s1, 12
    %v2434 = vld [vmem:[%s2433] sm:$0xff]
    %v2435 = vld [vmem:[%s2433 + $0x8] sm:$0xf]
    %2436 = vmatprep.subr.mxu0 %v282
    %2437 = vmatpush1.msra.mxu0 %v281
    %2438 = vmatprep.subr.mxu0 %v285
    %2439 = vmatpush1.msra.mxu0 %v284
    %2440 = vmatprep.subr.mxu0 %v288
    %2441 = vmatpush1.msra.mxu0 %v287
    %2442 = vmatprep.subr.mxu0 %v291
    %2443 = vmatpush1.msra.mxu0 %v290
    %2444 = vmatprep.subr.mxu0 %v294
    %2445 = vmatpush1.msra.mxu0 %v293
    %2446 = vmatprep.subr.mxu0 %v297
    %2447 = vmatpush1.msra.mxu0 %v296
    %2448 = vmatprep.subr.mxu0 %v300
    %2449 = vmatpush1.msra.mxu0 %v299
    %2450 = vmatprep.subr.mxu0 %v303
    %2451 = vmatpush1.msra.mxu0 %v302
    %2452 = vmatprep.subr.mxu0 %v306
    %2453 = vmatpush1.msra.mxu0 %v305
    %2454 = vmatprep.subr.mxu0 %v309
    %2455 = vmatpush1.msra.mxu0 %v308
    %2456 = vmatprep.subr.mxu0 %v312
    %2457 = vmatpush1.msra.mxu0 %v311
    %2458 = vmatprep.subr.mxu0 %v315
    %2459 = vmatpush1.msra.mxu0 %v314
    %2460 = vmatprep.subr.mxu0 %v318
    %2461 = vmatpush1.msra.mxu0 %v317
    %2462 = vmatprep.subr.mxu0 %v321
    %2463 = vmatpush1.msra.mxu0 %v320
    %2464 = vmatprep.subr.mxu0 %v324
    %2465 = vmatpush1.msra.mxu0 %v323
    %2466 = vmatprep.subr.mxu0 %v327
    %2467 = vmatpush1.msra.mxu0 %v326
    %2468 = vmatprep.subr.mxu0 0.0
    %2469 = vmatpush1.msra.mxu0 0.0
    %2470 = vmatprep.subr.mxu0 0.0
    %2471 = vmatpush1.msra.mxu0 0.0
    %2472 = vmatprep.subr.mxu0 0.0
    %2473 = vmatpush1.msra.mxu0 0.0
    %2474 = vmatprep.subr.mxu0 0.0
    %2475 = vmatpush1.msra.mxu0 0.0
    %2476 = vmatprep.subr.mxu0 0.0
    %2477 = vmatpush1.msra.mxu0 0.0
    %2478 = vmatprep.subr.mxu0 0.0
    %2479 = vmatpush1.msra.mxu0 0.0
    %2480 = vmatprep.subr.mxu0 0.0
    %2481 = vmatpush1.msra.mxu0 0.0
    %2482 = vmatprep.subr.mxu0 0.0
    %2483 = vmatpush1.msra.mxu0 0.0
    %2484 = vmatprep.subr.mxu0 0.0
    %2485 = vmatpush1.msra.mxu0 0.0
    %2486 = vmatprep.subr.mxu0 0.0
    %2487 = vmatpush1.msra.mxu0 0.0
    %2488 = vmatprep.subr.mxu0 0.0
    %2489 = vmatpush1.msra.mxu0 0.0
    %2490 = vmatprep.subr.mxu0 0.0
    %2491 = vmatpush1.msra.mxu0 0.0
    %2492 = vmatprep.subr.mxu0 0.0
    %2493 = vmatpush1.msra.mxu0 0.0
    %2494 = vmatprep.subr.mxu0 0.0
    %2495 = vmatpush1.msra.mxu0 0.0
    %2496 = vmatprep.subr.mxu0 0.0
    %2497 = vmatpush1.msra.mxu0 0.0
    %2498 = vmatprep.subr.mxu0 0.0
    %2499 = vmatpush1.msra.mxu0 0.0
    %2500 = vmatprep.mubr.f32.mxu0 0.0
    %2501 = vmatmul.mubr.f32.gmra.mrb[0].mxu0 %v2259
    %v2502 = vpop.f32.mrb[0].mxu0
    %v2503 = vadd.f32 0.0, %v2502
    %v2504 = vpop.f32.mrb[0].mxu0
    %v2505 = vadd.f32 0.0, %v2504
    %2506 = vdwg.mxu0
    %2507 = vmatprep.subr.mxu0 0.0
    %2508 = vmatpush1.msra.mxu0 %v283
    %2509 = vmatprep.subr.mxu0 0.0
    %2510 = vmatpush1.msra.mxu0 %v286
    %2511 = vmatprep.subr.mxu0 0.0
    %2512 = vmatpush1.msra.mxu0 %v289
    %2513 = vmatprep.subr.mxu0 0.0
    %2514 = vmatpush1.msra.mxu0 %v292
    %2515 = vmatprep.subr.mxu0 0.0
    %2516 = vmatpush1.msra.mxu0 %v295
    %2517 = vmatprep.subr.mxu0 0.0
    %2518 = vmatpush1.msra.mxu0 %v298
    %2519 = vmatprep.subr.mxu0 0.0
    %2520 = vmatpush1.msra.mxu0 %v301
    %2521 = vmatprep.subr.mxu0 0.0
    %2522 = vmatpush1.msra.mxu0 %v304
    %2523 = vmatprep.subr.mxu0 0.0
    %2524 = vmatpush1.msra.mxu0 %v307
    %2525 = vmatprep.subr.mxu0 0.0
    %2526 = vmatpush1.msra.mxu0 %v310
    %2527 = vmatprep.subr.mxu0 0.0
    %2528 = vmatpush1.msra.mxu0 %v313
    %2529 = vmatprep.subr.mxu0 0.0
    %2530 = vmatpush1.msra.mxu0 %v316
    %2531 = vmatprep.subr.mxu0 0.0
    %2532 = vmatpush1.msra.mxu0 %v319
    %2533 = vmatprep.subr.mxu0 0.0
    %2534 = vmatpush1.msra.mxu0 %v322
    %2535 = vmatprep.subr.mxu0 0.0
    %2536 = vmatpush1.msra.mxu0 %v325
    %2537 = vmatprep.subr.mxu0 0.0
    %2538 = vmatpush1.msra.mxu0 %v328
    %2539 = vmatprep.subr.mxu0 0.0
    %2540 = vmatpush1.msra.mxu0 0.0
    %2541 = vmatprep.subr.mxu0 0.0
    %2542 = vmatpush1.msra.mxu0 0.0
    %2543 = vmatprep.subr.mxu0 0.0
    %2544 = vmatpush1.msra.mxu0 0.0
    %2545 = vmatprep.subr.mxu0 0.0
    %2546 = vmatpush1.msra.mxu0 0.0
    %2547 = vmatprep.subr.mxu0 0.0
    %2548 = vmatpush1.msra.mxu0 0.0
    %2549 = vmatprep.subr.mxu0 0.0
    %2550 = vmatpush1.msra.mxu0 0.0
    %2551 = vmatprep.subr.mxu0 0.0
    %2552 = vmatpush1.msra.mxu0 0.0
    %2553 = vmatprep.subr.mxu0 0.0
    %2554 = vmatpush1.msra.mxu0 0.0
    %2555 = vmatprep.subr.mxu0 0.0
    %2556 = vmatpush1.msra.mxu0 0.0
    %2557 = vmatprep.subr.mxu0 0.0
    %2558 = vmatpush1.msra.mxu0 0.0
    %2559 = vmatprep.subr.mxu0 0.0
    %2560 = vmatpush1.msra.mxu0 0.0
    %2561 = vmatprep.subr.mxu0 0.0
    %2562 = vmatpush1.msra.mxu0 0.0
    %2563 = vmatprep.subr.mxu0 0.0
    %2564 = vmatpush1.msra.mxu0 0.0
    %2565 = vmatprep.subr.mxu0 0.0
    %2566 = vmatpush1.msra.mxu0 0.0
    %2567 = vmatprep.subr.mxu0 0.0
    %2568 = vmatpush1.msra.mxu0 0.0
    %2569 = vmatprep.subr.mxu0 0.0
    %2570 = vmatpush1.msra.mxu0 0.0
    %2571 = vmatprep.mubr.f32.mxu0 0.0
    %2572 = vmatmul.mubr.f32.gmra.mrb[0].mxu0 %v2259
    %v2573 = vpop.f32.mrb[0].mxu0
    %v2574 = vadd.f32 0.0, %v2573
    %v2575 = vpop.f32.mrb[0].mxu0
    %2576 = vdwg.mxu0
    %v2577 = vadd.f32 %v2434, %v2503
    %v2578 = vxor.u32 %v2577, 2147483648
    %v2579 = vmul.f32 %v2578, 1.442695
    %v2580 = vpow.pop %v2579
    %v2581 = vadd.f32 %v2580, 1.0
    %v2582 = vrcp.pop %v2581
    %v2583 = vmul.f32 1.0, %v2582
    %v2585 = vrot.slane %v2434, 4
    %v2587 = vadd.f32 %v2585, %v2505
    %v2588 = vxor.u32 %v2587, 2147483648
    %v2589 = vmul.f32 %v2588, 1.442695
    %v2590 = vpow.pop %v2589
    %v2591 = vadd.f32 %v2590, 1.0
    %v2592 = vrcp.pop %v2591
    %v2593 = vmul.f32 1.0, %v2592
    %v2594 = vadd.f32 %v2574, %v492
    %v2595 = vmul.f32 %v2583, %v2594
    %v2596 = vadd.f32 %v2435, %v2595
    %v2597 = vtanh.pop %v2596
    %v2598 = vsub.f32 1.0, %v2593
    %v2599 = vmul.f32 %v2598, %v2597
    %v2600 = vmul.f32 %v2593, %v2259
    %v2601 = vadd.f32 %v2599, %v2600
    %v2602 = vsel %vm869, %v2432, 0.0
    %v2603 = vadd.f32 %v2261, %v2602
    %v2604 = vsel %vm861, %v2601, 0.0
    %v2605 = vadd.f32 %v2263, %v2604
    %s2606 = scalar_lea.vmem %s0, 84
    %v2607 = vld [vmem:[%s2606] sm:$0xff]
    %v2608 = vld [vmem:[%s2606 + $0x8] sm:$0xf]
    %2609 = vmatprep.subr.mxu0 %v58
    %2610 = vmatpush1.msra.mxu0 %v57
    %2611 = vmatprep.subr.mxu0 %v61
    %2612 = vmatpush1.msra.mxu0 %v60
    %2613 = vmatprep.subr.mxu0 %v64
    %2614 = vmatpush1.msra.mxu0 %v63
    %2615 = vmatprep.subr.mxu0 %v67
    %2616 = vmatpush1.msra.mxu0 %v66
    %2617 = vmatprep.subr.mxu0 %v70
    %2618 = vmatpush1.msra.mxu0 %v69
    %2619 = vmatprep.subr.mxu0 %v73
    %2620 = vmatpush1.msra.mxu0 %v72
    %2621 = vmatprep.subr.mxu0 %v76
    %2622 = vmatpush1.msra.mxu0 %v75
    %2623 = vmatprep.subr.mxu0 %v79
    %2624 = vmatpush1.msra.mxu0 %v78
    %2625 = vmatprep.subr.mxu0 %v82
    %2626 = vmatpush1.msra.mxu0 %v81
    %2627 = vmatprep.subr.mxu0 %v85
    %2628 = vmatpush1.msra.mxu0 %v84
    %2629 = vmatprep.subr.mxu0 %v88
    %2630 = vmatpush1.msra.mxu0 %v87
    %2631 = vmatprep.subr.mxu0 %v91
    %2632 = vmatpush1.msra.mxu0 %v90
    %2633 = vmatprep.subr.mxu0 %v94
    %2634 = vmatpush1.msra.mxu0 %v93
    %2635 = vmatprep.subr.mxu0 %v97
    %2636 = vmatpush1.msra.mxu0 %v96
    %2637 = vmatprep.subr.mxu0 %v100
    %2638 = vmatpush1.msra.mxu0 %v99
    %2639 = vmatprep.subr.mxu0 %v103
    %2640 = vmatpush1.msra.mxu0 %v102
    %2641 = vmatprep.subr.mxu0 0.0
    %2642 = vmatpush1.msra.mxu0 0.0
    %2643 = vmatprep.subr.mxu0 0.0
    %2644 = vmatpush1.msra.mxu0 0.0
    %2645 = vmatprep.subr.mxu0 0.0
    %2646 = vmatpush1.msra.mxu0 0.0
    %2647 = vmatprep.subr.mxu0 0.0
    %2648 = vmatpush1.msra.mxu0 0.0
    %2649 = vmatprep.subr.mxu0 0.0
    %2650 = vmatpush1.msra.mxu0 0.0
    %2651 = vmatprep.subr.mxu0 0.0
    %2652 = vmatpush1.msra.mxu0 0.0
    %2653 = vmatprep.subr.mxu0 0.0
    %2654 = vmatpush1.msra.mxu0 0.0
    %2655 = vmatprep.subr.mxu0 0.0
    %2656 = vmatpush1.msra.mxu0 0.0
    %2657 = vmatprep.subr.mxu0 0.0
    %2658 = vmatpush1.msra.mxu0 0.0
    %2659 = vmatprep.subr.mxu0 0.0
    %2660 = vmatpush1.msra.mxu0 0.0
    %2661 = vmatprep.subr.mxu0 0.0
    %2662 = vmatpush1.msra.mxu0 0.0
    %2663 = vmatprep.subr.mxu0 0.0
    %2664 = vmatpush1.msra.mxu0 0.0
    %2665 = vmatprep.subr.mxu0 0.0
    %2666 = vmatpush1.msra.mxu0 0.0
    %2667 = vmatprep.subr.mxu0 0.0
    %2668 = vmatpush1.msra.mxu0 0.0
    %2669 = vmatprep.subr.mxu0 0.0
    %2670 = vmatpush1.msra.mxu0 0.0
    %2671 = vmatprep.subr.mxu0 0.0
    %2672 = vmatpush1.msra.mxu0 0.0
    %2673 = vmatprep.mubr.f32.mxu0 0.0
    %2674 = vmatmul.mubr.f32.gmra.mrb[0].mxu0 %v2432
    %v2675 = vpop.f32.mrb[0].mxu0
    %v2676 = vadd.f32 0.0, %v2675
    %v2677 = vpop.f32.mrb[0].mxu0
    %v2678 = vadd.f32 0.0, %v2677
    %2679 = vdwg.mxu0
    %2680 = vmatprep.subr.mxu0 0.0
    %2681 = vmatpush1.msra.mxu0 %v59
    %2682 = vmatprep.subr.mxu0 0.0
    %2683 = vmatpush1.msra.mxu0 %v62
    %2684 = vmatprep.subr.mxu0 0.0
    %2685 = vmatpush1.msra.mxu0 %v65
    %2686 = vmatprep.subr.mxu0 0.0
    %2687 = vmatpush1.msra.mxu0 %v68
    %2688 = vmatprep.subr.mxu0 0.0
    %2689 = vmatpush1.msra.mxu0 %v71
    %2690 = vmatprep.subr.mxu0 0.0
    %2691 = vmatpush1.msra.mxu0 %v74
    %2692 = vmatprep.subr.mxu0 0.0
    %2693 = vmatpush1.msra.mxu0 %v77
    %2694 = vmatprep.subr.mxu0 0.0
    %2695 = vmatpush1.msra.mxu0 %v80
    %2696 = vmatprep.subr.mxu0 0.0
    %2697 = vmatpush1.msra.mxu0 %v83
    %2698 = vmatprep.subr.mxu0 0.0
    %2699 = vmatpush1.msra.mxu0 %v86
    %2700 = vmatprep.subr.mxu0 0.0
    %2701 = vmatpush1.msra.mxu0 %v89
    %2702 = vmatprep.subr.mxu0 0.0
    %2703 = vmatpush1.msra.mxu0 %v92
    %2704 = vmatprep.subr.mxu0 0.0
    %2705 = vmatpush1.msra.mxu0 %v95
    %2706 = vmatprep.subr.mxu0 0.0
    %2707 = vmatpush1.msra.mxu0 %v98
    %2708 = vmatprep.subr.mxu0 0.0
    %2709 = vmatpush1.msra.mxu0 %v101
    %2710 = vmatprep.subr.mxu0 0.0
    %2711 = vmatpush1.msra.mxu0 %v104
    %2712 = vmatprep.subr.mxu0 0.0
    %2713 = vmatpush1.msra.mxu0 0.0
    %2714 = vmatprep.subr.mxu0 0.0
    %2715 = vmatpush1.msra.mxu0 0.0
    %2716 = vmatprep.subr.mxu0 0.0
    %2717 = vmatpush1.msra.mxu0 0.0
    %2718 = vmatprep.subr.mxu0 0.0
    %2719 = vmatpush1.msra.mxu0 0.0
    %2720 = vmatprep.subr.mxu0 0.0
    %2721 = vmatpush1.msra.mxu0 0.0
    %2722 = vmatprep.subr.mxu0 0.0
    %2723 = vmatpush1.msra.mxu0 0.0
    %2724 = vmatprep.subr.mxu0 0.0
    %2725 = vmatpush1.msra.mxu0 0.0
    %2726 = vmatprep.subr.mxu0 0.0
    %2727 = vmatpush1.msra.mxu0 0.0
    %2728 = vmatprep.subr.mxu0 0.0
    %2729 = vmatpush1.msra.mxu0 0.0
    %2730 = vmatprep.subr.mxu0 0.0
    %2731 = vmatpush1.msra.mxu0 0.0
    %2732 = vmatprep.subr.mxu0 0.0
    %2733 = vmatpush1.msra.mxu0 0.0
    %2734 = vmatprep.subr.mxu0 0.0
    %2735 = vmatpush1.msra.mxu0 0.0
    %2736 = vmatprep.subr.mxu0 0.0
    %2737 = vmatpush1.msra.mxu0 0.0
    %2738 = vmatprep.subr.mxu0 0.0
    %2739 = vmatpush1.msra.mxu0 0.0
    %2740 = vmatprep.subr.mxu0 0.0
    %2741 = vmatpush1.msra.mxu0 0.0
    %2742 = vmatprep.subr.mxu0 0.0
    %2743 = vmatpush1.msra.mxu0 0.0
    %2744 = vmatprep.mubr.f32.mxu0 0.0
    %2745 = vmatmul.mubr.f32.gmra.mrb[0].mxu0 %v2432
    %v2746 = vpop.f32.mrb[0].mxu0
    %v2747 = vadd.f32 0.0, %v2746
    %v2748 = vpop.f32.mrb[0].mxu0
    %2749 = vdwg.mxu0
    %v2750 = vadd.f32 %v2607, %v2676
    %v2751 = vxor.u32 %v2750, 2147483648
    %v2752 = vmul.f32 %v2751, 1.442695
    %v2753 = vpow.pop %v2752
    %v2754 = vadd.f32 %v2753, 1.0
    %v2755 = vrcp.pop %v2754
    %v2756 = vmul.f32 1.0, %v2755
    %v2758 = vrot.slane %v2607, 4
    %v2760 = vadd.f32 %v2758, %v2678
    %v2761 = vxor.u32 %v2760, 2147483648
    %v2762 = vmul.f32 %v2761, 1.442695
    %v2763 = vpow.pop %v2762
    %v2764 = vadd.f32 %v2763, 1.0
    %v2765 = vrcp.pop %v2764
    %v2766 = vmul.f32 1.0, %v2765
    %v2767 = vadd.f32 %v2747, %v268
    %v2768 = vmul.f32 %v2756, %v2767
    %v2769 = vadd.f32 %v2608, %v2768
    %v2770 = vtanh.pop %v2769
    %v2771 = vsub.f32 1.0, %v2766
    %v2772 = vmul.f32 %v2771, %v2770
    %v2773 = vmul.f32 %v2766, %v2432
    %v2774 = vadd.f32 %v2772, %v2773
    %v2775 = vld [vmem:[%s1] sm:$0xff]
    %v2776 = vld [vmem:[%s1 + $0x8] sm:$0xf]
    %2777 = vmatprep.subr.mxu0 %v282
    %2778 = vmatpush1.msra.mxu0 %v281
    %2779 = vmatprep.subr.mxu0 %v285
    %2780 = vmatpush1.msra.mxu0 %v284
    %2781 = vmatprep.subr.mxu0 %v288
    %2782 = vmatpush1.msra.mxu0 %v287
    %2783 = vmatprep.subr.mxu0 %v291
    %2784 = vmatpush1.msra.mxu0 %v290
    %2785 = vmatprep.subr.mxu0 %v294
    %2786 = vmatpush1.msra.mxu0 %v293
    %2787 = vmatprep.subr.mxu0 %v297
    %2788 = vmatpush1.msra.mxu0 %v296
    %2789 = vmatprep.subr.mxu0 %v300
    %2790 = vmatpush1.msra.mxu0 %v299
    %2791 = vmatprep.subr.mxu0 %v303
    %2792 = vmatpush1.msra.mxu0 %v302
    %2793 = vmatprep.subr.mxu0 %v306
    %2794 = vmatpush1.msra.mxu0 %v305
    %2795 = vmatprep.subr.mxu0 %v309
    %2796 = vmatpush1.msra.mxu0 %v308
    %2797 = vmatprep.subr.mxu0 %v312
    %2798 = vmatpush1.msra.mxu0 %v311
    %2799 = vmatprep.subr.mxu0 %v315
    %2800 = vmatpush1.msra.mxu0 %v314
    %2801 = vmatprep.subr.mxu0 %v318
    %2802 = vmatpush1.msra.mxu0 %v317
    %2803 = vmatprep.subr.mxu0 %v321
    %2804 = vmatpush1.msra.mxu0 %v320
    %2805 = vmatprep.subr.mxu0 %v324
    %2806 = vmatpush1.msra.mxu0 %v323
    %2807 = vmatprep.subr.mxu0 %v327
    %2808 = vmatpush1.msra.mxu0 %v326
    %2809 = vmatprep.subr.mxu0 0.0
    %2810 = vmatpush1.msra.mxu0 0.0
    %2811 = vmatprep.subr.mxu0 0.0
    %2812 = vmatpush1.msra.mxu0 0.0
    %2813 = vmatprep.subr.mxu0 0.0
    %2814 = vmatpush1.msra.mxu0 0.0
    %2815 = vmatprep.subr.mxu0 0.0
    %2816 = vmatpush1.msra.mxu0 0.0
    %2817 = vmatprep.subr.mxu0 0.0
    %2818 = vmatpush1.msra.mxu0 0.0
    %2819 = vmatprep.subr.mxu0 0.0
    %2820 = vmatpush1.msra.mxu0 0.0
    %2821 = vmatprep.subr.mxu0 0.0
    %2822 = vmatpush1.msra.mxu0 0.0
    %2823 = vmatprep.subr.mxu0 0.0
    %2824 = vmatpush1.msra.mxu0 0.0
    %2825 = vmatprep.subr.mxu0 0.0
    %2826 = vmatpush1.msra.mxu0 0.0
    %2827 = vmatprep.subr.mxu0 0.0
    %2828 = vmatpush1.msra.mxu0 0.0
    %2829 = vmatprep.subr.mxu0 0.0
    %2830 = vmatpush1.msra.mxu0 0.0
    %2831 = vmatprep.subr.mxu0 0.0
    %2832 = vmatpush1.msra.mxu0 0.0
    %2833 = vmatprep.subr.mxu0 0.0
    %2834 = vmatpush1.msra.mxu0 0.0
    %2835 = vmatprep.subr.mxu0 0.0
    %2836 = vmatpush1.msra.mxu0 0.0
    %2837 = vmatprep.subr.mxu0 0.0
    %2838 = vmatpush1.msra.mxu0 0.0
    %2839 = vmatprep.subr.mxu0 0.0
    %2840 = vmatpush1.msra.mxu0 0.0
    %2841 = vmatprep.mubr.f32.mxu0 0.0
    %2842 = vmatmul.mubr.f32.gmra.mrb[0].mxu0 %v2601
    %v2843 = vpop.f32.mrb[0].mxu0
    %v2844 = vadd.f32 0.0, %v2843
    %v2845 = vpop.f32.mrb[0].mxu0
    %v2846 = vadd.f32 0.0, %v2845
    %2847 = vdwg.mxu0
    %2848 = vmatprep.subr.mxu0 0.0
    %2849 = vmatpush1.msra.mxu0 %v283
    %2850 = vmatprep.subr.mxu0 0.0
    %2851 = vmatpush1.msra.mxu0 %v286
    %2852 = vmatprep.subr.mxu0 0.0
    %2853 = vmatpush1.msra.mxu0 %v289
    %2854 = vmatprep.subr.mxu0 0.0
    %2855 = vmatpush1.msra.mxu0 %v292
    %2856 = vmatprep.subr.mxu0 0.0
    %2857 = vmatpush1.msra.mxu0 %v295
    %2858 = vmatprep.subr.mxu0 0.0
    %2859 = vmatpush1.msra.mxu0 %v298
    %2860 = vmatprep.subr.mxu0 0.0
    %2861 = vmatpush1.msra.mxu0 %v301
    %2862 = vmatprep.subr.mxu0 0.0
    %2863 = vmatpush1.msra.mxu0 %v304
    %2864 = vmatprep.subr.mxu0 0.0
    %2865 = vmatpush1.msra.mxu0 %v307
    %2866 = vmatprep.subr.mxu0 0.0
    %2867 = vmatpush1.msra.mxu0 %v310
    %2868 = vmatprep.subr.mxu0 0.0
    %2869 = vmatpush1.msra.mxu0 %v313
    %2870 = vmatprep.subr.mxu0 0.0
    %2871 = vmatpush1.msra.mxu0 %v316
    %2872 = vmatprep.subr.mxu0 0.0
    %2873 = vmatpush1.msra.mxu0 %v319
    %2874 = vmatprep.subr.mxu0 0.0
    %2875 = vmatpush1.msra.mxu0 %v322
    %2876 = vmatprep.subr.mxu0 0.0
    %2877 = vmatpush1.msra.mxu0 %v325
    %2878 = vmatprep.subr.mxu0 0.0
    %2879 = vmatpush1.msra.mxu0 %v328
    %2880 = vmatprep.subr.mxu0 0.0
    %2881 = vmatpush1.msra.mxu0 0.0
    %2882 = vmatprep.subr.mxu0 0.0
    %2883 = vmatpush1.msra.mxu0 0.0
    %2884 = vmatprep.subr.mxu0 0.0
    %2885 = vmatpush1.msra.mxu0 0.0
    %2886 = vmatprep.subr.mxu0 0.0
    %2887 = vmatpush1.msra.mxu0 0.0
    %2888 = vmatprep.subr.mxu0 0.0
    %2889 = vmatpush1.msra.mxu0 0.0
    %2890 = vmatprep.subr.mxu0 0.0
    %2891 = vmatpush1.msra.mxu0 0.0
    %2892 = vmatprep.subr.mxu0 0.0
    %2893 = vmatpush1.msra.mxu0 0.0
    %2894 = vmatprep.subr.mxu0 0.0
    %2895 = vmatpush1.msra.mxu0 0.0
    %2896 = vmatprep.subr.mxu0 0.0
    %2897 = vmatpush1.msra.mxu0 0.0
    %2898 = vmatprep.subr.mxu0 0.0
    %2899 = vmatpush1.msra.mxu0 0.0
    %2900 = vmatprep.subr.mxu0 0.0
    %2901 = vmatpush1.msra.mxu0 0.0
    %2902 = vmatprep.subr.mxu0 0.0
    %2903 = vmatpush1.msra.mxu0 0.0
    %2904 = vmatprep.subr.mxu0 0.0
    %2905 = vmatpush1.msra.mxu0 0.0
    %2906 = vmatprep.subr.mxu0 0.0
    %2907 = vmatpush1.msra.mxu0 0.0
    %2908 = vmatprep.subr.mxu0 0.0
    %2909 = vmatpush1.msra.mxu0 0.0
    %2910 = vmatprep.subr.mxu0 0.0
    %2911 = vmatpush1.msra.mxu0 0.0
    %2912 = vmatprep.mubr.f32.mxu0 0.0
    %2913 = vmatmul.mubr.f32.gmra.mrb[0].mxu0 %v2601
    %v2914 = vpop.f32.mrb[0].mxu0
    %v2915 = vadd.f32 0.0, %v2914
    %v2916 = vpop.f32.mrb[0].mxu0
    %2917 = vdwg.mxu0
    %v2918 = vadd.f32 %v2775, %v2844
    %v2919 = vxor.u32 %v2918, 2147483648
    %v2920 = vmul.f32 %v2919, 1.442695
    %v2921 = vpow.pop %v2920
    %v2922 = vadd.f32 %v2921, 1.0
    %v2923 = vrcp.pop %v2922
    %v2924 = vmul.f32 1.0, %v2923
    %v2926 = vrot.slane %v2775, 4
    %v2928 = vadd.f32 %v2926, %v2846
    %v2929 = vxor.u32 %v2928, 2147483648
    %v2930 = vmul.f32 %v2929, 1.442695
    %v2931 = vpow.pop %v2930
    %v2932 = vadd.f32 %v2931, 1.0
    %v2933 = vrcp.pop %v2932
    %v2934 = vmul.f32 1.0, %v2933
    %v2935 = vadd.f32 %v2915, %v492
    %v2936 = vmul.f32 %v2924, %v2935
    %v2937 = vadd.f32 %v2776, %v2936
    %v2938 = vtanh.pop %v2937
    %v2939 = vsub.f32 1.0, %v2934
    %v2940 = vmul.f32 %v2939, %v2938
    %v2941 = vmul.f32 %v2934, %v2601
    %v2942 = vadd.f32 %v2940, %v2941
    %v2943 = vsel %vm515, %v2774, 0.0
    %v2944 = vadd.f32 %v2603, %v2943
    %v2945 = vsel %vm507, %v2942, 0.0
    %v2946 = vadd.f32 %v2605, %v2945
    %v2947 = vmax.f32 %v54, 1.0
    %v2948 = vrcp.pop %v2947
    %v2949 = vmul.f32 1.0, %v2948
    %2951 = vset.pattern.permute.xlu0 0
    %2952 = vperm.xlu0 %2951, %v2949
    %v2953 = vpop.permute.xlu0 %2952
    %v2955 = vmul.f32 %v2944, %v2953
    %2956 = vst [vmem:[%s7] sm:$0xf] %v2955
    %v2957 = vmul.f32 %v2946, %v2953
    %2958 = vst [vmem:[%s7 + $0x4] sm:$0xf] %v2957
    // Predicated region
    $region38: #{summarunner_forward.2} parent=1 // pred_check
      _
    $region39: #{summarunner_forward.2} parent=1 // pred_check_branch
      %2960 = sbr.rel (0) target = $region41
    $region40: #{summarunner_forward.2} parent=1 // pred_region
      _
    $region41: #{summarunner_forward.2} parent=1 // pred_fallthru
      _
    // Predicated region
    $region42: #{summarunner_forward.2} parent=1 // pred_check
      _
    $region43: #{summarunner_forward.2} parent=1 // pred_check_branch
      %2962 = sbr.rel (0) target = $region45
    $region44: #{summarunner_forward.2} parent=1 // pred_region
      _
    $region45: #{summarunner_forward.2} parent=1 // pred_fallthru
      _
    %2963 = vsyncpa [#allocation3], 1
    %2964 = vsyncpa [#allocation5], 1

// kernel: summarunner_forward.3
$region0: #{summarunner_forward.3}
  #allocation0 [shape = 'u32[]', space=smem, size = 0x4, offset = 0x4, fixed_abs, tag = 'smem constant byte address 0x4 - core index']
  #allocation1 [shape = 'u32[144,128]{1,0:T(1,128)}', space=vmem, size = 0x12000, scoped, tag = 'internal scratch']
  #allocation2 [shape = 'f32[4,768]{1,0:T(4,128)}', space=vmem, size = 0x3000, scoped, tag = 'scratch operand']
  #allocation3 [shape = 'f32[4,768]{1,0:T(4,128)}', space=vmem, size = 0x3000, scoped, tag = 'scratch operand']
  #allocation4 [shape = 'f32[4,512]{1,0:T(4,128)}', space=vmem, size = 0x2000, scoped, tag = 'scratch operand']
  #allocation5 [shape = 'f32[4,128]{1,0:T(4,128)}', space=vmem, size = 0x800, scoped, tag = 'scratch operand']
  #allocation6 [shape = 'f32[4,128]{1,0:T(4,128)}', space=vmem, size = 0x800, scoped, tag = 'scratch operand']
  #allocation7 [shape = 'f32[4,1]{1,0:T(4,128)}', space=vmem, size = 0x800, scoped, tag = 'scratch operand']
  #allocation8 [shape = 'f32[1,1]{1,0:T(1,128)S(1)}', space=vmem, size = 0x200, scoped, tag = 'scoped memory for summarunner_forward.3']
  %s0 = inlined_call_operand.vmem [shape: f32[4,256], index: 0, kind: input, shape index: {}]
  %s1 = inlined_call_operand.vmem [shape: f32[4,128], index: 1, kind: input, shape index: {}]
  %s2 = inlined_call_operand.vmem [shape: f32[256,768], index: 2, kind: input, shape index: {}]
  %s3 = inlined_call_operand.hbm [shape: f32[256,768], index: 3, kind: input, shape index: {}]
  %s4 = inlined_call_operand.vmem [shape: f32[1,768], index: 4, kind: input, shape index: {}]
  %s5 = inlined_call_operand.vmem [shape: f32[1,256], index: 5, kind: input, shape index: {}]
  %s6 = inlined_call_operand.hbm [shape: f32[256,768], index: 6, kind: input, shape index: {}]
  %s7 = inlined_call_operand.hbm [shape: f32[256,768], index: 7, kind: input, shape index: {}]
  %s8 = inlined_call_operand.vmem [shape: f32[1,768], index: 8, kind: input, shape index: {}]
  %s9 = inlined_call_operand.vmem [shape: f32[1,256], index: 9, kind: input, shape index: {}]
  %s10 = inlined_call_operand.vmem [shape: f32[512,128], index: 10, kind: input, shape index: {}]
  %s11 = inlined_call_operand.vmem [shape: f32[1,128], index: 11, kind: input, shape index: {}]
  %s12 = inlined_call_operand.hbm [shape: f32[512,128], index: 12, kind: input, shape index: {}]
  %s13 = inlined_call_operand.vmem [shape: f32[1,128], index: 13, kind: input, shape index: {}]
  %s14 = inlined_call_operand.vmem [shape: f32[1,128], index: 14, kind: input, shape index: {}]
  %s15 = inlined_call_operand.vmem [shape: f32[128,128], index: 15, kind: input, shape index: {}]
  %s16 = inlined_call_operand.hbm [shape: f32[128,128], index: 16, kind: input, shape index: {}]
  %s17 = inlined_call_operand.vmem [shape: f32[1,128], index: 17, kind: input, shape index: {}]
  %s18 = inlined_call_operand.<no memory space> [shape: f32[1,1], index: 18, kind: input, shape index: {}]
  %s19 = inlined_call_operand.vmem [shape: f32[1,128], index: 19, kind: output, shape index: {}]
  %s20 = sld [smem:[#allocation0]]
  $region106: #{summarunner_forward.3} parent=0
    _
  %s22 = ssub.s32 1, %s20
  %s23 = scalar_select 0, %s22, %s20
  %v24 = vstv %s18
  %25 = vst [vmem:[#allocation8] sm:$0x1] %v24
  $region1: #{summarunner_forward.3} parent=0
    #allocation9 [shape = 'u8[786432]{0}', space=vmem, size = 0xc0000, scoped, tag = 'input window, operand 3, single buffered']
    #allocation10 [shape = 's32[1]{0}', space=sflag, size = 0x4, scoped, tag = 'scoped memory for summarunner_forward.3']
    #allocation11 [shape = 'u8[786432]{0}', space=vmem, size = 0xc0000, scoped, tag = 'input window, operand 6, single buffered']
    #allocation12 [shape = 's32[1]{0}', space=sflag, size = 0x4, scoped, tag = 'scoped memory for summarunner_forward.3']
    #allocation13 [shape = 'u8[786432]{0}', space=vmem, size = 0xc0000, scoped, tag = 'input window, operand 7, single buffered']
    #allocation14 [shape = 'u8[262144]{0}', space=vmem, size = 0x40000, scoped, tag = 'input window, operand 12, single buffered']
    #allocation15 [shape = 's32[1]{0}', space=sflag, size = 0x4, scoped, tag = 'scoped memory for summarunner_forward.3']
    #allocation16 [shape = 'u8[65536]{0}', space=vmem, size = 0x10000, scoped, tag = 'input window, operand 16, single buffered']
    %26 = vsyncpa [#allocation10], 0
    %27 = vsyncpa [#allocation12], 0
    %28 = vsyncpa [#allocation15], 0
    // Predicated region
    $region2: #{summarunner_forward.3} parent=1 // pred_check
      _
    $region3: #{summarunner_forward.3} parent=1 // pred_check_branch
      %30 = sbr.rel (0) target = $region5
    $region4: #{summarunner_forward.3} parent=1 // pred_region
      _
    $region5: #{summarunner_forward.3} parent=1 // pred_fallthru
      _
    // Predicated region
    $region6: #{summarunner_forward.3} parent=1 // pred_check
      _
    $region7: #{summarunner_forward.3} parent=1 // pred_check_branch
      %32 = sbr.rel (0) target = $region9
    $region8: #{summarunner_forward.3} parent=1 // pred_region
      _
    $region9: #{summarunner_forward.3} parent=1 // pred_fallthru
      _
    // Predicated region
    $region10: #{summarunner_forward.3} parent=1 // pred_check
      _
    $region11: #{summarunner_forward.3} parent=1 // pred_check_branch
      %34 = sbr.rel (0) target = $region13
    $region12: #{summarunner_forward.3} parent=1 // pred_region
      _
    $region13: #{summarunner_forward.3} parent=1 // pred_fallthru
      _
    // Predicated region
    $region14: #{summarunner_forward.3} parent=1 // pred_check
      _
    $region15: #{summarunner_forward.3} parent=1 // pred_check_branch
      %36 = sbr.rel (0) target = $region17
    $region16: #{summarunner_forward.3} parent=1 // pred_region
      %s38 = ssub.s32 24576, 24576
      %39 = vsyncadd [#allocation10], %s38
      %s40 = sshll.u32 [#allocation9], 4
      %s41 = int_to_ptr.vmem [resolvable:$true] %s40
      %46 = dma.hbm_to_vmem [thread:$0]  %s3, 24576, %s41, [#allocation10], 768, 768, 48
    $region17: #{summarunner_forward.3} parent=1 // pred_fallthru
      _
    // Predicated region
    $region18: #{summarunner_forward.3} parent=1 // pred_check
      _
    $region19: #{summarunner_forward.3} parent=1 // pred_check_branch
      %48 = sbr.rel (0) target = $region21
    $region20: #{summarunner_forward.3} parent=1 // pred_region
      _
    $region21: #{summarunner_forward.3} parent=1 // pred_fallthru
      _
    // Predicated region
    $region22: #{summarunner_forward.3} parent=1 // pred_check
      _
    $region23: #{summarunner_forward.3} parent=1 // pred_check_branch
      %50 = sbr.rel (0) target = $region25
    $region24: #{summarunner_forward.3} parent=1 // pred_region
      _
    $region25: #{summarunner_forward.3} parent=1 // pred_fallthru
      _
    // Predicated region
    $region26: #{summarunner_forward.3} parent=1 // pred_check
      _
    $region27: #{summarunner_forward.3} parent=1 // pred_check_branch
      %52 = sbr.rel (0) target = $region29
    $region28: #{summarunner_forward.3} parent=1 // pred_region
      %s54 = ssub.s32 24576, 24576
      %55 = vsyncadd [#allocation12], %s54
      %s56 = sshll.u32 [#allocation11], 4
      %s57 = int_to_ptr.vmem [resolvable:$true] %s56
      %62 = dma.hbm_to_vmem [thread:$0]  %s6, 24576, %s57, [#allocation12], 768, 768, 48
    $region29: #{summarunner_forward.3} parent=1 // pred_fallthru
      _
    // Predicated region
    $region30: #{summarunner_forward.3} parent=1 // pred_check
      _
    $region31: #{summarunner_forward.3} parent=1 // pred_check_branch
      %64 = sbr.rel (0) target = $region33
    $region32: #{summarunner_forward.3} parent=1 // pred_region
      %s66 = ssub.s32 24576, 24576
      %67 = vsyncadd [#allocation12], %s66
      %s68 = sshll.u32 [#allocation13], 4
      %s69 = int_to_ptr.vmem [resolvable:$true] %s68
      %74 = dma.hbm_to_vmem [thread:$0]  %s7, 24576, %s69, [#allocation12], 768, 768, 48
    $region33: #{summarunner_forward.3} parent=1 // pred_fallthru
      _
    // Predicated region
    $region34: #{summarunner_forward.3} parent=1 // pred_check
      _
    $region35: #{summarunner_forward.3} parent=1 // pred_check_branch
      %76 = sbr.rel (0) target = $region37
    $region36: #{summarunner_forward.3} parent=1 // pred_region
      _
    $region37: #{summarunner_forward.3} parent=1 // pred_fallthru
      _
    // Predicated region
    $region38: #{summarunner_forward.3} parent=1 // pred_check
      _
    $region39: #{summarunner_forward.3} parent=1 // pred_check_branch
      %78 = sbr.rel (0) target = $region41
    $region40: #{summarunner_forward.3} parent=1 // pred_region
      _
    $region41: #{summarunner_forward.3} parent=1 // pred_fallthru
      _
    // Predicated region
    $region42: #{summarunner_forward.3} parent=1 // pred_check
      _
    $region43: #{summarunner_forward.3} parent=1 // pred_check_branch
      %80 = sbr.rel (0) target = $region45
    $region44: #{summarunner_forward.3} parent=1 // pred_region
      _
    $region45: #{summarunner_forward.3} parent=1 // pred_fallthru
      _
    // Predicated region
    $region46: #{summarunner_forward.3} parent=1 // pred_check
      _
    $region47: #{summarunner_forward.3} parent=1 // pred_check_branch
      %82 = sbr.rel (0) target = $region49
    $region48: #{summarunner_forward.3} parent=1 // pred_region
      _
    $region49: #{summarunner_forward.3} parent=1 // pred_fallthru
      _
    // Predicated region
    $region50: #{summarunner_forward.3} parent=1 // pred_check
      _
    $region51: #{summarunner_forward.3} parent=1 // pred_check_branch
      %84 = sbr.rel (0) target = $region53
    $region52: #{summarunner_forward.3} parent=1 // pred_region
      %s86 = ssub.s32 8192, 8192
      %87 = vsyncadd [#allocation15], %s86
      %s88 = sshll.u32 [#allocation14], 4
      %s89 = int_to_ptr.vmem [resolvable:$true] %s88
      %94 = dma.hbm_to_vmem [thread:$0]  %s12, 8192, %s89, [#allocation15], 128, 128, 8
    $region53: #{summarunner_forward.3} parent=1 // pred_fallthru
      _
    // Predicated region
    $region54: #{summarunner_forward.3} parent=1 // pred_check
      _
    $region55: #{summarunner_forward.3} parent=1 // pred_check_branch
      %96 = sbr.rel (0) target = $region57
    $region56: #{summarunner_forward.3} parent=1 // pred_region
      _
    $region57: #{summarunner_forward.3} parent=1 // pred_fallthru
      _
    // Predicated region
    $region58: #{summarunner_forward.3} parent=1 // pred_check
      _
    $region59: #{summarunner_forward.3} parent=1 // pred_check_branch
      %98 = sbr.rel (0) target = $region61
    $region60: #{summarunner_forward.3} parent=1 // pred_region
      _
    $region61: #{summarunner_forward.3} parent=1 // pred_fallthru
      _
    // Predicated region
    $region62: #{summarunner_forward.3} parent=1 // pred_check
      _
    $region63: #{summarunner_forward.3} parent=1 // pred_check_branch
      %100 = sbr.rel (0) target = $region65
    $region64: #{summarunner_forward.3} parent=1 // pred_region
      _
    $region65: #{summarunner_forward.3} parent=1 // pred_fallthru
      _
    // Predicated region
    $region66: #{summarunner_forward.3} parent=1 // pred_check
      _
    $region67: #{summarunner_forward.3} parent=1 // pred_check_branch
      %102 = sbr.rel (0) target = $region69
    $region68: #{summarunner_forward.3} parent=1 // pred_region
      %s104 = ssub.s32 2048, 2048
      %105 = vsyncadd [#allocation15], %s104
      %s106 = sshll.u32 [#allocation16], 4
      %s107 = int_to_ptr.vmem [resolvable:$true] %s106
      %112 = dma.hbm_to_vmem [thread:$0]  %s16, 2048, %s107, [#allocation15], 128, 128, 8
    $region69: #{summarunner_forward.3} parent=1 // pred_fallthru
      _
    // Predicated region
    $region70: #{summarunner_forward.3} parent=1 // pred_check
      _
    $region71: #{summarunner_forward.3} parent=1 // pred_check_branch
      %114 = sbr.rel (0) target = $region73
    $region72: #{summarunner_forward.3} parent=1 // pred_region
      _
    $region73: #{summarunner_forward.3} parent=1 // pred_fallthru
      _
    // Predicated region
    $region74: #{summarunner_forward.3} parent=1 // pred_check
      _
    $region75: #{summarunner_forward.3} parent=1 // pred_check_branch
      %116 = sbr.rel (0) target = $region77
    $region76: #{summarunner_forward.3} parent=1 // pred_region
      _
    $region77: #{summarunner_forward.3} parent=1 // pred_fallthru
      _
    // Predicated region
    $region78: #{summarunner_forward.3} parent=1 // pred_check
      _
    $region79: #{summarunner_forward.3} parent=1 // pred_check_branch
      %118 = sbr.rel (0) target = $region81
    $region80: #{summarunner_forward.3} parent=1 // pred_region
      %119 = dma.done [#allocation10], 24576
    $region81: #{summarunner_forward.3} parent=1 // pred_fallthru
      _
    // Predicated region
    $region82: #{summarunner_forward.3} parent=1 // pred_check
      _
    $region83: #{summarunner_forward.3} parent=1 // pred_check_branch
      %121 = sbr.rel (0) target = $region85
    $region84: #{summarunner_forward.3} parent=1 // pred_region
      %122 = dma.done [#allocation12], 24576
    $region85: #{summarunner_forward.3} parent=1 // pred_fallthru
      _
    // Predicated region
    $region86: #{summarunner_forward.3} parent=1 // pred_check
      _
    $region87: #{summarunner_forward.3} parent=1 // pred_check_branch
      %124 = sbr.rel (0) target = $region89
    $region88: #{summarunner_forward.3} parent=1 // pred_region
      %125 = dma.done [#allocation12], 24576
    $region89: #{summarunner_forward.3} parent=1 // pred_fallthru
      _
    // Predicated region
    $region90: #{summarunner_forward.3} parent=1 // pred_check
      _
    $region91: #{summarunner_forward.3} parent=1 // pred_check_branch
      %127 = sbr.rel (0) target = $region93
    $region92: #{summarunner_forward.3} parent=1 // pred_region
      %128 = dma.done [#allocation15], 8192
    $region93: #{summarunner_forward.3} parent=1 // pred_fallthru
      _
    // Predicated region
    $region94: #{summarunner_forward.3} parent=1 // pred_check
      _
    $region95: #{summarunner_forward.3} parent=1 // pred_check_branch
      %130 = sbr.rel (0) target = $region97
    $region96: #{summarunner_forward.3} parent=1 // pred_region
      %131 = dma.done [#allocation15], 2048
    $region97: #{summarunner_forward.3} parent=1 // pred_fallthru
      _
    %v132 = vld [vmem:[%s0] sm:$0xff]
    %v133 = vld [vmem:[%s2] sm:$0xff]
    %v134 = vld [vmem:[%s2 + $0x8] sm:$0xff]
    %v135 = vld [vmem:[%s2 + $0x10] sm:$0xff]
    %v136 = vld [vmem:[%s2 + $0x18] sm:$0xff]
    %v137 = vld [vmem:[%s2 + $0x20] sm:$0xff]
    %v138 = vld [vmem:[%s2 + $0x28] sm:$0xff]
    %v139 = vld [vmem:[%s2 + $0x30] sm:$0xff]
    %v140 = vld [vmem:[%s2 + $0x38] sm:$0xff]
    %v141 = vld [vmem:[%s2 + $0x40] sm:$0xff]
    %v142 = vld [vmem:[%s2 + $0x48] sm:$0xff]
    %v143 = vld [vmem:[%s2 + $0x50] sm:$0xff]
    %v144 = vld [vmem:[%s2 + $0x58] sm:$0xff]
    %v145 = vld [vmem:[%s2 + $0x60] sm:$0xff]
    %v146 = vld [vmem:[%s2 + $0x68] sm:$0xff]
    %v147 = vld [vmem:[%s2 + $0x70] sm:$0xff]
    %v148 = vld [vmem:[%s2 + $0x78] sm:$0xff]
    %v149 = vld [vmem:[%s2 + $0x80] sm:$0xff]
    %v150 = vld [vmem:[%s2 + $0x88] sm:$0xff]
    %v151 = vld [vmem:[%s2 + $0x90] sm:$0xff]
    %v152 = vld [vmem:[%s2 + $0x98] sm:$0xff]
    %v153 = vld [vmem:[%s2 + $0xa0] sm:$0xff]
    %v154 = vld [vmem:[%s2 + $0xa8] sm:$0xff]
    %v155 = vld [vmem:[%s2 + $0xb0] sm:$0xff]
    %v156 = vld [vmem:[%s2 + $0xb8] sm:$0xff]
    %v157 = vld [vmem:[%s2 + $0xc0] sm:$0xff]
    %v158 = vld [vmem:[%s2 + $0xc8] sm:$0xff]
    %v159 = vld [vmem:[%s2 + $0xd0] sm:$0xff]
    %v160 = vld [vmem:[%s2 + $0xd8] sm:$0xff]
    %v161 = vld [vmem:[%s2 + $0xe0] sm:$0xff]
    %v162 = vld [vmem:[%s2 + $0xe8] sm:$0xff]
    %v163 = vld [vmem:[%s2 + $0xf0] sm:$0xff]
    %v164 = vld [vmem:[%s2 + $0xf8] sm:$0xff]
    %v165 = vld [vmem:[%s2 + $0x100] sm:$0xff]
    %v166 = vld [vmem:[%s2 + $0x108] sm:$0xff]
    %v167 = vld [vmem:[%s2 + $0x110] sm:$0xff]
    %v168 = vld [vmem:[%s2 + $0x118] sm:$0xff]
    %v169 = vld [vmem:[%s2 + $0x120] sm:$0xff]
    %v170 = vld [vmem:[%s2 + $0x128] sm:$0xff]
    %v171 = vld [vmem:[%s2 + $0x130] sm:$0xff]
    %v172 = vld [vmem:[%s2 + $0x138] sm:$0xff]
    %v173 = vld [vmem:[%s2 + $0x140] sm:$0xff]
    %v174 = vld [vmem:[%s2 + $0x148] sm:$0xff]
    %v175 = vld [vmem:[%s2 + $0x150] sm:$0xff]
    %v176 = vld [vmem:[%s2 + $0x158] sm:$0xff]
    %v177 = vld [vmem:[%s2 + $0x160] sm:$0xff]
    %v178 = vld [vmem:[%s2 + $0x168] sm:$0xff]
    %v179 = vld [vmem:[%s2 + $0x170] sm:$0xff]
    %v180 = vld [vmem:[%s2 + $0x178] sm:$0xff]
    %v181 = vld [vmem:[%s2 + $0x180] sm:$0xff]
    %v182 = vld [vmem:[%s2 + $0x188] sm:$0xff]
    %v183 = vld [vmem:[%s2 + $0x190] sm:$0xff]
    %v184 = vld [vmem:[%s2 + $0x198] sm:$0xff]
    %v185 = vld [vmem:[%s2 + $0x1a0] sm:$0xff]
    %v186 = vld [vmem:[%s2 + $0x1a8] sm:$0xff]
    %v187 = vld [vmem:[%s2 + $0x1b0] sm:$0xff]
    %v188 = vld [vmem:[%s2 + $0x1b8] sm:$0xff]
    %v189 = vld [vmem:[%s2 + $0x1c0] sm:$0xff]
    %v190 = vld [vmem:[%s2 + $0x1c8] sm:$0xff]
    %v191 = vld [vmem:[%s2 + $0x1d0] sm:$0xff]
    %v192 = vld [vmem:[%s2 + $0x1d8] sm:$0xff]
    %v193 = vld [vmem:[%s2 + $0x1e0] sm:$0xff]
    %v194 = vld [vmem:[%s2 + $0x1e8] sm:$0xff]
    %v195 = vld [vmem:[%s2 + $0x1f0] sm:$0xff]
    %v196 = vld [vmem:[%s2 + $0x1f8] sm:$0xff]
    %v197 = vld [vmem:[%s2 + $0x200] sm:$0xff]
    %v198 = vld [vmem:[%s2 + $0x208] sm:$0xff]
    %v199 = vld [vmem:[%s2 + $0x210] sm:$0xff]
    %v200 = vld [vmem:[%s2 + $0x218] sm:$0xff]
    %v201 = vld [vmem:[%s2 + $0x220] sm:$0xff]
    %v202 = vld [vmem:[%s2 + $0x228] sm:$0xff]
    %v203 = vld [vmem:[%s2 + $0x230] sm:$0xff]
    %v204 = vld [vmem:[%s2 + $0x238] sm:$0xff]
    %v205 = vld [vmem:[%s2 + $0x240] sm:$0xff]
    %v206 = vld [vmem:[%s2 + $0x248] sm:$0xff]
    %v207 = vld [vmem:[%s2 + $0x250] sm:$0xff]
    %v208 = vld [vmem:[%s2 + $0x258] sm:$0xff]
    %v209 = vld [vmem:[%s2 + $0x260] sm:$0xff]
    %v210 = vld [vmem:[%s2 + $0x268] sm:$0xff]
    %v211 = vld [vmem:[%s2 + $0x270] sm:$0xff]
    %v212 = vld [vmem:[%s2 + $0x278] sm:$0xff]
    %v213 = vld [vmem:[%s2 + $0x280] sm:$0xff]
    %v214 = vld [vmem:[%s2 + $0x288] sm:$0xff]
    %v215 = vld [vmem:[%s2 + $0x290] sm:$0xff]
    %v216 = vld [vmem:[%s2 + $0x298] sm:$0xff]
    %v217 = vld [vmem:[%s2 + $0x2a0] sm:$0xff]
    %v218 = vld [vmem:[%s2 + $0x2a8] sm:$0xff]
    %v219 = vld [vmem:[%s2 + $0x2b0] sm:$0xff]
    %v220 = vld [vmem:[%s2 + $0x2b8] sm:$0xff]
    %v221 = vld [vmem:[%s2 + $0x2c0] sm:$0xff]
    %v222 = vld [vmem:[%s2 + $0x2c8] sm:$0xff]
    %v223 = vld [vmem:[%s2 + $0x2d0] sm:$0xff]
    %v224 = vld [vmem:[%s2 + $0x2d8] sm:$0xff]
    %v225 = vld [vmem:[%s2 + $0x2e0] sm:$0xff]
    %v226 = vld [vmem:[%s2 + $0x2e8] sm:$0xff]
    %v227 = vld [vmem:[%s2 + $0x2f0] sm:$0xff]
    %v228 = vld [vmem:[%s2 + $0x2f8] sm:$0xff]
    %v229 = vld [vmem:[%s2 + $0x300] sm:$0xff]
    %v230 = vld [vmem:[%s2 + $0x308] sm:$0xff]
    %v231 = vld [vmem:[%s2 + $0x310] sm:$0xff]
    %v232 = vld [vmem:[%s2 + $0x318] sm:$0xff]
    %v233 = vld [vmem:[%s2 + $0x320] sm:$0xff]
    %v234 = vld [vmem:[%s2 + $0x328] sm:$0xff]
    %v235 = vld [vmem:[%s2 + $0x330] sm:$0xff]
    %v236 = vld [vmem:[%s2 + $0x338] sm:$0xff]
    %v237 = vld [vmem:[%s2 + $0x340] sm:$0xff]
    %v238 = vld [vmem:[%s2 + $0x348] sm:$0xff]
    %v239 = vld [vmem:[%s2 + $0x350] sm:$0xff]
    %v240 = vld [vmem:[%s2 + $0x358] sm:$0xff]
    %v241 = vld [vmem:[%s2 + $0x360] sm:$0xff]
    %v242 = vld [vmem:[%s2 + $0x368] sm:$0xff]
    %v243 = vld [vmem:[%s2 + $0x370] sm:$0xff]
    %v244 = vld [vmem:[%s2 + $0x378] sm:$0xff]
    %v245 = vld [vmem:[%s2 + $0x380] sm:$0xff]
    %v246 = vld [vmem:[%s2 + $0x388] sm:$0xff]
    %v247 = vld [vmem:[%s2 + $0x390] sm:$0xff]
    %v248 = vld [vmem:[%s2 + $0x398] sm:$0xff]
    %v249 = vld [vmem:[%s2 + $0x3a0] sm:$0xff]
    %v250 = vld [vmem:[%s2 + $0x3a8] sm:$0xff]
    %v251 = vld [vmem:[%s2 + $0x3b0] sm:$0xff]
    %v252 = vld [vmem:[%s2 + $0x3b8] sm:$0xff]
    %v253 = vld [vmem:[%s2 + $0x3c0] sm:$0xff]
    %v254 = vld [vmem:[%s2 + $0x3c8] sm:$0xff]
    %v255 = vld [vmem:[%s2 + $0x3d0] sm:$0xff]
    %v256 = vld [vmem:[%s2 + $0x3d8] sm:$0xff]
    %v257 = vld [vmem:[%s2 + $0x3e0] sm:$0xff]
    %v258 = vld [vmem:[%s2 + $0x3e8] sm:$0xff]
    %v259 = vld [vmem:[%s2 + $0x3f0] sm:$0xff]
    %v260 = vld [vmem:[%s2 + $0x3f8] sm:$0xff]
    %v261 = vld [vmem:[%s2 + $0x400] sm:$0xff]
    %v262 = vld [vmem:[%s2 + $0x408] sm:$0xff]
    %v263 = vld [vmem:[%s2 + $0x410] sm:$0xff]
    %v264 = vld [vmem:[%s2 + $0x418] sm:$0xff]
    %v265 = vld [vmem:[%s2 + $0x420] sm:$0xff]
    %v266 = vld [vmem:[%s2 + $0x428] sm:$0xff]
    %v267 = vld [vmem:[%s2 + $0x430] sm:$0xff]
    %v268 = vld [vmem:[%s2 + $0x438] sm:$0xff]
    %v269 = vld [vmem:[%s2 + $0x440] sm:$0xff]
    %v270 = vld [vmem:[%s2 + $0x448] sm:$0xff]
    %v271 = vld [vmem:[%s2 + $0x450] sm:$0xff]
    %v272 = vld [vmem:[%s2 + $0x458] sm:$0xff]
    %v273 = vld [vmem:[%s2 + $0x460] sm:$0xff]
    %v274 = vld [vmem:[%s2 + $0x468] sm:$0xff]
    %v275 = vld [vmem:[%s2 + $0x470] sm:$0xff]
    %v276 = vld [vmem:[%s2 + $0x478] sm:$0xff]
    %v277 = vld [vmem:[%s2 + $0x480] sm:$0xff]
    %v278 = vld [vmem:[%s2 + $0x488] sm:$0xff]
    %v279 = vld [vmem:[%s2 + $0x490] sm:$0xff]
    %v280 = vld [vmem:[%s2 + $0x498] sm:$0xff]
    %v281 = vld [vmem:[%s2 + $0x4a0] sm:$0xff]
    %v282 = vld [vmem:[%s2 + $0x4a8] sm:$0xff]
    %v283 = vld [vmem:[%s2 + $0x4b0] sm:$0xff]
    %v284 = vld [vmem:[%s2 + $0x4b8] sm:$0xff]
    %v285 = vld [vmem:[%s2 + $0x4c0] sm:$0xff]
    %v286 = vld [vmem:[%s2 + $0x4c8] sm:$0xff]
    %v287 = vld [vmem:[%s2 + $0x4d0] sm:$0xff]
    %v288 = vld [vmem:[%s2 + $0x4d8] sm:$0xff]
    %v289 = vld [vmem:[%s2 + $0x4e0] sm:$0xff]
    %v290 = vld [vmem:[%s2 + $0x4e8] sm:$0xff]
    %v291 = vld [vmem:[%s2 + $0x4f0] sm:$0xff]
    %v292 = vld [vmem:[%s2 + $0x4f8] sm:$0xff]
    %v293 = vld [vmem:[%s2 + $0x500] sm:$0xff]
    %v294 = vld [vmem:[%s2 + $0x508] sm:$0xff]
    %v295 = vld [vmem:[%s2 + $0x510] sm:$0xff]
    %v296 = vld [vmem:[%s2 + $0x518] sm:$0xff]
    %v297 = vld [vmem:[%s2 + $0x520] sm:$0xff]
    %v298 = vld [vmem:[%s2 + $0x528] sm:$0xff]
    %v299 = vld [vmem:[%s2 + $0x530] sm:$0xff]
    %v300 = vld [vmem:[%s2 + $0x538] sm:$0xff]
    %v301 = vld [vmem:[%s2 + $0x540] sm:$0xff]
    %v302 = vld [vmem:[%s2 + $0x548] sm:$0xff]
    %v303 = vld [vmem:[%s2 + $0x550] sm:$0xff]
    %v304 = vld [vmem:[%s2 + $0x558] sm:$0xff]
    %v305 = vld [vmem:[%s2 + $0x560] sm:$0xff]
    %v306 = vld [vmem:[%s2 + $0x568] sm:$0xff]
    %v307 = vld [vmem:[%s2 + $0x570] sm:$0xff]
    %v308 = vld [vmem:[%s2 + $0x578] sm:$0xff]
    %v309 = vld [vmem:[%s2 + $0x580] sm:$0xff]
    %v310 = vld [vmem:[%s2 + $0x588] sm:$0xff]
    %v311 = vld [vmem:[%s2 + $0x590] sm:$0xff]
    %v312 = vld [vmem:[%s2 + $0x598] sm:$0xff]
    %v313 = vld [vmem:[%s2 + $0x5a0] sm:$0xff]
    %v314 = vld [vmem:[%s2 + $0x5a8] sm:$0xff]
    %v315 = vld [vmem:[%s2 + $0x5b0] sm:$0xff]
    %v316 = vld [vmem:[%s2 + $0x5b8] sm:$0xff]
    %v317 = vld [vmem:[%s2 + $0x5c0] sm:$0xff]
    %v318 = vld [vmem:[%s2 + $0x5c8] sm:$0xff]
    %v319 = vld [vmem:[%s2 + $0x5d0] sm:$0xff]
    %v320 = vld [vmem:[%s2 + $0x5d8] sm:$0xff]
    %v321 = vld [vmem:[%s2 + $0x5e0] sm:$0xff]
    %v322 = vld [vmem:[%s2 + $0x5e8] sm:$0xff]
    %v323 = vld [vmem:[%s2 + $0x5f0] sm:$0xff]
    %v324 = vld [vmem:[%s2 + $0x5f8] sm:$0xff]
    %v325 = vld [vmem:[%s4] sm:$0x3f]
    %v327 = vlaneseq
    %v328 = vshrl.u32 %v327, 7
    %v329 = vsub.s32 0, %v328
    %v330 = vrot.slane %v325, %v329
    %v331 = vlaneseq
    %v332 = vshrl.u32 %v331, 7
    %v333 = vsub.s32 1, %v332
    %v334 = vrot.slane %v325, %v333
    %v335 = vlaneseq
    %v336 = vshrl.u32 %v335, 7
    %v337 = vsub.s32 2, %v336
    %v338 = vrot.slane %v325, %v337
    %v339 = vlaneseq
    %v340 = vshrl.u32 %v339, 7
    %v341 = vsub.s32 3, %v340
    %v342 = vrot.slane %v325, %v341
    %v343 = vlaneseq
    %v344 = vshrl.u32 %v343, 7
    %v345 = vsub.s32 4, %v344
    %v346 = vrot.slane %v325, %v345
    %v347 = vlaneseq
    %v348 = vshrl.u32 %v347, 7
    %v349 = vsub.s32 5, %v348
    %v350 = vrot.slane %v325, %v349
    %v358 = vcombine.high %v132, %v132
    %360 = vmatprep.subr.mxu0 %v134
    %361 = vmatpush1.msra.mxu0 %v133
    %362 = vmatprep.subr.mxu0 %v140
    %363 = vmatpush1.msra.mxu0 %v139
    %364 = vmatprep.subr.mxu0 %v146
    %365 = vmatpush1.msra.mxu0 %v145
    %366 = vmatprep.subr.mxu0 %v152
    %367 = vmatpush1.msra.mxu0 %v151
    %368 = vmatprep.subr.mxu0 %v158
    %369 = vmatpush1.msra.mxu0 %v157
    %370 = vmatprep.subr.mxu0 %v164
    %371 = vmatpush1.msra.mxu0 %v163
    %372 = vmatprep.subr.mxu0 %v170
    %373 = vmatpush1.msra.mxu0 %v169
    %374 = vmatprep.subr.mxu0 %v176
    %375 = vmatpush1.msra.mxu0 %v175
    %376 = vmatprep.subr.mxu0 %v182
    %377 = vmatpush1.msra.mxu0 %v181
    %378 = vmatprep.subr.mxu0 %v188
    %379 = vmatpush1.msra.mxu0 %v187
    %380 = vmatprep.subr.mxu0 %v194
    %381 = vmatpush1.msra.mxu0 %v193
    %382 = vmatprep.subr.mxu0 %v200
    %383 = vmatpush1.msra.mxu0 %v199
    %384 = vmatprep.subr.mxu0 %v206
    %385 = vmatpush1.msra.mxu0 %v205
    %386 = vmatprep.subr.mxu0 %v212
    %387 = vmatpush1.msra.mxu0 %v211
    %388 = vmatprep.subr.mxu0 %v218
    %389 = vmatpush1.msra.mxu0 %v217
    %390 = vmatprep.subr.mxu0 %v224
    %391 = vmatpush1.msra.mxu0 %v223
    %392 = vmatprep.subr.mxu0 %v230
    %393 = vmatpush1.msra.mxu0 %v229
    %394 = vmatprep.subr.mxu0 %v236
    %395 = vmatpush1.msra.mxu0 %v235
    %396 = vmatprep.subr.mxu0 %v242
    %397 = vmatpush1.msra.mxu0 %v241
    %398 = vmatprep.subr.mxu0 %v248
    %399 = vmatpush1.msra.mxu0 %v247
    %400 = vmatprep.subr.mxu0 %v254
    %401 = vmatpush1.msra.mxu0 %v253
    %402 = vmatprep.subr.mxu0 %v260
    %403 = vmatpush1.msra.mxu0 %v259
    %404 = vmatprep.subr.mxu0 %v266
    %405 = vmatpush1.msra.mxu0 %v265
    %406 = vmatprep.subr.mxu0 %v272
    %407 = vmatpush1.msra.mxu0 %v271
    %408 = vmatprep.subr.mxu0 %v278
    %409 = vmatpush1.msra.mxu0 %v277
    %410 = vmatprep.subr.mxu0 %v284
    %411 = vmatpush1.msra.mxu0 %v283
    %412 = vmatprep.subr.mxu0 %v290
    %413 = vmatpush1.msra.mxu0 %v289
    %414 = vmatprep.subr.mxu0 %v296
    %415 = vmatpush1.msra.mxu0 %v295
    %416 = vmatprep.subr.mxu0 %v302
    %417 = vmatpush1.msra.mxu0 %v301
    %418 = vmatprep.subr.mxu0 %v308
    %419 = vmatpush1.msra.mxu0 %v307
    %420 = vmatprep.subr.mxu0 %v314
    %421 = vmatpush1.msra.mxu0 %v313
    %422 = vmatprep.subr.mxu0 %v320
    %423 = vmatpush1.msra.mxu0 %v319
    %424 = vmatprep.mubr.f32.mxu0 %v358
    %425 = vmatmul.mubr.f32.gmra.mrb[0].mxu0 %v132
    %v426 = vpop.f32.mrb[0].mxu0
    %v427 = vadd.f32 %v330, %v426
    %v428 = vpop.f32.mrb[0].mxu0
    %v429 = vadd.f32 %v334, %v428
    %430 = vdwg.mxu0
    %431 = vmatprep.subr.mxu0 %v136
    %432 = vmatpush1.msra.mxu0 %v135
    %433 = vmatprep.subr.mxu0 %v142
    %434 = vmatpush1.msra.mxu0 %v141
    %435 = vmatprep.subr.mxu0 %v148
    %436 = vmatpush1.msra.mxu0 %v147
    %437 = vmatprep.subr.mxu0 %v154
    %438 = vmatpush1.msra.mxu0 %v153
    %439 = vmatprep.subr.mxu0 %v160
    %440 = vmatpush1.msra.mxu0 %v159
    %441 = vmatprep.subr.mxu0 %v166
    %442 = vmatpush1.msra.mxu0 %v165
    %443 = vmatprep.subr.mxu0 %v172
    %444 = vmatpush1.msra.mxu0 %v171
    %445 = vmatprep.subr.mxu0 %v178
    %446 = vmatpush1.msra.mxu0 %v177
    %447 = vmatprep.subr.mxu0 %v184
    %448 = vmatpush1.msra.mxu0 %v183
    %449 = vmatprep.subr.mxu0 %v190
    %450 = vmatpush1.msra.mxu0 %v189
    %451 = vmatprep.subr.mxu0 %v196
    %452 = vmatpush1.msra.mxu0 %v195
    %453 = vmatprep.subr.mxu0 %v202
    %454 = vmatpush1.msra.mxu0 %v201
    %455 = vmatprep.subr.mxu0 %v208
    %456 = vmatpush1.msra.mxu0 %v207
    %457 = vmatprep.subr.mxu0 %v214
    %458 = vmatpush1.msra.mxu0 %v213
    %459 = vmatprep.subr.mxu0 %v220
    %460 = vmatpush1.msra.mxu0 %v219
    %461 = vmatprep.subr.mxu0 %v226
    %462 = vmatpush1.msra.mxu0 %v225
    %463 = vmatprep.subr.mxu0 %v232
    %464 = vmatpush1.msra.mxu0 %v231
    %465 = vmatprep.subr.mxu0 %v238
    %466 = vmatpush1.msra.mxu0 %v237
    %467 = vmatprep.subr.mxu0 %v244
    %468 = vmatpush1.msra.mxu0 %v243
    %469 = vmatprep.subr.mxu0 %v250
    %470 = vmatpush1.msra.mxu0 %v249
    %471 = vmatprep.subr.mxu0 %v256
    %472 = vmatpush1.msra.mxu0 %v255
    %473 = vmatprep.subr.mxu0 %v262
    %474 = vmatpush1.msra.mxu0 %v261
    %475 = vmatprep.subr.mxu0 %v268
    %476 = vmatpush1.msra.mxu0 %v267
    %477 = vmatprep.subr.mxu0 %v274
    %478 = vmatpush1.msra.mxu0 %v273
    %479 = vmatprep.subr.mxu0 %v280
    %480 = vmatpush1.msra.mxu0 %v279
    %481 = vmatprep.subr.mxu0 %v286
    %482 = vmatpush1.msra.mxu0 %v285
    %483 = vmatprep.subr.mxu0 %v292
    %484 = vmatpush1.msra.mxu0 %v291
    %485 = vmatprep.subr.mxu0 %v298
    %486 = vmatpush1.msra.mxu0 %v297
    %487 = vmatprep.subr.mxu0 %v304
    %488 = vmatpush1.msra.mxu0 %v303
    %489 = vmatprep.subr.mxu0 %v310
    %490 = vmatpush1.msra.mxu0 %v309
    %491 = vmatprep.subr.mxu0 %v316
    %492 = vmatpush1.msra.mxu0 %v315
    %493 = vmatprep.subr.mxu0 %v322
    %494 = vmatpush1.msra.mxu0 %v321
    %495 = vmatprep.mubr.f32.mxu0 %v358
    %496 = vmatmul.mubr.f32.gmra.mrb[0].mxu0 %v132
    %v497 = vpop.f32.mrb[0].mxu0
    %v498 = vadd.f32 %v338, %v497
    %v499 = vpop.f32.mrb[0].mxu0
    %v500 = vadd.f32 %v342, %v499
    %501 = vdwg.mxu0
    %502 = vmatprep.subr.mxu0 %v138
    %503 = vmatpush1.msra.mxu0 %v137
    %504 = vmatprep.subr.mxu0 %v144
    %505 = vmatpush1.msra.mxu0 %v143
    %506 = vmatprep.subr.mxu0 %v150
    %507 = vmatpush1.msra.mxu0 %v149
    %508 = vmatprep.subr.mxu0 %v156
    %509 = vmatpush1.msra.mxu0 %v155
    %510 = vmatprep.subr.mxu0 %v162
    %511 = vmatpush1.msra.mxu0 %v161
    %512 = vmatprep.subr.mxu0 %v168
    %513 = vmatpush1.msra.mxu0 %v167
    %514 = vmatprep.subr.mxu0 %v174
    %515 = vmatpush1.msra.mxu0 %v173
    %516 = vmatprep.subr.mxu0 %v180
    %517 = vmatpush1.msra.mxu0 %v179
    %518 = vmatprep.subr.mxu0 %v186
    %519 = vmatpush1.msra.mxu0 %v185
    %520 = vmatprep.subr.mxu0 %v192
    %521 = vmatpush1.msra.mxu0 %v191
    %522 = vmatprep.subr.mxu0 %v198
    %523 = vmatpush1.msra.mxu0 %v197
    %524 = vmatprep.subr.mxu0 %v204
    %525 = vmatpush1.msra.mxu0 %v203
    %526 = vmatprep.subr.mxu0 %v210
    %527 = vmatpush1.msra.mxu0 %v209
    %528 = vmatprep.subr.mxu0 %v216
    %529 = vmatpush1.msra.mxu0 %v215
    %530 = vmatprep.subr.mxu0 %v222
    %531 = vmatpush1.msra.mxu0 %v221
    %532 = vmatprep.subr.mxu0 %v228
    %533 = vmatpush1.msra.mxu0 %v227
    %534 = vmatprep.subr.mxu0 %v234
    %535 = vmatpush1.msra.mxu0 %v233
    %536 = vmatprep.subr.mxu0 %v240
    %537 = vmatpush1.msra.mxu0 %v239
    %538 = vmatprep.subr.mxu0 %v246
    %539 = vmatpush1.msra.mxu0 %v245
    %540 = vmatprep.subr.mxu0 %v252
    %541 = vmatpush1.msra.mxu0 %v251
    %542 = vmatprep.subr.mxu0 %v258
    %543 = vmatpush1.msra.mxu0 %v257
    %544 = vmatprep.subr.mxu0 %v264
    %545 = vmatpush1.msra.mxu0 %v263
    %546 = vmatprep.subr.mxu0 %v270
    %547 = vmatpush1.msra.mxu0 %v269
    %548 = vmatprep.subr.mxu0 %v276
    %549 = vmatpush1.msra.mxu0 %v275
    %550 = vmatprep.subr.mxu0 %v282
    %551 = vmatpush1.msra.mxu0 %v281
    %552 = vmatprep.subr.mxu0 %v288
    %553 = vmatpush1.msra.mxu0 %v287
    %554 = vmatprep.subr.mxu0 %v294
    %555 = vmatpush1.msra.mxu0 %v293
    %556 = vmatprep.subr.mxu0 %v300
    %557 = vmatpush1.msra.mxu0 %v299
    %558 = vmatprep.subr.mxu0 %v306
    %559 = vmatpush1.msra.mxu0 %v305
    %560 = vmatprep.subr.mxu0 %v312
    %561 = vmatpush1.msra.mxu0 %v311
    %562 = vmatprep.subr.mxu0 %v318
    %563 = vmatpush1.msra.mxu0 %v317
    %564 = vmatprep.subr.mxu0 %v324
    %565 = vmatpush1.msra.mxu0 %v323
    %566 = vmatprep.mubr.f32.mxu0 %v358
    %567 = vmatmul.mubr.f32.gmra.mrb[0].mxu0 %v132
    %v568 = vpop.f32.mrb[0].mxu0
    %v569 = vadd.f32 %v346, %v568
    %v570 = vpop.f32.mrb[0].mxu0
    %v571 = vadd.f32 %v350, %v570
    %572 = vdwg.mxu0
    %v579 = vcombine.low %v427, %v429
    %v580 = vcombine.low %v498, %v500
    %v581 = vcombine.low %v569, %v571
    %585 = vst [vmem:[#allocation2] sm:$0xff] %v579
    %586 = vst [vmem:[#allocation2 + $0x8] sm:$0xff] %v580
    %587 = vst [vmem:[#allocation2 + $0x10] sm:$0xff] %v581
    %v588 = vld [vmem:[#allocation11] sm:$0xff]
    %v589 = vld [vmem:[#allocation11 + $0x8] sm:$0xff]
    %v590 = vld [vmem:[#allocation11 + $0x10] sm:$0xff]
    %v591 = vld [vmem:[#allocation11 + $0x18] sm:$0xff]
    %v592 = vld [vmem:[#allocation11 + $0x20] sm:$0xff]
    %v593 = vld [vmem:[#allocation11 + $0x28] sm:$0xff]
    %v594 = vld [vmem:[#allocation11 + $0x30] sm:$0xff]
    %v595 = vld [vmem:[#allocation11 + $0x38] sm:$0xff]
    %v596 = vld [vmem:[#allocation11 + $0x40] sm:$0xff]
    %v597 = vld [vmem:[#allocation11 + $0x48] sm:$0xff]
    %v598 = vld [vmem:[#allocation11 + $0x50] sm:$0xff]
    %v599 = vld [vmem:[#allocation11 + $0x58] sm:$0xff]
    %v600 = vld [vmem:[#allocation11 + $0x60] sm:$0xff]
    %v601 = vld [vmem:[#allocation11 + $0x68] sm:$0xff]
    %v602 = vld [vmem:[#allocation11 + $0x70] sm:$0xff]
    %v603 = vld [vmem:[#allocation11 + $0x78] sm:$0xff]
    %v604 = vld [vmem:[#allocation11 + $0x80] sm:$0xff]
    %v605 = vld [vmem:[#allocation11 + $0x88] sm:$0xff]
    %v606 = vld [vmem:[#allocation11 + $0x90] sm:$0xff]
    %v607 = vld [vmem:[#allocation11 + $0x98] sm:$0xff]
    %v608 = vld [vmem:[#allocation11 + $0xa0] sm:$0xff]
    %v609 = vld [vmem:[#allocation11 + $0xa8] sm:$0xff]
    %v610 = vld [vmem:[#allocation11 + $0xb0] sm:$0xff]
    %v611 = vld [vmem:[#allocation11 + $0xb8] sm:$0xff]
    %v612 = vld [vmem:[#allocation11 + $0xc0] sm:$0xff]
    %v613 = vld [vmem:[#allocation11 + $0xc8] sm:$0xff]
    %v614 = vld [vmem:[#allocation11 + $0xd0] sm:$0xff]
    %v615 = vld [vmem:[#allocation11 + $0xd8] sm:$0xff]
    %v616 = vld [vmem:[#allocation11 + $0xe0] sm:$0xff]
    %v617 = vld [vmem:[#allocation11 + $0xe8] sm:$0xff]
    %v618 = vld [vmem:[#allocation11 + $0xf0] sm:$0xff]
    %v619 = vld [vmem:[#allocation11 + $0xf8] sm:$0xff]
    %v620 = vld [vmem:[#allocation11 + $0x100] sm:$0xff]
    %v621 = vld [vmem:[#allocation11 + $0x108] sm:$0xff]
    %v622 = vld [vmem:[#allocation11 + $0x110] sm:$0xff]
    %v623 = vld [vmem:[#allocation11 + $0x118] sm:$0xff]
    %v624 = vld [vmem:[#allocation11 + $0x120] sm:$0xff]
    %v625 = vld [vmem:[#allocation11 + $0x128] sm:$0xff]
    %v626 = vld [vmem:[#allocation11 + $0x130] sm:$0xff]
    %v627 = vld [vmem:[#allocation11 + $0x138] sm:$0xff]
    %v628 = vld [vmem:[#allocation11 + $0x140] sm:$0xff]
    %v629 = vld [vmem:[#allocation11 + $0x148] sm:$0xff]
    %v630 = vld [vmem:[#allocation11 + $0x150] sm:$0xff]
    %v631 = vld [vmem:[#allocation11 + $0x158] sm:$0xff]
    %v632 = vld [vmem:[#allocation11 + $0x160] sm:$0xff]
    %v633 = vld [vmem:[#allocation11 + $0x168] sm:$0xff]
    %v634 = vld [vmem:[#allocation11 + $0x170] sm:$0xff]
    %v635 = vld [vmem:[#allocation11 + $0x178] sm:$0xff]
    %v636 = vld [vmem:[#allocation11 + $0x180] sm:$0xff]
    %v637 = vld [vmem:[#allocation11 + $0x188] sm:$0xff]
    %v638 = vld [vmem:[#allocation11 + $0x190] sm:$0xff]
    %v639 = vld [vmem:[#allocation11 + $0x198] sm:$0xff]
    %v640 = vld [vmem:[#allocation11 + $0x1a0] sm:$0xff]
    %v641 = vld [vmem:[#allocation11 + $0x1a8] sm:$0xff]
    %v642 = vld [vmem:[#allocation11 + $0x1b0] sm:$0xff]
    %v643 = vld [vmem:[#allocation11 + $0x1b8] sm:$0xff]
    %v644 = vld [vmem:[#allocation11 + $0x1c0] sm:$0xff]
    %v645 = vld [vmem:[#allocation11 + $0x1c8] sm:$0xff]
    %v646 = vld [vmem:[#allocation11 + $0x1d0] sm:$0xff]
    %v647 = vld [vmem:[#allocation11 + $0x1d8] sm:$0xff]
    %v648 = vld [vmem:[#allocation11 + $0x1e0] sm:$0xff]
    %v649 = vld [vmem:[#allocation11 + $0x1e8] sm:$0xff]
    %v650 = vld [vmem:[#allocation11 + $0x1f0] sm:$0xff]
    %v651 = vld [vmem:[#allocation11 + $0x1f8] sm:$0xff]
    %v652 = vld [vmem:[#allocation11 + $0x200] sm:$0xff]
    %v653 = vld [vmem:[#allocation11 + $0x208] sm:$0xff]
    %v654 = vld [vmem:[#allocation11 + $0x210] sm:$0xff]
    %v655 = vld [vmem:[#allocation11 + $0x218] sm:$0xff]
    %v656 = vld [vmem:[#allocation11 + $0x220] sm:$0xff]
    %v657 = vld [vmem:[#allocation11 + $0x228] sm:$0xff]
    %v658 = vld [vmem:[#allocation11 + $0x230] sm:$0xff]
    %v659 = vld [vmem:[#allocation11 + $0x238] sm:$0xff]
    %v660 = vld [vmem:[#allocation11 + $0x240] sm:$0xff]
    %v661 = vld [vmem:[#allocation11 + $0x248] sm:$0xff]
    %v662 = vld [vmem:[#allocation11 + $0x250] sm:$0xff]
    %v663 = vld [vmem:[#allocation11 + $0x258] sm:$0xff]
    %v664 = vld [vmem:[#allocation11 + $0x260] sm:$0xff]
    %v665 = vld [vmem:[#allocation11 + $0x268] sm:$0xff]
    %v666 = vld [vmem:[#allocation11 + $0x270] sm:$0xff]
    %v667 = vld [vmem:[#allocation11 + $0x278] sm:$0xff]
    %v668 = vld [vmem:[#allocation11 + $0x280] sm:$0xff]
    %v669 = vld [vmem:[#allocation11 + $0x288] sm:$0xff]
    %v670 = vld [vmem:[#allocation11 + $0x290] sm:$0xff]
    %v671 = vld [vmem:[#allocation11 + $0x298] sm:$0xff]
    %v672 = vld [vmem:[#allocation11 + $0x2a0] sm:$0xff]
    %v673 = vld [vmem:[#allocation11 + $0x2a8] sm:$0xff]
    %v674 = vld [vmem:[#allocation11 + $0x2b0] sm:$0xff]
    %v675 = vld [vmem:[#allocation11 + $0x2b8] sm:$0xff]
    %v676 = vld [vmem:[#allocation11 + $0x2c0] sm:$0xff]
    %v677 = vld [vmem:[#allocation11 + $0x2c8] sm:$0xff]
    %v678 = vld [vmem:[#allocation11 + $0x2d0] sm:$0xff]
    %v679 = vld [vmem:[#allocation11 + $0x2d8] sm:$0xff]
    %v680 = vld [vmem:[#allocation11 + $0x2e0] sm:$0xff]
    %v681 = vld [vmem:[#allocation11 + $0x2e8] sm:$0xff]
    %v682 = vld [vmem:[#allocation11 + $0x2f0] sm:$0xff]
    %v683 = vld [vmem:[#allocation11 + $0x2f8] sm:$0xff]
    %v684 = vld [vmem:[#allocation11 + $0x300] sm:$0xff]
    %v685 = vld [vmem:[#allocation11 + $0x308] sm:$0xff]
    %v686 = vld [vmem:[#allocation11 + $0x310] sm:$0xff]
    %v687 = vld [vmem:[#allocation11 + $0x318] sm:$0xff]
    %v688 = vld [vmem:[#allocation11 + $0x320] sm:$0xff]
    %v689 = vld [vmem:[#allocation11 + $0x328] sm:$0xff]
    %v690 = vld [vmem:[#allocation11 + $0x330] sm:$0xff]
    %v691 = vld [vmem:[#allocation11 + $0x338] sm:$0xff]
    %v692 = vld [vmem:[#allocation11 + $0x340] sm:$0xff]
    %v693 = vld [vmem:[#allocation11 + $0x348] sm:$0xff]
    %v694 = vld [vmem:[#allocation11 + $0x350] sm:$0xff]
    %v695 = vld [vmem:[#allocation11 + $0x358] sm:$0xff]
    %v696 = vld [vmem:[#allocation11 + $0x360] sm:$0xff]
    %v697 = vld [vmem:[#allocation11 + $0x368] sm:$0xff]
    %v698 = vld [vmem:[#allocation11 + $0x370] sm:$0xff]
    %v699 = vld [vmem:[#allocation11 + $0x378] sm:$0xff]
    %v700 = vld [vmem:[#allocation11 + $0x380] sm:$0xff]
    %v701 = vld [vmem:[#allocation11 + $0x388] sm:$0xff]
    %v702 = vld [vmem:[#allocation11 + $0x390] sm:$0xff]
    %v703 = vld [vmem:[#allocation11 + $0x398] sm:$0xff]
    %v704 = vld [vmem:[#allocation11 + $0x3a0] sm:$0xff]
    %v705 = vld [vmem:[#allocation11 + $0x3a8] sm:$0xff]
    %v706 = vld [vmem:[#allocation11 + $0x3b0] sm:$0xff]
    %v707 = vld [vmem:[#allocation11 + $0x3b8] sm:$0xff]
    %v708 = vld [vmem:[#allocation11 + $0x3c0] sm:$0xff]
    %v709 = vld [vmem:[#allocation11 + $0x3c8] sm:$0xff]
    %v710 = vld [vmem:[#allocation11 + $0x3d0] sm:$0xff]
    %v711 = vld [vmem:[#allocation11 + $0x3d8] sm:$0xff]
    %v712 = vld [vmem:[#allocation11 + $0x3e0] sm:$0xff]
    %v713 = vld [vmem:[#allocation11 + $0x3e8] sm:$0xff]
    %v714 = vld [vmem:[#allocation11 + $0x3f0] sm:$0xff]
    %v715 = vld [vmem:[#allocation11 + $0x3f8] sm:$0xff]
    %v716 = vld [vmem:[#allocation11 + $0x400] sm:$0xff]
    %v717 = vld [vmem:[#allocation11 + $0x408] sm:$0xff]
    %v718 = vld [vmem:[#allocation11 + $0x410] sm:$0xff]
    %v719 = vld [vmem:[#allocation11 + $0x418] sm:$0xff]
    %v720 = vld [vmem:[#allocation11 + $0x420] sm:$0xff]
    %v721 = vld [vmem:[#allocation11 + $0x428] sm:$0xff]
    %v722 = vld [vmem:[#allocation11 + $0x430] sm:$0xff]
    %v723 = vld [vmem:[#allocation11 + $0x438] sm:$0xff]
    %v724 = vld [vmem:[#allocation11 + $0x440] sm:$0xff]
    %v725 = vld [vmem:[#allocation11 + $0x448] sm:$0xff]
    %v726 = vld [vmem:[#allocation11 + $0x450] sm:$0xff]
    %v727 = vld [vmem:[#allocation11 + $0x458] sm:$0xff]
    %v728 = vld [vmem:[#allocation11 + $0x460] sm:$0xff]
    %v729 = vld [vmem:[#allocation11 + $0x468] sm:$0xff]
    %v730 = vld [vmem:[#allocation11 + $0x470] sm:$0xff]
    %v731 = vld [vmem:[#allocation11 + $0x478] sm:$0xff]
    %v732 = vld [vmem:[#allocation11 + $0x480] sm:$0xff]
    %v733 = vld [vmem:[#allocation11 + $0x488] sm:$0xff]
    %v734 = vld [vmem:[#allocation11 + $0x490] sm:$0xff]
    %v735 = vld [vmem:[#allocation11 + $0x498] sm:$0xff]
    %v736 = vld [vmem:[#allocation11 + $0x4a0] sm:$0xff]
    %v737 = vld [vmem:[#allocation11 + $0x4a8] sm:$0xff]
    %v738 = vld [vmem:[#allocation11 + $0x4b0] sm:$0xff]
    %v739 = vld [vmem:[#allocation11 + $0x4b8] sm:$0xff]
    %v740 = vld [vmem:[#allocation11 + $0x4c0] sm:$0xff]
    %v741 = vld [vmem:[#allocation11 + $0x4c8] sm:$0xff]
    %v742 = vld [vmem:[#allocation11 + $0x4d0] sm:$0xff]
    %v743 = vld [vmem:[#allocation11 + $0x4d8] sm:$0xff]
    %v744 = vld [vmem:[#allocation11 + $0x4e0] sm:$0xff]
    %v745 = vld [vmem:[#allocation11 + $0x4e8] sm:$0xff]
    %v746 = vld [vmem:[#allocation11 + $0x4f0] sm:$0xff]
    %v747 = vld [vmem:[#allocation11 + $0x4f8] sm:$0xff]
    %v748 = vld [vmem:[#allocation11 + $0x500] sm:$0xff]
    %v749 = vld [vmem:[#allocation11 + $0x508] sm:$0xff]
    %v750 = vld [vmem:[#allocation11 + $0x510] sm:$0xff]
    %v751 = vld [vmem:[#allocation11 + $0x518] sm:$0xff]
    %v752 = vld [vmem:[#allocation11 + $0x520] sm:$0xff]
    %v753 = vld [vmem:[#allocation11 + $0x528] sm:$0xff]
    %v754 = vld [vmem:[#allocation11 + $0x530] sm:$0xff]
    %v755 = vld [vmem:[#allocation11 + $0x538] sm:$0xff]
    %v756 = vld [vmem:[#allocation11 + $0x540] sm:$0xff]
    %v757 = vld [vmem:[#allocation11 + $0x548] sm:$0xff]
    %v758 = vld [vmem:[#allocation11 + $0x550] sm:$0xff]
    %v759 = vld [vmem:[#allocation11 + $0x558] sm:$0xff]
    %v760 = vld [vmem:[#allocation11 + $0x560] sm:$0xff]
    %v761 = vld [vmem:[#allocation11 + $0x568] sm:$0xff]
    %v762 = vld [vmem:[#allocation11 + $0x570] sm:$0xff]
    %v763 = vld [vmem:[#allocation11 + $0x578] sm:$0xff]
    %v764 = vld [vmem:[#allocation11 + $0x580] sm:$0xff]
    %v765 = vld [vmem:[#allocation11 + $0x588] sm:$0xff]
    %v766 = vld [vmem:[#allocation11 + $0x590] sm:$0xff]
    %v767 = vld [vmem:[#allocation11 + $0x598] sm:$0xff]
    %v768 = vld [vmem:[#allocation11 + $0x5a0] sm:$0xff]
    %v769 = vld [vmem:[#allocation11 + $0x5a8] sm:$0xff]
    %v770 = vld [vmem:[#allocation11 + $0x5b0] sm:$0xff]
    %v771 = vld [vmem:[#allocation11 + $0x5b8] sm:$0xff]
    %v772 = vld [vmem:[#allocation11 + $0x5c0] sm:$0xff]
    %v773 = vld [vmem:[#allocation11 + $0x5c8] sm:$0xff]
    %v774 = vld [vmem:[#allocation11 + $0x5d0] sm:$0xff]
    %v775 = vld [vmem:[#allocation11 + $0x5d8] sm:$0xff]
    %v776 = vld [vmem:[#allocation11 + $0x5e0] sm:$0xff]
    %v777 = vld [vmem:[#allocation11 + $0x5e8] sm:$0xff]
    %v778 = vld [vmem:[#allocation11 + $0x5f0] sm:$0xff]
    %v779 = vld [vmem:[#allocation11 + $0x5f8] sm:$0xff]
    %v780 = vld [vmem:[%s8] sm:$0x3f]
    %v782 = vlaneseq
    %v783 = vshrl.u32 %v782, 7
    %v784 = vsub.s32 0, %v783
    %v785 = vrot.slane %v780, %v784
    %v786 = vlaneseq
    %v787 = vshrl.u32 %v786, 7
    %v788 = vsub.s32 1, %v787
    %v789 = vrot.slane %v780, %v788
    %v790 = vlaneseq
    %v791 = vshrl.u32 %v790, 7
    %v792 = vsub.s32 2, %v791
    %v793 = vrot.slane %v780, %v792
    %v794 = vlaneseq
    %v795 = vshrl.u32 %v794, 7
    %v796 = vsub.s32 3, %v795
    %v797 = vrot.slane %v780, %v796
    %v798 = vlaneseq
    %v799 = vshrl.u32 %v798, 7
    %v800 = vsub.s32 4, %v799
    %v801 = vrot.slane %v780, %v800
    %v802 = vlaneseq
    %v803 = vshrl.u32 %v802, 7
    %v804 = vsub.s32 5, %v803
    %v805 = vrot.slane %v780, %v804
    %812 = vmatprep.subr.mxu0 %v589
    %813 = vmatpush1.msra.mxu0 %v588
    %814 = vmatprep.subr.mxu0 %v595
    %815 = vmatpush1.msra.mxu0 %v594
    %816 = vmatprep.subr.mxu0 %v601
    %817 = vmatpush1.msra.mxu0 %v600
    %818 = vmatprep.subr.mxu0 %v607
    %819 = vmatpush1.msra.mxu0 %v606
    %820 = vmatprep.subr.mxu0 %v613
    %821 = vmatpush1.msra.mxu0 %v612
    %822 = vmatprep.subr.mxu0 %v619
    %823 = vmatpush1.msra.mxu0 %v618
    %824 = vmatprep.subr.mxu0 %v625
    %825 = vmatpush1.msra.mxu0 %v624
    %826 = vmatprep.subr.mxu0 %v631
    %827 = vmatpush1.msra.mxu0 %v630
    %828 = vmatprep.subr.mxu0 %v637
    %829 = vmatpush1.msra.mxu0 %v636
    %830 = vmatprep.subr.mxu0 %v643
    %831 = vmatpush1.msra.mxu0 %v642
    %832 = vmatprep.subr.mxu0 %v649
    %833 = vmatpush1.msra.mxu0 %v648
    %834 = vmatprep.subr.mxu0 %v655
    %835 = vmatpush1.msra.mxu0 %v654
    %836 = vmatprep.subr.mxu0 %v661
    %837 = vmatpush1.msra.mxu0 %v660
    %838 = vmatprep.subr.mxu0 %v667
    %839 = vmatpush1.msra.mxu0 %v666
    %840 = vmatprep.subr.mxu0 %v673
    %841 = vmatpush1.msra.mxu0 %v672
    %842 = vmatprep.subr.mxu0 %v679
    %843 = vmatpush1.msra.mxu0 %v678
    %844 = vmatprep.subr.mxu0 %v685
    %845 = vmatpush1.msra.mxu0 %v684
    %846 = vmatprep.subr.mxu0 %v691
    %847 = vmatpush1.msra.mxu0 %v690
    %848 = vmatprep.subr.mxu0 %v697
    %849 = vmatpush1.msra.mxu0 %v696
    %850 = vmatprep.subr.mxu0 %v703
    %851 = vmatpush1.msra.mxu0 %v702
    %852 = vmatprep.subr.mxu0 %v709
    %853 = vmatpush1.msra.mxu0 %v708
    %854 = vmatprep.subr.mxu0 %v715
    %855 = vmatpush1.msra.mxu0 %v714
    %856 = vmatprep.subr.mxu0 %v721
    %857 = vmatpush1.msra.mxu0 %v720
    %858 = vmatprep.subr.mxu0 %v727
    %859 = vmatpush1.msra.mxu0 %v726
    %860 = vmatprep.subr.mxu0 %v733
    %861 = vmatpush1.msra.mxu0 %v732
    %862 = vmatprep.subr.mxu0 %v739
    %863 = vmatpush1.msra.mxu0 %v738
    %864 = vmatprep.subr.mxu0 %v745
    %865 = vmatpush1.msra.mxu0 %v744
    %866 = vmatprep.subr.mxu0 %v751
    %867 = vmatpush1.msra.mxu0 %v750
    %868 = vmatprep.subr.mxu0 %v757
    %869 = vmatpush1.msra.mxu0 %v756
    %870 = vmatprep.subr.mxu0 %v763
    %871 = vmatpush1.msra.mxu0 %v762
    %872 = vmatprep.subr.mxu0 %v769
    %873 = vmatpush1.msra.mxu0 %v768
    %874 = vmatprep.subr.mxu0 %v775
    %875 = vmatpush1.msra.mxu0 %v774
    %876 = vmatprep.mubr.f32.mxu0 %v358
    %877 = vmatmul.mubr.f32.gmra.mrb[0].mxu0 %v132
    %v878 = vpop.f32.mrb[0].mxu0
    %v879 = vadd.f32 %v785, %v878
    %v880 = vpop.f32.mrb[0].mxu0
    %v881 = vadd.f32 %v789, %v880
    %882 = vdwg.mxu0
    %883 = vmatprep.subr.mxu0 %v591
    %884 = vmatpush1.msra.mxu0 %v590
    %885 = vmatprep.subr.mxu0 %v597
    %886 = vmatpush1.msra.mxu0 %v596
    %887 = vmatprep.subr.mxu0 %v603
    %888 = vmatpush1.msra.mxu0 %v602
    %889 = vmatprep.subr.mxu0 %v609
    %890 = vmatpush1.msra.mxu0 %v608
    %891 = vmatprep.subr.mxu0 %v615
    %892 = vmatpush1.msra.mxu0 %v614
    %893 = vmatprep.subr.mxu0 %v621
    %894 = vmatpush1.msra.mxu0 %v620
    %895 = vmatprep.subr.mxu0 %v627
    %896 = vmatpush1.msra.mxu0 %v626
    %897 = vmatprep.subr.mxu0 %v633
    %898 = vmatpush1.msra.mxu0 %v632
    %899 = vmatprep.subr.mxu0 %v639
    %900 = vmatpush1.msra.mxu0 %v638
    %901 = vmatprep.subr.mxu0 %v645
    %902 = vmatpush1.msra.mxu0 %v644
    %903 = vmatprep.subr.mxu0 %v651
    %904 = vmatpush1.msra.mxu0 %v650
    %905 = vmatprep.subr.mxu0 %v657
    %906 = vmatpush1.msra.mxu0 %v656
    %907 = vmatprep.subr.mxu0 %v663
    %908 = vmatpush1.msra.mxu0 %v662
    %909 = vmatprep.subr.mxu0 %v669
    %910 = vmatpush1.msra.mxu0 %v668
    %911 = vmatprep.subr.mxu0 %v675
    %912 = vmatpush1.msra.mxu0 %v674
    %913 = vmatprep.subr.mxu0 %v681
    %914 = vmatpush1.msra.mxu0 %v680
    %915 = vmatprep.subr.mxu0 %v687
    %916 = vmatpush1.msra.mxu0 %v686
    %917 = vmatprep.subr.mxu0 %v693
    %918 = vmatpush1.msra.mxu0 %v692
    %919 = vmatprep.subr.mxu0 %v699
    %920 = vmatpush1.msra.mxu0 %v698
    %921 = vmatprep.subr.mxu0 %v705
    %922 = vmatpush1.msra.mxu0 %v704
    %923 = vmatprep.subr.mxu0 %v711
    %924 = vmatpush1.msra.mxu0 %v710
    %925 = vmatprep.subr.mxu0 %v717
    %926 = vmatpush1.msra.mxu0 %v716
    %927 = vmatprep.subr.mxu0 %v723
    %928 = vmatpush1.msra.mxu0 %v722
    %929 = vmatprep.subr.mxu0 %v729
    %930 = vmatpush1.msra.mxu0 %v728
    %931 = vmatprep.subr.mxu0 %v735
    %932 = vmatpush1.msra.mxu0 %v734
    %933 = vmatprep.subr.mxu0 %v741
    %934 = vmatpush1.msra.mxu0 %v740
    %935 = vmatprep.subr.mxu0 %v747
    %936 = vmatpush1.msra.mxu0 %v746
    %937 = vmatprep.subr.mxu0 %v753
    %938 = vmatpush1.msra.mxu0 %v752
    %939 = vmatprep.subr.mxu0 %v759
    %940 = vmatpush1.msra.mxu0 %v758
    %941 = vmatprep.subr.mxu0 %v765
    %942 = vmatpush1.msra.mxu0 %v764
    %943 = vmatprep.subr.mxu0 %v771
    %944 = vmatpush1.msra.mxu0 %v770
    %945 = vmatprep.subr.mxu0 %v777
    %946 = vmatpush1.msra.mxu0 %v776
    %947 = vmatprep.mubr.f32.mxu0 %v358
    %948 = vmatmul.mubr.f32.gmra.mrb[0].mxu0 %v132
    %v949 = vpop.f32.mrb[0].mxu0
    %v950 = vadd.f32 %v793, %v949
    %v951 = vpop.f32.mrb[0].mxu0
    %v952 = vadd.f32 %v797, %v951
    %953 = vdwg.mxu0
    %954 = vmatprep.subr.mxu0 %v593
    %955 = vmatpush1.msra.mxu0 %v592
    %956 = vmatprep.subr.mxu0 %v599
    %957 = vmatpush1.msra.mxu0 %v598
    %958 = vmatprep.subr.mxu0 %v605
    %959 = vmatpush1.msra.mxu0 %v604
    %960 = vmatprep.subr.mxu0 %v611
    %961 = vmatpush1.msra.mxu0 %v610
    %962 = vmatprep.subr.mxu0 %v617
    %963 = vmatpush1.msra.mxu0 %v616
    %964 = vmatprep.subr.mxu0 %v623
    %965 = vmatpush1.msra.mxu0 %v622
    %966 = vmatprep.subr.mxu0 %v629
    %967 = vmatpush1.msra.mxu0 %v628
    %968 = vmatprep.subr.mxu0 %v635
    %969 = vmatpush1.msra.mxu0 %v634
    %970 = vmatprep.subr.mxu0 %v641
    %971 = vmatpush1.msra.mxu0 %v640
    %972 = vmatprep.subr.mxu0 %v647
    %973 = vmatpush1.msra.mxu0 %v646
    %974 = vmatprep.subr.mxu0 %v653
    %975 = vmatpush1.msra.mxu0 %v652
    %976 = vmatprep.subr.mxu0 %v659
    %977 = vmatpush1.msra.mxu0 %v658
    %978 = vmatprep.subr.mxu0 %v665
    %979 = vmatpush1.msra.mxu0 %v664
    %980 = vmatprep.subr.mxu0 %v671
    %981 = vmatpush1.msra.mxu0 %v670
    %982 = vmatprep.subr.mxu0 %v677
    %983 = vmatpush1.msra.mxu0 %v676
    %984 = vmatprep.subr.mxu0 %v683
    %985 = vmatpush1.msra.mxu0 %v682
    %986 = vmatprep.subr.mxu0 %v689
    %987 = vmatpush1.msra.mxu0 %v688
    %988 = vmatprep.subr.mxu0 %v695
    %989 = vmatpush1.msra.mxu0 %v694
    %990 = vmatprep.subr.mxu0 %v701
    %991 = vmatpush1.msra.mxu0 %v700
    %992 = vmatprep.subr.mxu0 %v707
    %993 = vmatpush1.msra.mxu0 %v706
    %994 = vmatprep.subr.mxu0 %v713
    %995 = vmatpush1.msra.mxu0 %v712
    %996 = vmatprep.subr.mxu0 %v719
    %997 = vmatpush1.msra.mxu0 %v718
    %998 = vmatprep.subr.mxu0 %v725
    %999 = vmatpush1.msra.mxu0 %v724
    %1000 = vmatprep.subr.mxu0 %v731
    %1001 = vmatpush1.msra.mxu0 %v730
    %1002 = vmatprep.subr.mxu0 %v737
    %1003 = vmatpush1.msra.mxu0 %v736
    %1004 = vmatprep.subr.mxu0 %v743
    %1005 = vmatpush1.msra.mxu0 %v742
    %1006 = vmatprep.subr.mxu0 %v749
    %1007 = vmatpush1.msra.mxu0 %v748
    %1008 = vmatprep.subr.mxu0 %v755
    %1009 = vmatpush1.msra.mxu0 %v754
    %1010 = vmatprep.subr.mxu0 %v761
    %1011 = vmatpush1.msra.mxu0 %v760
    %1012 = vmatprep.subr.mxu0 %v767
    %1013 = vmatpush1.msra.mxu0 %v766
    %1014 = vmatprep.subr.mxu0 %v773
    %1015 = vmatpush1.msra.mxu0 %v772
    %1016 = vmatprep.subr.mxu0 %v779
    %1017 = vmatpush1.msra.mxu0 %v778
    %1018 = vmatprep.mubr.f32.mxu0 %v358
    %1019 = vmatmul.mubr.f32.gmra.mrb[0].mxu0 %v132
    %v1020 = vpop.f32.mrb[0].mxu0
    %v1021 = vadd.f32 %v801, %v1020
    %v1022 = vpop.f32.mrb[0].mxu0
    %v1023 = vadd.f32 %v805, %v1022
    %1024 = vdwg.mxu0
    %v1031 = vcombine.low %v879, %v881
    %v1032 = vcombine.low %v950, %v952
    %v1033 = vcombine.low %v1021, %v1023
    %1037 = vst [vmem:[#allocation3] sm:$0xff] %v1031
    %1038 = vst [vmem:[#allocation3 + $0x8] sm:$0xff] %v1032
    %1039 = vst [vmem:[#allocation3 + $0x10] sm:$0xff] %v1033
    %v1040 = vld [vmem:[#allocation2] ss:$4 sm:$0x3f]
    %v1041 = vld [vmem:[#allocation9] sm:$0xff]
    %v1042 = vld [vmem:[#allocation9 + $0x8] sm:$0xff]
    %v1043 = vld [vmem:[#allocation9 + $0x10] sm:$0xff]
    %v1044 = vld [vmem:[#allocation9 + $0x18] sm:$0xff]
    %v1045 = vld [vmem:[#allocation9 + $0x20] sm:$0xff]
    %v1046 = vld [vmem:[#allocation9 + $0x28] sm:$0xff]
    %v1047 = vld [vmem:[#allocation9 + $0x30] sm:$0xff]
    %v1048 = vld [vmem:[#allocation9 + $0x38] sm:$0xff]
    %v1049 = vld [vmem:[#allocation9 + $0x40] sm:$0xff]
    %v1050 = vld [vmem:[#allocation9 + $0x48] sm:$0xff]
    %v1051 = vld [vmem:[#allocation9 + $0x50] sm:$0xff]
    %v1052 = vld [vmem:[#allocation9 + $0x58] sm:$0xff]
    %v1053 = vld [vmem:[#allocation9 + $0x60] sm:$0xff]
    %v1054 = vld [vmem:[#allocation9 + $0x68] sm:$0xff]
    %v1055 = vld [vmem:[#allocation9 + $0x70] sm:$0xff]
    %v1056 = vld [vmem:[#allocation9 + $0x78] sm:$0xff]
    %v1057 = vld [vmem:[#allocation9 + $0x80] sm:$0xff]
    %v1058 = vld [vmem:[#allocation9 + $0x88] sm:$0xff]
    %v1059 = vld [vmem:[#allocation9 + $0x90] sm:$0xff]
    %v1060 = vld [vmem:[#allocation9 + $0x98] sm:$0xff]
    %v1061 = vld [vmem:[#allocation9 + $0xa0] sm:$0xff]
    %v1062 = vld [vmem:[#allocation9 + $0xa8] sm:$0xff]
    %v1063 = vld [vmem:[#allocation9 + $0xb0] sm:$0xff]
    %v1064 = vld [vmem:[#allocation9 + $0xb8] sm:$0xff]
    %v1065 = vld [vmem:[#allocation9 + $0xc0] sm:$0xff]
    %v1066 = vld [vmem:[#allocation9 + $0xc8] sm:$0xff]
    %v1067 = vld [vmem:[#allocation9 + $0xd0] sm:$0xff]
    %v1068 = vld [vmem:[#allocation9 + $0xd8] sm:$0xff]
    %v1069 = vld [vmem:[#allocation9 + $0xe0] sm:$0xff]
    %v1070 = vld [vmem:[#allocation9 + $0xe8] sm:$0xff]
    %v1071 = vld [vmem:[#allocation9 + $0xf0] sm:$0xff]
    %v1072 = vld [vmem:[#allocation9 + $0xf8] sm:$0xff]
    %v1073 = vld [vmem:[#allocation9 + $0x100] sm:$0xff]
    %v1074 = vld [vmem:[#allocation9 + $0x108] sm:$0xff]
    %v1075 = vld [vmem:[#allocation9 + $0x110] sm:$0xff]
    %v1076 = vld [vmem:[#allocation9 + $0x118] sm:$0xff]
    %v1077 = vld [vmem:[#allocation9 + $0x120] sm:$0xff]
    %v1078 = vld [vmem:[#allocation9 + $0x128] sm:$0xff]
    %v1079 = vld [vmem:[#allocation9 + $0x130] sm:$0xff]
    %v1080 = vld [vmem:[#allocation9 + $0x138] sm:$0xff]
    %v1081 = vld [vmem:[#allocation9 + $0x140] sm:$0xff]
    %v1082 = vld [vmem:[#allocation9 + $0x148] sm:$0xff]
    %v1083 = vld [vmem:[#allocation9 + $0x150] sm:$0xff]
    %v1084 = vld [vmem:[#allocation9 + $0x158] sm:$0xff]
    %v1085 = vld [vmem:[#allocation9 + $0x160] sm:$0xff]
    %v1086 = vld [vmem:[#allocation9 + $0x168] sm:$0xff]
    %v1087 = vld [vmem:[#allocation9 + $0x170] sm:$0xff]
    %v1088 = vld [vmem:[#allocation9 + $0x178] sm:$0xff]
    %v1089 = vld [vmem:[#allocation9 + $0x180] sm:$0xff]
    %v1090 = vld [vmem:[#allocation9 + $0x188] sm:$0xff]
    %v1091 = vld [vmem:[#allocation9 + $0x190] sm:$0xff]
    %v1092 = vld [vmem:[#allocation9 + $0x198] sm:$0xff]
    %v1093 = vld [vmem:[#allocation9 + $0x1a0] sm:$0xff]
    %v1094 = vld [vmem:[#allocation9 + $0x1a8] sm:$0xff]
    %v1095 = vld [vmem:[#allocation9 + $0x1b0] sm:$0xff]
    %v1096 = vld [vmem:[#allocation9 + $0x1b8] sm:$0xff]
    %v1097 = vld [vmem:[#allocation9 + $0x1c0] sm:$0xff]
    %v1098 = vld [vmem:[#allocation9 + $0x1c8] sm:$0xff]
    %v1099 = vld [vmem:[#allocation9 + $0x1d0] sm:$0xff]
    %v1100 = vld [vmem:[#allocation9 + $0x1d8] sm:$0xff]
    %v1101 = vld [vmem:[#allocation9 + $0x1e0] sm:$0xff]
    %v1102 = vld [vmem:[#allocation9 + $0x1e8] sm:$0xff]
    %v1103 = vld [vmem:[#allocation9 + $0x1f0] sm:$0xff]
    %v1104 = vld [vmem:[#allocation9 + $0x1f8] sm:$0xff]
    %v1105 = vld [vmem:[#allocation9 + $0x200] sm:$0xff]
    %v1106 = vld [vmem:[#allocation9 + $0x208] sm:$0xff]
    %v1107 = vld [vmem:[#allocation9 + $0x210] sm:$0xff]
    %v1108 = vld [vmem:[#allocation9 + $0x218] sm:$0xff]
    %v1109 = vld [vmem:[#allocation9 + $0x220] sm:$0xff]
    %v1110 = vld [vmem:[#allocation9 + $0x228] sm:$0xff]
    %v1111 = vld [vmem:[#allocation9 + $0x230] sm:$0xff]
    %v1112 = vld [vmem:[#allocation9 + $0x238] sm:$0xff]
    %v1113 = vld [vmem:[#allocation9 + $0x240] sm:$0xff]
    %v1114 = vld [vmem:[#allocation9 + $0x248] sm:$0xff]
    %v1115 = vld [vmem:[#allocation9 + $0x250] sm:$0xff]
    %v1116 = vld [vmem:[#allocation9 + $0x258] sm:$0xff]
    %v1117 = vld [vmem:[#allocation9 + $0x260] sm:$0xff]
    %v1118 = vld [vmem:[#allocation9 + $0x268] sm:$0xff]
    %v1119 = vld [vmem:[#allocation9 + $0x270] sm:$0xff]
    %v1120 = vld [vmem:[#allocation9 + $0x278] sm:$0xff]
    %v1121 = vld [vmem:[#allocation9 + $0x280] sm:$0xff]
    %v1122 = vld [vmem:[#allocation9 + $0x288] sm:$0xff]
    %v1123 = vld [vmem:[#allocation9 + $0x290] sm:$0xff]
    %v1124 = vld [vmem:[#allocation9 + $0x298] sm:$0xff]
    %v1125 = vld [vmem:[#allocation9 + $0x2a0] sm:$0xff]
    %v1126 = vld [vmem:[#allocation9 + $0x2a8] sm:$0xff]
    %v1127 = vld [vmem:[#allocation9 + $0x2b0] sm:$0xff]
    %v1128 = vld [vmem:[#allocation9 + $0x2b8] sm:$0xff]
    %v1129 = vld [vmem:[#allocation9 + $0x2c0] sm:$0xff]
    %v1130 = vld [vmem:[#allocation9 + $0x2c8] sm:$0xff]
    %v1131 = vld [vmem:[#allocation9 + $0x2d0] sm:$0xff]
    %v1132 = vld [vmem:[#allocation9 + $0x2d8] sm:$0xff]
    %v1133 = vld [vmem:[#allocation9 + $0x2e0] sm:$0xff]
    %v1134 = vld [vmem:[#allocation9 + $0x2e8] sm:$0xff]
    %v1135 = vld [vmem:[#allocation9 + $0x2f0] sm:$0xff]
    %v1136 = vld [vmem:[#allocation9 + $0x2f8] sm:$0xff]
    %v1137 = vld [vmem:[#allocation9 + $0x300] sm:$0xff]
    %v1138 = vld [vmem:[#allocation9 + $0x308] sm:$0xff]
    %v1139 = vld [vmem:[#allocation9 + $0x310] sm:$0xff]
    %v1140 = vld [vmem:[#allocation9 + $0x318] sm:$0xff]
    %v1141 = vld [vmem:[#allocation9 + $0x320] sm:$0xff]
    %v1142 = vld [vmem:[#allocation9 + $0x328] sm:$0xff]
    %v1143 = vld [vmem:[#allocation9 + $0x330] sm:$0xff]
    %v1144 = vld [vmem:[#allocation9 + $0x338] sm:$0xff]
    %v1145 = vld [vmem:[#allocation9 + $0x340] sm:$0xff]
    %v1146 = vld [vmem:[#allocation9 + $0x348] sm:$0xff]
    %v1147 = vld [vmem:[#allocation9 + $0x350] sm:$0xff]
    %v1148 = vld [vmem:[#allocation9 + $0x358] sm:$0xff]
    %v1149 = vld [vmem:[#allocation9 + $0x360] sm:$0xff]
    %v1150 = vld [vmem:[#allocation9 + $0x368] sm:$0xff]
    %v1151 = vld [vmem:[#allocation9 + $0x370] sm:$0xff]
    %v1152 = vld [vmem:[#allocation9 + $0x378] sm:$0xff]
    %v1153 = vld [vmem:[#allocation9 + $0x380] sm:$0xff]
    %v1154 = vld [vmem:[#allocation9 + $0x388] sm:$0xff]
    %v1155 = vld [vmem:[#allocation9 + $0x390] sm:$0xff]
    %v1156 = vld [vmem:[#allocation9 + $0x398] sm:$0xff]
    %v1157 = vld [vmem:[#allocation9 + $0x3a0] sm:$0xff]
    %v1158 = vld [vmem:[#allocation9 + $0x3a8] sm:$0xff]
    %v1159 = vld [vmem:[#allocation9 + $0x3b0] sm:$0xff]
    %v1160 = vld [vmem:[#allocation9 + $0x3b8] sm:$0xff]
    %v1161 = vld [vmem:[#allocation9 + $0x3c0] sm:$0xff]
    %v1162 = vld [vmem:[#allocation9 + $0x3c8] sm:$0xff]
    %v1163 = vld [vmem:[#allocation9 + $0x3d0] sm:$0xff]
    %v1164 = vld [vmem:[#allocation9 + $0x3d8] sm:$0xff]
    %v1165 = vld [vmem:[#allocation9 + $0x3e0] sm:$0xff]
    %v1166 = vld [vmem:[#allocation9 + $0x3e8] sm:$0xff]
    %v1167 = vld [vmem:[#allocation9 + $0x3f0] sm:$0xff]
    %v1168 = vld [vmem:[#allocation9 + $0x3f8] sm:$0xff]
    %v1169 = vld [vmem:[#allocation9 + $0x400] sm:$0xff]
    %v1170 = vld [vmem:[#allocation9 + $0x408] sm:$0xff]
    %v1171 = vld [vmem:[#allocation9 + $0x410] sm:$0xff]
    %v1172 = vld [vmem:[#allocation9 + $0x418] sm:$0xff]
    %v1173 = vld [vmem:[#allocation9 + $0x420] sm:$0xff]
    %v1174 = vld [vmem:[#allocation9 + $0x428] sm:$0xff]
    %v1175 = vld [vmem:[#allocation9 + $0x430] sm:$0xff]
    %v1176 = vld [vmem:[#allocation9 + $0x438] sm:$0xff]
    %v1177 = vld [vmem:[#allocation9 + $0x440] sm:$0xff]
    %v1178 = vld [vmem:[#allocation9 + $0x448] sm:$0xff]
    %v1179 = vld [vmem:[#allocation9 + $0x450] sm:$0xff]
    %v1180 = vld [vmem:[#allocation9 + $0x458] sm:$0xff]
    %v1181 = vld [vmem:[#allocation9 + $0x460] sm:$0xff]
    %v1182 = vld [vmem:[#allocation9 + $0x468] sm:$0xff]
    %v1183 = vld [vmem:[#allocation9 + $0x470] sm:$0xff]
    %v1184 = vld [vmem:[#allocation9 + $0x478] sm:$0xff]
    %v1185 = vld [vmem:[#allocation9 + $0x480] sm:$0xff]
    %v1186 = vld [vmem:[#allocation9 + $0x488] sm:$0xff]
    %v1187 = vld [vmem:[#allocation9 + $0x490] sm:$0xff]
    %v1188 = vld [vmem:[#allocation9 + $0x498] sm:$0xff]
    %v1189 = vld [vmem:[#allocation9 + $0x4a0] sm:$0xff]
    %v1190 = vld [vmem:[#allocation9 + $0x4a8] sm:$0xff]
    %v1191 = vld [vmem:[#allocation9 + $0x4b0] sm:$0xff]
    %v1192 = vld [vmem:[#allocation9 + $0x4b8] sm:$0xff]
    %v1193 = vld [vmem:[#allocation9 + $0x4c0] sm:$0xff]
    %v1194 = vld [vmem:[#allocation9 + $0x4c8] sm:$0xff]
    %v1195 = vld [vmem:[#allocation9 + $0x4d0] sm:$0xff]
    %v1196 = vld [vmem:[#allocation9 + $0x4d8] sm:$0xff]
    %v1197 = vld [vmem:[#allocation9 + $0x4e0] sm:$0xff]
    %v1198 = vld [vmem:[#allocation9 + $0x4e8] sm:$0xff]
    %v1199 = vld [vmem:[#allocation9 + $0x4f0] sm:$0xff]
    %v1200 = vld [vmem:[#allocation9 + $0x4f8] sm:$0xff]
    %v1201 = vld [vmem:[#allocation9 + $0x500] sm:$0xff]
    %v1202 = vld [vmem:[#allocation9 + $0x508] sm:$0xff]
    %v1203 = vld [vmem:[#allocation9 + $0x510] sm:$0xff]
    %v1204 = vld [vmem:[#allocation9 + $0x518] sm:$0xff]
    %v1205 = vld [vmem:[#allocation9 + $0x520] sm:$0xff]
    %v1206 = vld [vmem:[#allocation9 + $0x528] sm:$0xff]
    %v1207 = vld [vmem:[#allocation9 + $0x530] sm:$0xff]
    %v1208 = vld [vmem:[#allocation9 + $0x538] sm:$0xff]
    %v1209 = vld [vmem:[#allocation9 + $0x540] sm:$0xff]
    %v1210 = vld [vmem:[#allocation9 + $0x548] sm:$0xff]
    %v1211 = vld [vmem:[#allocation9 + $0x550] sm:$0xff]
    %v1212 = vld [vmem:[#allocation9 + $0x558] sm:$0xff]
    %v1213 = vld [vmem:[#allocation9 + $0x560] sm:$0xff]
    %v1214 = vld [vmem:[#allocation9 + $0x568] sm:$0xff]
    %v1215 = vld [vmem:[#allocation9 + $0x570] sm:$0xff]
    %v1216 = vld [vmem:[#allocation9 + $0x578] sm:$0xff]
    %v1217 = vld [vmem:[#allocation9 + $0x580] sm:$0xff]
    %v1218 = vld [vmem:[#allocation9 + $0x588] sm:$0xff]
    %v1219 = vld [vmem:[#allocation9 + $0x590] sm:$0xff]
    %v1220 = vld [vmem:[#allocation9 + $0x598] sm:$0xff]
    %v1221 = vld [vmem:[#allocation9 + $0x5a0] sm:$0xff]
    %v1222 = vld [vmem:[#allocation9 + $0x5a8] sm:$0xff]
    %v1223 = vld [vmem:[#allocation9 + $0x5b0] sm:$0xff]
    %v1224 = vld [vmem:[#allocation9 + $0x5b8] sm:$0xff]
    %v1225 = vld [vmem:[#allocation9 + $0x5c0] sm:$0xff]
    %v1226 = vld [vmem:[#allocation9 + $0x5c8] sm:$0xff]
    %v1227 = vld [vmem:[#allocation9 + $0x5d0] sm:$0xff]
    %v1228 = vld [vmem:[#allocation9 + $0x5d8] sm:$0xff]
    %v1229 = vld [vmem:[#allocation9 + $0x5e0] sm:$0xff]
    %v1230 = vld [vmem:[#allocation9 + $0x5e8] sm:$0xff]
    %v1231 = vld [vmem:[#allocation9 + $0x5f0] sm:$0xff]
    %v1232 = vld [vmem:[#allocation9 + $0x5f8] sm:$0xff]
    %1233 = vmatprep.subr.mxu0 %v1042
    %1234 = vmatpush1.msra.mxu0 %v1041
    %1235 = vmatprep.subr.mxu0 %v1048
    %1236 = vmatpush1.msra.mxu0 %v1047
    %1237 = vmatprep.subr.mxu0 %v1054
    %1238 = vmatpush1.msra.mxu0 %v1053
    %1239 = vmatprep.subr.mxu0 %v1060
    %1240 = vmatpush1.msra.mxu0 %v1059
    %1241 = vmatprep.subr.mxu0 %v1066
    %1242 = vmatpush1.msra.mxu0 %v1065
    %1243 = vmatprep.subr.mxu0 %v1072
    %1244 = vmatpush1.msra.mxu0 %v1071
    %1245 = vmatprep.subr.mxu0 %v1078
    %1246 = vmatpush1.msra.mxu0 %v1077
    %1247 = vmatprep.subr.mxu0 %v1084
    %1248 = vmatpush1.msra.mxu0 %v1083
    %1249 = vmatprep.subr.mxu0 %v1090
    %1250 = vmatpush1.msra.mxu0 %v1089
    %1251 = vmatprep.subr.mxu0 %v1096
    %1252 = vmatpush1.msra.mxu0 %v1095
    %1253 = vmatprep.subr.mxu0 %v1102
    %1254 = vmatpush1.msra.mxu0 %v1101
    %1255 = vmatprep.subr.mxu0 %v1108
    %1256 = vmatpush1.msra.mxu0 %v1107
    %1257 = vmatprep.subr.mxu0 %v1114
    %1258 = vmatpush1.msra.mxu0 %v1113
    %1259 = vmatprep.subr.mxu0 %v1120
    %1260 = vmatpush1.msra.mxu0 %v1119
    %1261 = vmatprep.subr.mxu0 %v1126
    %1262 = vmatpush1.msra.mxu0 %v1125
    %1263 = vmatprep.subr.mxu0 %v1132
    %1264 = vmatpush1.msra.mxu0 %v1131
    %1265 = vmatprep.subr.mxu0 %v1138
    %1266 = vmatpush1.msra.mxu0 %v1137
    %1267 = vmatprep.subr.mxu0 %v1144
    %1268 = vmatpush1.msra.mxu0 %v1143
    %1269 = vmatprep.subr.mxu0 %v1150
    %1270 = vmatpush1.msra.mxu0 %v1149
    %1271 = vmatprep.subr.mxu0 %v1156
    %1272 = vmatpush1.msra.mxu0 %v1155
    %1273 = vmatprep.subr.mxu0 %v1162
    %1274 = vmatpush1.msra.mxu0 %v1161
    %1275 = vmatprep.subr.mxu0 %v1168
    %1276 = vmatpush1.msra.mxu0 %v1167
    %1277 = vmatprep.subr.mxu0 %v1174
    %1278 = vmatpush1.msra.mxu0 %v1173
    %1279 = vmatprep.subr.mxu0 %v1180
    %1280 = vmatpush1.msra.mxu0 %v1179
    %1281 = vmatprep.subr.mxu0 %v1186
    %1282 = vmatpush1.msra.mxu0 %v1185
    %1283 = vmatprep.subr.mxu0 %v1192
    %1284 = vmatpush1.msra.mxu0 %v1191
    %1285 = vmatprep.subr.mxu0 %v1198
    %1286 = vmatpush1.msra.mxu0 %v1197
    %1287 = vmatprep.subr.mxu0 %v1204
    %1288 = vmatpush1.msra.mxu0 %v1203
    %1289 = vmatprep.subr.mxu0 %v1210
    %1290 = vmatpush1.msra.mxu0 %v1209
    %1291 = vmatprep.subr.mxu0 %v1216
    %1292 = vmatpush1.msra.mxu0 %v1215
    %1293 = vmatprep.subr.mxu0 %v1222
    %1294 = vmatpush1.msra.mxu0 %v1221
    %1295 = vmatprep.subr.mxu0 %v1228
    %1296 = vmatpush1.msra.mxu0 %v1227
    %1297 = vmatprep.mubr.f32.mxu0 0.0
    %1298 = vmatmul.mubr.f32.gmra.mrb[0].mxu0 0.0
    %v1299 = vpop.f32.mrb[0].mxu0
    %v1300 = vadd.f32 0.0, %v1299
    %v1301 = vpop.f32.mrb[0].mxu0
    %v1302 = vadd.f32 0.0, %v1301
    %1303 = vdwg.mxu0
    %1304 = vmatprep.subr.mxu0 %v1044
    %1305 = vmatpush1.msra.mxu0 %v1043
    %1306 = vmatprep.subr.mxu0 %v1050
    %1307 = vmatpush1.msra.mxu0 %v1049
    %1308 = vmatprep.subr.mxu0 %v1056
    %1309 = vmatpush1.msra.mxu0 %v1055
    %1310 = vmatprep.subr.mxu0 %v1062
    %1311 = vmatpush1.msra.mxu0 %v1061
    %1312 = vmatprep.subr.mxu0 %v1068
    %1313 = vmatpush1.msra.mxu0 %v1067
    %1314 = vmatprep.subr.mxu0 %v1074
    %1315 = vmatpush1.msra.mxu0 %v1073
    %1316 = vmatprep.subr.mxu0 %v1080
    %1317 = vmatpush1.msra.mxu0 %v1079
    %1318 = vmatprep.subr.mxu0 %v1086
    %1319 = vmatpush1.msra.mxu0 %v1085
    %1320 = vmatprep.subr.mxu0 %v1092
    %1321 = vmatpush1.msra.mxu0 %v1091
    %1322 = vmatprep.subr.mxu0 %v1098
    %1323 = vmatpush1.msra.mxu0 %v1097
    %1324 = vmatprep.subr.mxu0 %v1104
    %1325 = vmatpush1.msra.mxu0 %v1103
    %1326 = vmatprep.subr.mxu0 %v1110
    %1327 = vmatpush1.msra.mxu0 %v1109
    %1328 = vmatprep.subr.mxu0 %v1116
    %1329 = vmatpush1.msra.mxu0 %v1115
    %1330 = vmatprep.subr.mxu0 %v1122
    %1331 = vmatpush1.msra.mxu0 %v1121
    %1332 = vmatprep.subr.mxu0 %v1128
    %1333 = vmatpush1.msra.mxu0 %v1127
    %1334 = vmatprep.subr.mxu0 %v1134
    %1335 = vmatpush1.msra.mxu0 %v1133
    %1336 = vmatprep.subr.mxu0 %v1140
    %1337 = vmatpush1.msra.mxu0 %v1139
    %1338 = vmatprep.subr.mxu0 %v1146
    %1339 = vmatpush1.msra.mxu0 %v1145
    %1340 = vmatprep.subr.mxu0 %v1152
    %1341 = vmatpush1.msra.mxu0 %v1151
    %1342 = vmatprep.subr.mxu0 %v1158
    %1343 = vmatpush1.msra.mxu0 %v1157
    %1344 = vmatprep.subr.mxu0 %v1164
    %1345 = vmatpush1.msra.mxu0 %v1163
    %1346 = vmatprep.subr.mxu0 %v1170
    %1347 = vmatpush1.msra.mxu0 %v1169
    %1348 = vmatprep.subr.mxu0 %v1176
    %1349 = vmatpush1.msra.mxu0 %v1175
    %1350 = vmatprep.subr.mxu0 %v1182
    %1351 = vmatpush1.msra.mxu0 %v1181
    %1352 = vmatprep.subr.mxu0 %v1188
    %1353 = vmatpush1.msra.mxu0 %v1187
    %1354 = vmatprep.subr.mxu0 %v1194
    %1355 = vmatpush1.msra.mxu0 %v1193
    %1356 = vmatprep.subr.mxu0 %v1200
    %1357 = vmatpush1.msra.mxu0 %v1199
    %1358 = vmatprep.subr.mxu0 %v1206
    %1359 = vmatpush1.msra.mxu0 %v1205
    %1360 = vmatprep.subr.mxu0 %v1212
    %1361 = vmatpush1.msra.mxu0 %v1211
    %1362 = vmatprep.subr.mxu0 %v1218
    %1363 = vmatpush1.msra.mxu0 %v1217
    %1364 = vmatprep.subr.mxu0 %v1224
    %1365 = vmatpush1.msra.mxu0 %v1223
    %1366 = vmatprep.subr.mxu0 %v1230
    %1367 = vmatpush1.msra.mxu0 %v1229
    %1368 = vmatprep.mubr.f32.mxu0 0.0
    %1369 = vmatmul.mubr.f32.gmra.mrb[0].mxu0 0.0
    %v1370 = vpop.f32.mrb[0].mxu0
    %v1371 = vadd.f32 0.0, %v1370
    %v1372 = vpop.f32.mrb[0].mxu0
    %v1373 = vadd.f32 0.0, %v1372
    %1374 = vdwg.mxu0
    %1375 = vmatprep.subr.mxu0 %v1046
    %1376 = vmatpush1.msra.mxu0 %v1045
    %1377 = vmatprep.subr.mxu0 %v1052
    %1378 = vmatpush1.msra.mxu0 %v1051
    %1379 = vmatprep.subr.mxu0 %v1058
    %1380 = vmatpush1.msra.mxu0 %v1057
    %1381 = vmatprep.subr.mxu0 %v1064
    %1382 = vmatpush1.msra.mxu0 %v1063
    %1383 = vmatprep.subr.mxu0 %v1070
    %1384 = vmatpush1.msra.mxu0 %v1069
    %1385 = vmatprep.subr.mxu0 %v1076
    %1386 = vmatpush1.msra.mxu0 %v1075
    %1387 = vmatprep.subr.mxu0 %v1082
    %1388 = vmatpush1.msra.mxu0 %v1081
    %1389 = vmatprep.subr.mxu0 %v1088
    %1390 = vmatpush1.msra.mxu0 %v1087
    %1391 = vmatprep.subr.mxu0 %v1094
    %1392 = vmatpush1.msra.mxu0 %v1093
    %1393 = vmatprep.subr.mxu0 %v1100
    %1394 = vmatpush1.msra.mxu0 %v1099
    %1395 = vmatprep.subr.mxu0 %v1106
    %1396 = vmatpush1.msra.mxu0 %v1105
    %1397 = vmatprep.subr.mxu0 %v1112
    %1398 = vmatpush1.msra.mxu0 %v1111
    %1399 = vmatprep.subr.mxu0 %v1118
    %1400 = vmatpush1.msra.mxu0 %v1117
    %1401 = vmatprep.subr.mxu0 %v1124
    %1402 = vmatpush1.msra.mxu0 %v1123
    %1403 = vmatprep.subr.mxu0 %v1130
    %1404 = vmatpush1.msra.mxu0 %v1129
    %1405 = vmatprep.subr.mxu0 %v1136
    %1406 = vmatpush1.msra.mxu0 %v1135
    %1407 = vmatprep.subr.mxu0 %v1142
    %1408 = vmatpush1.msra.mxu0 %v1141
    %1409 = vmatprep.subr.mxu0 %v1148
    %1410 = vmatpush1.msra.mxu0 %v1147
    %1411 = vmatprep.subr.mxu0 %v1154
    %1412 = vmatpush1.msra.mxu0 %v1153
    %1413 = vmatprep.subr.mxu0 %v1160
    %1414 = vmatpush1.msra.mxu0 %v1159
    %1415 = vmatprep.subr.mxu0 %v1166
    %1416 = vmatpush1.msra.mxu0 %v1165
    %1417 = vmatprep.subr.mxu0 %v1172
    %1418 = vmatpush1.msra.mxu0 %v1171
    %1419 = vmatprep.subr.mxu0 %v1178
    %1420 = vmatpush1.msra.mxu0 %v1177
    %1421 = vmatprep.subr.mxu0 %v1184
    %1422 = vmatpush1.msra.mxu0 %v1183
    %1423 = vmatprep.subr.mxu0 %v1190
    %1424 = vmatpush1.msra.mxu0 %v1189
    %1425 = vmatprep.subr.mxu0 %v1196
    %1426 = vmatpush1.msra.mxu0 %v1195
    %1427 = vmatprep.subr.mxu0 %v1202
    %1428 = vmatpush1.msra.mxu0 %v1201
    %1429 = vmatprep.subr.mxu0 %v1208
    %1430 = vmatpush1.msra.mxu0 %v1207
    %1431 = vmatprep.subr.mxu0 %v1214
    %1432 = vmatpush1.msra.mxu0 %v1213
    %1433 = vmatprep.subr.mxu0 %v1220
    %1434 = vmatpush1.msra.mxu0 %v1219
    %1435 = vmatprep.subr.mxu0 %v1226
    %1436 = vmatpush1.msra.mxu0 %v1225
    %1437 = vmatprep.subr.mxu0 %v1232
    %1438 = vmatpush1.msra.mxu0 %v1231
    %1439 = vmatprep.mubr.f32.mxu0 0.0
    %1440 = vmatmul.mubr.f32.gmra.mrb[0].mxu0 0.0
    %v1441 = vpop.f32.mrb[0].mxu0
    %v1442 = vadd.f32 0.0, %v1441
    %v1443 = vpop.f32.mrb[0].mxu0
    %v1444 = vadd.f32 0.0, %v1443
    %1445 = vdwg.mxu0
    %v1448 = vcombine.low %v1300, %v1302
    %v1450 = vunpack.c.l.s4 1966171168
    %v1451 = vunpack.c.0.s8 %v1450
    %v1452 = vlaneseq
    %v1453 = vshrl.u32 %v1452, 7
    %v1454 = vsub.s32 %v1451, %v1453
    %v1455 = vrot.slane %v1448, %v1454
    %v1457 = vunpack.c.l.s4 1966171168
    %v1458 = vunpack.c.0.s8 %v1457
    %v1459 = vlaneseq
    %v1460 = vshrl.u32 %v1459, 7
    %v1461 = vsub.s32 %v1458, %v1460
    %v1462 = vrot.slane %v1455, %v1461
    %v1464 = vadd.f32 %v1040, %v1462
    %v1465 = vxor.u32 %v1464, 2147483648
    %v1466 = vmul.f32 %v1465, 1.442695
    %v1467 = vpow.pop %v1466
    %v1468 = vadd.f32 %v1467, 1.0
    %v1469 = vrcp.pop %v1468
    %v1470 = vmul.f32 1.0, %v1469
    %v1472 = vrot.slane %v1040, 2
    %v1476 = vcombine.low %v1371, %v1373
    %v1478 = vunpack.c.l.s4 1966171168
    %v1479 = vunpack.c.0.s8 %v1478
    %v1480 = vlaneseq
    %v1481 = vshrl.u32 %v1480, 7
    %v1482 = vsub.s32 %v1479, %v1481
    %v1483 = vrot.slane %v1476, %v1482
    %v1485 = vunpack.c.l.s4 1966171168
    %v1486 = vunpack.c.0.s8 %v1485
    %v1487 = vlaneseq
    %v1488 = vshrl.u32 %v1487, 7
    %v1489 = vsub.s32 %v1486, %v1488
    %v1490 = vrot.slane %v1483, %v1489
    %v1492 = vadd.f32 %v1472, %v1490
    %v1493 = vxor.u32 %v1492, 2147483648
    %v1494 = vmul.f32 %v1493, 1.442695
    %v1495 = vpow.pop %v1494
    %v1496 = vadd.f32 %v1495, 1.0
    %v1497 = vrcp.pop %v1496
    %v1498 = vmul.f32 1.0, %v1497
    %v1499 = vld [vmem:[%s5] sm:$0x3]
    %v1501 = vlaneseq
    %v1502 = vshrl.u32 %v1501, 7
    %v1503 = vsub.s32 0, %v1502
    %v1504 = vrot.slane %v1499, %v1503
    %v1505 = vlaneseq
    %v1506 = vshrl.u32 %v1505, 7
    %v1507 = vsub.s32 1, %v1506
    %v1508 = vrot.slane %v1499, %v1507
    %v1511 = vadd.f32 %v1442, %v1504
    %v1512 = vadd.f32 %v1444, %v1508
    %v1515 = vcombine.low %v1511, %v1512
    %v1517 = vunpack.c.l.s4 1966171168
    %v1518 = vunpack.c.0.s8 %v1517
    %v1519 = vlaneseq
    %v1520 = vshrl.u32 %v1519, 7
    %v1521 = vsub.s32 %v1518, %v1520
    %v1522 = vrot.slane %v1515, %v1521
    %v1524 = vunpack.c.l.s4 1966171168
    %v1525 = vunpack.c.0.s8 %v1524
    %v1526 = vlaneseq
    %v1527 = vshrl.u32 %v1526, 7
    %v1528 = vsub.s32 %v1525, %v1527
    %v1529 = vrot.slane %v1522, %v1528
    %v1531 = vmul.f32 %v1470, %v1529
    %v1532 = vrot.slane %v1040, 4
    %v1534 = vadd.f32 %v1532, %v1531
    %v1535 = vtanh.pop %v1534
    %v1536 = vsub.f32 1.0, %v1498
    %v1537 = vmul.f32 %v1536, %v1535
    %v1538 = vmul.f32 %v1498, 0.0
    %v1539 = vadd.f32 %v1537, %v1538
    %s1540 = scalar_lea.vmem [#allocation3], 3
    %v1541 = vld [vmem:[%s1540] ss:$4 sm:$0x3f]
    %v1542 = vld [vmem:[#allocation13] sm:$0xff]
    %v1543 = vld [vmem:[#allocation13 + $0x8] sm:$0xff]
    %v1544 = vld [vmem:[#allocation13 + $0x10] sm:$0xff]
    %v1545 = vld [vmem:[#allocation13 + $0x18] sm:$0xff]
    %v1546 = vld [vmem:[#allocation13 + $0x20] sm:$0xff]
    %v1547 = vld [vmem:[#allocation13 + $0x28] sm:$0xff]
    %v1548 = vld [vmem:[#allocation13 + $0x30] sm:$0xff]
    %v1549 = vld [vmem:[#allocation13 + $0x38] sm:$0xff]
    %v1550 = vld [vmem:[#allocation13 + $0x40] sm:$0xff]
    %v1551 = vld [vmem:[#allocation13 + $0x48] sm:$0xff]
    %v1552 = vld [vmem:[#allocation13 + $0x50] sm:$0xff]
    %v1553 = vld [vmem:[#allocation13 + $0x58] sm:$0xff]
    %v1554 = vld [vmem:[#allocation13 + $0x60] sm:$0xff]
    %v1555 = vld [vmem:[#allocation13 + $0x68] sm:$0xff]
    %v1556 = vld [vmem:[#allocation13 + $0x70] sm:$0xff]
    %v1557 = vld [vmem:[#allocation13 + $0x78] sm:$0xff]
    %v1558 = vld [vmem:[#allocation13 + $0x80] sm:$0xff]
    %v1559 = vld [vmem:[#allocation13 + $0x88] sm:$0xff]
    %v1560 = vld [vmem:[#allocation13 + $0x90] sm:$0xff]
    %v1561 = vld [vmem:[#allocation13 + $0x98] sm:$0xff]
    %v1562 = vld [vmem:[#allocation13 + $0xa0] sm:$0xff]
    %v1563 = vld [vmem:[#allocation13 + $0xa8] sm:$0xff]
    %v1564 = vld [vmem:[#allocation13 + $0xb0] sm:$0xff]
    %v1565 = vld [vmem:[#allocation13 + $0xb8] sm:$0xff]
    %v1566 = vld [vmem:[#allocation13 + $0xc0] sm:$0xff]
    %v1567 = vld [vmem:[#allocation13 + $0xc8] sm:$0xff]
    %v1568 = vld [vmem:[#allocation13 + $0xd0] sm:$0xff]
    %v1569 = vld [vmem:[#allocation13 + $0xd8] sm:$0xff]
    %v1570 = vld [vmem:[#allocation13 + $0xe0] sm:$0xff]
    %v1571 = vld [vmem:[#allocation13 + $0xe8] sm:$0xff]
    %v1572 = vld [vmem:[#allocation13 + $0xf0] sm:$0xff]
    %v1573 = vld [vmem:[#allocation13 + $0xf8] sm:$0xff]
    %v1574 = vld [vmem:[#allocation13 + $0x100] sm:$0xff]
    %v1575 = vld [vmem:[#allocation13 + $0x108] sm:$0xff]
    %v1576 = vld [vmem:[#allocation13 + $0x110] sm:$0xff]
    %v1577 = vld [vmem:[#allocation13 + $0x118] sm:$0xff]
    %v1578 = vld [vmem:[#allocation13 + $0x120] sm:$0xff]
    %v1579 = vld [vmem:[#allocation13 + $0x128] sm:$0xff]
    %v1580 = vld [vmem:[#allocation13 + $0x130] sm:$0xff]
    %v1581 = vld [vmem:[#allocation13 + $0x138] sm:$0xff]
    %v1582 = vld [vmem:[#allocation13 + $0x140] sm:$0xff]
    %v1583 = vld [vmem:[#allocation13 + $0x148] sm:$0xff]
    %v1584 = vld [vmem:[#allocation13 + $0x150] sm:$0xff]
    %v1585 = vld [vmem:[#allocation13 + $0x158] sm:$0xff]
    %v1586 = vld [vmem:[#allocation13 + $0x160] sm:$0xff]
    %v1587 = vld [vmem:[#allocation13 + $0x168] sm:$0xff]
    %v1588 = vld [vmem:[#allocation13 + $0x170] sm:$0xff]
    %v1589 = vld [vmem:[#allocation13 + $0x178] sm:$0xff]
    %v1590 = vld [vmem:[#allocation13 + $0x180] sm:$0xff]
    %v1591 = vld [vmem:[#allocation13 + $0x188] sm:$0xff]
    %v1592 = vld [vmem:[#allocation13 + $0x190] sm:$0xff]
    %v1593 = vld [vmem:[#allocation13 + $0x198] sm:$0xff]
    %v1594 = vld [vmem:[#allocation13 + $0x1a0] sm:$0xff]
    %v1595 = vld [vmem:[#allocation13 + $0x1a8] sm:$0xff]
    %v1596 = vld [vmem:[#allocation13 + $0x1b0] sm:$0xff]
    %v1597 = vld [vmem:[#allocation13 + $0x1b8] sm:$0xff]
    %v1598 = vld [vmem:[#allocation13 + $0x1c0] sm:$0xff]
    %v1599 = vld [vmem:[#allocation13 + $0x1c8] sm:$0xff]
    %v1600 = vld [vmem:[#allocation13 + $0x1d0] sm:$0xff]
    %v1601 = vld [vmem:[#allocation13 + $0x1d8] sm:$0xff]
    %v1602 = vld [vmem:[#allocation13 + $0x1e0] sm:$0xff]
    %v1603 = vld [vmem:[#allocation13 + $0x1e8] sm:$0xff]
    %v1604 = vld [vmem:[#allocation13 + $0x1f0] sm:$0xff]
    %v1605 = vld [vmem:[#allocation13 + $0x1f8] sm:$0xff]
    %v1606 = vld [vmem:[#allocation13 + $0x200] sm:$0xff]
    %v1607 = vld [vmem:[#allocation13 + $0x208] sm:$0xff]
    %v1608 = vld [vmem:[#allocation13 + $0x210] sm:$0xff]
    %v1609 = vld [vmem:[#allocation13 + $0x218] sm:$0xff]
    %v1610 = vld [vmem:[#allocation13 + $0x220] sm:$0xff]
    %v1611 = vld [vmem:[#allocation13 + $0x228] sm:$0xff]
    %v1612 = vld [vmem:[#allocation13 + $0x230] sm:$0xff]
    %v1613 = vld [vmem:[#allocation13 + $0x238] sm:$0xff]
    %v1614 = vld [vmem:[#allocation13 + $0x240] sm:$0xff]
    %v1615 = vld [vmem:[#allocation13 + $0x248] sm:$0xff]
    %v1616 = vld [vmem:[#allocation13 + $0x250] sm:$0xff]
    %v1617 = vld [vmem:[#allocation13 + $0x258] sm:$0xff]
    %v1618 = vld [vmem:[#allocation13 + $0x260] sm:$0xff]
    %v1619 = vld [vmem:[#allocation13 + $0x268] sm:$0xff]
    %v1620 = vld [vmem:[#allocation13 + $0x270] sm:$0xff]
    %v1621 = vld [vmem:[#allocation13 + $0x278] sm:$0xff]
    %v1622 = vld [vmem:[#allocation13 + $0x280] sm:$0xff]
    %v1623 = vld [vmem:[#allocation13 + $0x288] sm:$0xff]
    %v1624 = vld [vmem:[#allocation13 + $0x290] sm:$0xff]
    %v1625 = vld [vmem:[#allocation13 + $0x298] sm:$0xff]
    %v1626 = vld [vmem:[#allocation13 + $0x2a0] sm:$0xff]
    %v1627 = vld [vmem:[#allocation13 + $0x2a8] sm:$0xff]
    %v1628 = vld [vmem:[#allocation13 + $0x2b0] sm:$0xff]
    %v1629 = vld [vmem:[#allocation13 + $0x2b8] sm:$0xff]
    %v1630 = vld [vmem:[#allocation13 + $0x2c0] sm:$0xff]
    %v1631 = vld [vmem:[#allocation13 + $0x2c8] sm:$0xff]
    %v1632 = vld [vmem:[#allocation13 + $0x2d0] sm:$0xff]
    %v1633 = vld [vmem:[#allocation13 + $0x2d8] sm:$0xff]
    %v1634 = vld [vmem:[#allocation13 + $0x2e0] sm:$0xff]
    %v1635 = vld [vmem:[#allocation13 + $0x2e8] sm:$0xff]
    %v1636 = vld [vmem:[#allocation13 + $0x2f0] sm:$0xff]
    %v1637 = vld [vmem:[#allocation13 + $0x2f8] sm:$0xff]
    %v1638 = vld [vmem:[#allocation13 + $0x300] sm:$0xff]
    %v1639 = vld [vmem:[#allocation13 + $0x308] sm:$0xff]
    %v1640 = vld [vmem:[#allocation13 + $0x310] sm:$0xff]
    %v1641 = vld [vmem:[#allocation13 + $0x318] sm:$0xff]
    %v1642 = vld [vmem:[#allocation13 + $0x320] sm:$0xff]
    %v1643 = vld [vmem:[#allocation13 + $0x328] sm:$0xff]
    %v1644 = vld [vmem:[#allocation13 + $0x330] sm:$0xff]
    %v1645 = vld [vmem:[#allocation13 + $0x338] sm:$0xff]
    %v1646 = vld [vmem:[#allocation13 + $0x340] sm:$0xff]
    %v1647 = vld [vmem:[#allocation13 + $0x348] sm:$0xff]
    %v1648 = vld [vmem:[#allocation13 + $0x350] sm:$0xff]
    %v1649 = vld [vmem:[#allocation13 + $0x358] sm:$0xff]
    %v1650 = vld [vmem:[#allocation13 + $0x360] sm:$0xff]
    %v1651 = vld [vmem:[#allocation13 + $0x368] sm:$0xff]
    %v1652 = vld [vmem:[#allocation13 + $0x370] sm:$0xff]
    %v1653 = vld [vmem:[#allocation13 + $0x378] sm:$0xff]
    %v1654 = vld [vmem:[#allocation13 + $0x380] sm:$0xff]
    %v1655 = vld [vmem:[#allocation13 + $0x388] sm:$0xff]
    %v1656 = vld [vmem:[#allocation13 + $0x390] sm:$0xff]
    %v1657 = vld [vmem:[#allocation13 + $0x398] sm:$0xff]
    %v1658 = vld [vmem:[#allocation13 + $0x3a0] sm:$0xff]
    %v1659 = vld [vmem:[#allocation13 + $0x3a8] sm:$0xff]
    %v1660 = vld [vmem:[#allocation13 + $0x3b0] sm:$0xff]
    %v1661 = vld [vmem:[#allocation13 + $0x3b8] sm:$0xff]
    %v1662 = vld [vmem:[#allocation13 + $0x3c0] sm:$0xff]
    %v1663 = vld [vmem:[#allocation13 + $0x3c8] sm:$0xff]
    %v1664 = vld [vmem:[#allocation13 + $0x3d0] sm:$0xff]
    %v1665 = vld [vmem:[#allocation13 + $0x3d8] sm:$0xff]
    %v1666 = vld [vmem:[#allocation13 + $0x3e0] sm:$0xff]
    %v1667 = vld [vmem:[#allocation13 + $0x3e8] sm:$0xff]
    %v1668 = vld [vmem:[#allocation13 + $0x3f0] sm:$0xff]
    %v1669 = vld [vmem:[#allocation13 + $0x3f8] sm:$0xff]
    %v1670 = vld [vmem:[#allocation13 + $0x400] sm:$0xff]
    %v1671 = vld [vmem:[#allocation13 + $0x408] sm:$0xff]
    %v1672 = vld [vmem:[#allocation13 + $0x410] sm:$0xff]
    %v1673 = vld [vmem:[#allocation13 + $0x418] sm:$0xff]
    %v1674 = vld [vmem:[#allocation13 + $0x420] sm:$0xff]
    %v1675 = vld [vmem:[#allocation13 + $0x428] sm:$0xff]
    %v1676 = vld [vmem:[#allocation13 + $0x430] sm:$0xff]
    %v1677 = vld [vmem:[#allocation13 + $0x438] sm:$0xff]
    %v1678 = vld [vmem:[#allocation13 + $0x440] sm:$0xff]
    %v1679 = vld [vmem:[#allocation13 + $0x448] sm:$0xff]
    %v1680 = vld [vmem:[#allocation13 + $0x450] sm:$0xff]
    %v1681 = vld [vmem:[#allocation13 + $0x458] sm:$0xff]
    %v1682 = vld [vmem:[#allocation13 + $0x460] sm:$0xff]
    %v1683 = vld [vmem:[#allocation13 + $0x468] sm:$0xff]
    %v1684 = vld [vmem:[#allocation13 + $0x470] sm:$0xff]
    %v1685 = vld [vmem:[#allocation13 + $0x478] sm:$0xff]
    %v1686 = vld [vmem:[#allocation13 + $0x480] sm:$0xff]
    %v1687 = vld [vmem:[#allocation13 + $0x488] sm:$0xff]
    %v1688 = vld [vmem:[#allocation13 + $0x490] sm:$0xff]
    %v1689 = vld [vmem:[#allocation13 + $0x498] sm:$0xff]
    %v1690 = vld [vmem:[#allocation13 + $0x4a0] sm:$0xff]
    %v1691 = vld [vmem:[#allocation13 + $0x4a8] sm:$0xff]
    %v1692 = vld [vmem:[#allocation13 + $0x4b0] sm:$0xff]
    %v1693 = vld [vmem:[#allocation13 + $0x4b8] sm:$0xff]
    %v1694 = vld [vmem:[#allocation13 + $0x4c0] sm:$0xff]
    %v1695 = vld [vmem:[#allocation13 + $0x4c8] sm:$0xff]
    %v1696 = vld [vmem:[#allocation13 + $0x4d0] sm:$0xff]
    %v1697 = vld [vmem:[#allocation13 + $0x4d8] sm:$0xff]
    %v1698 = vld [vmem:[#allocation13 + $0x4e0] sm:$0xff]
    %v1699 = vld [vmem:[#allocation13 + $0x4e8] sm:$0xff]
    %v1700 = vld [vmem:[#allocation13 + $0x4f0] sm:$0xff]
    %v1701 = vld [vmem:[#allocation13 + $0x4f8] sm:$0xff]
    %v1702 = vld [vmem:[#allocation13 + $0x500] sm:$0xff]
    %v1703 = vld [vmem:[#allocation13 + $0x508] sm:$0xff]
    %v1704 = vld [vmem:[#allocation13 + $0x510] sm:$0xff]
    %v1705 = vld [vmem:[#allocation13 + $0x518] sm:$0xff]
    %v1706 = vld [vmem:[#allocation13 + $0x520] sm:$0xff]
    %v1707 = vld [vmem:[#allocation13 + $0x528] sm:$0xff]
    %v1708 = vld [vmem:[#allocation13 + $0x530] sm:$0xff]
    %v1709 = vld [vmem:[#allocation13 + $0x538] sm:$0xff]
    %v1710 = vld [vmem:[#allocation13 + $0x540] sm:$0xff]
    %v1711 = vld [vmem:[#allocation13 + $0x548] sm:$0xff]
    %v1712 = vld [vmem:[#allocation13 + $0x550] sm:$0xff]
    %v1713 = vld [vmem:[#allocation13 + $0x558] sm:$0xff]
    %v1714 = vld [vmem:[#allocation13 + $0x560] sm:$0xff]
    %v1715 = vld [vmem:[#allocation13 + $0x568] sm:$0xff]
    %v1716 = vld [vmem:[#allocation13 + $0x570] sm:$0xff]
    %v1717 = vld [vmem:[#allocation13 + $0x578] sm:$0xff]
    %v1718 = vld [vmem:[#allocation13 + $0x580] sm:$0xff]
    %v1719 = vld [vmem:[#allocation13 + $0x588] sm:$0xff]
    %v1720 = vld [vmem:[#allocation13 + $0x590] sm:$0xff]
    %v1721 = vld [vmem:[#allocation13 + $0x598] sm:$0xff]
    %v1722 = vld [vmem:[#allocation13 + $0x5a0] sm:$0xff]
    %v1723 = vld [vmem:[#allocation13 + $0x5a8] sm:$0xff]
    %v1724 = vld [vmem:[#allocation13 + $0x5b0] sm:$0xff]
    %v1725 = vld [vmem:[#allocation13 + $0x5b8] sm:$0xff]
    %v1726 = vld [vmem:[#allocation13 + $0x5c0] sm:$0xff]
    %v1727 = vld [vmem:[#allocation13 + $0x5c8] sm:$0xff]
    %v1728 = vld [vmem:[#allocation13 + $0x5d0] sm:$0xff]
    %v1729 = vld [vmem:[#allocation13 + $0x5d8] sm:$0xff]
    %v1730 = vld [vmem:[#allocation13 + $0x5e0] sm:$0xff]
    %v1731 = vld [vmem:[#allocation13 + $0x5e8] sm:$0xff]
    %v1732 = vld [vmem:[#allocation13 + $0x5f0] sm:$0xff]
    %v1733 = vld [vmem:[#allocation13 + $0x5f8] sm:$0xff]
    %1734 = vmatprep.subr.mxu0 %v1543
    %1735 = vmatpush1.msra.mxu0 %v1542
    %1736 = vmatprep.subr.mxu0 %v1549
    %1737 = vmatpush1.msra.mxu0 %v1548
    %1738 = vmatprep.subr.mxu0 %v1555
    %1739 = vmatpush1.msra.mxu0 %v1554
    %1740 = vmatprep.subr.mxu0 %v1561
    %1741 = vmatpush1.msra.mxu0 %v1560
    %1742 = vmatprep.subr.mxu0 %v1567
    %1743 = vmatpush1.msra.mxu0 %v1566
    %1744 = vmatprep.subr.mxu0 %v1573
    %1745 = vmatpush1.msra.mxu0 %v1572
    %1746 = vmatprep.subr.mxu0 %v1579
    %1747 = vmatpush1.msra.mxu0 %v1578
    %1748 = vmatprep.subr.mxu0 %v1585
    %1749 = vmatpush1.msra.mxu0 %v1584
    %1750 = vmatprep.subr.mxu0 %v1591
    %1751 = vmatpush1.msra.mxu0 %v1590
    %1752 = vmatprep.subr.mxu0 %v1597
    %1753 = vmatpush1.msra.mxu0 %v1596
    %1754 = vmatprep.subr.mxu0 %v1603
    %1755 = vmatpush1.msra.mxu0 %v1602
    %1756 = vmatprep.subr.mxu0 %v1609
    %1757 = vmatpush1.msra.mxu0 %v1608
    %1758 = vmatprep.subr.mxu0 %v1615
    %1759 = vmatpush1.msra.mxu0 %v1614
    %1760 = vmatprep.subr.mxu0 %v1621
    %1761 = vmatpush1.msra.mxu0 %v1620
    %1762 = vmatprep.subr.mxu0 %v1627
    %1763 = vmatpush1.msra.mxu0 %v1626
    %1764 = vmatprep.subr.mxu0 %v1633
    %1765 = vmatpush1.msra.mxu0 %v1632
    %1766 = vmatprep.subr.mxu0 %v1639
    %1767 = vmatpush1.msra.mxu0 %v1638
    %1768 = vmatprep.subr.mxu0 %v1645
    %1769 = vmatpush1.msra.mxu0 %v1644
    %1770 = vmatprep.subr.mxu0 %v1651
    %1771 = vmatpush1.msra.mxu0 %v1650
    %1772 = vmatprep.subr.mxu0 %v1657
    %1773 = vmatpush1.msra.mxu0 %v1656
    %1774 = vmatprep.subr.mxu0 %v1663
    %1775 = vmatpush1.msra.mxu0 %v1662
    %1776 = vmatprep.subr.mxu0 %v1669
    %1777 = vmatpush1.msra.mxu0 %v1668
    %1778 = vmatprep.subr.mxu0 %v1675
    %1779 = vmatpush1.msra.mxu0 %v1674
    %1780 = vmatprep.subr.mxu0 %v1681
    %1781 = vmatpush1.msra.mxu0 %v1680
    %1782 = vmatprep.subr.mxu0 %v1687
    %1783 = vmatpush1.msra.mxu0 %v1686
    %1784 = vmatprep.subr.mxu0 %v1693
    %1785 = vmatpush1.msra.mxu0 %v1692
    %1786 = vmatprep.subr.mxu0 %v1699
    %1787 = vmatpush1.msra.mxu0 %v1698
    %1788 = vmatprep.subr.mxu0 %v1705
    %1789 = vmatpush1.msra.mxu0 %v1704
    %1790 = vmatprep.subr.mxu0 %v1711
    %1791 = vmatpush1.msra.mxu0 %v1710
    %1792 = vmatprep.subr.mxu0 %v1717
    %1793 = vmatpush1.msra.mxu0 %v1716
    %1794 = vmatprep.subr.mxu0 %v1723
    %1795 = vmatpush1.msra.mxu0 %v1722
    %1796 = vmatprep.subr.mxu0 %v1729
    %1797 = vmatpush1.msra.mxu0 %v1728
    %1798 = vmatprep.mubr.f32.mxu0 0.0
    %1799 = vmatmul.mubr.f32.gmra.mrb[0].mxu0 0.0
    %v1800 = vpop.f32.mrb[0].mxu0
    %v1801 = vadd.f32 0.0, %v1800
    %v1802 = vpop.f32.mrb[0].mxu0
    %v1803 = vadd.f32 0.0, %v1802
    %1804 = vdwg.mxu0
    %1805 = vmatprep.subr.mxu0 %v1545
    %1806 = vmatpush1.msra.mxu0 %v1544
    %1807 = vmatprep.subr.mxu0 %v1551
    %1808 = vmatpush1.msra.mxu0 %v1550
    %1809 = vmatprep.subr.mxu0 %v1557
    %1810 = vmatpush1.msra.mxu0 %v1556
    %1811 = vmatprep.subr.mxu0 %v1563
    %1812 = vmatpush1.msra.mxu0 %v1562
    %1813 = vmatprep.subr.mxu0 %v1569
    %1814 = vmatpush1.msra.mxu0 %v1568
    %1815 = vmatprep.subr.mxu0 %v1575
    %1816 = vmatpush1.msra.mxu0 %v1574
    %1817 = vmatprep.subr.mxu0 %v1581
    %1818 = vmatpush1.msra.mxu0 %v1580
    %1819 = vmatprep.subr.mxu0 %v1587
    %1820 = vmatpush1.msra.mxu0 %v1586
    %1821 = vmatprep.subr.mxu0 %v1593
    %1822 = vmatpush1.msra.mxu0 %v1592
    %1823 = vmatprep.subr.mxu0 %v1599
    %1824 = vmatpush1.msra.mxu0 %v1598
    %1825 = vmatprep.subr.mxu0 %v1605
    %1826 = vmatpush1.msra.mxu0 %v1604
    %1827 = vmatprep.subr.mxu0 %v1611
    %1828 = vmatpush1.msra.mxu0 %v1610
    %1829 = vmatprep.subr.mxu0 %v1617
    %1830 = vmatpush1.msra.mxu0 %v1616
    %1831 = vmatprep.subr.mxu0 %v1623
    %1832 = vmatpush1.msra.mxu0 %v1622
    %1833 = vmatprep.subr.mxu0 %v1629
    %1834 = vmatpush1.msra.mxu0 %v1628
    %1835 = vmatprep.subr.mxu0 %v1635
    %1836 = vmatpush1.msra.mxu0 %v1634
    %1837 = vmatprep.subr.mxu0 %v1641
    %1838 = vmatpush1.msra.mxu0 %v1640
    %1839 = vmatprep.subr.mxu0 %v1647
    %1840 = vmatpush1.msra.mxu0 %v1646
    %1841 = vmatprep.subr.mxu0 %v1653
    %1842 = vmatpush1.msra.mxu0 %v1652
    %1843 = vmatprep.subr.mxu0 %v1659
    %1844 = vmatpush1.msra.mxu0 %v1658
    %1845 = vmatprep.subr.mxu0 %v1665
    %1846 = vmatpush1.msra.mxu0 %v1664
    %1847 = vmatprep.subr.mxu0 %v1671
    %1848 = vmatpush1.msra.mxu0 %v1670
    %1849 = vmatprep.subr.mxu0 %v1677
    %1850 = vmatpush1.msra.mxu0 %v1676
    %1851 = vmatprep.subr.mxu0 %v1683
    %1852 = vmatpush1.msra.mxu0 %v1682
    %1853 = vmatprep.subr.mxu0 %v1689
    %1854 = vmatpush1.msra.mxu0 %v1688
    %1855 = vmatprep.subr.mxu0 %v1695
    %1856 = vmatpush1.msra.mxu0 %v1694
    %1857 = vmatprep.subr.mxu0 %v1701
    %1858 = vmatpush1.msra.mxu0 %v1700
    %1859 = vmatprep.subr.mxu0 %v1707
    %1860 = vmatpush1.msra.mxu0 %v1706
    %1861 = vmatprep.subr.mxu0 %v1713
    %1862 = vmatpush1.msra.mxu0 %v1712
    %1863 = vmatprep.subr.mxu0 %v1719
    %1864 = vmatpush1.msra.mxu0 %v1718
    %1865 = vmatprep.subr.mxu0 %v1725
    %1866 = vmatpush1.msra.mxu0 %v1724
    %1867 = vmatprep.subr.mxu0 %v1731
    %1868 = vmatpush1.msra.mxu0 %v1730
    %1869 = vmatprep.mubr.f32.mxu0 0.0
    %1870 = vmatmul.mubr.f32.gmra.mrb[0].mxu0 0.0
    %v1871 = vpop.f32.mrb[0].mxu0
    %v1872 = vadd.f32 0.0, %v1871
    %v1873 = vpop.f32.mrb[0].mxu0
    %v1874 = vadd.f32 0.0, %v1873
    %1875 = vdwg.mxu0
    %1876 = vmatprep.subr.mxu0 %v1547
    %1877 = vmatpush1.msra.mxu0 %v1546
    %1878 = vmatprep.subr.mxu0 %v1553
    %1879 = vmatpush1.msra.mxu0 %v1552
    %1880 = vmatprep.subr.mxu0 %v1559
    %1881 = vmatpush1.msra.mxu0 %v1558
    %1882 = vmatprep.subr.mxu0 %v1565
    %1883 = vmatpush1.msra.mxu0 %v1564
    %1884 = vmatprep.subr.mxu0 %v1571
    %1885 = vmatpush1.msra.mxu0 %v1570
    %1886 = vmatprep.subr.mxu0 %v1577
    %1887 = vmatpush1.msra.mxu0 %v1576
    %1888 = vmatprep.subr.mxu0 %v1583
    %1889 = vmatpush1.msra.mxu0 %v1582
    %1890 = vmatprep.subr.mxu0 %v1589
    %1891 = vmatpush1.msra.mxu0 %v1588
    %1892 = vmatprep.subr.mxu0 %v1595
    %1893 = vmatpush1.msra.mxu0 %v1594
    %1894 = vmatprep.subr.mxu0 %v1601
    %1895 = vmatpush1.msra.mxu0 %v1600
    %1896 = vmatprep.subr.mxu0 %v1607
    %1897 = vmatpush1.msra.mxu0 %v1606
    %1898 = vmatprep.subr.mxu0 %v1613
    %1899 = vmatpush1.msra.mxu0 %v1612
    %1900 = vmatprep.subr.mxu0 %v1619
    %1901 = vmatpush1.msra.mxu0 %v1618
    %1902 = vmatprep.subr.mxu0 %v1625
    %1903 = vmatpush1.msra.mxu0 %v1624
    %1904 = vmatprep.subr.mxu0 %v1631
    %1905 = vmatpush1.msra.mxu0 %v1630
    %1906 = vmatprep.subr.mxu0 %v1637
    %1907 = vmatpush1.msra.mxu0 %v1636
    %1908 = vmatprep.subr.mxu0 %v1643
    %1909 = vmatpush1.msra.mxu0 %v1642
    %1910 = vmatprep.subr.mxu0 %v1649
    %1911 = vmatpush1.msra.mxu0 %v1648
    %1912 = vmatprep.subr.mxu0 %v1655
    %1913 = vmatpush1.msra.mxu0 %v1654
    %1914 = vmatprep.subr.mxu0 %v1661
    %1915 = vmatpush1.msra.mxu0 %v1660
    %1916 = vmatprep.subr.mxu0 %v1667
    %1917 = vmatpush1.msra.mxu0 %v1666
    %1918 = vmatprep.subr.mxu0 %v1673
    %1919 = vmatpush1.msra.mxu0 %v1672
    %1920 = vmatprep.subr.mxu0 %v1679
    %1921 = vmatpush1.msra.mxu0 %v1678
    %1922 = vmatprep.subr.mxu0 %v1685
    %1923 = vmatpush1.msra.mxu0 %v1684
    %1924 = vmatprep.subr.mxu0 %v1691
    %1925 = vmatpush1.msra.mxu0 %v1690
    %1926 = vmatprep.subr.mxu0 %v1697
    %1927 = vmatpush1.msra.mxu0 %v1696
    %1928 = vmatprep.subr.mxu0 %v1703
    %1929 = vmatpush1.msra.mxu0 %v1702
    %1930 = vmatprep.subr.mxu0 %v1709
    %1931 = vmatpush1.msra.mxu0 %v1708
    %1932 = vmatprep.subr.mxu0 %v1715
    %1933 = vmatpush1.msra.mxu0 %v1714
    %1934 = vmatprep.subr.mxu0 %v1721
    %1935 = vmatpush1.msra.mxu0 %v1720
    %1936 = vmatprep.subr.mxu0 %v1727
    %1937 = vmatpush1.msra.mxu0 %v1726
    %1938 = vmatprep.subr.mxu0 %v1733
    %1939 = vmatpush1.msra.mxu0 %v1732
    %1940 = vmatprep.mubr.f32.mxu0 0.0
    %1941 = vmatmul.mubr.f32.gmra.mrb[0].mxu0 0.0
    %v1942 = vpop.f32.mrb[0].mxu0
    %v1943 = vadd.f32 0.0, %v1942
    %v1944 = vpop.f32.mrb[0].mxu0
    %v1945 = vadd.f32 0.0, %v1944
    %1946 = vdwg.mxu0
    %v1949 = vcombine.low %v1801, %v1803
    %v1951 = vunpack.c.l.s4 1966171168
    %v1952 = vunpack.c.0.s8 %v1951
    %v1953 = vlaneseq
    %v1954 = vshrl.u32 %v1953, 7
    %v1955 = vsub.s32 %v1952, %v1954
    %v1956 = vrot.slane %v1949, %v1955
    %v1958 = vunpack.c.l.s4 1966171168
    %v1959 = vunpack.c.0.s8 %v1958
    %v1960 = vlaneseq
    %v1961 = vshrl.u32 %v1960, 7
    %v1962 = vsub.s32 %v1959, %v1961
    %v1963 = vrot.slane %v1956, %v1962
    %v1965 = vadd.f32 %v1541, %v1963
    %v1966 = vxor.u32 %v1965, 2147483648
    %v1967 = vmul.f32 %v1966, 1.442695
    %v1968 = vpow.pop %v1967
    %v1969 = vadd.f32 %v1968, 1.0
    %v1970 = vrcp.pop %v1969
    %v1971 = vmul.f32 1.0, %v1970
    %v1973 = vrot.slane %v1541, 2
    %v1977 = vcombine.low %v1872, %v1874
    %v1979 = vunpack.c.l.s4 1966171168
    %v1980 = vunpack.c.0.s8 %v1979
    %v1981 = vlaneseq
    %v1982 = vshrl.u32 %v1981, 7
    %v1983 = vsub.s32 %v1980, %v1982
    %v1984 = vrot.slane %v1977, %v1983
    %v1986 = vunpack.c.l.s4 1966171168
    %v1987 = vunpack.c.0.s8 %v1986
    %v1988 = vlaneseq
    %v1989 = vshrl.u32 %v1988, 7
    %v1990 = vsub.s32 %v1987, %v1989
    %v1991 = vrot.slane %v1984, %v1990
    %v1993 = vadd.f32 %v1973, %v1991
    %v1994 = vxor.u32 %v1993, 2147483648
    %v1995 = vmul.f32 %v1994, 1.442695
    %v1996 = vpow.pop %v1995
    %v1997 = vadd.f32 %v1996, 1.0
    %v1998 = vrcp.pop %v1997
    %v1999 = vmul.f32 1.0, %v1998
    %v2000 = vld [vmem:[%s9] sm:$0x3]
    %v2002 = vlaneseq
    %v2003 = vshrl.u32 %v2002, 7
    %v2004 = vsub.s32 0, %v2003
    %v2005 = vrot.slane %v2000, %v2004
    %v2006 = vlaneseq
    %v2007 = vshrl.u32 %v2006, 7
    %v2008 = vsub.s32 1, %v2007
    %v2009 = vrot.slane %v2000, %v2008
    %v2012 = vadd.f32 %v1943, %v2005
    %v2013 = vadd.f32 %v1945, %v2009
    %v2016 = vcombine.low %v2012, %v2013
    %v2018 = vunpack.c.l.s4 1966171168
    %v2019 = vunpack.c.0.s8 %v2018
    %v2020 = vlaneseq
    %v2021 = vshrl.u32 %v2020, 7
    %v2022 = vsub.s32 %v2019, %v2021
    %v2023 = vrot.slane %v2016, %v2022
    %v2025 = vunpack.c.l.s4 1966171168
    %v2026 = vunpack.c.0.s8 %v2025
    %v2027 = vlaneseq
    %v2028 = vshrl.u32 %v2027, 7
    %v2029 = vsub.s32 %v2026, %v2028
    %v2030 = vrot.slane %v2023, %v2029
    %v2032 = vmul.f32 %v1971, %v2030
    %v2033 = vrot.slane %v1541, 4
    %v2035 = vadd.f32 %v2033, %v2032
    %v2036 = vtanh.pop %v2035
    %v2037 = vsub.f32 1.0, %v1999
    %v2038 = vmul.f32 %v2037, %v2036
    %v2039 = vmul.f32 %v1999, 0.0
    %v2040 = vadd.f32 %v2038, %v2039
    %v2041 = vlaneseq
    %vm2042 = vcmp.ge.s32.totalorder %v2041, 0
    %vm2043 = vcmp.lt.s32.totalorder %v2041, 256
    %vm2044 = vmand %vm2042, %vm2043
    %2045 = vst.msk [vmem:[#allocation4] ss:$4 sm:$0x3] %vm2044, %v1539
    %s2046 = scalar_lea.vmem [#allocation4], 11
    %2047 = vst.msk [vmem:[%s2046] ss:$4 sm:$0x3] %vm2044, %v2040
    %s2048 = scalar_lea.vmem [#allocation2], 1
    %v2049 = vld [vmem:[%s2048] ss:$4 sm:$0x3f]
    %v2050 = vld [vmem:[#allocation9] sm:$0xff]
    %v2051 = vld [vmem:[#allocation9 + $0x8] sm:$0xff]
    %v2052 = vld [vmem:[#allocation9 + $0x10] sm:$0xff]
    %v2053 = vld [vmem:[#allocation9 + $0x18] sm:$0xff]
    %v2054 = vld [vmem:[#allocation9 + $0x20] sm:$0xff]
    %v2055 = vld [vmem:[#allocation9 + $0x28] sm:$0xff]
    %v2056 = vld [vmem:[#allocation9 + $0x30] sm:$0xff]
    %v2057 = vld [vmem:[#allocation9 + $0x38] sm:$0xff]
    %v2058 = vld [vmem:[#allocation9 + $0x40] sm:$0xff]
    %v2059 = vld [vmem:[#allocation9 + $0x48] sm:$0xff]
    %v2060 = vld [vmem:[#allocation9 + $0x50] sm:$0xff]
    %v2061 = vld [vmem:[#allocation9 + $0x58] sm:$0xff]
    %v2062 = vld [vmem:[#allocation9 + $0x60] sm:$0xff]
    %v2063 = vld [vmem:[#allocation9 + $0x68] sm:$0xff]
    %v2064 = vld [vmem:[#allocation9 + $0x70] sm:$0xff]
    %v2065 = vld [vmem:[#allocation9 + $0x78] sm:$0xff]
    %v2066 = vld [vmem:[#allocation9 + $0x80] sm:$0xff]
    %v2067 = vld [vmem:[#allocation9 + $0x88] sm:$0xff]
    %v2068 = vld [vmem:[#allocation9 + $0x90] sm:$0xff]
    %v2069 = vld [vmem:[#allocation9 + $0x98] sm:$0xff]
    %v2070 = vld [vmem:[#allocation9 + $0xa0] sm:$0xff]
    %v2071 = vld [vmem:[#allocation9 + $0xa8] sm:$0xff]
    %v2072 = vld [vmem:[#allocation9 + $0xb0] sm:$0xff]
    %v2073 = vld [vmem:[#allocation9 + $0xb8] sm:$0xff]
    %v2074 = vld [vmem:[#allocation9 + $0xc0] sm:$0xff]
    %v2075 = vld [vmem:[#allocation9 + $0xc8] sm:$0xff]
    %v2076 = vld [vmem:[#allocation9 + $0xd0] sm:$0xff]
    %v2077 = vld [vmem:[#allocation9 + $0xd8] sm:$0xff]
    %v2078 = vld [vmem:[#allocation9 + $0xe0] sm:$0xff]
    %v2079 = vld [vmem:[#allocation9 + $0xe8] sm:$0xff]
    %v2080 = vld [vmem:[#allocation9 + $0xf0] sm:$0xff]
    %v2081 = vld [vmem:[#allocation9 + $0xf8] sm:$0xff]
    %v2082 = vld [vmem:[#allocation9 + $0x100] sm:$0xff]
    %v2083 = vld [vmem:[#allocation9 + $0x108] sm:$0xff]
    %v2084 = vld [vmem:[#allocation9 + $0x110] sm:$0xff]
    %v2085 = vld [vmem:[#allocation9 + $0x118] sm:$0xff]
    %v2086 = vld [vmem:[#allocation9 + $0x120] sm:$0xff]
    %v2087 = vld [vmem:[#allocation9 + $0x128] sm:$0xff]
    %v2088 = vld [vmem:[#allocation9 + $0x130] sm:$0xff]
    %v2089 = vld [vmem:[#allocation9 + $0x138] sm:$0xff]
    %v2090 = vld [vmem:[#allocation9 + $0x140] sm:$0xff]
    %v2091 = vld [vmem:[#allocation9 + $0x148] sm:$0xff]
    %v2092 = vld [vmem:[#allocation9 + $0x150] sm:$0xff]
    %v2093 = vld [vmem:[#allocation9 + $0x158] sm:$0xff]
    %v2094 = vld [vmem:[#allocation9 + $0x160] sm:$0xff]
    %v2095 = vld [vmem:[#allocation9 + $0x168] sm:$0xff]
    %v2096 = vld [vmem:[#allocation9 + $0x170] sm:$0xff]
    %v2097 = vld [vmem:[#allocation9 + $0x178] sm:$0xff]
    %v2098 = vld [vmem:[#allocation9 + $0x180] sm:$0xff]
    %v2099 = vld [vmem:[#allocation9 + $0x188] sm:$0xff]
    %v2100 = vld [vmem:[#allocation9 + $0x190] sm:$0xff]
    %v2101 = vld [vmem:[#allocation9 + $0x198] sm:$0xff]
    %v2102 = vld [vmem:[#allocation9 + $0x1a0] sm:$0xff]
    %v2103 = vld [vmem:[#allocation9 + $0x1a8] sm:$0xff]
    %v2104 = vld [vmem:[#allocation9 + $0x1b0] sm:$0xff]
    %v2105 = vld [vmem:[#allocation9 + $0x1b8] sm:$0xff]
    %v2106 = vld [vmem:[#allocation9 + $0x1c0] sm:$0xff]
    %v2107 = vld [vmem:[#allocation9 + $0x1c8] sm:$0xff]
    %v2108 = vld [vmem:[#allocation9 + $0x1d0] sm:$0xff]
    %v2109 = vld [vmem:[#allocation9 + $0x1d8] sm:$0xff]
    %v2110 = vld [vmem:[#allocation9 + $0x1e0] sm:$0xff]
    %v2111 = vld [vmem:[#allocation9 + $0x1e8] sm:$0xff]
    %v2112 = vld [vmem:[#allocation9 + $0x1f0] sm:$0xff]
    %v2113 = vld [vmem:[#allocation9 + $0x1f8] sm:$0xff]
    %v2114 = vld [vmem:[#allocation9 + $0x200] sm:$0xff]
    %v2115 = vld [vmem:[#allocation9 + $0x208] sm:$0xff]
    %v2116 = vld [vmem:[#allocation9 + $0x210] sm:$0xff]
    %v2117 = vld [vmem:[#allocation9 + $0x218] sm:$0xff]
    %v2118 = vld [vmem:[#allocation9 + $0x220] sm:$0xff]
    %v2119 = vld [vmem:[#allocation9 + $0x228] sm:$0xff]
    %v2120 = vld [vmem:[#allocation9 + $0x230] sm:$0xff]
    %v2121 = vld [vmem:[#allocation9 + $0x238] sm:$0xff]
    %v2122 = vld [vmem:[#allocation9 + $0x240] sm:$0xff]
    %v2123 = vld [vmem:[#allocation9 + $0x248] sm:$0xff]
    %v2124 = vld [vmem:[#allocation9 + $0x250] sm:$0xff]
    %v2125 = vld [vmem:[#allocation9 + $0x258] sm:$0xff]
    %v2126 = vld [vmem:[#allocation9 + $0x260] sm:$0xff]
    %v2127 = vld [vmem:[#allocation9 + $0x268] sm:$0xff]
    %v2128 = vld [vmem:[#allocation9 + $0x270] sm:$0xff]
    %v2129 = vld [vmem:[#allocation9 + $0x278] sm:$0xff]
    %v2130 = vld [vmem:[#allocation9 + $0x280] sm:$0xff]
    %v2131 = vld [vmem:[#allocation9 + $0x288] sm:$0xff]
    %v2132 = vld [vmem:[#allocation9 + $0x290] sm:$0xff]
    %v2133 = vld [vmem:[#allocation9 + $0x298] sm:$0xff]
    %v2134 = vld [vmem:[#allocation9 + $0x2a0] sm:$0xff]
    %v2135 = vld [vmem:[#allocation9 + $0x2a8] sm:$0xff]
    %v2136 = vld [vmem:[#allocation9 + $0x2b0] sm:$0xff]
    %v2137 = vld [vmem:[#allocation9 + $0x2b8] sm:$0xff]
    %v2138 = vld [vmem:[#allocation9 + $0x2c0] sm:$0xff]
    %v2139 = vld [vmem:[#allocation9 + $0x2c8] sm:$0xff]
    %v2140 = vld [vmem:[#allocation9 + $0x2d0] sm:$0xff]
    %v2141 = vld [vmem:[#allocation9 + $0x2d8] sm:$0xff]
    %v2142 = vld [vmem:[#allocation9 + $0x2e0] sm:$0xff]
    %v2143 = vld [vmem:[#allocation9 + $0x2e8] sm:$0xff]
    %v2144 = vld [vmem:[#allocation9 + $0x2f0] sm:$0xff]
    %v2145 = vld [vmem:[#allocation9 + $0x2f8] sm:$0xff]
    %v2146 = vld [vmem:[#allocation9 + $0x300] sm:$0xff]
    %v2147 = vld [vmem:[#allocation9 + $0x308] sm:$0xff]
    %v2148 = vld [vmem:[#allocation9 + $0x310] sm:$0xff]
    %v2149 = vld [vmem:[#allocation9 + $0x318] sm:$0xff]
    %v2150 = vld [vmem:[#allocation9 + $0x320] sm:$0xff]
    %v2151 = vld [vmem:[#allocation9 + $0x328] sm:$0xff]
    %v2152 = vld [vmem:[#allocation9 + $0x330] sm:$0xff]
    %v2153 = vld [vmem:[#allocation9 + $0x338] sm:$0xff]
    %v2154 = vld [vmem:[#allocation9 + $0x340] sm:$0xff]
    %v2155 = vld [vmem:[#allocation9 + $0x348] sm:$0xff]
    %v2156 = vld [vmem:[#allocation9 + $0x350] sm:$0xff]
    %v2157 = vld [vmem:[#allocation9 + $0x358] sm:$0xff]
    %v2158 = vld [vmem:[#allocation9 + $0x360] sm:$0xff]
    %v2159 = vld [vmem:[#allocation9 + $0x368] sm:$0xff]
    %v2160 = vld [vmem:[#allocation9 + $0x370] sm:$0xff]
    %v2161 = vld [vmem:[#allocation9 + $0x378] sm:$0xff]
    %v2162 = vld [vmem:[#allocation9 + $0x380] sm:$0xff]
    %v2163 = vld [vmem:[#allocation9 + $0x388] sm:$0xff]
    %v2164 = vld [vmem:[#allocation9 + $0x390] sm:$0xff]
    %v2165 = vld [vmem:[#allocation9 + $0x398] sm:$0xff]
    %v2166 = vld [vmem:[#allocation9 + $0x3a0] sm:$0xff]
    %v2167 = vld [vmem:[#allocation9 + $0x3a8] sm:$0xff]
    %v2168 = vld [vmem:[#allocation9 + $0x3b0] sm:$0xff]
    %v2169 = vld [vmem:[#allocation9 + $0x3b8] sm:$0xff]
    %v2170 = vld [vmem:[#allocation9 + $0x3c0] sm:$0xff]
    %v2171 = vld [vmem:[#allocation9 + $0x3c8] sm:$0xff]
    %v2172 = vld [vmem:[#allocation9 + $0x3d0] sm:$0xff]
    %v2173 = vld [vmem:[#allocation9 + $0x3d8] sm:$0xff]
    %v2174 = vld [vmem:[#allocation9 + $0x3e0] sm:$0xff]
    %v2175 = vld [vmem:[#allocation9 + $0x3e8] sm:$0xff]
    %v2176 = vld [vmem:[#allocation9 + $0x3f0] sm:$0xff]
    %v2177 = vld [vmem:[#allocation9 + $0x3f8] sm:$0xff]
    %v2178 = vld [vmem:[#allocation9 + $0x400] sm:$0xff]
    %v2179 = vld [vmem:[#allocation9 + $0x408] sm:$0xff]
    %v2180 = vld [vmem:[#allocation9 + $0x410] sm:$0xff]
    %v2181 = vld [vmem:[#allocation9 + $0x418] sm:$0xff]
    %v2182 = vld [vmem:[#allocation9 + $0x420] sm:$0xff]
    %v2183 = vld [vmem:[#allocation9 + $0x428] sm:$0xff]
    %v2184 = vld [vmem:[#allocation9 + $0x430] sm:$0xff]
    %v2185 = vld [vmem:[#allocation9 + $0x438] sm:$0xff]
    %v2186 = vld [vmem:[#allocation9 + $0x440] sm:$0xff]
    %v2187 = vld [vmem:[#allocation9 + $0x448] sm:$0xff]
    %v2188 = vld [vmem:[#allocation9 + $0x450] sm:$0xff]
    %v2189 = vld [vmem:[#allocation9 + $0x458] sm:$0xff]
    %v2190 = vld [vmem:[#allocation9 + $0x460] sm:$0xff]
    %v2191 = vld [vmem:[#allocation9 + $0x468] sm:$0xff]
    %v2192 = vld [vmem:[#allocation9 + $0x470] sm:$0xff]
    %v2193 = vld [vmem:[#allocation9 + $0x478] sm:$0xff]
    %v2194 = vld [vmem:[#allocation9 + $0x480] sm:$0xff]
    %v2195 = vld [vmem:[#allocation9 + $0x488] sm:$0xff]
    %v2196 = vld [vmem:[#allocation9 + $0x490] sm:$0xff]
    %v2197 = vld [vmem:[#allocation9 + $0x498] sm:$0xff]
    %v2198 = vld [vmem:[#allocation9 + $0x4a0] sm:$0xff]
    %v2199 = vld [vmem:[#allocation9 + $0x4a8] sm:$0xff]
    %v2200 = vld [vmem:[#allocation9 + $0x4b0] sm:$0xff]
    %v2201 = vld [vmem:[#allocation9 + $0x4b8] sm:$0xff]
    %v2202 = vld [vmem:[#allocation9 + $0x4c0] sm:$0xff]
    %v2203 = vld [vmem:[#allocation9 + $0x4c8] sm:$0xff]
    %v2204 = vld [vmem:[#allocation9 + $0x4d0] sm:$0xff]
    %v2205 = vld [vmem:[#allocation9 + $0x4d8] sm:$0xff]
    %v2206 = vld [vmem:[#allocation9 + $0x4e0] sm:$0xff]
    %v2207 = vld [vmem:[#allocation9 + $0x4e8] sm:$0xff]
    %v2208 = vld [vmem:[#allocation9 + $0x4f0] sm:$0xff]
    %v2209 = vld [vmem:[#allocation9 + $0x4f8] sm:$0xff]
    %v2210 = vld [vmem:[#allocation9 + $0x500] sm:$0xff]
    %v2211 = vld [vmem:[#allocation9 + $0x508] sm:$0xff]
    %v2212 = vld [vmem:[#allocation9 + $0x510] sm:$0xff]
    %v2213 = vld [vmem:[#allocation9 + $0x518] sm:$0xff]
    %v2214 = vld [vmem:[#allocation9 + $0x520] sm:$0xff]
    %v2215 = vld [vmem:[#allocation9 + $0x528] sm:$0xff]
    %v2216 = vld [vmem:[#allocation9 + $0x530] sm:$0xff]
    %v2217 = vld [vmem:[#allocation9 + $0x538] sm:$0xff]
    %v2218 = vld [vmem:[#allocation9 + $0x540] sm:$0xff]
    %v2219 = vld [vmem:[#allocation9 + $0x548] sm:$0xff]
    %v2220 = vld [vmem:[#allocation9 + $0x550] sm:$0xff]
    %v2221 = vld [vmem:[#allocation9 + $0x558] sm:$0xff]
    %v2222 = vld [vmem:[#allocation9 + $0x560] sm:$0xff]
    %v2223 = vld [vmem:[#allocation9 + $0x568] sm:$0xff]
    %v2224 = vld [vmem:[#allocation9 + $0x570] sm:$0xff]
    %v2225 = vld [vmem:[#allocation9 + $0x578] sm:$0xff]
    %v2226 = vld [vmem:[#allocation9 + $0x580] sm:$0xff]
    %v2227 = vld [vmem:[#allocation9 + $0x588] sm:$0xff]
    %v2228 = vld [vmem:[#allocation9 + $0x590] sm:$0xff]
    %v2229 = vld [vmem:[#allocation9 + $0x598] sm:$0xff]
    %v2230 = vld [vmem:[#allocation9 + $0x5a0] sm:$0xff]
    %v2231 = vld [vmem:[#allocation9 + $0x5a8] sm:$0xff]
    %v2232 = vld [vmem:[#allocation9 + $0x5b0] sm:$0xff]
    %v2233 = vld [vmem:[#allocation9 + $0x5b8] sm:$0xff]
    %v2234 = vld [vmem:[#allocation9 + $0x5c0] sm:$0xff]
    %v2235 = vld [vmem:[#allocation9 + $0x5c8] sm:$0xff]
    %v2236 = vld [vmem:[#allocation9 + $0x5d0] sm:$0xff]
    %v2237 = vld [vmem:[#allocation9 + $0x5d8] sm:$0xff]
    %v2238 = vld [vmem:[#allocation9 + $0x5e0] sm:$0xff]
    %v2239 = vld [vmem:[#allocation9 + $0x5e8] sm:$0xff]
    %v2240 = vld [vmem:[#allocation9 + $0x5f0] sm:$0xff]
    %v2241 = vld [vmem:[#allocation9 + $0x5f8] sm:$0xff]
    %v2243 = vlaneseq
    %v2244 = vshrl.u32 %v2243, 7
    %v2245 = vsub.s32 0, %v2244
    %v2246 = vrot.slane %v1539, %v2245
    %v2247 = vlaneseq
    %v2248 = vshrl.u32 %v2247, 7
    %v2249 = vsub.s32 1, %v2248
    %v2250 = vrot.slane %v1539, %v2249
    %2253 = vmatprep.subr.mxu0 %v2051
    %2254 = vmatpush1.msra.mxu0 %v2050
    %2255 = vmatprep.subr.mxu0 %v2057
    %2256 = vmatpush1.msra.mxu0 %v2056
    %2257 = vmatprep.subr.mxu0 %v2063
    %2258 = vmatpush1.msra.mxu0 %v2062
    %2259 = vmatprep.subr.mxu0 %v2069
    %2260 = vmatpush1.msra.mxu0 %v2068
    %2261 = vmatprep.subr.mxu0 %v2075
    %2262 = vmatpush1.msra.mxu0 %v2074
    %2263 = vmatprep.subr.mxu0 %v2081
    %2264 = vmatpush1.msra.mxu0 %v2080
    %2265 = vmatprep.subr.mxu0 %v2087
    %2266 = vmatpush1.msra.mxu0 %v2086
    %2267 = vmatprep.subr.mxu0 %v2093
    %2268 = vmatpush1.msra.mxu0 %v2092
    %2269 = vmatprep.subr.mxu0 %v2099
    %2270 = vmatpush1.msra.mxu0 %v2098
    %2271 = vmatprep.subr.mxu0 %v2105
    %2272 = vmatpush1.msra.mxu0 %v2104
    %2273 = vmatprep.subr.mxu0 %v2111
    %2274 = vmatpush1.msra.mxu0 %v2110
    %2275 = vmatprep.subr.mxu0 %v2117
    %2276 = vmatpush1.msra.mxu0 %v2116
    %2277 = vmatprep.subr.mxu0 %v2123
    %2278 = vmatpush1.msra.mxu0 %v2122
    %2279 = vmatprep.subr.mxu0 %v2129
    %2280 = vmatpush1.msra.mxu0 %v2128
    %2281 = vmatprep.subr.mxu0 %v2135
    %2282 = vmatpush1.msra.mxu0 %v2134
    %2283 = vmatprep.subr.mxu0 %v2141
    %2284 = vmatpush1.msra.mxu0 %v2140
    %2285 = vmatprep.subr.mxu0 %v2147
    %2286 = vmatpush1.msra.mxu0 %v2146
    %2287 = vmatprep.subr.mxu0 %v2153
    %2288 = vmatpush1.msra.mxu0 %v2152
    %2289 = vmatprep.subr.mxu0 %v2159
    %2290 = vmatpush1.msra.mxu0 %v2158
    %2291 = vmatprep.subr.mxu0 %v2165
    %2292 = vmatpush1.msra.mxu0 %v2164
    %2293 = vmatprep.subr.mxu0 %v2171
    %2294 = vmatpush1.msra.mxu0 %v2170
    %2295 = vmatprep.subr.mxu0 %v2177
    %2296 = vmatpush1.msra.mxu0 %v2176
    %2297 = vmatprep.subr.mxu0 %v2183
    %2298 = vmatpush1.msra.mxu0 %v2182
    %2299 = vmatprep.subr.mxu0 %v2189
    %2300 = vmatpush1.msra.mxu0 %v2188
    %2301 = vmatprep.subr.mxu0 %v2195
    %2302 = vmatpush1.msra.mxu0 %v2194
    %2303 = vmatprep.subr.mxu0 %v2201
    %2304 = vmatpush1.msra.mxu0 %v2200
    %2305 = vmatprep.subr.mxu0 %v2207
    %2306 = vmatpush1.msra.mxu0 %v2206
    %2307 = vmatprep.subr.mxu0 %v2213
    %2308 = vmatpush1.msra.mxu0 %v2212
    %2309 = vmatprep.subr.mxu0 %v2219
    %2310 = vmatpush1.msra.mxu0 %v2218
    %2311 = vmatprep.subr.mxu0 %v2225
    %2312 = vmatpush1.msra.mxu0 %v2224
    %2313 = vmatprep.subr.mxu0 %v2231
    %2314 = vmatpush1.msra.mxu0 %v2230
    %2315 = vmatprep.subr.mxu0 %v2237
    %2316 = vmatpush1.msra.mxu0 %v2236
    %2317 = vmatprep.mubr.f32.mxu0 %v2250
    %2318 = vmatmul.mubr.f32.gmra.mrb[0].mxu0 %v2246
    %v2319 = vpop.f32.mrb[0].mxu0
    %v2320 = vadd.f32 0.0, %v2319
    %v2321 = vpop.f32.mrb[0].mxu0
    %v2322 = vadd.f32 0.0, %v2321
    %2323 = vdwg.mxu0
    %2324 = vmatprep.subr.mxu0 %v2053
    %2325 = vmatpush1.msra.mxu0 %v2052
    %2326 = vmatprep.subr.mxu0 %v2059
    %2327 = vmatpush1.msra.mxu0 %v2058
    %2328 = vmatprep.subr.mxu0 %v2065
    %2329 = vmatpush1.msra.mxu0 %v2064
    %2330 = vmatprep.subr.mxu0 %v2071
    %2331 = vmatpush1.msra.mxu0 %v2070
    %2332 = vmatprep.subr.mxu0 %v2077
    %2333 = vmatpush1.msra.mxu0 %v2076
    %2334 = vmatprep.subr.mxu0 %v2083
    %2335 = vmatpush1.msra.mxu0 %v2082
    %2336 = vmatprep.subr.mxu0 %v2089
    %2337 = vmatpush1.msra.mxu0 %v2088
    %2338 = vmatprep.subr.mxu0 %v2095
    %2339 = vmatpush1.msra.mxu0 %v2094
    %2340 = vmatprep.subr.mxu0 %v2101
    %2341 = vmatpush1.msra.mxu0 %v2100
    %2342 = vmatprep.subr.mxu0 %v2107
    %2343 = vmatpush1.msra.mxu0 %v2106
    %2344 = vmatprep.subr.mxu0 %v2113
    %2345 = vmatpush1.msra.mxu0 %v2112
    %2346 = vmatprep.subr.mxu0 %v2119
    %2347 = vmatpush1.msra.mxu0 %v2118
    %2348 = vmatprep.subr.mxu0 %v2125
    %2349 = vmatpush1.msra.mxu0 %v2124
    %2350 = vmatprep.subr.mxu0 %v2131
    %2351 = vmatpush1.msra.mxu0 %v2130
    %2352 = vmatprep.subr.mxu0 %v2137
    %2353 = vmatpush1.msra.mxu0 %v2136
    %2354 = vmatprep.subr.mxu0 %v2143
    %2355 = vmatpush1.msra.mxu0 %v2142
    %2356 = vmatprep.subr.mxu0 %v2149
    %2357 = vmatpush1.msra.mxu0 %v2148
    %2358 = vmatprep.subr.mxu0 %v2155
    %2359 = vmatpush1.msra.mxu0 %v2154
    %2360 = vmatprep.subr.mxu0 %v2161
    %2361 = vmatpush1.msra.mxu0 %v2160
    %2362 = vmatprep.subr.mxu0 %v2167
    %2363 = vmatpush1.msra.mxu0 %v2166
    %2364 = vmatprep.subr.mxu0 %v2173
    %2365 = vmatpush1.msra.mxu0 %v2172
    %2366 = vmatprep.subr.mxu0 %v2179
    %2367 = vmatpush1.msra.mxu0 %v2178
    %2368 = vmatprep.subr.mxu0 %v2185
    %2369 = vmatpush1.msra.mxu0 %v2184
    %2370 = vmatprep.subr.mxu0 %v2191
    %2371 = vmatpush1.msra.mxu0 %v2190
    %2372 = vmatprep.subr.mxu0 %v2197
    %2373 = vmatpush1.msra.mxu0 %v2196
    %2374 = vmatprep.subr.mxu0 %v2203
    %2375 = vmatpush1.msra.mxu0 %v2202
    %2376 = vmatprep.subr.mxu0 %v2209
    %2377 = vmatpush1.msra.mxu0 %v2208
    %2378 = vmatprep.subr.mxu0 %v2215
    %2379 = vmatpush1.msra.mxu0 %v2214
    %2380 = vmatprep.subr.mxu0 %v2221
    %2381 = vmatpush1.msra.mxu0 %v2220
    %2382 = vmatprep.subr.mxu0 %v2227
    %2383 = vmatpush1.msra.mxu0 %v2226
    %2384 = vmatprep.subr.mxu0 %v2233
    %2385 = vmatpush1.msra.mxu0 %v2232
    %2386 = vmatprep.subr.mxu0 %v2239
    %2387 = vmatpush1.msra.mxu0 %v2238
    %2388 = vmatprep.mubr.f32.mxu0 %v2250
    %2389 = vmatmul.mubr.f32.gmra.mrb[0].mxu0 %v2246
    %v2390 = vpop.f32.mrb[0].mxu0
    %v2391 = vadd.f32 0.0, %v2390
    %v2392 = vpop.f32.mrb[0].mxu0
    %v2393 = vadd.f32 0.0, %v2392
    %2394 = vdwg.mxu0
    %2395 = vmatprep.subr.mxu0 %v2055
    %2396 = vmatpush1.msra.mxu0 %v2054
    %2397 = vmatprep.subr.mxu0 %v2061
    %2398 = vmatpush1.msra.mxu0 %v2060
    %2399 = vmatprep.subr.mxu0 %v2067
    %2400 = vmatpush1.msra.mxu0 %v2066
    %2401 = vmatprep.subr.mxu0 %v2073
    %2402 = vmatpush1.msra.mxu0 %v2072
    %2403 = vmatprep.subr.mxu0 %v2079
    %2404 = vmatpush1.msra.mxu0 %v2078
    %2405 = vmatprep.subr.mxu0 %v2085
    %2406 = vmatpush1.msra.mxu0 %v2084
    %2407 = vmatprep.subr.mxu0 %v2091
    %2408 = vmatpush1.msra.mxu0 %v2090
    %2409 = vmatprep.subr.mxu0 %v2097
    %2410 = vmatpush1.msra.mxu0 %v2096
    %2411 = vmatprep.subr.mxu0 %v2103
    %2412 = vmatpush1.msra.mxu0 %v2102
    %2413 = vmatprep.subr.mxu0 %v2109
    %2414 = vmatpush1.msra.mxu0 %v2108
    %2415 = vmatprep.subr.mxu0 %v2115
    %2416 = vmatpush1.msra.mxu0 %v2114
    %2417 = vmatprep.subr.mxu0 %v2121
    %2418 = vmatpush1.msra.mxu0 %v2120
    %2419 = vmatprep.subr.mxu0 %v2127
    %2420 = vmatpush1.msra.mxu0 %v2126
    %2421 = vmatprep.subr.mxu0 %v2133
    %2422 = vmatpush1.msra.mxu0 %v2132
    %2423 = vmatprep.subr.mxu0 %v2139
    %2424 = vmatpush1.msra.mxu0 %v2138
    %2425 = vmatprep.subr.mxu0 %v2145
    %2426 = vmatpush1.msra.mxu0 %v2144
    %2427 = vmatprep.subr.mxu0 %v2151
    %2428 = vmatpush1.msra.mxu0 %v2150
    %2429 = vmatprep.subr.mxu0 %v2157
    %2430 = vmatpush1.msra.mxu0 %v2156
    %2431 = vmatprep.subr.mxu0 %v2163
    %2432 = vmatpush1.msra.mxu0 %v2162
    %2433 = vmatprep.subr.mxu0 %v2169
    %2434 = vmatpush1.msra.mxu0 %v2168
    %2435 = vmatprep.subr.mxu0 %v2175
    %2436 = vmatpush1.msra.mxu0 %v2174
    %2437 = vmatprep.subr.mxu0 %v2181
    %2438 = vmatpush1.msra.mxu0 %v2180
    %2439 = vmatprep.subr.mxu0 %v2187
    %2440 = vmatpush1.msra.mxu0 %v2186
    %2441 = vmatprep.subr.mxu0 %v2193
    %2442 = vmatpush1.msra.mxu0 %v2192
    %2443 = vmatprep.subr.mxu0 %v2199
    %2444 = vmatpush1.msra.mxu0 %v2198
    %2445 = vmatprep.subr.mxu0 %v2205
    %2446 = vmatpush1.msra.mxu0 %v2204
    %2447 = vmatprep.subr.mxu0 %v2211
    %2448 = vmatpush1.msra.mxu0 %v2210
    %2449 = vmatprep.subr.mxu0 %v2217
    %2450 = vmatpush1.msra.mxu0 %v2216
    %2451 = vmatprep.subr.mxu0 %v2223
    %2452 = vmatpush1.msra.mxu0 %v2222
    %2453 = vmatprep.subr.mxu0 %v2229
    %2454 = vmatpush1.msra.mxu0 %v2228
    %2455 = vmatprep.subr.mxu0 %v2235
    %2456 = vmatpush1.msra.mxu0 %v2234
    %2457 = vmatprep.subr.mxu0 %v2241
    %2458 = vmatpush1.msra.mxu0 %v2240
    %2459 = vmatprep.mubr.f32.mxu0 %v2250
    %2460 = vmatmul.mubr.f32.gmra.mrb[0].mxu0 %v2246
    %v2461 = vpop.f32.mrb[0].mxu0
    %v2462 = vadd.f32 0.0, %v2461
    %v2463 = vpop.f32.mrb[0].mxu0
    %v2464 = vadd.f32 0.0, %v2463
    %2465 = vdwg.mxu0
    %v2468 = vcombine.low %v2320, %v2322
    %v2470 = vunpack.c.l.s4 1966171168
    %v2471 = vunpack.c.0.s8 %v2470
    %v2472 = vlaneseq
    %v2473 = vshrl.u32 %v2472, 7
    %v2474 = vsub.s32 %v2471, %v2473
    %v2475 = vrot.slane %v2468, %v2474
    %v2477 = vunpack.c.l.s4 1966171168
    %v2478 = vunpack.c.0.s8 %v2477
    %v2479 = vlaneseq
    %v2480 = vshrl.u32 %v2479, 7
    %v2481 = vsub.s32 %v2478, %v2480
    %v2482 = vrot.slane %v2475, %v2481
    %v2484 = vadd.f32 %v2049, %v2482
    %v2485 = vxor.u32 %v2484, 2147483648
    %v2486 = vmul.f32 %v2485, 1.442695
    %v2487 = vpow.pop %v2486
    %v2488 = vadd.f32 %v2487, 1.0
    %v2489 = vrcp.pop %v2488
    %v2490 = vmul.f32 1.0, %v2489
    %v2492 = vrot.slane %v2049, 2
    %v2496 = vcombine.low %v2391, %v2393
    %v2498 = vunpack.c.l.s4 1966171168
    %v2499 = vunpack.c.0.s8 %v2498
    %v2500 = vlaneseq
    %v2501 = vshrl.u32 %v2500, 7
    %v2502 = vsub.s32 %v2499, %v2501
    %v2503 = vrot.slane %v2496, %v2502
    %v2505 = vunpack.c.l.s4 1966171168
    %v2506 = vunpack.c.0.s8 %v2505
    %v2507 = vlaneseq
    %v2508 = vshrl.u32 %v2507, 7
    %v2509 = vsub.s32 %v2506, %v2508
    %v2510 = vrot.slane %v2503, %v2509
    %v2512 = vadd.f32 %v2492, %v2510
    %v2513 = vxor.u32 %v2512, 2147483648
    %v2514 = vmul.f32 %v2513, 1.442695
    %v2515 = vpow.pop %v2514
    %v2516 = vadd.f32 %v2515, 1.0
    %v2517 = vrcp.pop %v2516
    %v2518 = vmul.f32 1.0, %v2517
    %v2519 = vld [vmem:[%s5] sm:$0x3]
    %v2521 = vlaneseq
    %v2522 = vshrl.u32 %v2521, 7
    %v2523 = vsub.s32 0, %v2522
    %v2524 = vrot.slane %v2519, %v2523
    %v2525 = vlaneseq
    %v2526 = vshrl.u32 %v2525, 7
    %v2527 = vsub.s32 1, %v2526
    %v2528 = vrot.slane %v2519, %v2527
    %v2531 = vadd.f32 %v2462, %v2524
    %v2532 = vadd.f32 %v2464, %v2528
    %v2535 = vcombine.low %v2531, %v2532
    %v2537 = vunpack.c.l.s4 1966171168
    %v2538 = vunpack.c.0.s8 %v2537
    %v2539 = vlaneseq
    %v2540 = vshrl.u32 %v2539, 7
    %v2541 = vsub.s32 %v2538, %v2540
    %v2542 = vrot.slane %v2535, %v2541
    %v2544 = vunpack.c.l.s4 1966171168
    %v2545 = vunpack.c.0.s8 %v2544
    %v2546 = vlaneseq
    %v2547 = vshrl.u32 %v2546, 7
    %v2548 = vsub.s32 %v2545, %v2547
    %v2549 = vrot.slane %v2542, %v2548
    %v2551 = vmul.f32 %v2490, %v2549
    %v2552 = vrot.slane %v2049, 4
    %v2554 = vadd.f32 %v2552, %v2551
    %v2555 = vtanh.pop %v2554
    %v2556 = vsub.f32 1.0, %v2518
    %v2557 = vmul.f32 %v2556, %v2555
    %v2558 = vmul.f32 %v2518, %v1539
    %v2559 = vadd.f32 %v2557, %v2558
    %s2560 = scalar_lea.vmem [#allocation3], 2
    %v2561 = vld [vmem:[%s2560] ss:$4 sm:$0x3f]
    %v2562 = vld [vmem:[#allocation13] sm:$0xff]
    %v2563 = vld [vmem:[#allocation13 + $0x8] sm:$0xff]
    %v2564 = vld [vmem:[#allocation13 + $0x10] sm:$0xff]
    %v2565 = vld [vmem:[#allocation13 + $0x18] sm:$0xff]
    %v2566 = vld [vmem:[#allocation13 + $0x20] sm:$0xff]
    %v2567 = vld [vmem:[#allocation13 + $0x28] sm:$0xff]
    %v2568 = vld [vmem:[#allocation13 + $0x30] sm:$0xff]
    %v2569 = vld [vmem:[#allocation13 + $0x38] sm:$0xff]
    %v2570 = vld [vmem:[#allocation13 + $0x40] sm:$0xff]
    %v2571 = vld [vmem:[#allocation13 + $0x48] sm:$0xff]
    %v2572 = vld [vmem:[#allocation13 + $0x50] sm:$0xff]
    %v2573 = vld [vmem:[#allocation13 + $0x58] sm:$0xff]
    %v2574 = vld [vmem:[#allocation13 + $0x60] sm:$0xff]
    %v2575 = vld [vmem:[#allocation13 + $0x68] sm:$0xff]
    %v2576 = vld [vmem:[#allocation13 + $0x70] sm:$0xff]
    %v2577 = vld [vmem:[#allocation13 + $0x78] sm:$0xff]
    %v2578 = vld [vmem:[#allocation13 + $0x80] sm:$0xff]
    %v2579 = vld [vmem:[#allocation13 + $0x88] sm:$0xff]
    %v2580 = vld [vmem:[#allocation13 + $0x90] sm:$0xff]
    %v2581 = vld [vmem:[#allocation13 + $0x98] sm:$0xff]
    %v2582 = vld [vmem:[#allocation13 + $0xa0] sm:$0xff]
    %v2583 = vld [vmem:[#allocation13 + $0xa8] sm:$0xff]
    %v2584 = vld [vmem:[#allocation13 + $0xb0] sm:$0xff]
    %v2585 = vld [vmem:[#allocation13 + $0xb8] sm:$0xff]
    %v2586 = vld [vmem:[#allocation13 + $0xc0] sm:$0xff]
    %v2587 = vld [vmem:[#allocation13 + $0xc8] sm:$0xff]
    %v2588 = vld [vmem:[#allocation13 + $0xd0] sm:$0xff]
    %v2589 = vld [vmem:[#allocation13 + $0xd8] sm:$0xff]
    %v2590 = vld [vmem:[#allocation13 + $0xe0] sm:$0xff]
    %v2591 = vld [vmem:[#allocation13 + $0xe8] sm:$0xff]
    %v2592 = vld [vmem:[#allocation13 + $0xf0] sm:$0xff]
    %v2593 = vld [vmem:[#allocation13 + $0xf8] sm:$0xff]
    %v2594 = vld [vmem:[#allocation13 + $0x100] sm:$0xff]
    %v2595 = vld [vmem:[#allocation13 + $0x108] sm:$0xff]
    %v2596 = vld [vmem:[#allocation13 + $0x110] sm:$0xff]
    %v2597 = vld [vmem:[#allocation13 + $0x118] sm:$0xff]
    %v2598 = vld [vmem:[#allocation13 + $0x120] sm:$0xff]
    %v2599 = vld [vmem:[#allocation13 + $0x128] sm:$0xff]
    %v2600 = vld [vmem:[#allocation13 + $0x130] sm:$0xff]
    %v2601 = vld [vmem:[#allocation13 + $0x138] sm:$0xff]
    %v2602 = vld [vmem:[#allocation13 + $0x140] sm:$0xff]
    %v2603 = vld [vmem:[#allocation13 + $0x148] sm:$0xff]
    %v2604 = vld [vmem:[#allocation13 + $0x150] sm:$0xff]
    %v2605 = vld [vmem:[#allocation13 + $0x158] sm:$0xff]
    %v2606 = vld [vmem:[#allocation13 + $0x160] sm:$0xff]
    %v2607 = vld [vmem:[#allocation13 + $0x168] sm:$0xff]
    %v2608 = vld [vmem:[#allocation13 + $0x170] sm:$0xff]
    %v2609 = vld [vmem:[#allocation13 + $0x178] sm:$0xff]
    %v2610 = vld [vmem:[#allocation13 + $0x180] sm:$0xff]
    %v2611 = vld [vmem:[#allocation13 + $0x188] sm:$0xff]
    %v2612 = vld [vmem:[#allocation13 + $0x190] sm:$0xff]
    %v2613 = vld [vmem:[#allocation13 + $0x198] sm:$0xff]
    %v2614 = vld [vmem:[#allocation13 + $0x1a0] sm:$0xff]
    %v2615 = vld [vmem:[#allocation13 + $0x1a8] sm:$0xff]
    %v2616 = vld [vmem:[#allocation13 + $0x1b0] sm:$0xff]
    %v2617 = vld [vmem:[#allocation13 + $0x1b8] sm:$0xff]
    %v2618 = vld [vmem:[#allocation13 + $0x1c0] sm:$0xff]
    %v2619 = vld [vmem:[#allocation13 + $0x1c8] sm:$0xff]
    %v2620 = vld [vmem:[#allocation13 + $0x1d0] sm:$0xff]
    %v2621 = vld [vmem:[#allocation13 + $0x1d8] sm:$0xff]
    %v2622 = vld [vmem:[#allocation13 + $0x1e0] sm:$0xff]
    %v2623 = vld [vmem:[#allocation13 + $0x1e8] sm:$0xff]
    %v2624 = vld [vmem:[#allocation13 + $0x1f0] sm:$0xff]
    %v2625 = vld [vmem:[#allocation13 + $0x1f8] sm:$0xff]
    %v2626 = vld [vmem:[#allocation13 + $0x200] sm:$0xff]
    %v2627 = vld [vmem:[#allocation13 + $0x208] sm:$0xff]
    %v2628 = vld [vmem:[#allocation13 + $0x210] sm:$0xff]
    %v2629 = vld [vmem:[#allocation13 + $0x218] sm:$0xff]
    %v2630 = vld [vmem:[#allocation13 + $0x220] sm:$0xff]
    %v2631 = vld [vmem:[#allocation13 + $0x228] sm:$0xff]
    %v2632 = vld [vmem:[#allocation13 + $0x230] sm:$0xff]
    %v2633 = vld [vmem:[#allocation13 + $0x238] sm:$0xff]
    %v2634 = vld [vmem:[#allocation13 + $0x240] sm:$0xff]
    %v2635 = vld [vmem:[#allocation13 + $0x248] sm:$0xff]
    %v2636 = vld [vmem:[#allocation13 + $0x250] sm:$0xff]
    %v2637 = vld [vmem:[#allocation13 + $0x258] sm:$0xff]
    %v2638 = vld [vmem:[#allocation13 + $0x260] sm:$0xff]
    %v2639 = vld [vmem:[#allocation13 + $0x268] sm:$0xff]
    %v2640 = vld [vmem:[#allocation13 + $0x270] sm:$0xff]
    %v2641 = vld [vmem:[#allocation13 + $0x278] sm:$0xff]
    %v2642 = vld [vmem:[#allocation13 + $0x280] sm:$0xff]
    %v2643 = vld [vmem:[#allocation13 + $0x288] sm:$0xff]
    %v2644 = vld [vmem:[#allocation13 + $0x290] sm:$0xff]
    %v2645 = vld [vmem:[#allocation13 + $0x298] sm:$0xff]
    %v2646 = vld [vmem:[#allocation13 + $0x2a0] sm:$0xff]
    %v2647 = vld [vmem:[#allocation13 + $0x2a8] sm:$0xff]
    %v2648 = vld [vmem:[#allocation13 + $0x2b0] sm:$0xff]
    %v2649 = vld [vmem:[#allocation13 + $0x2b8] sm:$0xff]
    %v2650 = vld [vmem:[#allocation13 + $0x2c0] sm:$0xff]
    %v2651 = vld [vmem:[#allocation13 + $0x2c8] sm:$0xff]
    %v2652 = vld [vmem:[#allocation13 + $0x2d0] sm:$0xff]
    %v2653 = vld [vmem:[#allocation13 + $0x2d8] sm:$0xff]
    %v2654 = vld [vmem:[#allocation13 + $0x2e0] sm:$0xff]
    %v2655 = vld [vmem:[#allocation13 + $0x2e8] sm:$0xff]
    %v2656 = vld [vmem:[#allocation13 + $0x2f0] sm:$0xff]
    %v2657 = vld [vmem:[#allocation13 + $0x2f8] sm:$0xff]
    %v2658 = vld [vmem:[#allocation13 + $0x300] sm:$0xff]
    %v2659 = vld [vmem:[#allocation13 + $0x308] sm:$0xff]
    %v2660 = vld [vmem:[#allocation13 + $0x310] sm:$0xff]
    %v2661 = vld [vmem:[#allocation13 + $0x318] sm:$0xff]
    %v2662 = vld [vmem:[#allocation13 + $0x320] sm:$0xff]
    %v2663 = vld [vmem:[#allocation13 + $0x328] sm:$0xff]
    %v2664 = vld [vmem:[#allocation13 + $0x330] sm:$0xff]
    %v2665 = vld [vmem:[#allocation13 + $0x338] sm:$0xff]
    %v2666 = vld [vmem:[#allocation13 + $0x340] sm:$0xff]
    %v2667 = vld [vmem:[#allocation13 + $0x348] sm:$0xff]
    %v2668 = vld [vmem:[#allocation13 + $0x350] sm:$0xff]
    %v2669 = vld [vmem:[#allocation13 + $0x358] sm:$0xff]
    %v2670 = vld [vmem:[#allocation13 + $0x360] sm:$0xff]
    %v2671 = vld [vmem:[#allocation13 + $0x368] sm:$0xff]
    %v2672 = vld [vmem:[#allocation13 + $0x370] sm:$0xff]
    %v2673 = vld [vmem:[#allocation13 + $0x378] sm:$0xff]
    %v2674 = vld [vmem:[#allocation13 + $0x380] sm:$0xff]
    %v2675 = vld [vmem:[#allocation13 + $0x388] sm:$0xff]
    %v2676 = vld [vmem:[#allocation13 + $0x390] sm:$0xff]
    %v2677 = vld [vmem:[#allocation13 + $0x398] sm:$0xff]
    %v2678 = vld [vmem:[#allocation13 + $0x3a0] sm:$0xff]
    %v2679 = vld [vmem:[#allocation13 + $0x3a8] sm:$0xff]
    %v2680 = vld [vmem:[#allocation13 + $0x3b0] sm:$0xff]
    %v2681 = vld [vmem:[#allocation13 + $0x3b8] sm:$0xff]
    %v2682 = vld [vmem:[#allocation13 + $0x3c0] sm:$0xff]
    %v2683 = vld [vmem:[#allocation13 + $0x3c8] sm:$0xff]
    %v2684 = vld [vmem:[#allocation13 + $0x3d0] sm:$0xff]
    %v2685 = vld [vmem:[#allocation13 + $0x3d8] sm:$0xff]
    %v2686 = vld [vmem:[#allocation13 + $0x3e0] sm:$0xff]
    %v2687 = vld [vmem:[#allocation13 + $0x3e8] sm:$0xff]
    %v2688 = vld [vmem:[#allocation13 + $0x3f0] sm:$0xff]
    %v2689 = vld [vmem:[#allocation13 + $0x3f8] sm:$0xff]
    %v2690 = vld [vmem:[#allocation13 + $0x400] sm:$0xff]
    %v2691 = vld [vmem:[#allocation13 + $0x408] sm:$0xff]
    %v2692 = vld [vmem:[#allocation13 + $0x410] sm:$0xff]
    %v2693 = vld [vmem:[#allocation13 + $0x418] sm:$0xff]
    %v2694 = vld [vmem:[#allocation13 + $0x420] sm:$0xff]
    %v2695 = vld [vmem:[#allocation13 + $0x428] sm:$0xff]
    %v2696 = vld [vmem:[#allocation13 + $0x430] sm:$0xff]
    %v2697 = vld [vmem:[#allocation13 + $0x438] sm:$0xff]
    %v2698 = vld [vmem:[#allocation13 + $0x440] sm:$0xff]
    %v2699 = vld [vmem:[#allocation13 + $0x448] sm:$0xff]
    %v2700 = vld [vmem:[#allocation13 + $0x450] sm:$0xff]
    %v2701 = vld [vmem:[#allocation13 + $0x458] sm:$0xff]
    %v2702 = vld [vmem:[#allocation13 + $0x460] sm:$0xff]
    %v2703 = vld [vmem:[#allocation13 + $0x468] sm:$0xff]
    %v2704 = vld [vmem:[#allocation13 + $0x470] sm:$0xff]
    %v2705 = vld [vmem:[#allocation13 + $0x478] sm:$0xff]
    %v2706 = vld [vmem:[#allocation13 + $0x480] sm:$0xff]
    %v2707 = vld [vmem:[#allocation13 + $0x488] sm:$0xff]
    %v2708 = vld [vmem:[#allocation13 + $0x490] sm:$0xff]
    %v2709 = vld [vmem:[#allocation13 + $0x498] sm:$0xff]
    %v2710 = vld [vmem:[#allocation13 + $0x4a0] sm:$0xff]
    %v2711 = vld [vmem:[#allocation13 + $0x4a8] sm:$0xff]
    %v2712 = vld [vmem:[#allocation13 + $0x4b0] sm:$0xff]
    %v2713 = vld [vmem:[#allocation13 + $0x4b8] sm:$0xff]
    %v2714 = vld [vmem:[#allocation13 + $0x4c0] sm:$0xff]
    %v2715 = vld [vmem:[#allocation13 + $0x4c8] sm:$0xff]
    %v2716 = vld [vmem:[#allocation13 + $0x4d0] sm:$0xff]
    %v2717 = vld [vmem:[#allocation13 + $0x4d8] sm:$0xff]
    %v2718 = vld [vmem:[#allocation13 + $0x4e0] sm:$0xff]
    %v2719 = vld [vmem:[#allocation13 + $0x4e8] sm:$0xff]
    %v2720 = vld [vmem:[#allocation13 + $0x4f0] sm:$0xff]
    %v2721 = vld [vmem:[#allocation13 + $0x4f8] sm:$0xff]
    %v2722 = vld [vmem:[#allocation13 + $0x500] sm:$0xff]
    %v2723 = vld [vmem:[#allocation13 + $0x508] sm:$0xff]
    %v2724 = vld [vmem:[#allocation13 + $0x510] sm:$0xff]
    %v2725 = vld [vmem:[#allocation13 + $0x518] sm:$0xff]
    %v2726 = vld [vmem:[#allocation13 + $0x520] sm:$0xff]
    %v2727 = vld [vmem:[#allocation13 + $0x528] sm:$0xff]
    %v2728 = vld [vmem:[#allocation13 + $0x530] sm:$0xff]
    %v2729 = vld [vmem:[#allocation13 + $0x538] sm:$0xff]
    %v2730 = vld [vmem:[#allocation13 + $0x540] sm:$0xff]
    %v2731 = vld [vmem:[#allocation13 + $0x548] sm:$0xff]
    %v2732 = vld [vmem:[#allocation13 + $0x550] sm:$0xff]
    %v2733 = vld [vmem:[#allocation13 + $0x558] sm:$0xff]
    %v2734 = vld [vmem:[#allocation13 + $0x560] sm:$0xff]
    %v2735 = vld [vmem:[#allocation13 + $0x568] sm:$0xff]
    %v2736 = vld [vmem:[#allocation13 + $0x570] sm:$0xff]
    %v2737 = vld [vmem:[#allocation13 + $0x578] sm:$0xff]
    %v2738 = vld [vmem:[#allocation13 + $0x580] sm:$0xff]
    %v2739 = vld [vmem:[#allocation13 + $0x588] sm:$0xff]
    %v2740 = vld [vmem:[#allocation13 + $0x590] sm:$0xff]
    %v2741 = vld [vmem:[#allocation13 + $0x598] sm:$0xff]
    %v2742 = vld [vmem:[#allocation13 + $0x5a0] sm:$0xff]
    %v2743 = vld [vmem:[#allocation13 + $0x5a8] sm:$0xff]
    %v2744 = vld [vmem:[#allocation13 + $0x5b0] sm:$0xff]
    %v2745 = vld [vmem:[#allocation13 + $0x5b8] sm:$0xff]
    %v2746 = vld [vmem:[#allocation13 + $0x5c0] sm:$0xff]
    %v2747 = vld [vmem:[#allocation13 + $0x5c8] sm:$0xff]
    %v2748 = vld [vmem:[#allocation13 + $0x5d0] sm:$0xff]
    %v2749 = vld [vmem:[#allocation13 + $0x5d8] sm:$0xff]
    %v2750 = vld [vmem:[#allocation13 + $0x5e0] sm:$0xff]
    %v2751 = vld [vmem:[#allocation13 + $0x5e8] sm:$0xff]
    %v2752 = vld [vmem:[#allocation13 + $0x5f0] sm:$0xff]
    %v2753 = vld [vmem:[#allocation13 + $0x5f8] sm:$0xff]
    %v2755 = vlaneseq
    %v2756 = vshrl.u32 %v2755, 7
    %v2757 = vsub.s32 0, %v2756
    %v2758 = vrot.slane %v2040, %v2757
    %v2759 = vlaneseq
    %v2760 = vshrl.u32 %v2759, 7
    %v2761 = vsub.s32 1, %v2760
    %v2762 = vrot.slane %v2040, %v2761
    %2765 = vmatprep.subr.mxu0 %v2563
    %2766 = vmatpush1.msra.mxu0 %v2562
    %2767 = vmatprep.subr.mxu0 %v2569
    %2768 = vmatpush1.msra.mxu0 %v2568
    %2769 = vmatprep.subr.mxu0 %v2575
    %2770 = vmatpush1.msra.mxu0 %v2574
    %2771 = vmatprep.subr.mxu0 %v2581
    %2772 = vmatpush1.msra.mxu0 %v2580
    %2773 = vmatprep.subr.mxu0 %v2587
    %2774 = vmatpush1.msra.mxu0 %v2586
    %2775 = vmatprep.subr.mxu0 %v2593
    %2776 = vmatpush1.msra.mxu0 %v2592
    %2777 = vmatprep.subr.mxu0 %v2599
    %2778 = vmatpush1.msra.mxu0 %v2598
    %2779 = vmatprep.subr.mxu0 %v2605
    %2780 = vmatpush1.msra.mxu0 %v2604
    %2781 = vmatprep.subr.mxu0 %v2611
    %2782 = vmatpush1.msra.mxu0 %v2610
    %2783 = vmatprep.subr.mxu0 %v2617
    %2784 = vmatpush1.msra.mxu0 %v2616
    %2785 = vmatprep.subr.mxu0 %v2623
    %2786 = vmatpush1.msra.mxu0 %v2622
    %2787 = vmatprep.subr.mxu0 %v2629
    %2788 = vmatpush1.msra.mxu0 %v2628
    %2789 = vmatprep.subr.mxu0 %v2635
    %2790 = vmatpush1.msra.mxu0 %v2634
    %2791 = vmatprep.subr.mxu0 %v2641
    %2792 = vmatpush1.msra.mxu0 %v2640
    %2793 = vmatprep.subr.mxu0 %v2647
    %2794 = vmatpush1.msra.mxu0 %v2646
    %2795 = vmatprep.subr.mxu0 %v2653
    %2796 = vmatpush1.msra.mxu0 %v2652
    %2797 = vmatprep.subr.mxu0 %v2659
    %2798 = vmatpush1.msra.mxu0 %v2658
    %2799 = vmatprep.subr.mxu0 %v2665
    %2800 = vmatpush1.msra.mxu0 %v2664
    %2801 = vmatprep.subr.mxu0 %v2671
    %2802 = vmatpush1.msra.mxu0 %v2670
    %2803 = vmatprep.subr.mxu0 %v2677
    %2804 = vmatpush1.msra.mxu0 %v2676
    %2805 = vmatprep.subr.mxu0 %v2683
    %2806 = vmatpush1.msra.mxu0 %v2682
    %2807 = vmatprep.subr.mxu0 %v2689
    %2808 = vmatpush1.msra.mxu0 %v2688
    %2809 = vmatprep.subr.mxu0 %v2695
    %2810 = vmatpush1.msra.mxu0 %v2694
    %2811 = vmatprep.subr.mxu0 %v2701
    %2812 = vmatpush1.msra.mxu0 %v2700
    %2813 = vmatprep.subr.mxu0 %v2707
    %2814 = vmatpush1.msra.mxu0 %v2706
    %2815 = vmatprep.subr.mxu0 %v2713
    %2816 = vmatpush1.msra.mxu0 %v2712
    %2817 = vmatprep.subr.mxu0 %v2719
    %2818 = vmatpush1.msra.mxu0 %v2718
    %2819 = vmatprep.subr.mxu0 %v2725
    %2820 = vmatpush1.msra.mxu0 %v2724
    %2821 = vmatprep.subr.mxu0 %v2731
    %2822 = vmatpush1.msra.mxu0 %v2730
    %2823 = vmatprep.subr.mxu0 %v2737
    %2824 = vmatpush1.msra.mxu0 %v2736
    %2825 = vmatprep.subr.mxu0 %v2743
    %2826 = vmatpush1.msra.mxu0 %v2742
    %2827 = vmatprep.subr.mxu0 %v2749
    %2828 = vmatpush1.msra.mxu0 %v2748
    %2829 = vmatprep.mubr.f32.mxu0 %v2762
    %2830 = vmatmul.mubr.f32.gmra.mrb[0].mxu0 %v2758
    %v2831 = vpop.f32.mrb[0].mxu0
    %v2832 = vadd.f32 0.0, %v2831
    %v2833 = vpop.f32.mrb[0].mxu0
    %v2834 = vadd.f32 0.0, %v2833
    %2835 = vdwg.mxu0
    %2836 = vmatprep.subr.mxu0 %v2565
    %2837 = vmatpush1.msra.mxu0 %v2564
    %2838 = vmatprep.subr.mxu0 %v2571
    %2839 = vmatpush1.msra.mxu0 %v2570
    %2840 = vmatprep.subr.mxu0 %v2577
    %2841 = vmatpush1.msra.mxu0 %v2576
    %2842 = vmatprep.subr.mxu0 %v2583
    %2843 = vmatpush1.msra.mxu0 %v2582
    %2844 = vmatprep.subr.mxu0 %v2589
    %2845 = vmatpush1.msra.mxu0 %v2588
    %2846 = vmatprep.subr.mxu0 %v2595
    %2847 = vmatpush1.msra.mxu0 %v2594
    %2848 = vmatprep.subr.mxu0 %v2601
    %2849 = vmatpush1.msra.mxu0 %v2600
    %2850 = vmatprep.subr.mxu0 %v2607
    %2851 = vmatpush1.msra.mxu0 %v2606
    %2852 = vmatprep.subr.mxu0 %v2613
    %2853 = vmatpush1.msra.mxu0 %v2612
    %2854 = vmatprep.subr.mxu0 %v2619
    %2855 = vmatpush1.msra.mxu0 %v2618
    %2856 = vmatprep.subr.mxu0 %v2625
    %2857 = vmatpush1.msra.mxu0 %v2624
    %2858 = vmatprep.subr.mxu0 %v2631
    %2859 = vmatpush1.msra.mxu0 %v2630
    %2860 = vmatprep.subr.mxu0 %v2637
    %2861 = vmatpush1.msra.mxu0 %v2636
    %2862 = vmatprep.subr.mxu0 %v2643
    %2863 = vmatpush1.msra.mxu0 %v2642
    %2864 = vmatprep.subr.mxu0 %v2649
    %2865 = vmatpush1.msra.mxu0 %v2648
    %2866 = vmatprep.subr.mxu0 %v2655
    %2867 = vmatpush1.msra.mxu0 %v2654
    %2868 = vmatprep.subr.mxu0 %v2661
    %2869 = vmatpush1.msra.mxu0 %v2660
    %2870 = vmatprep.subr.mxu0 %v2667
    %2871 = vmatpush1.msra.mxu0 %v2666
    %2872 = vmatprep.subr.mxu0 %v2673
    %2873 = vmatpush1.msra.mxu0 %v2672
    %2874 = vmatprep.subr.mxu0 %v2679
    %2875 = vmatpush1.msra.mxu0 %v2678
    %2876 = vmatprep.subr.mxu0 %v2685
    %2877 = vmatpush1.msra.mxu0 %v2684
    %2878 = vmatprep.subr.mxu0 %v2691
    %2879 = vmatpush1.msra.mxu0 %v2690
    %2880 = vmatprep.subr.mxu0 %v2697
    %2881 = vmatpush1.msra.mxu0 %v2696
    %2882 = vmatprep.subr.mxu0 %v2703
    %2883 = vmatpush1.msra.mxu0 %v2702
    %2884 = vmatprep.subr.mxu0 %v2709
    %2885 = vmatpush1.msra.mxu0 %v2708
    %2886 = vmatprep.subr.mxu0 %v2715
    %2887 = vmatpush1.msra.mxu0 %v2714
    %2888 = vmatprep.subr.mxu0 %v2721
    %2889 = vmatpush1.msra.mxu0 %v2720
    %2890 = vmatprep.subr.mxu0 %v2727
    %2891 = vmatpush1.msra.mxu0 %v2726
    %2892 = vmatprep.subr.mxu0 %v2733
    %2893 = vmatpush1.msra.mxu0 %v2732
    %2894 = vmatprep.subr.mxu0 %v2739
    %2895 = vmatpush1.msra.mxu0 %v2738
    %2896 = vmatprep.subr.mxu0 %v2745
    %2897 = vmatpush1.msra.mxu0 %v2744
    %2898 = vmatprep.subr.mxu0 %v2751
    %2899 = vmatpush1.msra.mxu0 %v2750
    %2900 = vmatprep.mubr.f32.mxu0 %v2762
    %2901 = vmatmul.mubr.f32.gmra.mrb[0].mxu0 %v2758
    %v2902 = vpop.f32.mrb[0].mxu0
    %v2903 = vadd.f32 0.0, %v2902
    %v2904 = vpop.f32.mrb[0].mxu0
    %v2905 = vadd.f32 0.0, %v2904
    %2906 = vdwg.mxu0
    %2907 = vmatprep.subr.mxu0 %v2567
    %2908 = vmatpush1.msra.mxu0 %v2566
    %2909 = vmatprep.subr.mxu0 %v2573
    %2910 = vmatpush1.msra.mxu0 %v2572
    %2911 = vmatprep.subr.mxu0 %v2579
    %2912 = vmatpush1.msra.mxu0 %v2578
    %2913 = vmatprep.subr.mxu0 %v2585
    %2914 = vmatpush1.msra.mxu0 %v2584
    %2915 = vmatprep.subr.mxu0 %v2591
    %2916 = vmatpush1.msra.mxu0 %v2590
    %2917 = vmatprep.subr.mxu0 %v2597
    %2918 = vmatpush1.msra.mxu0 %v2596
    %2919 = vmatprep.subr.mxu0 %v2603
    %2920 = vmatpush1.msra.mxu0 %v2602
    %2921 = vmatprep.subr.mxu0 %v2609
    %2922 = vmatpush1.msra.mxu0 %v2608
    %2923 = vmatprep.subr.mxu0 %v2615
    %2924 = vmatpush1.msra.mxu0 %v2614
    %2925 = vmatprep.subr.mxu0 %v2621
    %2926 = vmatpush1.msra.mxu0 %v2620
    %2927 = vmatprep.subr.mxu0 %v2627
    %2928 = vmatpush1.msra.mxu0 %v2626
    %2929 = vmatprep.subr.mxu0 %v2633
    %2930 = vmatpush1.msra.mxu0 %v2632
    %2931 = vmatprep.subr.mxu0 %v2639
    %2932 = vmatpush1.msra.mxu0 %v2638
    %2933 = vmatprep.subr.mxu0 %v2645
    %2934 = vmatpush1.msra.mxu0 %v2644
    %2935 = vmatprep.subr.mxu0 %v2651
    %2936 = vmatpush1.msra.mxu0 %v2650
    %2937 = vmatprep.subr.mxu0 %v2657
    %2938 = vmatpush1.msra.mxu0 %v2656
    %2939 = vmatprep.subr.mxu0 %v2663
    %2940 = vmatpush1.msra.mxu0 %v2662
    %2941 = vmatprep.subr.mxu0 %v2669
    %2942 = vmatpush1.msra.mxu0 %v2668
    %2943 = vmatprep.subr.mxu0 %v2675
    %2944 = vmatpush1.msra.mxu0 %v2674
    %2945 = vmatprep.subr.mxu0 %v2681
    %2946 = vmatpush1.msra.mxu0 %v2680
    %2947 = vmatprep.subr.mxu0 %v2687
    %2948 = vmatpush1.msra.mxu0 %v2686
    %2949 = vmatprep.subr.mxu0 %v2693
    %2950 = vmatpush1.msra.mxu0 %v2692
    %2951 = vmatprep.subr.mxu0 %v2699
    %2952 = vmatpush1.msra.mxu0 %v2698
    %2953 = vmatprep.subr.mxu0 %v2705
    %2954 = vmatpush1.msra.mxu0 %v2704
    %2955 = vmatprep.subr.mxu0 %v2711
    %2956 = vmatpush1.msra.mxu0 %v2710
    %2957 = vmatprep.subr.mxu0 %v2717
    %2958 = vmatpush1.msra.mxu0 %v2716
    %2959 = vmatprep.subr.mxu0 %v2723
    %2960 = vmatpush1.msra.mxu0 %v2722
    %2961 = vmatprep.subr.mxu0 %v2729
    %2962 = vmatpush1.msra.mxu0 %v2728
    %2963 = vmatprep.subr.mxu0 %v2735
    %2964 = vmatpush1.msra.mxu0 %v2734
    %2965 = vmatprep.subr.mxu0 %v2741
    %2966 = vmatpush1.msra.mxu0 %v2740
    %2967 = vmatprep.subr.mxu0 %v2747
    %2968 = vmatpush1.msra.mxu0 %v2746
    %2969 = vmatprep.subr.mxu0 %v2753
    %2970 = vmatpush1.msra.mxu0 %v2752
    %2971 = vmatprep.mubr.f32.mxu0 %v2762
    %2972 = vmatmul.mubr.f32.gmra.mrb[0].mxu0 %v2758
    %v2973 = vpop.f32.mrb[0].mxu0
    %v2974 = vadd.f32 0.0, %v2973
    %v2975 = vpop.f32.mrb[0].mxu0
    %v2976 = vadd.f32 0.0, %v2975
    %2977 = vdwg.mxu0
    %v2980 = vcombine.low %v2832, %v2834
    %v2982 = vunpack.c.l.s4 1966171168
    %v2983 = vunpack.c.0.s8 %v2982
    %v2984 = vlaneseq
    %v2985 = vshrl.u32 %v2984, 7
    %v2986 = vsub.s32 %v2983, %v2985
    %v2987 = vrot.slane %v2980, %v2986
    %v2989 = vunpack.c.l.s4 1966171168
    %v2990 = vunpack.c.0.s8 %v2989
    %v2991 = vlaneseq
    %v2992 = vshrl.u32 %v2991, 7
    %v2993 = vsub.s32 %v2990, %v2992
    %v2994 = vrot.slane %v2987, %v2993
    %v2996 = vadd.f32 %v2561, %v2994
    %v2997 = vxor.u32 %v2996, 2147483648
    %v2998 = vmul.f32 %v2997, 1.442695
    %v2999 = vpow.pop %v2998
    %v3000 = vadd.f32 %v2999, 1.0
    %v3001 = vrcp.pop %v3000
    %v3002 = vmul.f32 1.0, %v3001
    %v3004 = vrot.slane %v2561, 2
    %v3008 = vcombine.low %v2903, %v2905
    %v3010 = vunpack.c.l.s4 1966171168
    %v3011 = vunpack.c.0.s8 %v3010
    %v3012 = vlaneseq
    %v3013 = vshrl.u32 %v3012, 7
    %v3014 = vsub.s32 %v3011, %v3013
    %v3015 = vrot.slane %v3008, %v3014
    %v3017 = vunpack.c.l.s4 1966171168
    %v3018 = vunpack.c.0.s8 %v3017
    %v3019 = vlaneseq
    %v3020 = vshrl.u32 %v3019, 7
    %v3021 = vsub.s32 %v3018, %v3020
    %v3022 = vrot.slane %v3015, %v3021
    %v3024 = vadd.f32 %v3004, %v3022
    %v3025 = vxor.u32 %v3024, 2147483648
    %v3026 = vmul.f32 %v3025, 1.442695
    %v3027 = vpow.pop %v3026
    %v3028 = vadd.f32 %v3027, 1.0
    %v3029 = vrcp.pop %v3028
    %v3030 = vmul.f32 1.0, %v3029
    %v3031 = vld [vmem:[%s9] sm:$0x3]
    %v3033 = vlaneseq
    %v3034 = vshrl.u32 %v3033, 7
    %v3035 = vsub.s32 0, %v3034
    %v3036 = vrot.slane %v3031, %v3035
    %v3037 = vlaneseq
    %v3038 = vshrl.u32 %v3037, 7
    %v3039 = vsub.s32 1, %v3038
    %v3040 = vrot.slane %v3031, %v3039
    %v3043 = vadd.f32 %v2974, %v3036
    %v3044 = vadd.f32 %v2976, %v3040
    %v3047 = vcombine.low %v3043, %v3044
    %v3049 = vunpack.c.l.s4 1966171168
    %v3050 = vunpack.c.0.s8 %v3049
    %v3051 = vlaneseq
    %v3052 = vshrl.u32 %v3051, 7
    %v3053 = vsub.s32 %v3050, %v3052
    %v3054 = vrot.slane %v3047, %v3053
    %v3056 = vunpack.c.l.s4 1966171168
    %v3057 = vunpack.c.0.s8 %v3056
    %v3058 = vlaneseq
    %v3059 = vshrl.u32 %v3058, 7
    %v3060 = vsub.s32 %v3057, %v3059
    %v3061 = vrot.slane %v3054, %v3060
    %v3063 = vmul.f32 %v3002, %v3061
    %v3064 = vrot.slane %v2561, 4
    %v3066 = vadd.f32 %v3064, %v3063
    %v3067 = vtanh.pop %v3066
    %v3068 = vsub.f32 1.0, %v3030
    %v3069 = vmul.f32 %v3068, %v3067
    %v3070 = vmul.f32 %v3030, %v2040
    %v3071 = vadd.f32 %v3069, %v3070
    %s3072 = scalar_lea.vmem [#allocation4], 1
    %3073 = vst.msk [vmem:[%s3072] ss:$4 sm:$0x3] %vm2044, %v2559
    %s3074 = scalar_lea.vmem [#allocation4], 10
    %3075 = vst.msk [vmem:[%s3074] ss:$4 sm:$0x3] %vm2044, %v3071
    %s3076 = scalar_lea.vmem [#allocation2], 2
    %v3077 = vld [vmem:[%s3076] ss:$4 sm:$0x3f]
    %v3078 = vld [vmem:[#allocation9] sm:$0xff]
    %v3079 = vld [vmem:[#allocation9 + $0x8] sm:$0xff]
    %v3080 = vld [vmem:[#allocation9 + $0x10] sm:$0xff]
    %v3081 = vld [vmem:[#allocation9 + $0x18] sm:$0xff]
    %v3082 = vld [vmem:[#allocation9 + $0x20] sm:$0xff]
    %v3083 = vld [vmem:[#allocation9 + $0x28] sm:$0xff]
    %v3084 = vld [vmem:[#allocation9 + $0x30] sm:$0xff]
    %v3085 = vld [vmem:[#allocation9 + $0x38] sm:$0xff]
    %v3086 = vld [vmem:[#allocation9 + $0x40] sm:$0xff]
    %v3087 = vld [vmem:[#allocation9 + $0x48] sm:$0xff]
    %v3088 = vld [vmem:[#allocation9 + $0x50] sm:$0xff]
    %v3089 = vld [vmem:[#allocation9 + $0x58] sm:$0xff]
    %v3090 = vld [vmem:[#allocation9 + $0x60] sm:$0xff]
    %v3091 = vld [vmem:[#allocation9 + $0x68] sm:$0xff]
    %v3092 = vld [vmem:[#allocation9 + $0x70] sm:$0xff]
    %v3093 = vld [vmem:[#allocation9 + $0x78] sm:$0xff]
    %v3094 = vld [vmem:[#allocation9 + $0x80] sm:$0xff]
    %v3095 = vld [vmem:[#allocation9 + $0x88] sm:$0xff]
    %v3096 = vld [vmem:[#allocation9 + $0x90] sm:$0xff]
    %v3097 = vld [vmem:[#allocation9 + $0x98] sm:$0xff]
    %v3098 = vld [vmem:[#allocation9 + $0xa0] sm:$0xff]
    %v3099 = vld [vmem:[#allocation9 + $0xa8] sm:$0xff]
    %v3100 = vld [vmem:[#allocation9 + $0xb0] sm:$0xff]
    %v3101 = vld [vmem:[#allocation9 + $0xb8] sm:$0xff]
    %v3102 = vld [vmem:[#allocation9 + $0xc0] sm:$0xff]
    %v3103 = vld [vmem:[#allocation9 + $0xc8] sm:$0xff]
    %v3104 = vld [vmem:[#allocation9 + $0xd0] sm:$0xff]
    %v3105 = vld [vmem:[#allocation9 + $0xd8] sm:$0xff]
    %v3106 = vld [vmem:[#allocation9 + $0xe0] sm:$0xff]
    %v3107 = vld [vmem:[#allocation9 + $0xe8] sm:$0xff]
    %v3108 = vld [vmem:[#allocation9 + $0xf0] sm:$0xff]
    %v3109 = vld [vmem:[#allocation9 + $0xf8] sm:$0xff]
    %v3110 = vld [vmem:[#allocation9 + $0x100] sm:$0xff]
    %v3111 = vld [vmem:[#allocation9 + $0x108] sm:$0xff]
    %v3112 = vld [vmem:[#allocation9 + $0x110] sm:$0xff]
    %v3113 = vld [vmem:[#allocation9 + $0x118] sm:$0xff]
    %v3114 = vld [vmem:[#allocation9 + $0x120] sm:$0xff]
    %v3115 = vld [vmem:[#allocation9 + $0x128] sm:$0xff]
    %v3116 = vld [vmem:[#allocation9 + $0x130] sm:$0xff]
    %v3117 = vld [vmem:[#allocation9 + $0x138] sm:$0xff]
    %v3118 = vld [vmem:[#allocation9 + $0x140] sm:$0xff]
    %v3119 = vld [vmem:[#allocation9 + $0x148] sm:$0xff]
    %v3120 = vld [vmem:[#allocation9 + $0x150] sm:$0xff]
    %v3121 = vld [vmem:[#allocation9 + $0x158] sm:$0xff]
    %v3122 = vld [vmem:[#allocation9 + $0x160] sm:$0xff]
    %v3123 = vld [vmem:[#allocation9 + $0x168] sm:$0xff]
    %v3124 = vld [vmem:[#allocation9 + $0x170] sm:$0xff]
    %v3125 = vld [vmem:[#allocation9 + $0x178] sm:$0xff]
    %v3126 = vld [vmem:[#allocation9 + $0x180] sm:$0xff]
    %v3127 = vld [vmem:[#allocation9 + $0x188] sm:$0xff]
    %v3128 = vld [vmem:[#allocation9 + $0x190] sm:$0xff]
    %v3129 = vld [vmem:[#allocation9 + $0x198] sm:$0xff]
    %v3130 = vld [vmem:[#allocation9 + $0x1a0] sm:$0xff]
    %v3131 = vld [vmem:[#allocation9 + $0x1a8] sm:$0xff]
    %v3132 = vld [vmem:[#allocation9 + $0x1b0] sm:$0xff]
    %v3133 = vld [vmem:[#allocation9 + $0x1b8] sm:$0xff]
    %v3134 = vld [vmem:[#allocation9 + $0x1c0] sm:$0xff]
    %v3135 = vld [vmem:[#allocation9 + $0x1c8] sm:$0xff]
    %v3136 = vld [vmem:[#allocation9 + $0x1d0] sm:$0xff]
    %v3137 = vld [vmem:[#allocation9 + $0x1d8] sm:$0xff]
    %v3138 = vld [vmem:[#allocation9 + $0x1e0] sm:$0xff]
    %v3139 = vld [vmem:[#allocation9 + $0x1e8] sm:$0xff]
    %v3140 = vld [vmem:[#allocation9 + $0x1f0] sm:$0xff]
    %v3141 = vld [vmem:[#allocation9 + $0x1f8] sm:$0xff]
    %v3142 = vld [vmem:[#allocation9 + $0x200] sm:$0xff]
    %v3143 = vld [vmem:[#allocation9 + $0x208] sm:$0xff]
    %v3144 = vld [vmem:[#allocation9 + $0x210] sm:$0xff]
    %v3145 = vld [vmem:[#allocation9 + $0x218] sm:$0xff]
    %v3146 = vld [vmem:[#allocation9 + $0x220] sm:$0xff]
    %v3147 = vld [vmem:[#allocation9 + $0x228] sm:$0xff]
    %v3148 = vld [vmem:[#allocation9 + $0x230] sm:$0xff]
    %v3149 = vld [vmem:[#allocation9 + $0x238] sm:$0xff]
    %v3150 = vld [vmem:[#allocation9 + $0x240] sm:$0xff]
    %v3151 = vld [vmem:[#allocation9 + $0x248] sm:$0xff]
    %v3152 = vld [vmem:[#allocation9 + $0x250] sm:$0xff]
    %v3153 = vld [vmem:[#allocation9 + $0x258] sm:$0xff]
    %v3154 = vld [vmem:[#allocation9 + $0x260] sm:$0xff]
    %v3155 = vld [vmem:[#allocation9 + $0x268] sm:$0xff]
    %v3156 = vld [vmem:[#allocation9 + $0x270] sm:$0xff]
    %v3157 = vld [vmem:[#allocation9 + $0x278] sm:$0xff]
    %v3158 = vld [vmem:[#allocation9 + $0x280] sm:$0xff]
    %v3159 = vld [vmem:[#allocation9 + $0x288] sm:$0xff]
    %v3160 = vld [vmem:[#allocation9 + $0x290] sm:$0xff]
    %v3161 = vld [vmem:[#allocation9 + $0x298] sm:$0xff]
    %v3162 = vld [vmem:[#allocation9 + $0x2a0] sm:$0xff]
    %v3163 = vld [vmem:[#allocation9 + $0x2a8] sm:$0xff]
    %v3164 = vld [vmem:[#allocation9 + $0x2b0] sm:$0xff]
    %v3165 = vld [vmem:[#allocation9 + $0x2b8] sm:$0xff]
    %v3166 = vld [vmem:[#allocation9 + $0x2c0] sm:$0xff]
    %v3167 = vld [vmem:[#allocation9 + $0x2c8] sm:$0xff]
    %v3168 = vld [vmem:[#allocation9 + $0x2d0] sm:$0xff]
    %v3169 = vld [vmem:[#allocation9 + $0x2d8] sm:$0xff]
    %v3170 = vld [vmem:[#allocation9 + $0x2e0] sm:$0xff]
    %v3171 = vld [vmem:[#allocation9 + $0x2e8] sm:$0xff]
    %v3172 = vld [vmem:[#allocation9 + $0x2f0] sm:$0xff]
    %v3173 = vld [vmem:[#allocation9 + $0x2f8] sm:$0xff]
    %v3174 = vld [vmem:[#allocation9 + $0x300] sm:$0xff]
    %v3175 = vld [vmem:[#allocation9 + $0x308] sm:$0xff]
    %v3176 = vld [vmem:[#allocation9 + $0x310] sm:$0xff]
    %v3177 = vld [vmem:[#allocation9 + $0x318] sm:$0xff]
    %v3178 = vld [vmem:[#allocation9 + $0x320] sm:$0xff]
    %v3179 = vld [vmem:[#allocation9 + $0x328] sm:$0xff]
    %v3180 = vld [vmem:[#allocation9 + $0x330] sm:$0xff]
    %v3181 = vld [vmem:[#allocation9 + $0x338] sm:$0xff]
    %v3182 = vld [vmem:[#allocation9 + $0x340] sm:$0xff]
    %v3183 = vld [vmem:[#allocation9 + $0x348] sm:$0xff]
    %v3184 = vld [vmem:[#allocation9 + $0x350] sm:$0xff]
    %v3185 = vld [vmem:[#allocation9 + $0x358] sm:$0xff]
    %v3186 = vld [vmem:[#allocation9 + $0x360] sm:$0xff]
    %v3187 = vld [vmem:[#allocation9 + $0x368] sm:$0xff]
    %v3188 = vld [vmem:[#allocation9 + $0x370] sm:$0xff]
    %v3189 = vld [vmem:[#allocation9 + $0x378] sm:$0xff]
    %v3190 = vld [vmem:[#allocation9 + $0x380] sm:$0xff]
    %v3191 = vld [vmem:[#allocation9 + $0x388] sm:$0xff]
    %v3192 = vld [vmem:[#allocation9 + $0x390] sm:$0xff]
    %v3193 = vld [vmem:[#allocation9 + $0x398] sm:$0xff]
    %v3194 = vld [vmem:[#allocation9 + $0x3a0] sm:$0xff]
    %v3195 = vld [vmem:[#allocation9 + $0x3a8] sm:$0xff]
    %v3196 = vld [vmem:[#allocation9 + $0x3b0] sm:$0xff]
    %v3197 = vld [vmem:[#allocation9 + $0x3b8] sm:$0xff]
    %v3198 = vld [vmem:[#allocation9 + $0x3c0] sm:$0xff]
    %v3199 = vld [vmem:[#allocation9 + $0x3c8] sm:$0xff]
    %v3200 = vld [vmem:[#allocation9 + $0x3d0] sm:$0xff]
    %v3201 = vld [vmem:[#allocation9 + $0x3d8] sm:$0xff]
    %v3202 = vld [vmem:[#allocation9 + $0x3e0] sm:$0xff]
    %v3203 = vld [vmem:[#allocation9 + $0x3e8] sm:$0xff]
    %v3204 = vld [vmem:[#allocation9 + $0x3f0] sm:$0xff]
    %v3205 = vld [vmem:[#allocation9 + $0x3f8] sm:$0xff]
    %v3206 = vld [vmem:[#allocation9 + $0x400] sm:$0xff]
    %v3207 = vld [vmem:[#allocation9 + $0x408] sm:$0xff]
    %v3208 = vld [vmem:[#allocation9 + $0x410] sm:$0xff]
    %v3209 = vld [vmem:[#allocation9 + $0x418] sm:$0xff]
    %v3210 = vld [vmem:[#allocation9 + $0x420] sm:$0xff]
    %v3211 = vld [vmem:[#allocation9 + $0x428] sm:$0xff]
    %v3212 = vld [vmem:[#allocation9 + $0x430] sm:$0xff]
    %v3213 = vld [vmem:[#allocation9 + $0x438] sm:$0xff]
    %v3214 = vld [vmem:[#allocation9 + $0x440] sm:$0xff]
    %v3215 = vld [vmem:[#allocation9 + $0x448] sm:$0xff]
    %v3216 = vld [vmem:[#allocation9 + $0x450] sm:$0xff]
    %v3217 = vld [vmem:[#allocation9 + $0x458] sm:$0xff]
    %v3218 = vld [vmem:[#allocation9 + $0x460] sm:$0xff]
    %v3219 = vld [vmem:[#allocation9 + $0x468] sm:$0xff]
    %v3220 = vld [vmem:[#allocation9 + $0x470] sm:$0xff]
    %v3221 = vld [vmem:[#allocation9 + $0x478] sm:$0xff]
    %v3222 = vld [vmem:[#allocation9 + $0x480] sm:$0xff]
    %v3223 = vld [vmem:[#allocation9 + $0x488] sm:$0xff]
    %v3224 = vld [vmem:[#allocation9 + $0x490] sm:$0xff]
    %v3225 = vld [vmem:[#allocation9 + $0x498] sm:$0xff]
    %v3226 = vld [vmem:[#allocation9 + $0x4a0] sm:$0xff]
    %v3227 = vld [vmem:[#allocation9 + $0x4a8] sm:$0xff]
    %v3228 = vld [vmem:[#allocation9 + $0x4b0] sm:$0xff]
    %v3229 = vld [vmem:[#allocation9 + $0x4b8] sm:$0xff]
    %v3230 = vld [vmem:[#allocation9 + $0x4c0] sm:$0xff]
    %v3231 = vld [vmem:[#allocation9 + $0x4c8] sm:$0xff]
    %v3232 = vld [vmem:[#allocation9 + $0x4d0] sm:$0xff]
    %v3233 = vld [vmem:[#allocation9 + $0x4d8] sm:$0xff]
    %v3234 = vld [vmem:[#allocation9 + $0x4e0] sm:$0xff]
    %v3235 = vld [vmem:[#allocation9 + $0x4e8] sm:$0xff]
    %v3236 = vld [vmem:[#allocation9 + $0x4f0] sm:$0xff]
    %v3237 = vld [vmem:[#allocation9 + $0x4f8] sm:$0xff]
    %v3238 = vld [vmem:[#allocation9 + $0x500] sm:$0xff]
    %v3239 = vld [vmem:[#allocation9 + $0x508] sm:$0xff]
    %v3240 = vld [vmem:[#allocation9 + $0x510] sm:$0xff]
    %v3241 = vld [vmem:[#allocation9 + $0x518] sm:$0xff]
    %v3242 = vld [vmem:[#allocation9 + $0x520] sm:$0xff]
    %v3243 = vld [vmem:[#allocation9 + $0x528] sm:$0xff]
    %v3244 = vld [vmem:[#allocation9 + $0x530] sm:$0xff]
    %v3245 = vld [vmem:[#allocation9 + $0x538] sm:$0xff]
    %v3246 = vld [vmem:[#allocation9 + $0x540] sm:$0xff]
    %v3247 = vld [vmem:[#allocation9 + $0x548] sm:$0xff]
    %v3248 = vld [vmem:[#allocation9 + $0x550] sm:$0xff]
    %v3249 = vld [vmem:[#allocation9 + $0x558] sm:$0xff]
    %v3250 = vld [vmem:[#allocation9 + $0x560] sm:$0xff]
    %v3251 = vld [vmem:[#allocation9 + $0x568] sm:$0xff]
    %v3252 = vld [vmem:[#allocation9 + $0x570] sm:$0xff]
    %v3253 = vld [vmem:[#allocation9 + $0x578] sm:$0xff]
    %v3254 = vld [vmem:[#allocation9 + $0x580] sm:$0xff]
    %v3255 = vld [vmem:[#allocation9 + $0x588] sm:$0xff]
    %v3256 = vld [vmem:[#allocation9 + $0x590] sm:$0xff]
    %v3257 = vld [vmem:[#allocation9 + $0x598] sm:$0xff]
    %v3258 = vld [vmem:[#allocation9 + $0x5a0] sm:$0xff]
    %v3259 = vld [vmem:[#allocation9 + $0x5a8] sm:$0xff]
    %v3260 = vld [vmem:[#allocation9 + $0x5b0] sm:$0xff]
    %v3261 = vld [vmem:[#allocation9 + $0x5b8] sm:$0xff]
    %v3262 = vld [vmem:[#allocation9 + $0x5c0] sm:$0xff]
    %v3263 = vld [vmem:[#allocation9 + $0x5c8] sm:$0xff]
    %v3264 = vld [vmem:[#allocation9 + $0x5d0] sm:$0xff]
    %v3265 = vld [vmem:[#allocation9 + $0x5d8] sm:$0xff]
    %v3266 = vld [vmem:[#allocation9 + $0x5e0] sm:$0xff]
    %v3267 = vld [vmem:[#allocation9 + $0x5e8] sm:$0xff]
    %v3268 = vld [vmem:[#allocation9 + $0x5f0] sm:$0xff]
    %v3269 = vld [vmem:[#allocation9 + $0x5f8] sm:$0xff]
    %v3271 = vlaneseq
    %v3272 = vshrl.u32 %v3271, 7
    %v3273 = vsub.s32 0, %v3272
    %v3274 = vrot.slane %v2559, %v3273
    %v3275 = vlaneseq
    %v3276 = vshrl.u32 %v3275, 7
    %v3277 = vsub.s32 1, %v3276
    %v3278 = vrot.slane %v2559, %v3277
    %3281 = vmatprep.subr.mxu0 %v3079
    %3282 = vmatpush1.msra.mxu0 %v3078
    %3283 = vmatprep.subr.mxu0 %v3085
    %3284 = vmatpush1.msra.mxu0 %v3084
    %3285 = vmatprep.subr.mxu0 %v3091
    %3286 = vmatpush1.msra.mxu0 %v3090
    %3287 = vmatprep.subr.mxu0 %v3097
    %3288 = vmatpush1.msra.mxu0 %v3096
    %3289 = vmatprep.subr.mxu0 %v3103
    %3290 = vmatpush1.msra.mxu0 %v3102
    %3291 = vmatprep.subr.mxu0 %v3109
    %3292 = vmatpush1.msra.mxu0 %v3108
    %3293 = vmatprep.subr.mxu0 %v3115
    %3294 = vmatpush1.msra.mxu0 %v3114
    %3295 = vmatprep.subr.mxu0 %v3121
    %3296 = vmatpush1.msra.mxu0 %v3120
    %3297 = vmatprep.subr.mxu0 %v3127
    %3298 = vmatpush1.msra.mxu0 %v3126
    %3299 = vmatprep.subr.mxu0 %v3133
    %3300 = vmatpush1.msra.mxu0 %v3132
    %3301 = vmatprep.subr.mxu0 %v3139
    %3302 = vmatpush1.msra.mxu0 %v3138
    %3303 = vmatprep.subr.mxu0 %v3145
    %3304 = vmatpush1.msra.mxu0 %v3144
    %3305 = vmatprep.subr.mxu0 %v3151
    %3306 = vmatpush1.msra.mxu0 %v3150
    %3307 = vmatprep.subr.mxu0 %v3157
    %3308 = vmatpush1.msra.mxu0 %v3156
    %3309 = vmatprep.subr.mxu0 %v3163
    %3310 = vmatpush1.msra.mxu0 %v3162
    %3311 = vmatprep.subr.mxu0 %v3169
    %3312 = vmatpush1.msra.mxu0 %v3168
    %3313 = vmatprep.subr.mxu0 %v3175
    %3314 = vmatpush1.msra.mxu0 %v3174
    %3315 = vmatprep.subr.mxu0 %v3181
    %3316 = vmatpush1.msra.mxu0 %v3180
    %3317 = vmatprep.subr.mxu0 %v3187
    %3318 = vmatpush1.msra.mxu0 %v3186
    %3319 = vmatprep.subr.mxu0 %v3193
    %3320 = vmatpush1.msra.mxu0 %v3192
    %3321 = vmatprep.subr.mxu0 %v3199
    %3322 = vmatpush1.msra.mxu0 %v3198
    %3323 = vmatprep.subr.mxu0 %v3205
    %3324 = vmatpush1.msra.mxu0 %v3204
    %3325 = vmatprep.subr.mxu0 %v3211
    %3326 = vmatpush1.msra.mxu0 %v3210
    %3327 = vmatprep.subr.mxu0 %v3217
    %3328 = vmatpush1.msra.mxu0 %v3216
    %3329 = vmatprep.subr.mxu0 %v3223
    %3330 = vmatpush1.msra.mxu0 %v3222
    %3331 = vmatprep.subr.mxu0 %v3229
    %3332 = vmatpush1.msra.mxu0 %v3228
    %3333 = vmatprep.subr.mxu0 %v3235
    %3334 = vmatpush1.msra.mxu0 %v3234
    %3335 = vmatprep.subr.mxu0 %v3241
    %3336 = vmatpush1.msra.mxu0 %v3240
    %3337 = vmatprep.subr.mxu0 %v3247
    %3338 = vmatpush1.msra.mxu0 %v3246
    %3339 = vmatprep.subr.mxu0 %v3253
    %3340 = vmatpush1.msra.mxu0 %v3252
    %3341 = vmatprep.subr.mxu0 %v3259
    %3342 = vmatpush1.msra.mxu0 %v3258
    %3343 = vmatprep.subr.mxu0 %v3265
    %3344 = vmatpush1.msra.mxu0 %v3264
    %3345 = vmatprep.mubr.f32.mxu0 %v3278
    %3346 = vmatmul.mubr.f32.gmra.mrb[0].mxu0 %v3274
    %v3347 = vpop.f32.mrb[0].mxu0
    %v3348 = vadd.f32 0.0, %v3347
    %v3349 = vpop.f32.mrb[0].mxu0
    %v3350 = vadd.f32 0.0, %v3349
    %3351 = vdwg.mxu0
    %3352 = vmatprep.subr.mxu0 %v3081
    %3353 = vmatpush1.msra.mxu0 %v3080
    %3354 = vmatprep.subr.mxu0 %v3087
    %3355 = vmatpush1.msra.mxu0 %v3086
    %3356 = vmatprep.subr.mxu0 %v3093
    %3357 = vmatpush1.msra.mxu0 %v3092
    %3358 = vmatprep.subr.mxu0 %v3099
    %3359 = vmatpush1.msra.mxu0 %v3098
    %3360 = vmatprep.subr.mxu0 %v3105
    %3361 = vmatpush1.msra.mxu0 %v3104
    %3362 = vmatprep.subr.mxu0 %v3111
    %3363 = vmatpush1.msra.mxu0 %v3110
    %3364 = vmatprep.subr.mxu0 %v3117
    %3365 = vmatpush1.msra.mxu0 %v3116
    %3366 = vmatprep.subr.mxu0 %v3123
    %3367 = vmatpush1.msra.mxu0 %v3122
    %3368 = vmatprep.subr.mxu0 %v3129
    %3369 = vmatpush1.msra.mxu0 %v3128
    %3370 = vmatprep.subr.mxu0 %v3135
    %3371 = vmatpush1.msra.mxu0 %v3134
    %3372 = vmatprep.subr.mxu0 %v3141
    %3373 = vmatpush1.msra.mxu0 %v3140
    %3374 = vmatprep.subr.mxu0 %v3147
    %3375 = vmatpush1.msra.mxu0 %v3146
    %3376 = vmatprep.subr.mxu0 %v3153
    %3377 = vmatpush1.msra.mxu0 %v3152
    %3378 = vmatprep.subr.mxu0 %v3159
    %3379 = vmatpush1.msra.mxu0 %v3158
    %3380 = vmatprep.subr.mxu0 %v3165
    %3381 = vmatpush1.msra.mxu0 %v3164
    %3382 = vmatprep.subr.mxu0 %v3171
    %3383 = vmatpush1.msra.mxu0 %v3170
    %3384 = vmatprep.subr.mxu0 %v3177
    %3385 = vmatpush1.msra.mxu0 %v3176
    %3386 = vmatprep.subr.mxu0 %v3183
    %3387 = vmatpush1.msra.mxu0 %v3182
    %3388 = vmatprep.subr.mxu0 %v3189
    %3389 = vmatpush1.msra.mxu0 %v3188
    %3390 = vmatprep.subr.mxu0 %v3195
    %3391 = vmatpush1.msra.mxu0 %v3194
    %3392 = vmatprep.subr.mxu0 %v3201
    %3393 = vmatpush1.msra.mxu0 %v3200
    %3394 = vmatprep.subr.mxu0 %v3207
    %3395 = vmatpush1.msra.mxu0 %v3206
    %3396 = vmatprep.subr.mxu0 %v3213
    %3397 = vmatpush1.msra.mxu0 %v3212
    %3398 = vmatprep.subr.mxu0 %v3219
    %3399 = vmatpush1.msra.mxu0 %v3218
    %3400 = vmatprep.subr.mxu0 %v3225
    %3401 = vmatpush1.msra.mxu0 %v3224
    %3402 = vmatprep.subr.mxu0 %v3231
    %3403 = vmatpush1.msra.mxu0 %v3230
    %3404 = vmatprep.subr.mxu0 %v3237
    %3405 = vmatpush1.msra.mxu0 %v3236
    %3406 = vmatprep.subr.mxu0 %v3243
    %3407 = vmatpush1.msra.mxu0 %v3242
    %3408 = vmatprep.subr.mxu0 %v3249
    %3409 = vmatpush1.msra.mxu0 %v3248
    %3410 = vmatprep.subr.mxu0 %v3255
    %3411 = vmatpush1.msra.mxu0 %v3254
    %3412 = vmatprep.subr.mxu0 %v3261
    %3413 = vmatpush1.msra.mxu0 %v3260
    %3414 = vmatprep.subr.mxu0 %v3267
    %3415 = vmatpush1.msra.mxu0 %v3266
    %3416 = vmatprep.mubr.f32.mxu0 %v3278
    %3417 = vmatmul.mubr.f32.gmra.mrb[0].mxu0 %v3274
    %v3418 = vpop.f32.mrb[0].mxu0
    %v3419 = vadd.f32 0.0, %v3418
    %v3420 = vpop.f32.mrb[0].mxu0
    %v3421 = vadd.f32 0.0, %v3420
    %3422 = vdwg.mxu0
    %3423 = vmatprep.subr.mxu0 %v3083
    %3424 = vmatpush1.msra.mxu0 %v3082
    %3425 = vmatprep.subr.mxu0 %v3089
    %3426 = vmatpush1.msra.mxu0 %v3088
    %3427 = vmatprep.subr.mxu0 %v3095
    %3428 = vmatpush1.msra.mxu0 %v3094
    %3429 = vmatprep.subr.mxu0 %v3101
    %3430 = vmatpush1.msra.mxu0 %v3100
    %3431 = vmatprep.subr.mxu0 %v3107
    %3432 = vmatpush1.msra.mxu0 %v3106
    %3433 = vmatprep.subr.mxu0 %v3113
    %3434 = vmatpush1.msra.mxu0 %v3112
    %3435 = vmatprep.subr.mxu0 %v3119
    %3436 = vmatpush1.msra.mxu0 %v3118
    %3437 = vmatprep.subr.mxu0 %v3125
    %3438 = vmatpush1.msra.mxu0 %v3124
    %3439 = vmatprep.subr.mxu0 %v3131
    %3440 = vmatpush1.msra.mxu0 %v3130
    %3441 = vmatprep.subr.mxu0 %v3137
    %3442 = vmatpush1.msra.mxu0 %v3136
    %3443 = vmatprep.subr.mxu0 %v3143
    %3444 = vmatpush1.msra.mxu0 %v3142
    %3445 = vmatprep.subr.mxu0 %v3149
    %3446 = vmatpush1.msra.mxu0 %v3148
    %3447 = vmatprep.subr.mxu0 %v3155
    %3448 = vmatpush1.msra.mxu0 %v3154
    %3449 = vmatprep.subr.mxu0 %v3161
    %3450 = vmatpush1.msra.mxu0 %v3160
    %3451 = vmatprep.subr.mxu0 %v3167
    %3452 = vmatpush1.msra.mxu0 %v3166
    %3453 = vmatprep.subr.mxu0 %v3173
    %3454 = vmatpush1.msra.mxu0 %v3172
    %3455 = vmatprep.subr.mxu0 %v3179
    %3456 = vmatpush1.msra.mxu0 %v3178
    %3457 = vmatprep.subr.mxu0 %v3185
    %3458 = vmatpush1.msra.mxu0 %v3184
    %3459 = vmatprep.subr.mxu0 %v3191
    %3460 = vmatpush1.msra.mxu0 %v3190
    %3461 = vmatprep.subr.mxu0 %v3197
    %3462 = vmatpush1.msra.mxu0 %v3196
    %3463 = vmatprep.subr.mxu0 %v3203
    %3464 = vmatpush1.msra.mxu0 %v3202
    %3465 = vmatprep.subr.mxu0 %v3209
    %3466 = vmatpush1.msra.mxu0 %v3208
    %3467 = vmatprep.subr.mxu0 %v3215
    %3468 = vmatpush1.msra.mxu0 %v3214
    %3469 = vmatprep.subr.mxu0 %v3221
    %3470 = vmatpush1.msra.mxu0 %v3220
    %3471 = vmatprep.subr.mxu0 %v3227
    %3472 = vmatpush1.msra.mxu0 %v3226
    %3473 = vmatprep.subr.mxu0 %v3233
    %3474 = vmatpush1.msra.mxu0 %v3232
    %3475 = vmatprep.subr.mxu0 %v3239
    %3476 = vmatpush1.msra.mxu0 %v3238
    %3477 = vmatprep.subr.mxu0 %v3245
    %3478 = vmatpush1.msra.mxu0 %v3244
    %3479 = vmatprep.subr.mxu0 %v3251
    %3480 = vmatpush1.msra.mxu0 %v3250
    %3481 = vmatprep.subr.mxu0 %v3257
    %3482 = vmatpush1.msra.mxu0 %v3256
    %3483 = vmatprep.subr.mxu0 %v3263
    %3484 = vmatpush1.msra.mxu0 %v3262
    %3485 = vmatprep.subr.mxu0 %v3269
    %3486 = vmatpush1.msra.mxu0 %v3268
    %3487 = vmatprep.mubr.f32.mxu0 %v3278
    %3488 = vmatmul.mubr.f32.gmra.mrb[0].mxu0 %v3274
    %v3489 = vpop.f32.mrb[0].mxu0
    %v3490 = vadd.f32 0.0, %v3489
    %v3491 = vpop.f32.mrb[0].mxu0
    %v3492 = vadd.f32 0.0, %v3491
    %3493 = vdwg.mxu0
    %v3496 = vcombine.low %v3348, %v3350
    %v3498 = vunpack.c.l.s4 1966171168
    %v3499 = vunpack.c.0.s8 %v3498
    %v3500 = vlaneseq
    %v3501 = vshrl.u32 %v3500, 7
    %v3502 = vsub.s32 %v3499, %v3501
    %v3503 = vrot.slane %v3496, %v3502
    %v3505 = vunpack.c.l.s4 1966171168
    %v3506 = vunpack.c.0.s8 %v3505
    %v3507 = vlaneseq
    %v3508 = vshrl.u32 %v3507, 7
    %v3509 = vsub.s32 %v3506, %v3508
    %v3510 = vrot.slane %v3503, %v3509
    %v3512 = vadd.f32 %v3077, %v3510
    %v3513 = vxor.u32 %v3512, 2147483648
    %v3514 = vmul.f32 %v3513, 1.442695
    %v3515 = vpow.pop %v3514
    %v3516 = vadd.f32 %v3515, 1.0
    %v3517 = vrcp.pop %v3516
    %v3518 = vmul.f32 1.0, %v3517
    %v3520 = vrot.slane %v3077, 2
    %v3524 = vcombine.low %v3419, %v3421
    %v3526 = vunpack.c.l.s4 1966171168
    %v3527 = vunpack.c.0.s8 %v3526
    %v3528 = vlaneseq
    %v3529 = vshrl.u32 %v3528, 7
    %v3530 = vsub.s32 %v3527, %v3529
    %v3531 = vrot.slane %v3524, %v3530
    %v3533 = vunpack.c.l.s4 1966171168
    %v3534 = vunpack.c.0.s8 %v3533
    %v3535 = vlaneseq
    %v3536 = vshrl.u32 %v3535, 7
    %v3537 = vsub.s32 %v3534, %v3536
    %v3538 = vrot.slane %v3531, %v3537
    %v3540 = vadd.f32 %v3520, %v3538
    %v3541 = vxor.u32 %v3540, 2147483648
    %v3542 = vmul.f32 %v3541, 1.442695
    %v3543 = vpow.pop %v3542
    %v3544 = vadd.f32 %v3543, 1.0
    %v3545 = vrcp.pop %v3544
    %v3546 = vmul.f32 1.0, %v3545
    %v3547 = vld [vmem:[%s5] sm:$0x3]
    %v3549 = vlaneseq
    %v3550 = vshrl.u32 %v3549, 7
    %v3551 = vsub.s32 0, %v3550
    %v3552 = vrot.slane %v3547, %v3551
    %v3553 = vlaneseq
    %v3554 = vshrl.u32 %v3553, 7
    %v3555 = vsub.s32 1, %v3554
    %v3556 = vrot.slane %v3547, %v3555
    %v3559 = vadd.f32 %v3490, %v3552
    %v3560 = vadd.f32 %v3492, %v3556
    %v3563 = vcombine.low %v3559, %v3560
    %v3565 = vunpack.c.l.s4 1966171168
    %v3566 = vunpack.c.0.s8 %v3565
    %v3567 = vlaneseq
    %v3568 = vshrl.u32 %v3567, 7
    %v3569 = vsub.s32 %v3566, %v3568
    %v3570 = vrot.slane %v3563, %v3569
    %v3572 = vunpack.c.l.s4 1966171168
    %v3573 = vunpack.c.0.s8 %v3572
    %v3574 = vlaneseq
    %v3575 = vshrl.u32 %v3574, 7
    %v3576 = vsub.s32 %v3573, %v3575
    %v3577 = vrot.slane %v3570, %v3576
    %v3579 = vmul.f32 %v3518, %v3577
    %v3580 = vrot.slane %v3077, 4
    %v3582 = vadd.f32 %v3580, %v3579
    %v3583 = vtanh.pop %v3582
    %v3584 = vsub.f32 1.0, %v3546
    %v3585 = vmul.f32 %v3584, %v3583
    %v3586 = vmul.f32 %v3546, %v2559
    %v3587 = vadd.f32 %v3585, %v3586
    %s3588 = scalar_lea.vmem [#allocation3], 1
    %v3589 = vld [vmem:[%s3588] ss:$4 sm:$0x3f]
    %v3590 = vld [vmem:[#allocation13] sm:$0xff]
    %v3591 = vld [vmem:[#allocation13 + $0x8] sm:$0xff]
    %v3592 = vld [vmem:[#allocation13 + $0x10] sm:$0xff]
    %v3593 = vld [vmem:[#allocation13 + $0x18] sm:$0xff]
    %v3594 = vld [vmem:[#allocation13 + $0x20] sm:$0xff]
    %v3595 = vld [vmem:[#allocation13 + $0x28] sm:$0xff]
    %v3596 = vld [vmem:[#allocation13 + $0x30] sm:$0xff]
    %v3597 = vld [vmem:[#allocation13 + $0x38] sm:$0xff]
    %v3598 = vld [vmem:[#allocation13 + $0x40] sm:$0xff]
    %v3599 = vld [vmem:[#allocation13 + $0x48] sm:$0xff]
    %v3600 = vld [vmem:[#allocation13 + $0x50] sm:$0xff]
    %v3601 = vld [vmem:[#allocation13 + $0x58] sm:$0xff]
    %v3602 = vld [vmem:[#allocation13 + $0x60] sm:$0xff]
    %v3603 = vld [vmem:[#allocation13 + $0x68] sm:$0xff]
    %v3604 = vld [vmem:[#allocation13 + $0x70] sm:$0xff]
    %v3605 = vld [vmem:[#allocation13 + $0x78] sm:$0xff]
    %v3606 = vld [vmem:[#allocation13 + $0x80] sm:$0xff]
    %v3607 = vld [vmem:[#allocation13 + $0x88] sm:$0xff]
    %v3608 = vld [vmem:[#allocation13 + $0x90] sm:$0xff]
    %v3609 = vld [vmem:[#allocation13 + $0x98] sm:$0xff]
    %v3610 = vld [vmem:[#allocation13 + $0xa0] sm:$0xff]
    %v3611 = vld [vmem:[#allocation13 + $0xa8] sm:$0xff]
    %v3612 = vld [vmem:[#allocation13 + $0xb0] sm:$0xff]
    %v3613 = vld [vmem:[#allocation13 + $0xb8] sm:$0xff]
    %v3614 = vld [vmem:[#allocation13 + $0xc0] sm:$0xff]
    %v3615 = vld [vmem:[#allocation13 + $0xc8] sm:$0xff]
    %v3616 = vld [vmem:[#allocation13 + $0xd0] sm:$0xff]
    %v3617 = vld [vmem:[#allocation13 + $0xd8] sm:$0xff]
    %v3618 = vld [vmem:[#allocation13 + $0xe0] sm:$0xff]
    %v3619 = vld [vmem:[#allocation13 + $0xe8] sm:$0xff]
    %v3620 = vld [vmem:[#allocation13 + $0xf0] sm:$0xff]
    %v3621 = vld [vmem:[#allocation13 + $0xf8] sm:$0xff]
    %v3622 = vld [vmem:[#allocation13 + $0x100] sm:$0xff]
    %v3623 = vld [vmem:[#allocation13 + $0x108] sm:$0xff]
    %v3624 = vld [vmem:[#allocation13 + $0x110] sm:$0xff]
    %v3625 = vld [vmem:[#allocation13 + $0x118] sm:$0xff]
    %v3626 = vld [vmem:[#allocation13 + $0x120] sm:$0xff]
    %v3627 = vld [vmem:[#allocation13 + $0x128] sm:$0xff]
    %v3628 = vld [vmem:[#allocation13 + $0x130] sm:$0xff]
    %v3629 = vld [vmem:[#allocation13 + $0x138] sm:$0xff]
    %v3630 = vld [vmem:[#allocation13 + $0x140] sm:$0xff]
    %v3631 = vld [vmem:[#allocation13 + $0x148] sm:$0xff]
    %v3632 = vld [vmem:[#allocation13 + $0x150] sm:$0xff]
    %v3633 = vld [vmem:[#allocation13 + $0x158] sm:$0xff]
    %v3634 = vld [vmem:[#allocation13 + $0x160] sm:$0xff]
    %v3635 = vld [vmem:[#allocation13 + $0x168] sm:$0xff]
    %v3636 = vld [vmem:[#allocation13 + $0x170] sm:$0xff]
    %v3637 = vld [vmem:[#allocation13 + $0x178] sm:$0xff]
    %v3638 = vld [vmem:[#allocation13 + $0x180] sm:$0xff]
    %v3639 = vld [vmem:[#allocation13 + $0x188] sm:$0xff]
    %v3640 = vld [vmem:[#allocation13 + $0x190] sm:$0xff]
    %v3641 = vld [vmem:[#allocation13 + $0x198] sm:$0xff]
    %v3642 = vld [vmem:[#allocation13 + $0x1a0] sm:$0xff]
    %v3643 = vld [vmem:[#allocation13 + $0x1a8] sm:$0xff]
    %v3644 = vld [vmem:[#allocation13 + $0x1b0] sm:$0xff]
    %v3645 = vld [vmem:[#allocation13 + $0x1b8] sm:$0xff]
    %v3646 = vld [vmem:[#allocation13 + $0x1c0] sm:$0xff]
    %v3647 = vld [vmem:[#allocation13 + $0x1c8] sm:$0xff]
    %v3648 = vld [vmem:[#allocation13 + $0x1d0] sm:$0xff]
    %v3649 = vld [vmem:[#allocation13 + $0x1d8] sm:$0xff]
    %v3650 = vld [vmem:[#allocation13 + $0x1e0] sm:$0xff]
    %v3651 = vld [vmem:[#allocation13 + $0x1e8] sm:$0xff]
    %v3652 = vld [vmem:[#allocation13 + $0x1f0] sm:$0xff]
    %v3653 = vld [vmem:[#allocation13 + $0x1f8] sm:$0xff]
    %v3654 = vld [vmem:[#allocation13 + $0x200] sm:$0xff]
    %v3655 = vld [vmem:[#allocation13 + $0x208] sm:$0xff]
    %v3656 = vld [vmem:[#allocation13 + $0x210] sm:$0xff]
    %v3657 = vld [vmem:[#allocation13 + $0x218] sm:$0xff]
    %v3658 = vld [vmem:[#allocation13 + $0x220] sm:$0xff]
    %v3659 = vld [vmem:[#allocation13 + $0x228] sm:$0xff]
    %v3660 = vld [vmem:[#allocation13 + $0x230] sm:$0xff]
    %v3661 = vld [vmem:[#allocation13 + $0x238] sm:$0xff]
    %v3662 = vld [vmem:[#allocation13 + $0x240] sm:$0xff]
    %v3663 = vld [vmem:[#allocation13 + $0x248] sm:$0xff]
    %v3664 = vld [vmem:[#allocation13 + $0x250] sm:$0xff]
    %v3665 = vld [vmem:[#allocation13 + $0x258] sm:$0xff]
    %v3666 = vld [vmem:[#allocation13 + $0x260] sm:$0xff]
    %v3667 = vld [vmem:[#allocation13 + $0x268] sm:$0xff]
    %v3668 = vld [vmem:[#allocation13 + $0x270] sm:$0xff]
    %v3669 = vld [vmem:[#allocation13 + $0x278] sm:$0xff]
    %v3670 = vld [vmem:[#allocation13 + $0x280] sm:$0xff]
    %v3671 = vld [vmem:[#allocation13 + $0x288] sm:$0xff]
    %v3672 = vld [vmem:[#allocation13 + $0x290] sm:$0xff]
    %v3673 = vld [vmem:[#allocation13 + $0x298] sm:$0xff]
    %v3674 = vld [vmem:[#allocation13 + $0x2a0] sm:$0xff]
    %v3675 = vld [vmem:[#allocation13 + $0x2a8] sm:$0xff]
    %v3676 = vld [vmem:[#allocation13 + $0x2b0] sm:$0xff]
    %v3677 = vld [vmem:[#allocation13 + $0x2b8] sm:$0xff]
    %v3678 = vld [vmem:[#allocation13 + $0x2c0] sm:$0xff]
    %v3679 = vld [vmem:[#allocation13 + $0x2c8] sm:$0xff]
    %v3680 = vld [vmem:[#allocation13 + $0x2d0] sm:$0xff]
    %v3681 = vld [vmem:[#allocation13 + $0x2d8] sm:$0xff]
    %v3682 = vld [vmem:[#allocation13 + $0x2e0] sm:$0xff]
    %v3683 = vld [vmem:[#allocation13 + $0x2e8] sm:$0xff]
    %v3684 = vld [vmem:[#allocation13 + $0x2f0] sm:$0xff]
    %v3685 = vld [vmem:[#allocation13 + $0x2f8] sm:$0xff]
    %v3686 = vld [vmem:[#allocation13 + $0x300] sm:$0xff]
    %v3687 = vld [vmem:[#allocation13 + $0x308] sm:$0xff]
    %v3688 = vld [vmem:[#allocation13 + $0x310] sm:$0xff]
    %v3689 = vld [vmem:[#allocation13 + $0x318] sm:$0xff]
    %v3690 = vld [vmem:[#allocation13 + $0x320] sm:$0xff]
    %v3691 = vld [vmem:[#allocation13 + $0x328] sm:$0xff]
    %v3692 = vld [vmem:[#allocation13 + $0x330] sm:$0xff]
    %v3693 = vld [vmem:[#allocation13 + $0x338] sm:$0xff]
    %v3694 = vld [vmem:[#allocation13 + $0x340] sm:$0xff]
    %v3695 = vld [vmem:[#allocation13 + $0x348] sm:$0xff]
    %v3696 = vld [vmem:[#allocation13 + $0x350] sm:$0xff]
    %v3697 = vld [vmem:[#allocation13 + $0x358] sm:$0xff]
    %v3698 = vld [vmem:[#allocation13 + $0x360] sm:$0xff]
    %v3699 = vld [vmem:[#allocation13 + $0x368] sm:$0xff]
    %v3700 = vld [vmem:[#allocation13 + $0x370] sm:$0xff]
    %v3701 = vld [vmem:[#allocation13 + $0x378] sm:$0xff]
    %v3702 = vld [vmem:[#allocation13 + $0x380] sm:$0xff]
    %v3703 = vld [vmem:[#allocation13 + $0x388] sm:$0xff]
    %v3704 = vld [vmem:[#allocation13 + $0x390] sm:$0xff]
    %v3705 = vld [vmem:[#allocation13 + $0x398] sm:$0xff]
    %v3706 = vld [vmem:[#allocation13 + $0x3a0] sm:$0xff]
    %v3707 = vld [vmem:[#allocation13 + $0x3a8] sm:$0xff]
    %v3708 = vld [vmem:[#allocation13 + $0x3b0] sm:$0xff]
    %v3709 = vld [vmem:[#allocation13 + $0x3b8] sm:$0xff]
    %v3710 = vld [vmem:[#allocation13 + $0x3c0] sm:$0xff]
    %v3711 = vld [vmem:[#allocation13 + $0x3c8] sm:$0xff]
    %v3712 = vld [vmem:[#allocation13 + $0x3d0] sm:$0xff]
    %v3713 = vld [vmem:[#allocation13 + $0x3d8] sm:$0xff]
    %v3714 = vld [vmem:[#allocation13 + $0x3e0] sm:$0xff]
    %v3715 = vld [vmem:[#allocation13 + $0x3e8] sm:$0xff]
    %v3716 = vld [vmem:[#allocation13 + $0x3f0] sm:$0xff]
    %v3717 = vld [vmem:[#allocation13 + $0x3f8] sm:$0xff]
    %v3718 = vld [vmem:[#allocation13 + $0x400] sm:$0xff]
    %v3719 = vld [vmem:[#allocation13 + $0x408] sm:$0xff]
    %v3720 = vld [vmem:[#allocation13 + $0x410] sm:$0xff]
    %v3721 = vld [vmem:[#allocation13 + $0x418] sm:$0xff]
    %v3722 = vld [vmem:[#allocation13 + $0x420] sm:$0xff]
    %v3723 = vld [vmem:[#allocation13 + $0x428] sm:$0xff]
    %v3724 = vld [vmem:[#allocation13 + $0x430] sm:$0xff]
    %v3725 = vld [vmem:[#allocation13 + $0x438] sm:$0xff]
    %v3726 = vld [vmem:[#allocation13 + $0x440] sm:$0xff]
    %v3727 = vld [vmem:[#allocation13 + $0x448] sm:$0xff]
    %v3728 = vld [vmem:[#allocation13 + $0x450] sm:$0xff]
    %v3729 = vld [vmem:[#allocation13 + $0x458] sm:$0xff]
    %v3730 = vld [vmem:[#allocation13 + $0x460] sm:$0xff]
    %v3731 = vld [vmem:[#allocation13 + $0x468] sm:$0xff]
    %v3732 = vld [vmem:[#allocation13 + $0x470] sm:$0xff]
    %v3733 = vld [vmem:[#allocation13 + $0x478] sm:$0xff]
    %v3734 = vld [vmem:[#allocation13 + $0x480] sm:$0xff]
    %v3735 = vld [vmem:[#allocation13 + $0x488] sm:$0xff]
    %v3736 = vld [vmem:[#allocation13 + $0x490] sm:$0xff]
    %v3737 = vld [vmem:[#allocation13 + $0x498] sm:$0xff]
    %v3738 = vld [vmem:[#allocation13 + $0x4a0] sm:$0xff]
    %v3739 = vld [vmem:[#allocation13 + $0x4a8] sm:$0xff]
    %v3740 = vld [vmem:[#allocation13 + $0x4b0] sm:$0xff]
    %v3741 = vld [vmem:[#allocation13 + $0x4b8] sm:$0xff]
    %v3742 = vld [vmem:[#allocation13 + $0x4c0] sm:$0xff]
    %v3743 = vld [vmem:[#allocation13 + $0x4c8] sm:$0xff]
    %v3744 = vld [vmem:[#allocation13 + $0x4d0] sm:$0xff]
    %v3745 = vld [vmem:[#allocation13 + $0x4d8] sm:$0xff]
    %v3746 = vld [vmem:[#allocation13 + $0x4e0] sm:$0xff]
    %v3747 = vld [vmem:[#allocation13 + $0x4e8] sm:$0xff]
    %v3748 = vld [vmem:[#allocation13 + $0x4f0] sm:$0xff]
    %v3749 = vld [vmem:[#allocation13 + $0x4f8] sm:$0xff]
    %v3750 = vld [vmem:[#allocation13 + $0x500] sm:$0xff]
    %v3751 = vld [vmem:[#allocation13 + $0x508] sm:$0xff]
    %v3752 = vld [vmem:[#allocation13 + $0x510] sm:$0xff]
    %v3753 = vld [vmem:[#allocation13 + $0x518] sm:$0xff]
    %v3754 = vld [vmem:[#allocation13 + $0x520] sm:$0xff]
    %v3755 = vld [vmem:[#allocation13 + $0x528] sm:$0xff]
    %v3756 = vld [vmem:[#allocation13 + $0x530] sm:$0xff]
    %v3757 = vld [vmem:[#allocation13 + $0x538] sm:$0xff]
    %v3758 = vld [vmem:[#allocation13 + $0x540] sm:$0xff]
    %v3759 = vld [vmem:[#allocation13 + $0x548] sm:$0xff]
    %v3760 = vld [vmem:[#allocation13 + $0x550] sm:$0xff]
    %v3761 = vld [vmem:[#allocation13 + $0x558] sm:$0xff]
    %v3762 = vld [vmem:[#allocation13 + $0x560] sm:$0xff]
    %v3763 = vld [vmem:[#allocation13 + $0x568] sm:$0xff]
    %v3764 = vld [vmem:[#allocation13 + $0x570] sm:$0xff]
    %v3765 = vld [vmem:[#allocation13 + $0x578] sm:$0xff]
    %v3766 = vld [vmem:[#allocation13 + $0x580] sm:$0xff]
    %v3767 = vld [vmem:[#allocation13 + $0x588] sm:$0xff]
    %v3768 = vld [vmem:[#allocation13 + $0x590] sm:$0xff]
    %v3769 = vld [vmem:[#allocation13 + $0x598] sm:$0xff]
    %v3770 = vld [vmem:[#allocation13 + $0x5a0] sm:$0xff]
    %v3771 = vld [vmem:[#allocation13 + $0x5a8] sm:$0xff]
    %v3772 = vld [vmem:[#allocation13 + $0x5b0] sm:$0xff]
    %v3773 = vld [vmem:[#allocation13 + $0x5b8] sm:$0xff]
    %v3774 = vld [vmem:[#allocation13 + $0x5c0] sm:$0xff]
    %v3775 = vld [vmem:[#allocation13 + $0x5c8] sm:$0xff]
    %v3776 = vld [vmem:[#allocation13 + $0x5d0] sm:$0xff]
    %v3777 = vld [vmem:[#allocation13 + $0x5d8] sm:$0xff]
    %v3778 = vld [vmem:[#allocation13 + $0x5e0] sm:$0xff]
    %v3779 = vld [vmem:[#allocation13 + $0x5e8] sm:$0xff]
    %v3780 = vld [vmem:[#allocation13 + $0x5f0] sm:$0xff]
    %v3781 = vld [vmem:[#allocation13 + $0x5f8] sm:$0xff]
    %v3783 = vlaneseq
    %v3784 = vshrl.u32 %v3783, 7
    %v3785 = vsub.s32 0, %v3784
    %v3786 = vrot.slane %v3071, %v3785
    %v3787 = vlaneseq
    %v3788 = vshrl.u32 %v3787, 7
    %v3789 = vsub.s32 1, %v3788
    %v3790 = vrot.slane %v3071, %v3789
    %3793 = vmatprep.subr.mxu0 %v3591
    %3794 = vmatpush1.msra.mxu0 %v3590
    %3795 = vmatprep.subr.mxu0 %v3597
    %3796 = vmatpush1.msra.mxu0 %v3596
    %3797 = vmatprep.subr.mxu0 %v3603
    %3798 = vmatpush1.msra.mxu0 %v3602
    %3799 = vmatprep.subr.mxu0 %v3609
    %3800 = vmatpush1.msra.mxu0 %v3608
    %3801 = vmatprep.subr.mxu0 %v3615
    %3802 = vmatpush1.msra.mxu0 %v3614
    %3803 = vmatprep.subr.mxu0 %v3621
    %3804 = vmatpush1.msra.mxu0 %v3620
    %3805 = vmatprep.subr.mxu0 %v3627
    %3806 = vmatpush1.msra.mxu0 %v3626
    %3807 = vmatprep.subr.mxu0 %v3633
    %3808 = vmatpush1.msra.mxu0 %v3632
    %3809 = vmatprep.subr.mxu0 %v3639
    %3810 = vmatpush1.msra.mxu0 %v3638
    %3811 = vmatprep.subr.mxu0 %v3645
    %3812 = vmatpush1.msra.mxu0 %v3644
    %3813 = vmatprep.subr.mxu0 %v3651
    %3814 = vmatpush1.msra.mxu0 %v3650
    %3815 = vmatprep.subr.mxu0 %v3657
    %3816 = vmatpush1.msra.mxu0 %v3656
    %3817 = vmatprep.subr.mxu0 %v3663
    %3818 = vmatpush1.msra.mxu0 %v3662
    %3819 = vmatprep.subr.mxu0 %v3669
    %3820 = vmatpush1.msra.mxu0 %v3668
    %3821 = vmatprep.subr.mxu0 %v3675
    %3822 = vmatpush1.msra.mxu0 %v3674
    %3823 = vmatprep.subr.mxu0 %v3681
    %3824 = vmatpush1.msra.mxu0 %v3680
    %3825 = vmatprep.subr.mxu0 %v3687
    %3826 = vmatpush1.msra.mxu0 %v3686
    %3827 = vmatprep.subr.mxu0 %v3693
    %3828 = vmatpush1.msra.mxu0 %v3692
    %3829 = vmatprep.subr.mxu0 %v3699
    %3830 = vmatpush1.msra.mxu0 %v3698
    %3831 = vmatprep.subr.mxu0 %v3705
    %3832 = vmatpush1.msra.mxu0 %v3704
    %3833 = vmatprep.subr.mxu0 %v3711
    %3834 = vmatpush1.msra.mxu0 %v3710
    %3835 = vmatprep.subr.mxu0 %v3717
    %3836 = vmatpush1.msra.mxu0 %v3716
    %3837 = vmatprep.subr.mxu0 %v3723
    %3838 = vmatpush1.msra.mxu0 %v3722
    %3839 = vmatprep.subr.mxu0 %v3729
    %3840 = vmatpush1.msra.mxu0 %v3728
    %3841 = vmatprep.subr.mxu0 %v3735
    %3842 = vmatpush1.msra.mxu0 %v3734
    %3843 = vmatprep.subr.mxu0 %v3741
    %3844 = vmatpush1.msra.mxu0 %v3740
    %3845 = vmatprep.subr.mxu0 %v3747
    %3846 = vmatpush1.msra.mxu0 %v3746
    %3847 = vmatprep.subr.mxu0 %v3753
    %3848 = vmatpush1.msra.mxu0 %v3752
    %3849 = vmatprep.subr.mxu0 %v3759
    %3850 = vmatpush1.msra.mxu0 %v3758
    %3851 = vmatprep.subr.mxu0 %v3765
    %3852 = vmatpush1.msra.mxu0 %v3764
    %3853 = vmatprep.subr.mxu0 %v3771
    %3854 = vmatpush1.msra.mxu0 %v3770
    %3855 = vmatprep.subr.mxu0 %v3777
    %3856 = vmatpush1.msra.mxu0 %v3776
    %3857 = vmatprep.mubr.f32.mxu0 %v3790
    %3858 = vmatmul.mubr.f32.gmra.mrb[0].mxu0 %v3786
    %v3859 = vpop.f32.mrb[0].mxu0
    %v3860 = vadd.f32 0.0, %v3859
    %v3861 = vpop.f32.mrb[0].mxu0
    %v3862 = vadd.f32 0.0, %v3861
    %3863 = vdwg.mxu0
    %3864 = vmatprep.subr.mxu0 %v3593
    %3865 = vmatpush1.msra.mxu0 %v3592
    %3866 = vmatprep.subr.mxu0 %v3599
    %3867 = vmatpush1.msra.mxu0 %v3598
    %3868 = vmatprep.subr.mxu0 %v3605
    %3869 = vmatpush1.msra.mxu0 %v3604
    %3870 = vmatprep.subr.mxu0 %v3611
    %3871 = vmatpush1.msra.mxu0 %v3610
    %3872 = vmatprep.subr.mxu0 %v3617
    %3873 = vmatpush1.msra.mxu0 %v3616
    %3874 = vmatprep.subr.mxu0 %v3623
    %3875 = vmatpush1.msra.mxu0 %v3622
    %3876 = vmatprep.subr.mxu0 %v3629
    %3877 = vmatpush1.msra.mxu0 %v3628
    %3878 = vmatprep.subr.mxu0 %v3635
    %3879 = vmatpush1.msra.mxu0 %v3634
    %3880 = vmatprep.subr.mxu0 %v3641
    %3881 = vmatpush1.msra.mxu0 %v3640
    %3882 = vmatprep.subr.mxu0 %v3647
    %3883 = vmatpush1.msra.mxu0 %v3646
    %3884 = vmatprep.subr.mxu0 %v3653
    %3885 = vmatpush1.msra.mxu0 %v3652
    %3886 = vmatprep.subr.mxu0 %v3659
    %3887 = vmatpush1.msra.mxu0 %v3658
    %3888 = vmatprep.subr.mxu0 %v3665
    %3889 = vmatpush1.msra.mxu0 %v3664
    %3890 = vmatprep.subr.mxu0 %v3671
    %3891 = vmatpush1.msra.mxu0 %v3670
    %3892 = vmatprep.subr.mxu0 %v3677
    %3893 = vmatpush1.msra.mxu0 %v3676
    %3894 = vmatprep.subr.mxu0 %v3683
    %3895 = vmatpush1.msra.mxu0 %v3682
    %3896 = vmatprep.subr.mxu0 %v3689
    %3897 = vmatpush1.msra.mxu0 %v3688
    %3898 = vmatprep.subr.mxu0 %v3695
    %3899 = vmatpush1.msra.mxu0 %v3694
    %3900 = vmatprep.subr.mxu0 %v3701
    %3901 = vmatpush1.msra.mxu0 %v3700
    %3902 = vmatprep.subr.mxu0 %v3707
    %3903 = vmatpush1.msra.mxu0 %v3706
    %3904 = vmatprep.subr.mxu0 %v3713
    %3905 = vmatpush1.msra.mxu0 %v3712
    %3906 = vmatprep.subr.mxu0 %v3719
    %3907 = vmatpush1.msra.mxu0 %v3718
    %3908 = vmatprep.subr.mxu0 %v3725
    %3909 = vmatpush1.msra.mxu0 %v3724
    %3910 = vmatprep.subr.mxu0 %v3731
    %3911 = vmatpush1.msra.mxu0 %v3730
    %3912 = vmatprep.subr.mxu0 %v3737
    %3913 = vmatpush1.msra.mxu0 %v3736
    %3914 = vmatprep.subr.mxu0 %v3743
    %3915 = vmatpush1.msra.mxu0 %v3742
    %3916 = vmatprep.subr.mxu0 %v3749
    %3917 = vmatpush1.msra.mxu0 %v3748
    %3918 = vmatprep.subr.mxu0 %v3755
    %3919 = vmatpush1.msra.mxu0 %v3754
    %3920 = vmatprep.subr.mxu0 %v3761
    %3921 = vmatpush1.msra.mxu0 %v3760
    %3922 = vmatprep.subr.mxu0 %v3767
    %3923 = vmatpush1.msra.mxu0 %v3766
    %3924 = vmatprep.subr.mxu0 %v3773
    %3925 = vmatpush1.msra.mxu0 %v3772
    %3926 = vmatprep.subr.mxu0 %v3779
    %3927 = vmatpush1.msra.mxu0 %v3778
    %3928 = vmatprep.mubr.f32.mxu0 %v3790
    %3929 = vmatmul.mubr.f32.gmra.mrb[0].mxu0 %v3786
    %v3930 = vpop.f32.mrb[0].mxu0
    %v3931 = vadd.f32 0.0, %v3930
    %v3932 = vpop.f32.mrb[0].mxu0
    %v3933 = vadd.f32 0.0, %v3932
    %3934 = vdwg.mxu0
    %3935 = vmatprep.subr.mxu0 %v3595
    %3936 = vmatpush1.msra.mxu0 %v3594
    %3937 = vmatprep.subr.mxu0 %v3601
    %3938 = vmatpush1.msra.mxu0 %v3600
    %3939 = vmatprep.subr.mxu0 %v3607
    %3940 = vmatpush1.msra.mxu0 %v3606
    %3941 = vmatprep.subr.mxu0 %v3613
    %3942 = vmatpush1.msra.mxu0 %v3612
    %3943 = vmatprep.subr.mxu0 %v3619
    %3944 = vmatpush1.msra.mxu0 %v3618
    %3945 = vmatprep.subr.mxu0 %v3625
    %3946 = vmatpush1.msra.mxu0 %v3624
    %3947 = vmatprep.subr.mxu0 %v3631
    %3948 = vmatpush1.msra.mxu0 %v3630
    %3949 = vmatprep.subr.mxu0 %v3637
    %3950 = vmatpush1.msra.mxu0 %v3636
    %3951 = vmatprep.subr.mxu0 %v3643
    %3952 = vmatpush1.msra.mxu0 %v3642
    %3953 = vmatprep.subr.mxu0 %v3649
    %3954 = vmatpush1.msra.mxu0 %v3648
    %3955 = vmatprep.subr.mxu0 %v3655
    %3956 = vmatpush1.msra.mxu0 %v3654
    %3957 = vmatprep.subr.mxu0 %v3661
    %3958 = vmatpush1.msra.mxu0 %v3660
    %3959 = vmatprep.subr.mxu0 %v3667
    %3960 = vmatpush1.msra.mxu0 %v3666
    %3961 = vmatprep.subr.mxu0 %v3673
    %3962 = vmatpush1.msra.mxu0 %v3672
    %3963 = vmatprep.subr.mxu0 %v3679
    %3964 = vmatpush1.msra.mxu0 %v3678
    %3965 = vmatprep.subr.mxu0 %v3685
    %3966 = vmatpush1.msra.mxu0 %v3684
    %3967 = vmatprep.subr.mxu0 %v3691
    %3968 = vmatpush1.msra.mxu0 %v3690
    %3969 = vmatprep.subr.mxu0 %v3697
    %3970 = vmatpush1.msra.mxu0 %v3696
    %3971 = vmatprep.subr.mxu0 %v3703
    %3972 = vmatpush1.msra.mxu0 %v3702
    %3973 = vmatprep.subr.mxu0 %v3709
    %3974 = vmatpush1.msra.mxu0 %v3708
    %3975 = vmatprep.subr.mxu0 %v3715
    %3976 = vmatpush1.msra.mxu0 %v3714
    %3977 = vmatprep.subr.mxu0 %v3721
    %3978 = vmatpush1.msra.mxu0 %v3720
    %3979 = vmatprep.subr.mxu0 %v3727
    %3980 = vmatpush1.msra.mxu0 %v3726
    %3981 = vmatprep.subr.mxu0 %v3733
    %3982 = vmatpush1.msra.mxu0 %v3732
    %3983 = vmatprep.subr.mxu0 %v3739
    %3984 = vmatpush1.msra.mxu0 %v3738
    %3985 = vmatprep.subr.mxu0 %v3745
    %3986 = vmatpush1.msra.mxu0 %v3744
    %3987 = vmatprep.subr.mxu0 %v3751
    %3988 = vmatpush1.msra.mxu0 %v3750
    %3989 = vmatprep.subr.mxu0 %v3757
    %3990 = vmatpush1.msra.mxu0 %v3756
    %3991 = vmatprep.subr.mxu0 %v3763
    %3992 = vmatpush1.msra.mxu0 %v3762
    %3993 = vmatprep.subr.mxu0 %v3769
    %3994 = vmatpush1.msra.mxu0 %v3768
    %3995 = vmatprep.subr.mxu0 %v3775
    %3996 = vmatpush1.msra.mxu0 %v3774
    %3997 = vmatprep.subr.mxu0 %v3781
    %3998 = vmatpush1.msra.mxu0 %v3780
    %3999 = vmatprep.mubr.f32.mxu0 %v3790
    %4000 = vmatmul.mubr.f32.gmra.mrb[0].mxu0 %v3786
    %v4001 = vpop.f32.mrb[0].mxu0
    %v4002 = vadd.f32 0.0, %v4001
    %v4003 = vpop.f32.mrb[0].mxu0
    %v4004 = vadd.f32 0.0, %v4003
    %4005 = vdwg.mxu0
    %v4008 = vcombine.low %v3860, %v3862
    %v4010 = vunpack.c.l.s4 1966171168
    %v4011 = vunpack.c.0.s8 %v4010
    %v4012 = vlaneseq
    %v4013 = vshrl.u32 %v4012, 7
    %v4014 = vsub.s32 %v4011, %v4013
    %v4015 = vrot.slane %v4008, %v4014
    %v4017 = vunpack.c.l.s4 1966171168
    %v4018 = vunpack.c.0.s8 %v4017
    %v4019 = vlaneseq
    %v4020 = vshrl.u32 %v4019, 7
    %v4021 = vsub.s32 %v4018, %v4020
    %v4022 = vrot.slane %v4015, %v4021
    %v4024 = vadd.f32 %v3589, %v4022
    %v4025 = vxor.u32 %v4024, 2147483648
    %v4026 = vmul.f32 %v4025, 1.442695
    %v4027 = vpow.pop %v4026
    %v4028 = vadd.f32 %v4027, 1.0
    %v4029 = vrcp.pop %v4028
    %v4030 = vmul.f32 1.0, %v4029
    %v4032 = vrot.slane %v3589, 2
    %v4036 = vcombine.low %v3931, %v3933
    %v4038 = vunpack.c.l.s4 1966171168
    %v4039 = vunpack.c.0.s8 %v4038
    %v4040 = vlaneseq
    %v4041 = vshrl.u32 %v4040, 7
    %v4042 = vsub.s32 %v4039, %v4041
    %v4043 = vrot.slane %v4036, %v4042
    %v4045 = vunpack.c.l.s4 1966171168
    %v4046 = vunpack.c.0.s8 %v4045
    %v4047 = vlaneseq
    %v4048 = vshrl.u32 %v4047, 7
    %v4049 = vsub.s32 %v4046, %v4048
    %v4050 = vrot.slane %v4043, %v4049
    %v4052 = vadd.f32 %v4032, %v4050
    %v4053 = vxor.u32 %v4052, 2147483648
    %v4054 = vmul.f32 %v4053, 1.442695
    %v4055 = vpow.pop %v4054
    %v4056 = vadd.f32 %v4055, 1.0
    %v4057 = vrcp.pop %v4056
    %v4058 = vmul.f32 1.0, %v4057
    %v4059 = vld [vmem:[%s9] sm:$0x3]
    %v4061 = vlaneseq
    %v4062 = vshrl.u32 %v4061, 7
    %v4063 = vsub.s32 0, %v4062
    %v4064 = vrot.slane %v4059, %v4063
    %v4065 = vlaneseq
    %v4066 = vshrl.u32 %v4065, 7
    %v4067 = vsub.s32 1, %v4066
    %v4068 = vrot.slane %v4059, %v4067
    %v4071 = vadd.f32 %v4002, %v4064
    %v4072 = vadd.f32 %v4004, %v4068
    %v4075 = vcombine.low %v4071, %v4072
    %v4077 = vunpack.c.l.s4 1966171168
    %v4078 = vunpack.c.0.s8 %v4077
    %v4079 = vlaneseq
    %v4080 = vshrl.u32 %v4079, 7
    %v4081 = vsub.s32 %v4078, %v4080
    %v4082 = vrot.slane %v4075, %v4081
    %v4084 = vunpack.c.l.s4 1966171168
    %v4085 = vunpack.c.0.s8 %v4084
    %v4086 = vlaneseq
    %v4087 = vshrl.u32 %v4086, 7
    %v4088 = vsub.s32 %v4085, %v4087
    %v4089 = vrot.slane %v4082, %v4088
    %v4091 = vmul.f32 %v4030, %v4089
    %v4092 = vrot.slane %v3589, 4
    %v4094 = vadd.f32 %v4092, %v4091
    %v4095 = vtanh.pop %v4094
    %v4096 = vsub.f32 1.0, %v4058
    %v4097 = vmul.f32 %v4096, %v4095
    %v4098 = vmul.f32 %v4058, %v3071
    %v4099 = vadd.f32 %v4097, %v4098
    %s4100 = scalar_lea.vmem [#allocation4], 2
    %4101 = vst.msk [vmem:[%s4100] ss:$4 sm:$0x3] %vm2044, %v3587
    %s4102 = scalar_lea.vmem [#allocation4], 9
    %4103 = vst.msk [vmem:[%s4102] ss:$4 sm:$0x3] %vm2044, %v4099
    %s4104 = scalar_lea.vmem [#allocation2], 3
    %v4105 = vld [vmem:[%s4104] ss:$4 sm:$0x3f]
    %v4106 = vld [vmem:[#allocation9] sm:$0xff]
    %v4107 = vld [vmem:[#allocation9 + $0x8] sm:$0xff]
    %v4108 = vld [vmem:[#allocation9 + $0x10] sm:$0xff]
    %v4109 = vld [vmem:[#allocation9 + $0x18] sm:$0xff]
    %v4110 = vld [vmem:[#allocation9 + $0x20] sm:$0xff]
    %v4111 = vld [vmem:[#allocation9 + $0x28] sm:$0xff]
    %v4112 = vld [vmem:[#allocation9 + $0x30] sm:$0xff]
    %v4113 = vld [vmem:[#allocation9 + $0x38] sm:$0xff]
    %v4114 = vld [vmem:[#allocation9 + $0x40] sm:$0xff]
    %v4115 = vld [vmem:[#allocation9 + $0x48] sm:$0xff]
    %v4116 = vld [vmem:[#allocation9 + $0x50] sm:$0xff]
    %v4117 = vld [vmem:[#allocation9 + $0x58] sm:$0xff]
    %v4118 = vld [vmem:[#allocation9 + $0x60] sm:$0xff]
    %v4119 = vld [vmem:[#allocation9 + $0x68] sm:$0xff]
    %v4120 = vld [vmem:[#allocation9 + $0x70] sm:$0xff]
    %v4121 = vld [vmem:[#allocation9 + $0x78] sm:$0xff]
    %v4122 = vld [vmem:[#allocation9 + $0x80] sm:$0xff]
    %v4123 = vld [vmem:[#allocation9 + $0x88] sm:$0xff]
    %v4124 = vld [vmem:[#allocation9 + $0x90] sm:$0xff]
    %v4125 = vld [vmem:[#allocation9 + $0x98] sm:$0xff]
    %v4126 = vld [vmem:[#allocation9 + $0xa0] sm:$0xff]
    %v4127 = vld [vmem:[#allocation9 + $0xa8] sm:$0xff]
    %v4128 = vld [vmem:[#allocation9 + $0xb0] sm:$0xff]
    %v4129 = vld [vmem:[#allocation9 + $0xb8] sm:$0xff]
    %v4130 = vld [vmem:[#allocation9 + $0xc0] sm:$0xff]
    %v4131 = vld [vmem:[#allocation9 + $0xc8] sm:$0xff]
    %v4132 = vld [vmem:[#allocation9 + $0xd0] sm:$0xff]
    %v4133 = vld [vmem:[#allocation9 + $0xd8] sm:$0xff]
    %v4134 = vld [vmem:[#allocation9 + $0xe0] sm:$0xff]
    %v4135 = vld [vmem:[#allocation9 + $0xe8] sm:$0xff]
    %v4136 = vld [vmem:[#allocation9 + $0xf0] sm:$0xff]
    %v4137 = vld [vmem:[#allocation9 + $0xf8] sm:$0xff]
    %v4138 = vld [vmem:[#allocation9 + $0x100] sm:$0xff]
    %v4139 = vld [vmem:[#allocation9 + $0x108] sm:$0xff]
    %v4140 = vld [vmem:[#allocation9 + $0x110] sm:$0xff]
    %v4141 = vld [vmem:[#allocation9 + $0x118] sm:$0xff]
    %v4142 = vld [vmem:[#allocation9 + $0x120] sm:$0xff]
    %v4143 = vld [vmem:[#allocation9 + $0x128] sm:$0xff]
    %v4144 = vld [vmem:[#allocation9 + $0x130] sm:$0xff]
    %v4145 = vld [vmem:[#allocation9 + $0x138] sm:$0xff]
    %v4146 = vld [vmem:[#allocation9 + $0x140] sm:$0xff]
    %v4147 = vld [vmem:[#allocation9 + $0x148] sm:$0xff]
    %v4148 = vld [vmem:[#allocation9 + $0x150] sm:$0xff]
    %v4149 = vld [vmem:[#allocation9 + $0x158] sm:$0xff]
    %v4150 = vld [vmem:[#allocation9 + $0x160] sm:$0xff]
    %v4151 = vld [vmem:[#allocation9 + $0x168] sm:$0xff]
    %v4152 = vld [vmem:[#allocation9 + $0x170] sm:$0xff]
    %v4153 = vld [vmem:[#allocation9 + $0x178] sm:$0xff]
    %v4154 = vld [vmem:[#allocation9 + $0x180] sm:$0xff]
    %v4155 = vld [vmem:[#allocation9 + $0x188] sm:$0xff]
    %v4156 = vld [vmem:[#allocation9 + $0x190] sm:$0xff]
    %v4157 = vld [vmem:[#allocation9 + $0x198] sm:$0xff]
    %v4158 = vld [vmem:[#allocation9 + $0x1a0] sm:$0xff]
    %v4159 = vld [vmem:[#allocation9 + $0x1a8] sm:$0xff]
    %v4160 = vld [vmem:[#allocation9 + $0x1b0] sm:$0xff]
    %v4161 = vld [vmem:[#allocation9 + $0x1b8] sm:$0xff]
    %v4162 = vld [vmem:[#allocation9 + $0x1c0] sm:$0xff]
    %v4163 = vld [vmem:[#allocation9 + $0x1c8] sm:$0xff]
    %v4164 = vld [vmem:[#allocation9 + $0x1d0] sm:$0xff]
    %v4165 = vld [vmem:[#allocation9 + $0x1d8] sm:$0xff]
    %v4166 = vld [vmem:[#allocation9 + $0x1e0] sm:$0xff]
    %v4167 = vld [vmem:[#allocation9 + $0x1e8] sm:$0xff]
    %v4168 = vld [vmem:[#allocation9 + $0x1f0] sm:$0xff]
    %v4169 = vld [vmem:[#allocation9 + $0x1f8] sm:$0xff]
    %v4170 = vld [vmem:[#allocation9 + $0x200] sm:$0xff]
    %v4171 = vld [vmem:[#allocation9 + $0x208] sm:$0xff]
    %v4172 = vld [vmem:[#allocation9 + $0x210] sm:$0xff]
    %v4173 = vld [vmem:[#allocation9 + $0x218] sm:$0xff]
    %v4174 = vld [vmem:[#allocation9 + $0x220] sm:$0xff]
    %v4175 = vld [vmem:[#allocation9 + $0x228] sm:$0xff]
    %v4176 = vld [vmem:[#allocation9 + $0x230] sm:$0xff]
    %v4177 = vld [vmem:[#allocation9 + $0x238] sm:$0xff]
    %v4178 = vld [vmem:[#allocation9 + $0x240] sm:$0xff]
    %v4179 = vld [vmem:[#allocation9 + $0x248] sm:$0xff]
    %v4180 = vld [vmem:[#allocation9 + $0x250] sm:$0xff]
    %v4181 = vld [vmem:[#allocation9 + $0x258] sm:$0xff]
    %v4182 = vld [vmem:[#allocation9 + $0x260] sm:$0xff]
    %v4183 = vld [vmem:[#allocation9 + $0x268] sm:$0xff]
    %v4184 = vld [vmem:[#allocation9 + $0x270] sm:$0xff]
    %v4185 = vld [vmem:[#allocation9 + $0x278] sm:$0xff]
    %v4186 = vld [vmem:[#allocation9 + $0x280] sm:$0xff]
    %v4187 = vld [vmem:[#allocation9 + $0x288] sm:$0xff]
    %v4188 = vld [vmem:[#allocation9 + $0x290] sm:$0xff]
    %v4189 = vld [vmem:[#allocation9 + $0x298] sm:$0xff]
    %v4190 = vld [vmem:[#allocation9 + $0x2a0] sm:$0xff]
    %v4191 = vld [vmem:[#allocation9 + $0x2a8] sm:$0xff]
    %v4192 = vld [vmem:[#allocation9 + $0x2b0] sm:$0xff]
    %v4193 = vld [vmem:[#allocation9 + $0x2b8] sm:$0xff]
    %v4194 = vld [vmem:[#allocation9 + $0x2c0] sm:$0xff]
    %v4195 = vld [vmem:[#allocation9 + $0x2c8] sm:$0xff]
    %v4196 = vld [vmem:[#allocation9 + $0x2d0] sm:$0xff]
    %v4197 = vld [vmem:[#allocation9 + $0x2d8] sm:$0xff]
    %v4198 = vld [vmem:[#allocation9 + $0x2e0] sm:$0xff]
    %v4199 = vld [vmem:[#allocation9 + $0x2e8] sm:$0xff]
    %v4200 = vld [vmem:[#allocation9 + $0x2f0] sm:$0xff]
    %v4201 = vld [vmem:[#allocation9 + $0x2f8] sm:$0xff]
    %v4202 = vld [vmem:[#allocation9 + $0x300] sm:$0xff]
    %v4203 = vld [vmem:[#allocation9 + $0x308] sm:$0xff]
    %v4204 = vld [vmem:[#allocation9 + $0x310] sm:$0xff]
    %v4205 = vld [vmem:[#allocation9 + $0x318] sm:$0xff]
    %v4206 = vld [vmem:[#allocation9 + $0x320] sm:$0xff]
    %v4207 = vld [vmem:[#allocation9 + $0x328] sm:$0xff]
    %v4208 = vld [vmem:[#allocation9 + $0x330] sm:$0xff]
    %v4209 = vld [vmem:[#allocation9 + $0x338] sm:$0xff]
    %v4210 = vld [vmem:[#allocation9 + $0x340] sm:$0xff]
    %v4211 = vld [vmem:[#allocation9 + $0x348] sm:$0xff]
    %v4212 = vld [vmem:[#allocation9 + $0x350] sm:$0xff]
    %v4213 = vld [vmem:[#allocation9 + $0x358] sm:$0xff]
    %v4214 = vld [vmem:[#allocation9 + $0x360] sm:$0xff]
    %v4215 = vld [vmem:[#allocation9 + $0x368] sm:$0xff]
    %v4216 = vld [vmem:[#allocation9 + $0x370] sm:$0xff]
    %v4217 = vld [vmem:[#allocation9 + $0x378] sm:$0xff]
    %v4218 = vld [vmem:[#allocation9 + $0x380] sm:$0xff]
    %v4219 = vld [vmem:[#allocation9 + $0x388] sm:$0xff]
    %v4220 = vld [vmem:[#allocation9 + $0x390] sm:$0xff]
    %v4221 = vld [vmem:[#allocation9 + $0x398] sm:$0xff]
    %v4222 = vld [vmem:[#allocation9 + $0x3a0] sm:$0xff]
    %v4223 = vld [vmem:[#allocation9 + $0x3a8] sm:$0xff]
    %v4224 = vld [vmem:[#allocation9 + $0x3b0] sm:$0xff]
    %v4225 = vld [vmem:[#allocation9 + $0x3b8] sm:$0xff]
    %v4226 = vld [vmem:[#allocation9 + $0x3c0] sm:$0xff]
    %v4227 = vld [vmem:[#allocation9 + $0x3c8] sm:$0xff]
    %v4228 = vld [vmem:[#allocation9 + $0x3d0] sm:$0xff]
    %v4229 = vld [vmem:[#allocation9 + $0x3d8] sm:$0xff]
    %v4230 = vld [vmem:[#allocation9 + $0x3e0] sm:$0xff]
    %v4231 = vld [vmem:[#allocation9 + $0x3e8] sm:$0xff]
    %v4232 = vld [vmem:[#allocation9 + $0x3f0] sm:$0xff]
    %v4233 = vld [vmem:[#allocation9 + $0x3f8] sm:$0xff]
    %v4234 = vld [vmem:[#allocation9 + $0x400] sm:$0xff]
    %v4235 = vld [vmem:[#allocation9 + $0x408] sm:$0xff]
    %v4236 = vld [vmem:[#allocation9 + $0x410] sm:$0xff]
    %v4237 = vld [vmem:[#allocation9 + $0x418] sm:$0xff]
    %v4238 = vld [vmem:[#allocation9 + $0x420] sm:$0xff]
    %v4239 = vld [vmem:[#allocation9 + $0x428] sm:$0xff]
    %v4240 = vld [vmem:[#allocation9 + $0x430] sm:$0xff]
    %v4241 = vld [vmem:[#allocation9 + $0x438] sm:$0xff]
    %v4242 = vld [vmem:[#allocation9 + $0x440] sm:$0xff]
    %v4243 = vld [vmem:[#allocation9 + $0x448] sm:$0xff]
    %v4244 = vld [vmem:[#allocation9 + $0x450] sm:$0xff]
    %v4245 = vld [vmem:[#allocation9 + $0x458] sm:$0xff]
    %v4246 = vld [vmem:[#allocation9 + $0x460] sm:$0xff]
    %v4247 = vld [vmem:[#allocation9 + $0x468] sm:$0xff]
    %v4248 = vld [vmem:[#allocation9 + $0x470] sm:$0xff]
    %v4249 = vld [vmem:[#allocation9 + $0x478] sm:$0xff]
    %v4250 = vld [vmem:[#allocation9 + $0x480] sm:$0xff]
    %v4251 = vld [vmem:[#allocation9 + $0x488] sm:$0xff]
    %v4252 = vld [vmem:[#allocation9 + $0x490] sm:$0xff]
    %v4253 = vld [vmem:[#allocation9 + $0x498] sm:$0xff]
    %v4254 = vld [vmem:[#allocation9 + $0x4a0] sm:$0xff]
    %v4255 = vld [vmem:[#allocation9 + $0x4a8] sm:$0xff]
    %v4256 = vld [vmem:[#allocation9 + $0x4b0] sm:$0xff]
    %v4257 = vld [vmem:[#allocation9 + $0x4b8] sm:$0xff]
    %v4258 = vld [vmem:[#allocation9 + $0x4c0] sm:$0xff]
    %v4259 = vld [vmem:[#allocation9 + $0x4c8] sm:$0xff]
    %v4260 = vld [vmem:[#allocation9 + $0x4d0] sm:$0xff]
    %v4261 = vld [vmem:[#allocation9 + $0x4d8] sm:$0xff]
    %v4262 = vld [vmem:[#allocation9 + $0x4e0] sm:$0xff]
    %v4263 = vld [vmem:[#allocation9 + $0x4e8] sm:$0xff]
    %v4264 = vld [vmem:[#allocation9 + $0x4f0] sm:$0xff]
    %v4265 = vld [vmem:[#allocation9 + $0x4f8] sm:$0xff]
    %v4266 = vld [vmem:[#allocation9 + $0x500] sm:$0xff]
    %v4267 = vld [vmem:[#allocation9 + $0x508] sm:$0xff]
    %v4268 = vld [vmem:[#allocation9 + $0x510] sm:$0xff]
    %v4269 = vld [vmem:[#allocation9 + $0x518] sm:$0xff]
    %v4270 = vld [vmem:[#allocation9 + $0x520] sm:$0xff]
    %v4271 = vld [vmem:[#allocation9 + $0x528] sm:$0xff]
    %v4272 = vld [vmem:[#allocation9 + $0x530] sm:$0xff]
    %v4273 = vld [vmem:[#allocation9 + $0x538] sm:$0xff]
    %v4274 = vld [vmem:[#allocation9 + $0x540] sm:$0xff]
    %v4275 = vld [vmem:[#allocation9 + $0x548] sm:$0xff]
    %v4276 = vld [vmem:[#allocation9 + $0x550] sm:$0xff]
    %v4277 = vld [vmem:[#allocation9 + $0x558] sm:$0xff]
    %v4278 = vld [vmem:[#allocation9 + $0x560] sm:$0xff]
    %v4279 = vld [vmem:[#allocation9 + $0x568] sm:$0xff]
    %v4280 = vld [vmem:[#allocation9 + $0x570] sm:$0xff]
    %v4281 = vld [vmem:[#allocation9 + $0x578] sm:$0xff]
    %v4282 = vld [vmem:[#allocation9 + $0x580] sm:$0xff]
    %v4283 = vld [vmem:[#allocation9 + $0x588] sm:$0xff]
    %v4284 = vld [vmem:[#allocation9 + $0x590] sm:$0xff]
    %v4285 = vld [vmem:[#allocation9 + $0x598] sm:$0xff]
    %v4286 = vld [vmem:[#allocation9 + $0x5a0] sm:$0xff]
    %v4287 = vld [vmem:[#allocation9 + $0x5a8] sm:$0xff]
    %v4288 = vld [vmem:[#allocation9 + $0x5b0] sm:$0xff]
    %v4289 = vld [vmem:[#allocation9 + $0x5b8] sm:$0xff]
    %v4290 = vld [vmem:[#allocation9 + $0x5c0] sm:$0xff]
    %v4291 = vld [vmem:[#allocation9 + $0x5c8] sm:$0xff]
    %v4292 = vld [vmem:[#allocation9 + $0x5d0] sm:$0xff]
    %v4293 = vld [vmem:[#allocation9 + $0x5d8] sm:$0xff]
    %v4294 = vld [vmem:[#allocation9 + $0x5e0] sm:$0xff]
    %v4295 = vld [vmem:[#allocation9 + $0x5e8] sm:$0xff]
    %v4296 = vld [vmem:[#allocation9 + $0x5f0] sm:$0xff]
    %v4297 = vld [vmem:[#allocation9 + $0x5f8] sm:$0xff]
    %v4299 = vlaneseq
    %v4300 = vshrl.u32 %v4299, 7
    %v4301 = vsub.s32 0, %v4300
    %v4302 = vrot.slane %v3587, %v4301
    %v4303 = vlaneseq
    %v4304 = vshrl.u32 %v4303, 7
    %v4305 = vsub.s32 1, %v4304
    %v4306 = vrot.slane %v3587, %v4305
    %4309 = vmatprep.subr.mxu0 %v4107
    %4310 = vmatpush1.msra.mxu0 %v4106
    %4311 = vmatprep.subr.mxu0 %v4113
    %4312 = vmatpush1.msra.mxu0 %v4112
    %4313 = vmatprep.subr.mxu0 %v4119
    %4314 = vmatpush1.msra.mxu0 %v4118
    %4315 = vmatprep.subr.mxu0 %v4125
    %4316 = vmatpush1.msra.mxu0 %v4124
    %4317 = vmatprep.subr.mxu0 %v4131
    %4318 = vmatpush1.msra.mxu0 %v4130
    %4319 = vmatprep.subr.mxu0 %v4137
    %4320 = vmatpush1.msra.mxu0 %v4136
    %4321 = vmatprep.subr.mxu0 %v4143
    %4322 = vmatpush1.msra.mxu0 %v4142
    %4323 = vmatprep.subr.mxu0 %v4149
    %4324 = vmatpush1.msra.mxu0 %v4148
    %4325 = vmatprep.subr.mxu0 %v4155
    %4326 = vmatpush1.msra.mxu0 %v4154
    %4327 = vmatprep.subr.mxu0 %v4161
    %4328 = vmatpush1.msra.mxu0 %v4160
    %4329 = vmatprep.subr.mxu0 %v4167
    %4330 = vmatpush1.msra.mxu0 %v4166
    %4331 = vmatprep.subr.mxu0 %v4173
    %4332 = vmatpush1.msra.mxu0 %v4172
    %4333 = vmatprep.subr.mxu0 %v4179
    %4334 = vmatpush1.msra.mxu0 %v4178
    %4335 = vmatprep.subr.mxu0 %v4185
    %4336 = vmatpush1.msra.mxu0 %v4184
    %4337 = vmatprep.subr.mxu0 %v4191
    %4338 = vmatpush1.msra.mxu0 %v4190
    %4339 = vmatprep.subr.mxu0 %v4197
    %4340 = vmatpush1.msra.mxu0 %v4196
    %4341 = vmatprep.subr.mxu0 %v4203
    %4342 = vmatpush1.msra.mxu0 %v4202
    %4343 = vmatprep.subr.mxu0 %v4209
    %4344 = vmatpush1.msra.mxu0 %v4208
    %4345 = vmatprep.subr.mxu0 %v4215
    %4346 = vmatpush1.msra.mxu0 %v4214
    %4347 = vmatprep.subr.mxu0 %v4221
    %4348 = vmatpush1.msra.mxu0 %v4220
    %4349 = vmatprep.subr.mxu0 %v4227
    %4350 = vmatpush1.msra.mxu0 %v4226
    %4351 = vmatprep.subr.mxu0 %v4233
    %4352 = vmatpush1.msra.mxu0 %v4232
    %4353 = vmatprep.subr.mxu0 %v4239
    %4354 = vmatpush1.msra.mxu0 %v4238
    %4355 = vmatprep.subr.mxu0 %v4245
    %4356 = vmatpush1.msra.mxu0 %v4244
    %4357 = vmatprep.subr.mxu0 %v4251
    %4358 = vmatpush1.msra.mxu0 %v4250
    %4359 = vmatprep.subr.mxu0 %v4257
    %4360 = vmatpush1.msra.mxu0 %v4256
    %4361 = vmatprep.subr.mxu0 %v4263
    %4362 = vmatpush1.msra.mxu0 %v4262
    %4363 = vmatprep.subr.mxu0 %v4269
    %4364 = vmatpush1.msra.mxu0 %v4268
    %4365 = vmatprep.subr.mxu0 %v4275
    %4366 = vmatpush1.msra.mxu0 %v4274
    %4367 = vmatprep.subr.mxu0 %v4281
    %4368 = vmatpush1.msra.mxu0 %v4280
    %4369 = vmatprep.subr.mxu0 %v4287
    %4370 = vmatpush1.msra.mxu0 %v4286
    %4371 = vmatprep.subr.mxu0 %v4293
    %4372 = vmatpush1.msra.mxu0 %v4292
    %4373 = vmatprep.mubr.f32.mxu0 %v4306
    %4374 = vmatmul.mubr.f32.gmra.mrb[0].mxu0 %v4302
    %v4375 = vpop.f32.mrb[0].mxu0
    %v4376 = vadd.f32 0.0, %v4375
    %v4377 = vpop.f32.mrb[0].mxu0
    %v4378 = vadd.f32 0.0, %v4377
    %4379 = vdwg.mxu0
    %4380 = vmatprep.subr.mxu0 %v4109
    %4381 = vmatpush1.msra.mxu0 %v4108
    %4382 = vmatprep.subr.mxu0 %v4115
    %4383 = vmatpush1.msra.mxu0 %v4114
    %4384 = vmatprep.subr.mxu0 %v4121
    %4385 = vmatpush1.msra.mxu0 %v4120
    %4386 = vmatprep.subr.mxu0 %v4127
    %4387 = vmatpush1.msra.mxu0 %v4126
    %4388 = vmatprep.subr.mxu0 %v4133
    %4389 = vmatpush1.msra.mxu0 %v4132
    %4390 = vmatprep.subr.mxu0 %v4139
    %4391 = vmatpush1.msra.mxu0 %v4138
    %4392 = vmatprep.subr.mxu0 %v4145
    %4393 = vmatpush1.msra.mxu0 %v4144
    %4394 = vmatprep.subr.mxu0 %v4151
    %4395 = vmatpush1.msra.mxu0 %v4150
    %4396 = vmatprep.subr.mxu0 %v4157
    %4397 = vmatpush1.msra.mxu0 %v4156
    %4398 = vmatprep.subr.mxu0 %v4163
    %4399 = vmatpush1.msra.mxu0 %v4162
    %4400 = vmatprep.subr.mxu0 %v4169
    %4401 = vmatpush1.msra.mxu0 %v4168
    %4402 = vmatprep.subr.mxu0 %v4175
    %4403 = vmatpush1.msra.mxu0 %v4174
    %4404 = vmatprep.subr.mxu0 %v4181
    %4405 = vmatpush1.msra.mxu0 %v4180
    %4406 = vmatprep.subr.mxu0 %v4187
    %4407 = vmatpush1.msra.mxu0 %v4186
    %4408 = vmatprep.subr.mxu0 %v4193
    %4409 = vmatpush1.msra.mxu0 %v4192
    %4410 = vmatprep.subr.mxu0 %v4199
    %4411 = vmatpush1.msra.mxu0 %v4198
    %4412 = vmatprep.subr.mxu0 %v4205
    %4413 = vmatpush1.msra.mxu0 %v4204
    %4414 = vmatprep.subr.mxu0 %v4211
    %4415 = vmatpush1.msra.mxu0 %v4210
    %4416 = vmatprep.subr.mxu0 %v4217
    %4417 = vmatpush1.msra.mxu0 %v4216
    %4418 = vmatprep.subr.mxu0 %v4223
    %4419 = vmatpush1.msra.mxu0 %v4222
    %4420 = vmatprep.subr.mxu0 %v4229
    %4421 = vmatpush1.msra.mxu0 %v4228
    %4422 = vmatprep.subr.mxu0 %v4235
    %4423 = vmatpush1.msra.mxu0 %v4234
    %4424 = vmatprep.subr.mxu0 %v4241
    %4425 = vmatpush1.msra.mxu0 %v4240
    %4426 = vmatprep.subr.mxu0 %v4247
    %4427 = vmatpush1.msra.mxu0 %v4246
    %4428 = vmatprep.subr.mxu0 %v4253
    %4429 = vmatpush1.msra.mxu0 %v4252
    %4430 = vmatprep.subr.mxu0 %v4259
    %4431 = vmatpush1.msra.mxu0 %v4258
    %4432 = vmatprep.subr.mxu0 %v4265
    %4433 = vmatpush1.msra.mxu0 %v4264
    %4434 = vmatprep.subr.mxu0 %v4271
    %4435 = vmatpush1.msra.mxu0 %v4270
    %4436 = vmatprep.subr.mxu0 %v4277
    %4437 = vmatpush1.msra.mxu0 %v4276
    %4438 = vmatprep.subr.mxu0 %v4283
    %4439 = vmatpush1.msra.mxu0 %v4282
    %4440 = vmatprep.subr.mxu0 %v4289
    %4441 = vmatpush1.msra.mxu0 %v4288
    %4442 = vmatprep.subr.mxu0 %v4295
    %4443 = vmatpush1.msra.mxu0 %v4294
    %4444 = vmatprep.mubr.f32.mxu0 %v4306
    %4445 = vmatmul.mubr.f32.gmra.mrb[0].mxu0 %v4302
    %v4446 = vpop.f32.mrb[0].mxu0
    %v4447 = vadd.f32 0.0, %v4446
    %v4448 = vpop.f32.mrb[0].mxu0
    %v4449 = vadd.f32 0.0, %v4448
    %4450 = vdwg.mxu0
    %4451 = vmatprep.subr.mxu0 %v4111
    %4452 = vmatpush1.msra.mxu0 %v4110
    %4453 = vmatprep.subr.mxu0 %v4117
    %4454 = vmatpush1.msra.mxu0 %v4116
    %4455 = vmatprep.subr.mxu0 %v4123
    %4456 = vmatpush1.msra.mxu0 %v4122
    %4457 = vmatprep.subr.mxu0 %v4129
    %4458 = vmatpush1.msra.mxu0 %v4128
    %4459 = vmatprep.subr.mxu0 %v4135
    %4460 = vmatpush1.msra.mxu0 %v4134
    %4461 = vmatprep.subr.mxu0 %v4141
    %4462 = vmatpush1.msra.mxu0 %v4140
    %4463 = vmatprep.subr.mxu0 %v4147
    %4464 = vmatpush1.msra.mxu0 %v4146
    %4465 = vmatprep.subr.mxu0 %v4153
    %4466 = vmatpush1.msra.mxu0 %v4152
    %4467 = vmatprep.subr.mxu0 %v4159
    %4468 = vmatpush1.msra.mxu0 %v4158
    %4469 = vmatprep.subr.mxu0 %v4165
    %4470 = vmatpush1.msra.mxu0 %v4164
    %4471 = vmatprep.subr.mxu0 %v4171
    %4472 = vmatpush1.msra.mxu0 %v4170
    %4473 = vmatprep.subr.mxu0 %v4177
    %4474 = vmatpush1.msra.mxu0 %v4176
    %4475 = vmatprep.subr.mxu0 %v4183
    %4476 = vmatpush1.msra.mxu0 %v4182
    %4477 = vmatprep.subr.mxu0 %v4189
    %4478 = vmatpush1.msra.mxu0 %v4188
    %4479 = vmatprep.subr.mxu0 %v4195
    %4480 = vmatpush1.msra.mxu0 %v4194
    %4481 = vmatprep.subr.mxu0 %v4201
    %4482 = vmatpush1.msra.mxu0 %v4200
    %4483 = vmatprep.subr.mxu0 %v4207
    %4484 = vmatpush1.msra.mxu0 %v4206
    %4485 = vmatprep.subr.mxu0 %v4213
    %4486 = vmatpush1.msra.mxu0 %v4212
    %4487 = vmatprep.subr.mxu0 %v4219
    %4488 = vmatpush1.msra.mxu0 %v4218
    %4489 = vmatprep.subr.mxu0 %v4225
    %4490 = vmatpush1.msra.mxu0 %v4224
    %4491 = vmatprep.subr.mxu0 %v4231
    %4492 = vmatpush1.msra.mxu0 %v4230
    %4493 = vmatprep.subr.mxu0 %v4237
    %4494 = vmatpush1.msra.mxu0 %v4236
    %4495 = vmatprep.subr.mxu0 %v4243
    %4496 = vmatpush1.msra.mxu0 %v4242
    %4497 = vmatprep.subr.mxu0 %v4249
    %4498 = vmatpush1.msra.mxu0 %v4248
    %4499 = vmatprep.subr.mxu0 %v4255
    %4500 = vmatpush1.msra.mxu0 %v4254
    %4501 = vmatprep.subr.mxu0 %v4261
    %4502 = vmatpush1.msra.mxu0 %v4260
    %4503 = vmatprep.subr.mxu0 %v4267
    %4504 = vmatpush1.msra.mxu0 %v4266
    %4505 = vmatprep.subr.mxu0 %v4273
    %4506 = vmatpush1.msra.mxu0 %v4272
    %4507 = vmatprep.subr.mxu0 %v4279
    %4508 = vmatpush1.msra.mxu0 %v4278
    %4509 = vmatprep.subr.mxu0 %v4285
    %4510 = vmatpush1.msra.mxu0 %v4284
    %4511 = vmatprep.subr.mxu0 %v4291
    %4512 = vmatpush1.msra.mxu0 %v4290
    %4513 = vmatprep.subr.mxu0 %v4297
    %4514 = vmatpush1.msra.mxu0 %v4296
    %4515 = vmatprep.mubr.f32.mxu0 %v4306
    %4516 = vmatmul.mubr.f32.gmra.mrb[0].mxu0 %v4302
    %v4517 = vpop.f32.mrb[0].mxu0
    %v4518 = vadd.f32 0.0, %v4517
    %v4519 = vpop.f32.mrb[0].mxu0
    %v4520 = vadd.f32 0.0, %v4519
    %4521 = vdwg.mxu0
    %v4524 = vcombine.low %v4376, %v4378
    %v4526 = vunpack.c.l.s4 1966171168
    %v4527 = vunpack.c.0.s8 %v4526
    %v4528 = vlaneseq
    %v4529 = vshrl.u32 %v4528, 7
    %v4530 = vsub.s32 %v4527, %v4529
    %v4531 = vrot.slane %v4524, %v4530
    %v4533 = vunpack.c.l.s4 1966171168
    %v4534 = vunpack.c.0.s8 %v4533
    %v4535 = vlaneseq
    %v4536 = vshrl.u32 %v4535, 7
    %v4537 = vsub.s32 %v4534, %v4536
    %v4538 = vrot.slane %v4531, %v4537
    %v4540 = vadd.f32 %v4105, %v4538
    %v4541 = vxor.u32 %v4540, 2147483648
    %v4542 = vmul.f32 %v4541, 1.442695
    %v4543 = vpow.pop %v4542
    %v4544 = vadd.f32 %v4543, 1.0
    %v4545 = vrcp.pop %v4544
    %v4546 = vmul.f32 1.0, %v4545
    %v4548 = vrot.slane %v4105, 2
    %v4552 = vcombine.low %v4447, %v4449
    %v4554 = vunpack.c.l.s4 1966171168
    %v4555 = vunpack.c.0.s8 %v4554
    %v4556 = vlaneseq
    %v4557 = vshrl.u32 %v4556, 7
    %v4558 = vsub.s32 %v4555, %v4557
    %v4559 = vrot.slane %v4552, %v4558
    %v4561 = vunpack.c.l.s4 1966171168
    %v4562 = vunpack.c.0.s8 %v4561
    %v4563 = vlaneseq
    %v4564 = vshrl.u32 %v4563, 7
    %v4565 = vsub.s32 %v4562, %v4564
    %v4566 = vrot.slane %v4559, %v4565
    %v4568 = vadd.f32 %v4548, %v4566
    %v4569 = vxor.u32 %v4568, 2147483648
    %v4570 = vmul.f32 %v4569, 1.442695
    %v4571 = vpow.pop %v4570
    %v4572 = vadd.f32 %v4571, 1.0
    %v4573 = vrcp.pop %v4572
    %v4574 = vmul.f32 1.0, %v4573
    %v4575 = vld [vmem:[%s5] sm:$0x3]
    %v4577 = vlaneseq
    %v4578 = vshrl.u32 %v4577, 7
    %v4579 = vsub.s32 0, %v4578
    %v4580 = vrot.slane %v4575, %v4579
    %v4581 = vlaneseq
    %v4582 = vshrl.u32 %v4581, 7
    %v4583 = vsub.s32 1, %v4582
    %v4584 = vrot.slane %v4575, %v4583
    %v4587 = vadd.f32 %v4518, %v4580
    %v4588 = vadd.f32 %v4520, %v4584
    %v4591 = vcombine.low %v4587, %v4588
    %v4593 = vunpack.c.l.s4 1966171168
    %v4594 = vunpack.c.0.s8 %v4593
    %v4595 = vlaneseq
    %v4596 = vshrl.u32 %v4595, 7
    %v4597 = vsub.s32 %v4594, %v4596
    %v4598 = vrot.slane %v4591, %v4597
    %v4600 = vunpack.c.l.s4 1966171168
    %v4601 = vunpack.c.0.s8 %v4600
    %v4602 = vlaneseq
    %v4603 = vshrl.u32 %v4602, 7
    %v4604 = vsub.s32 %v4601, %v4603
    %v4605 = vrot.slane %v4598, %v4604
    %v4607 = vmul.f32 %v4546, %v4605
    %v4608 = vrot.slane %v4105, 4
    %v4610 = vadd.f32 %v4608, %v4607
    %v4611 = vtanh.pop %v4610
    %v4612 = vsub.f32 1.0, %v4574
    %v4613 = vmul.f32 %v4612, %v4611
    %v4614 = vmul.f32 %v4574, %v3587
    %v4615 = vadd.f32 %v4613, %v4614
    %v4616 = vld [vmem:[#allocation3] ss:$4 sm:$0x3f]
    %v4617 = vld [vmem:[#allocation13] sm:$0xff]
    %v4618 = vld [vmem:[#allocation13 + $0x8] sm:$0xff]
    %v4619 = vld [vmem:[#allocation13 + $0x10] sm:$0xff]
    %v4620 = vld [vmem:[#allocation13 + $0x18] sm:$0xff]
    %v4621 = vld [vmem:[#allocation13 + $0x20] sm:$0xff]
    %v4622 = vld [vmem:[#allocation13 + $0x28] sm:$0xff]
    %v4623 = vld [vmem:[#allocation13 + $0x30] sm:$0xff]
    %v4624 = vld [vmem:[#allocation13 + $0x38] sm:$0xff]
    %v4625 = vld [vmem:[#allocation13 + $0x40] sm:$0xff]
    %v4626 = vld [vmem:[#allocation13 + $0x48] sm:$0xff]
    %v4627 = vld [vmem:[#allocation13 + $0x50] sm:$0xff]
    %v4628 = vld [vmem:[#allocation13 + $0x58] sm:$0xff]
    %v4629 = vld [vmem:[#allocation13 + $0x60] sm:$0xff]
    %v4630 = vld [vmem:[#allocation13 + $0x68] sm:$0xff]
    %v4631 = vld [vmem:[#allocation13 + $0x70] sm:$0xff]
    %v4632 = vld [vmem:[#allocation13 + $0x78] sm:$0xff]
    %v4633 = vld [vmem:[#allocation13 + $0x80] sm:$0xff]
    %v4634 = vld [vmem:[#allocation13 + $0x88] sm:$0xff]
    %v4635 = vld [vmem:[#allocation13 + $0x90] sm:$0xff]
    %v4636 = vld [vmem:[#allocation13 + $0x98] sm:$0xff]
    %v4637 = vld [vmem:[#allocation13 + $0xa0] sm:$0xff]
    %v4638 = vld [vmem:[#allocation13 + $0xa8] sm:$0xff]
    %v4639 = vld [vmem:[#allocation13 + $0xb0] sm:$0xff]
    %v4640 = vld [vmem:[#allocation13 + $0xb8] sm:$0xff]
    %v4641 = vld [vmem:[#allocation13 + $0xc0] sm:$0xff]
    %v4642 = vld [vmem:[#allocation13 + $0xc8] sm:$0xff]
    %v4643 = vld [vmem:[#allocation13 + $0xd0] sm:$0xff]
    %v4644 = vld [vmem:[#allocation13 + $0xd8] sm:$0xff]
    %v4645 = vld [vmem:[#allocation13 + $0xe0] sm:$0xff]
    %v4646 = vld [vmem:[#allocation13 + $0xe8] sm:$0xff]
    %v4647 = vld [vmem:[#allocation13 + $0xf0] sm:$0xff]
    %v4648 = vld [vmem:[#allocation13 + $0xf8] sm:$0xff]
    %v4649 = vld [vmem:[#allocation13 + $0x100] sm:$0xff]
    %v4650 = vld [vmem:[#allocation13 + $0x108] sm:$0xff]
    %v4651 = vld [vmem:[#allocation13 + $0x110] sm:$0xff]
    %v4652 = vld [vmem:[#allocation13 + $0x118] sm:$0xff]
    %v4653 = vld [vmem:[#allocation13 + $0x120] sm:$0xff]
    %v4654 = vld [vmem:[#allocation13 + $0x128] sm:$0xff]
    %v4655 = vld [vmem:[#allocation13 + $0x130] sm:$0xff]
    %v4656 = vld [vmem:[#allocation13 + $0x138] sm:$0xff]
    %v4657 = vld [vmem:[#allocation13 + $0x140] sm:$0xff]
    %v4658 = vld [vmem:[#allocation13 + $0x148] sm:$0xff]
    %v4659 = vld [vmem:[#allocation13 + $0x150] sm:$0xff]
    %v4660 = vld [vmem:[#allocation13 + $0x158] sm:$0xff]
    %v4661 = vld [vmem:[#allocation13 + $0x160] sm:$0xff]
    %v4662 = vld [vmem:[#allocation13 + $0x168] sm:$0xff]
    %v4663 = vld [vmem:[#allocation13 + $0x170] sm:$0xff]
    %v4664 = vld [vmem:[#allocation13 + $0x178] sm:$0xff]
    %v4665 = vld [vmem:[#allocation13 + $0x180] sm:$0xff]
    %v4666 = vld [vmem:[#allocation13 + $0x188] sm:$0xff]
    %v4667 = vld [vmem:[#allocation13 + $0x190] sm:$0xff]
    %v4668 = vld [vmem:[#allocation13 + $0x198] sm:$0xff]
    %v4669 = vld [vmem:[#allocation13 + $0x1a0] sm:$0xff]
    %v4670 = vld [vmem:[#allocation13 + $0x1a8] sm:$0xff]
    %v4671 = vld [vmem:[#allocation13 + $0x1b0] sm:$0xff]
    %v4672 = vld [vmem:[#allocation13 + $0x1b8] sm:$0xff]
    %v4673 = vld [vmem:[#allocation13 + $0x1c0] sm:$0xff]
    %v4674 = vld [vmem:[#allocation13 + $0x1c8] sm:$0xff]
    %v4675 = vld [vmem:[#allocation13 + $0x1d0] sm:$0xff]
    %v4676 = vld [vmem:[#allocation13 + $0x1d8] sm:$0xff]
    %v4677 = vld [vmem:[#allocation13 + $0x1e0] sm:$0xff]
    %v4678 = vld [vmem:[#allocation13 + $0x1e8] sm:$0xff]
    %v4679 = vld [vmem:[#allocation13 + $0x1f0] sm:$0xff]
    %v4680 = vld [vmem:[#allocation13 + $0x1f8] sm:$0xff]
    %v4681 = vld [vmem:[#allocation13 + $0x200] sm:$0xff]
    %v4682 = vld [vmem:[#allocation13 + $0x208] sm:$0xff]
    %v4683 = vld [vmem:[#allocation13 + $0x210] sm:$0xff]
    %v4684 = vld [vmem:[#allocation13 + $0x218] sm:$0xff]
    %v4685 = vld [vmem:[#allocation13 + $0x220] sm:$0xff]
    %v4686 = vld [vmem:[#allocation13 + $0x228] sm:$0xff]
    %v4687 = vld [vmem:[#allocation13 + $0x230] sm:$0xff]
    %v4688 = vld [vmem:[#allocation13 + $0x238] sm:$0xff]
    %v4689 = vld [vmem:[#allocation13 + $0x240] sm:$0xff]
    %v4690 = vld [vmem:[#allocation13 + $0x248] sm:$0xff]
    %v4691 = vld [vmem:[#allocation13 + $0x250] sm:$0xff]
    %v4692 = vld [vmem:[#allocation13 + $0x258] sm:$0xff]
    %v4693 = vld [vmem:[#allocation13 + $0x260] sm:$0xff]
    %v4694 = vld [vmem:[#allocation13 + $0x268] sm:$0xff]
    %v4695 = vld [vmem:[#allocation13 + $0x270] sm:$0xff]
    %v4696 = vld [vmem:[#allocation13 + $0x278] sm:$0xff]
    %v4697 = vld [vmem:[#allocation13 + $0x280] sm:$0xff]
    %v4698 = vld [vmem:[#allocation13 + $0x288] sm:$0xff]
    %v4699 = vld [vmem:[#allocation13 + $0x290] sm:$0xff]
    %v4700 = vld [vmem:[#allocation13 + $0x298] sm:$0xff]
    %v4701 = vld [vmem:[#allocation13 + $0x2a0] sm:$0xff]
    %v4702 = vld [vmem:[#allocation13 + $0x2a8] sm:$0xff]
    %v4703 = vld [vmem:[#allocation13 + $0x2b0] sm:$0xff]
    %v4704 = vld [vmem:[#allocation13 + $0x2b8] sm:$0xff]
    %v4705 = vld [vmem:[#allocation13 + $0x2c0] sm:$0xff]
    %v4706 = vld [vmem:[#allocation13 + $0x2c8] sm:$0xff]
    %v4707 = vld [vmem:[#allocation13 + $0x2d0] sm:$0xff]
    %v4708 = vld [vmem:[#allocation13 + $0x2d8] sm:$0xff]
    %v4709 = vld [vmem:[#allocation13 + $0x2e0] sm:$0xff]
    %v4710 = vld [vmem:[#allocation13 + $0x2e8] sm:$0xff]
    %v4711 = vld [vmem:[#allocation13 + $0x2f0] sm:$0xff]
    %v4712 = vld [vmem:[#allocation13 + $0x2f8] sm:$0xff]
    %v4713 = vld [vmem:[#allocation13 + $0x300] sm:$0xff]
    %v4714 = vld [vmem:[#allocation13 + $0x308] sm:$0xff]
    %v4715 = vld [vmem:[#allocation13 + $0x310] sm:$0xff]
    %v4716 = vld [vmem:[#allocation13 + $0x318] sm:$0xff]
    %v4717 = vld [vmem:[#allocation13 + $0x320] sm:$0xff]
    %v4718 = vld [vmem:[#allocation13 + $0x328] sm:$0xff]
    %v4719 = vld [vmem:[#allocation13 + $0x330] sm:$0xff]
    %v4720 = vld [vmem:[#allocation13 + $0x338] sm:$0xff]
    %v4721 = vld [vmem:[#allocation13 + $0x340] sm:$0xff]
    %v4722 = vld [vmem:[#allocation13 + $0x348] sm:$0xff]
    %v4723 = vld [vmem:[#allocation13 + $0x350] sm:$0xff]
    %v4724 = vld [vmem:[#allocation13 + $0x358] sm:$0xff]
    %v4725 = vld [vmem:[#allocation13 + $0x360] sm:$0xff]
    %v4726 = vld [vmem:[#allocation13 + $0x368] sm:$0xff]
    %v4727 = vld [vmem:[#allocation13 + $0x370] sm:$0xff]
    %v4728 = vld [vmem:[#allocation13 + $0x378] sm:$0xff]
    %v4729 = vld [vmem:[#allocation13 + $0x380] sm:$0xff]
    %v4730 = vld [vmem:[#allocation13 + $0x388] sm:$0xff]
    %v4731 = vld [vmem:[#allocation13 + $0x390] sm:$0xff]
    %v4732 = vld [vmem:[#allocation13 + $0x398] sm:$0xff]
    %v4733 = vld [vmem:[#allocation13 + $0x3a0] sm:$0xff]
    %v4734 = vld [vmem:[#allocation13 + $0x3a8] sm:$0xff]
    %v4735 = vld [vmem:[#allocation13 + $0x3b0] sm:$0xff]
    %v4736 = vld [vmem:[#allocation13 + $0x3b8] sm:$0xff]
    %v4737 = vld [vmem:[#allocation13 + $0x3c0] sm:$0xff]
    %v4738 = vld [vmem:[#allocation13 + $0x3c8] sm:$0xff]
    %v4739 = vld [vmem:[#allocation13 + $0x3d0] sm:$0xff]
    %v4740 = vld [vmem:[#allocation13 + $0x3d8] sm:$0xff]
    %v4741 = vld [vmem:[#allocation13 + $0x3e0] sm:$0xff]
    %v4742 = vld [vmem:[#allocation13 + $0x3e8] sm:$0xff]
    %v4743 = vld [vmem:[#allocation13 + $0x3f0] sm:$0xff]
    %v4744 = vld [vmem:[#allocation13 + $0x3f8] sm:$0xff]
    %v4745 = vld [vmem:[#allocation13 + $0x400] sm:$0xff]
    %v4746 = vld [vmem:[#allocation13 + $0x408] sm:$0xff]
    %v4747 = vld [vmem:[#allocation13 + $0x410] sm:$0xff]
    %v4748 = vld [vmem:[#allocation13 + $0x418] sm:$0xff]
    %v4749 = vld [vmem:[#allocation13 + $0x420] sm:$0xff]
    %v4750 = vld [vmem:[#allocation13 + $0x428] sm:$0xff]
    %v4751 = vld [vmem:[#allocation13 + $0x430] sm:$0xff]
    %v4752 = vld [vmem:[#allocation13 + $0x438] sm:$0xff]
    %v4753 = vld [vmem:[#allocation13 + $0x440] sm:$0xff]
    %v4754 = vld [vmem:[#allocation13 + $0x448] sm:$0xff]
    %v4755 = vld [vmem:[#allocation13 + $0x450] sm:$0xff]
    %v4756 = vld [vmem:[#allocation13 + $0x458] sm:$0xff]
    %v4757 = vld [vmem:[#allocation13 + $0x460] sm:$0xff]
    %v4758 = vld [vmem:[#allocation13 + $0x468] sm:$0xff]
    %v4759 = vld [vmem:[#allocation13 + $0x470] sm:$0xff]
    %v4760 = vld [vmem:[#allocation13 + $0x478] sm:$0xff]
    %v4761 = vld [vmem:[#allocation13 + $0x480] sm:$0xff]
    %v4762 = vld [vmem:[#allocation13 + $0x488] sm:$0xff]
    %v4763 = vld [vmem:[#allocation13 + $0x490] sm:$0xff]
    %v4764 = vld [vmem:[#allocation13 + $0x498] sm:$0xff]
    %v4765 = vld [vmem:[#allocation13 + $0x4a0] sm:$0xff]
    %v4766 = vld [vmem:[#allocation13 + $0x4a8] sm:$0xff]
    %v4767 = vld [vmem:[#allocation13 + $0x4b0] sm:$0xff]
    %v4768 = vld [vmem:[#allocation13 + $0x4b8] sm:$0xff]
    %v4769 = vld [vmem:[#allocation13 + $0x4c0] sm:$0xff]
    %v4770 = vld [vmem:[#allocation13 + $0x4c8] sm:$0xff]
    %v4771 = vld [vmem:[#allocation13 + $0x4d0] sm:$0xff]
    %v4772 = vld [vmem:[#allocation13 + $0x4d8] sm:$0xff]
    %v4773 = vld [vmem:[#allocation13 + $0x4e0] sm:$0xff]
    %v4774 = vld [vmem:[#allocation13 + $0x4e8] sm:$0xff]
    %v4775 = vld [vmem:[#allocation13 + $0x4f0] sm:$0xff]
    %v4776 = vld [vmem:[#allocation13 + $0x4f8] sm:$0xff]
    %v4777 = vld [vmem:[#allocation13 + $0x500] sm:$0xff]
    %v4778 = vld [vmem:[#allocation13 + $0x508] sm:$0xff]
    %v4779 = vld [vmem:[#allocation13 + $0x510] sm:$0xff]
    %v4780 = vld [vmem:[#allocation13 + $0x518] sm:$0xff]
    %v4781 = vld [vmem:[#allocation13 + $0x520] sm:$0xff]
    %v4782 = vld [vmem:[#allocation13 + $0x528] sm:$0xff]
    %v4783 = vld [vmem:[#allocation13 + $0x530] sm:$0xff]
    %v4784 = vld [vmem:[#allocation13 + $0x538] sm:$0xff]
    %v4785 = vld [vmem:[#allocation13 + $0x540] sm:$0xff]
    %v4786 = vld [vmem:[#allocation13 + $0x548] sm:$0xff]
    %v4787 = vld [vmem:[#allocation13 + $0x550] sm:$0xff]
    %v4788 = vld [vmem:[#allocation13 + $0x558] sm:$0xff]
    %v4789 = vld [vmem:[#allocation13 + $0x560] sm:$0xff]
    %v4790 = vld [vmem:[#allocation13 + $0x568] sm:$0xff]
    %v4791 = vld [vmem:[#allocation13 + $0x570] sm:$0xff]
    %v4792 = vld [vmem:[#allocation13 + $0x578] sm:$0xff]
    %v4793 = vld [vmem:[#allocation13 + $0x580] sm:$0xff]
    %v4794 = vld [vmem:[#allocation13 + $0x588] sm:$0xff]
    %v4795 = vld [vmem:[#allocation13 + $0x590] sm:$0xff]
    %v4796 = vld [vmem:[#allocation13 + $0x598] sm:$0xff]
    %v4797 = vld [vmem:[#allocation13 + $0x5a0] sm:$0xff]
    %v4798 = vld [vmem:[#allocation13 + $0x5a8] sm:$0xff]
    %v4799 = vld [vmem:[#allocation13 + $0x5b0] sm:$0xff]
    %v4800 = vld [vmem:[#allocation13 + $0x5b8] sm:$0xff]
    %v4801 = vld [vmem:[#allocation13 + $0x5c0] sm:$0xff]
    %v4802 = vld [vmem:[#allocation13 + $0x5c8] sm:$0xff]
    %v4803 = vld [vmem:[#allocation13 + $0x5d0] sm:$0xff]
    %v4804 = vld [vmem:[#allocation13 + $0x5d8] sm:$0xff]
    %v4805 = vld [vmem:[#allocation13 + $0x5e0] sm:$0xff]
    %v4806 = vld [vmem:[#allocation13 + $0x5e8] sm:$0xff]
    %v4807 = vld [vmem:[#allocation13 + $0x5f0] sm:$0xff]
    %v4808 = vld [vmem:[#allocation13 + $0x5f8] sm:$0xff]
    %v4810 = vlaneseq
    %v4811 = vshrl.u32 %v4810, 7
    %v4812 = vsub.s32 0, %v4811
    %v4813 = vrot.slane %v4099, %v4812
    %v4814 = vlaneseq
    %v4815 = vshrl.u32 %v4814, 7
    %v4816 = vsub.s32 1, %v4815
    %v4817 = vrot.slane %v4099, %v4816
    %4820 = vmatprep.subr.mxu0 %v4618
    %4821 = vmatpush1.msra.mxu0 %v4617
    %4822 = vmatprep.subr.mxu0 %v4624
    %4823 = vmatpush1.msra.mxu0 %v4623
    %4824 = vmatprep.subr.mxu0 %v4630
    %4825 = vmatpush1.msra.mxu0 %v4629
    %4826 = vmatprep.subr.mxu0 %v4636
    %4827 = vmatpush1.msra.mxu0 %v4635
    %4828 = vmatprep.subr.mxu0 %v4642
    %4829 = vmatpush1.msra.mxu0 %v4641
    %4830 = vmatprep.subr.mxu0 %v4648
    %4831 = vmatpush1.msra.mxu0 %v4647
    %4832 = vmatprep.subr.mxu0 %v4654
    %4833 = vmatpush1.msra.mxu0 %v4653
    %4834 = vmatprep.subr.mxu0 %v4660
    %4835 = vmatpush1.msra.mxu0 %v4659
    %4836 = vmatprep.subr.mxu0 %v4666
    %4837 = vmatpush1.msra.mxu0 %v4665
    %4838 = vmatprep.subr.mxu0 %v4672
    %4839 = vmatpush1.msra.mxu0 %v4671
    %4840 = vmatprep.subr.mxu0 %v4678
    %4841 = vmatpush1.msra.mxu0 %v4677
    %4842 = vmatprep.subr.mxu0 %v4684
    %4843 = vmatpush1.msra.mxu0 %v4683
    %4844 = vmatprep.subr.mxu0 %v4690
    %4845 = vmatpush1.msra.mxu0 %v4689
    %4846 = vmatprep.subr.mxu0 %v4696
    %4847 = vmatpush1.msra.mxu0 %v4695
    %4848 = vmatprep.subr.mxu0 %v4702
    %4849 = vmatpush1.msra.mxu0 %v4701
    %4850 = vmatprep.subr.mxu0 %v4708
    %4851 = vmatpush1.msra.mxu0 %v4707
    %4852 = vmatprep.subr.mxu0 %v4714
    %4853 = vmatpush1.msra.mxu0 %v4713
    %4854 = vmatprep.subr.mxu0 %v4720
    %4855 = vmatpush1.msra.mxu0 %v4719
    %4856 = vmatprep.subr.mxu0 %v4726
    %4857 = vmatpush1.msra.mxu0 %v4725
    %4858 = vmatprep.subr.mxu0 %v4732
    %4859 = vmatpush1.msra.mxu0 %v4731
    %4860 = vmatprep.subr.mxu0 %v4738
    %4861 = vmatpush1.msra.mxu0 %v4737
    %4862 = vmatprep.subr.mxu0 %v4744
    %4863 = vmatpush1.msra.mxu0 %v4743
    %4864 = vmatprep.subr.mxu0 %v4750
    %4865 = vmatpush1.msra.mxu0 %v4749
    %4866 = vmatprep.subr.mxu0 %v4756
    %4867 = vmatpush1.msra.mxu0 %v4755
    %4868 = vmatprep.subr.mxu0 %v4762
    %4869 = vmatpush1.msra.mxu0 %v4761
    %4870 = vmatprep.subr.mxu0 %v4768
    %4871 = vmatpush1.msra.mxu0 %v4767
    %4872 = vmatprep.subr.mxu0 %v4774
    %4873 = vmatpush1.msra.mxu0 %v4773
    %4874 = vmatprep.subr.mxu0 %v4780
    %4875 = vmatpush1.msra.mxu0 %v4779
    %4876 = vmatprep.subr.mxu0 %v4786
    %4877 = vmatpush1.msra.mxu0 %v4785
    %4878 = vmatprep.subr.mxu0 %v4792
    %4879 = vmatpush1.msra.mxu0 %v4791
    %4880 = vmatprep.subr.mxu0 %v4798
    %4881 = vmatpush1.msra.mxu0 %v4797
    %4882 = vmatprep.subr.mxu0 %v4804
    %4883 = vmatpush1.msra.mxu0 %v4803
    %4884 = vmatprep.mubr.f32.mxu0 %v4817
    %4885 = vmatmul.mubr.f32.gmra.mrb[0].mxu0 %v4813
    %v4886 = vpop.f32.mrb[0].mxu0
    %v4887 = vadd.f32 0.0, %v4886
    %v4888 = vpop.f32.mrb[0].mxu0
    %v4889 = vadd.f32 0.0, %v4888
    %4890 = vdwg.mxu0
    %4891 = vmatprep.subr.mxu0 %v4620
    %4892 = vmatpush1.msra.mxu0 %v4619
    %4893 = vmatprep.subr.mxu0 %v4626
    %4894 = vmatpush1.msra.mxu0 %v4625
    %4895 = vmatprep.subr.mxu0 %v4632
    %4896 = vmatpush1.msra.mxu0 %v4631
    %4897 = vmatprep.subr.mxu0 %v4638
    %4898 = vmatpush1.msra.mxu0 %v4637
    %4899 = vmatprep.subr.mxu0 %v4644
    %4900 = vmatpush1.msra.mxu0 %v4643
    %4901 = vmatprep.subr.mxu0 %v4650
    %4902 = vmatpush1.msra.mxu0 %v4649
    %4903 = vmatprep.subr.mxu0 %v4656
    %4904 = vmatpush1.msra.mxu0 %v4655
    %4905 = vmatprep.subr.mxu0 %v4662
    %4906 = vmatpush1.msra.mxu0 %v4661
    %4907 = vmatprep.subr.mxu0 %v4668
    %4908 = vmatpush1.msra.mxu0 %v4667
    %4909 = vmatprep.subr.mxu0 %v4674
    %4910 = vmatpush1.msra.mxu0 %v4673
    %4911 = vmatprep.subr.mxu0 %v4680
    %4912 = vmatpush1.msra.mxu0 %v4679
    %4913 = vmatprep.subr.mxu0 %v4686
    %4914 = vmatpush1.msra.mxu0 %v4685
    %4915 = vmatprep.subr.mxu0 %v4692
    %4916 = vmatpush1.msra.mxu0 %v4691
    %4917 = vmatprep.subr.mxu0 %v4698
    %4918 = vmatpush1.msra.mxu0 %v4697
    %4919 = vmatprep.subr.mxu0 %v4704
    %4920 = vmatpush1.msra.mxu0 %v4703
    %4921 = vmatprep.subr.mxu0 %v4710
    %4922 = vmatpush1.msra.mxu0 %v4709
    %4923 = vmatprep.subr.mxu0 %v4716
    %4924 = vmatpush1.msra.mxu0 %v4715
    %4925 = vmatprep.subr.mxu0 %v4722
    %4926 = vmatpush1.msra.mxu0 %v4721
    %4927 = vmatprep.subr.mxu0 %v4728
    %4928 = vmatpush1.msra.mxu0 %v4727
    %4929 = vmatprep.subr.mxu0 %v4734
    %4930 = vmatpush1.msra.mxu0 %v4733
    %4931 = vmatprep.subr.mxu0 %v4740
    %4932 = vmatpush1.msra.mxu0 %v4739
    %4933 = vmatprep.subr.mxu0 %v4746
    %4934 = vmatpush1.msra.mxu0 %v4745
    %4935 = vmatprep.subr.mxu0 %v4752
    %4936 = vmatpush1.msra.mxu0 %v4751
    %4937 = vmatprep.subr.mxu0 %v4758
    %4938 = vmatpush1.msra.mxu0 %v4757
    %4939 = vmatprep.subr.mxu0 %v4764
    %4940 = vmatpush1.msra.mxu0 %v4763
    %4941 = vmatprep.subr.mxu0 %v4770
    %4942 = vmatpush1.msra.mxu0 %v4769
    %4943 = vmatprep.subr.mxu0 %v4776
    %4944 = vmatpush1.msra.mxu0 %v4775
    %4945 = vmatprep.subr.mxu0 %v4782
    %4946 = vmatpush1.msra.mxu0 %v4781
    %4947 = vmatprep.subr.mxu0 %v4788
    %4948 = vmatpush1.msra.mxu0 %v4787
    %4949 = vmatprep.subr.mxu0 %v4794
    %4950 = vmatpush1.msra.mxu0 %v4793
    %4951 = vmatprep.subr.mxu0 %v4800
    %4952 = vmatpush1.msra.mxu0 %v4799
    %4953 = vmatprep.subr.mxu0 %v4806
    %4954 = vmatpush1.msra.mxu0 %v4805
    %4955 = vmatprep.mubr.f32.mxu0 %v4817
    %4956 = vmatmul.mubr.f32.gmra.mrb[0].mxu0 %v4813
    %v4957 = vpop.f32.mrb[0].mxu0
    %v4958 = vadd.f32 0.0, %v4957
    %v4959 = vpop.f32.mrb[0].mxu0
    %v4960 = vadd.f32 0.0, %v4959
    %4961 = vdwg.mxu0
    %4962 = vmatprep.subr.mxu0 %v4622
    %4963 = vmatpush1.msra.mxu0 %v4621
    %4964 = vmatprep.subr.mxu0 %v4628
    %4965 = vmatpush1.msra.mxu0 %v4627
    %4966 = vmatprep.subr.mxu0 %v4634
    %4967 = vmatpush1.msra.mxu0 %v4633
    %4968 = vmatprep.subr.mxu0 %v4640
    %4969 = vmatpush1.msra.mxu0 %v4639
    %4970 = vmatprep.subr.mxu0 %v4646
    %4971 = vmatpush1.msra.mxu0 %v4645
    %4972 = vmatprep.subr.mxu0 %v4652
    %4973 = vmatpush1.msra.mxu0 %v4651
    %4974 = vmatprep.subr.mxu0 %v4658
    %4975 = vmatpush1.msra.mxu0 %v4657
    %4976 = vmatprep.subr.mxu0 %v4664
    %4977 = vmatpush1.msra.mxu0 %v4663
    %4978 = vmatprep.subr.mxu0 %v4670
    %4979 = vmatpush1.msra.mxu0 %v4669
    %4980 = vmatprep.subr.mxu0 %v4676
    %4981 = vmatpush1.msra.mxu0 %v4675
    %4982 = vmatprep.subr.mxu0 %v4682
    %4983 = vmatpush1.msra.mxu0 %v4681
    %4984 = vmatprep.subr.mxu0 %v4688
    %4985 = vmatpush1.msra.mxu0 %v4687
    %4986 = vmatprep.subr.mxu0 %v4694
    %4987 = vmatpush1.msra.mxu0 %v4693
    %4988 = vmatprep.subr.mxu0 %v4700
    %4989 = vmatpush1.msra.mxu0 %v4699
    %4990 = vmatprep.subr.mxu0 %v4706
    %4991 = vmatpush1.msra.mxu0 %v4705
    %4992 = vmatprep.subr.mxu0 %v4712
    %4993 = vmatpush1.msra.mxu0 %v4711
    %4994 = vmatprep.subr.mxu0 %v4718
    %4995 = vmatpush1.msra.mxu0 %v4717
    %4996 = vmatprep.subr.mxu0 %v4724
    %4997 = vmatpush1.msra.mxu0 %v4723
    %4998 = vmatprep.subr.mxu0 %v4730
    %4999 = vmatpush1.msra.mxu0 %v4729
    %5000 = vmatprep.subr.mxu0 %v4736
    %5001 = vmatpush1.msra.mxu0 %v4735
    %5002 = vmatprep.subr.mxu0 %v4742
    %5003 = vmatpush1.msra.mxu0 %v4741
    %5004 = vmatprep.subr.mxu0 %v4748
    %5005 = vmatpush1.msra.mxu0 %v4747
    %5006 = vmatprep.subr.mxu0 %v4754
    %5007 = vmatpush1.msra.mxu0 %v4753
    %5008 = vmatprep.subr.mxu0 %v4760
    %5009 = vmatpush1.msra.mxu0 %v4759
    %5010 = vmatprep.subr.mxu0 %v4766
    %5011 = vmatpush1.msra.mxu0 %v4765
    %5012 = vmatprep.subr.mxu0 %v4772
    %5013 = vmatpush1.msra.mxu0 %v4771
    %5014 = vmatprep.subr.mxu0 %v4778
    %5015 = vmatpush1.msra.mxu0 %v4777
    %5016 = vmatprep.subr.mxu0 %v4784
    %5017 = vmatpush1.msra.mxu0 %v4783
    %5018 = vmatprep.subr.mxu0 %v4790
    %5019 = vmatpush1.msra.mxu0 %v4789
    %5020 = vmatprep.subr.mxu0 %v4796
    %5021 = vmatpush1.msra.mxu0 %v4795
    %5022 = vmatprep.subr.mxu0 %v4802
    %5023 = vmatpush1.msra.mxu0 %v4801
    %5024 = vmatprep.subr.mxu0 %v4808
    %5025 = vmatpush1.msra.mxu0 %v4807
    %5026 = vmatprep.mubr.f32.mxu0 %v4817
    %5027 = vmatmul.mubr.f32.gmra.mrb[0].mxu0 %v4813
    %v5028 = vpop.f32.mrb[0].mxu0
    %v5029 = vadd.f32 0.0, %v5028
    %v5030 = vpop.f32.mrb[0].mxu0
    %v5031 = vadd.f32 0.0, %v5030
    %5032 = vdwg.mxu0
    %v5035 = vcombine.low %v4887, %v4889
    %v5037 = vunpack.c.l.s4 1966171168
    %v5038 = vunpack.c.0.s8 %v5037
    %v5039 = vlaneseq
    %v5040 = vshrl.u32 %v5039, 7
    %v5041 = vsub.s32 %v5038, %v5040
    %v5042 = vrot.slane %v5035, %v5041
    %v5044 = vunpack.c.l.s4 1966171168
    %v5045 = vunpack.c.0.s8 %v5044
    %v5046 = vlaneseq
    %v5047 = vshrl.u32 %v5046, 7
    %v5048 = vsub.s32 %v5045, %v5047
    %v5049 = vrot.slane %v5042, %v5048
    %v5051 = vadd.f32 %v4616, %v5049
    %v5052 = vxor.u32 %v5051, 2147483648
    %v5053 = vmul.f32 %v5052, 1.442695
    %v5054 = vpow.pop %v5053
    %v5055 = vadd.f32 %v5054, 1.0
    %v5056 = vrcp.pop %v5055
    %v5057 = vmul.f32 1.0, %v5056
    %v5059 = vrot.slane %v4616, 2
    %v5063 = vcombine.low %v4958, %v4960
    %v5065 = vunpack.c.l.s4 1966171168
    %v5066 = vunpack.c.0.s8 %v5065
    %v5067 = vlaneseq
    %v5068 = vshrl.u32 %v5067, 7
    %v5069 = vsub.s32 %v5066, %v5068
    %v5070 = vrot.slane %v5063, %v5069
    %v5072 = vunpack.c.l.s4 1966171168
    %v5073 = vunpack.c.0.s8 %v5072
    %v5074 = vlaneseq
    %v5075 = vshrl.u32 %v5074, 7
    %v5076 = vsub.s32 %v5073, %v5075
    %v5077 = vrot.slane %v5070, %v5076
    %v5079 = vadd.f32 %v5059, %v5077
    %v5080 = vxor.u32 %v5079, 2147483648
    %v5081 = vmul.f32 %v5080, 1.442695
    %v5082 = vpow.pop %v5081
    %v5083 = vadd.f32 %v5082, 1.0
    %v5084 = vrcp.pop %v5083
    %v5085 = vmul.f32 1.0, %v5084
    %v5086 = vld [vmem:[%s9] sm:$0x3]
    %v5088 = vlaneseq
    %v5089 = vshrl.u32 %v5088, 7
    %v5090 = vsub.s32 0, %v5089
    %v5091 = vrot.slane %v5086, %v5090
    %v5092 = vlaneseq
    %v5093 = vshrl.u32 %v5092, 7
    %v5094 = vsub.s32 1, %v5093
    %v5095 = vrot.slane %v5086, %v5094
    %v5098 = vadd.f32 %v5029, %v5091
    %v5099 = vadd.f32 %v5031, %v5095
    %v5102 = vcombine.low %v5098, %v5099
    %v5104 = vunpack.c.l.s4 1966171168
    %v5105 = vunpack.c.0.s8 %v5104
    %v5106 = vlaneseq
    %v5107 = vshrl.u32 %v5106, 7
    %v5108 = vsub.s32 %v5105, %v5107
    %v5109 = vrot.slane %v5102, %v5108
    %v5111 = vunpack.c.l.s4 1966171168
    %v5112 = vunpack.c.0.s8 %v5111
    %v5113 = vlaneseq
    %v5114 = vshrl.u32 %v5113, 7
    %v5115 = vsub.s32 %v5112, %v5114
    %v5116 = vrot.slane %v5109, %v5115
    %v5118 = vmul.f32 %v5057, %v5116
    %v5119 = vrot.slane %v4616, 4
    %v5121 = vadd.f32 %v5119, %v5118
    %v5122 = vtanh.pop %v5121
    %v5123 = vsub.f32 1.0, %v5085
    %v5124 = vmul.f32 %v5123, %v5122
    %v5125 = vmul.f32 %v5085, %v4099
    %v5126 = vadd.f32 %v5124, %v5125
    %s5127 = scalar_lea.vmem [#allocation4], 3
    %5128 = vst.msk [vmem:[%s5127] ss:$4 sm:$0x3] %vm2044, %v4615
    %s5129 = scalar_lea.vmem [#allocation4], 8
    %5130 = vst.msk [vmem:[%s5129] ss:$4 sm:$0x3] %vm2044, %v5126
    %v5131 = vld [vmem:[#allocation4] sm:$0xff]
    %v5132 = vld [vmem:[#allocation4 + $0x8] sm:$0xff]
    %v5135 = vcombine.high %v5131, %v5131
    %v5136 = vcombine.high %v5132, %v5132
    %vm5139 = vcmask 1043456
    %v5140 = vsel %vm5139, %v5131, 0.0
    %v5141 = vrot.slane %v5140, 4
    %v5142 = vadd.f32 %v5140, %v5141
    %v5143 = vrot.slane %v5142, 2
    %v5144 = vadd.f32 %v5142, %v5143
    %v5145 = vrot.slane %v5144, 1
    %v5146 = vadd.f32 %v5144, %v5145
    %v5147 = vsel %vm5139, %v5135, 0.0
    %v5148 = vrot.slane %v5147, 4
    %v5149 = vadd.f32 %v5147, %v5148
    %v5150 = vrot.slane %v5149, 2
    %v5151 = vadd.f32 %v5149, %v5150
    %v5152 = vrot.slane %v5151, 1
    %v5153 = vadd.f32 %v5151, %v5152
    %v5154 = vsel %vm5139, %v5132, 0.0
    %v5155 = vrot.slane %v5154, 4
    %v5156 = vadd.f32 %v5154, %v5155
    %v5157 = vrot.slane %v5156, 2
    %v5158 = vadd.f32 %v5156, %v5157
    %v5159 = vrot.slane %v5158, 1
    %v5160 = vadd.f32 %v5158, %v5159
    %v5161 = vsel %vm5139, %v5136, 0.0
    %v5162 = vrot.slane %v5161, 4
    %v5163 = vadd.f32 %v5161, %v5162
    %v5164 = vrot.slane %v5163, 2
    %v5165 = vadd.f32 %v5163, %v5164
    %v5166 = vrot.slane %v5165, 1
    %v5167 = vadd.f32 %v5165, %v5166
    %v5168 = vrcp.pop 4.0
    %v5169 = vmul.f32 %v5146, %v5168
    %v5170 = vmul.f32 %v5153, %v5168
    %v5171 = vmul.f32 %v5160, %v5168
    %v5172 = vmul.f32 %v5167, %v5168
    %v5173 = vld [vmem:[%s10] sm:$0xff]
    %v5174 = vld [vmem:[%s10 + $0x8] sm:$0xff]
    %v5175 = vld [vmem:[%s10 + $0x10] sm:$0xff]
    %v5176 = vld [vmem:[%s10 + $0x18] sm:$0xff]
    %v5177 = vld [vmem:[%s10 + $0x20] sm:$0xff]
    %v5178 = vld [vmem:[%s10 + $0x28] sm:$0xff]
    %v5179 = vld [vmem:[%s10 + $0x30] sm:$0xff]
    %v5180 = vld [vmem:[%s10 + $0x38] sm:$0xff]
    %v5181 = vld [vmem:[%s10 + $0x40] sm:$0xff]
    %v5182 = vld [vmem:[%s10 + $0x48] sm:$0xff]
    %v5183 = vld [vmem:[%s10 + $0x50] sm:$0xff]
    %v5184 = vld [vmem:[%s10 + $0x58] sm:$0xff]
    %v5185 = vld [vmem:[%s10 + $0x60] sm:$0xff]
    %v5186 = vld [vmem:[%s10 + $0x68] sm:$0xff]
    %v5187 = vld [vmem:[%s10 + $0x70] sm:$0xff]
    %v5188 = vld [vmem:[%s10 + $0x78] sm:$0xff]
    %v5189 = vld [vmem:[%s10 + $0x80] sm:$0xff]
    %v5190 = vld [vmem:[%s10 + $0x88] sm:$0xff]
    %v5191 = vld [vmem:[%s10 + $0x90] sm:$0xff]
    %v5192 = vld [vmem:[%s10 + $0x98] sm:$0xff]
    %v5193 = vld [vmem:[%s10 + $0xa0] sm:$0xff]
    %v5194 = vld [vmem:[%s10 + $0xa8] sm:$0xff]
    %v5195 = vld [vmem:[%s10 + $0xb0] sm:$0xff]
    %v5196 = vld [vmem:[%s10 + $0xb8] sm:$0xff]
    %v5197 = vld [vmem:[%s10 + $0xc0] sm:$0xff]
    %v5198 = vld [vmem:[%s10 + $0xc8] sm:$0xff]
    %v5199 = vld [vmem:[%s10 + $0xd0] sm:$0xff]
    %v5200 = vld [vmem:[%s10 + $0xd8] sm:$0xff]
    %v5201 = vld [vmem:[%s10 + $0xe0] sm:$0xff]
    %v5202 = vld [vmem:[%s10 + $0xe8] sm:$0xff]
    %v5203 = vld [vmem:[%s10 + $0xf0] sm:$0xff]
    %v5204 = vld [vmem:[%s10 + $0xf8] sm:$0xff]
    %v5205 = vld [vmem:[%s10 + $0x100] sm:$0xff]
    %v5206 = vld [vmem:[%s10 + $0x108] sm:$0xff]
    %v5207 = vld [vmem:[%s10 + $0x110] sm:$0xff]
    %v5208 = vld [vmem:[%s10 + $0x118] sm:$0xff]
    %v5209 = vld [vmem:[%s10 + $0x120] sm:$0xff]
    %v5210 = vld [vmem:[%s10 + $0x128] sm:$0xff]
    %v5211 = vld [vmem:[%s10 + $0x130] sm:$0xff]
    %v5212 = vld [vmem:[%s10 + $0x138] sm:$0xff]
    %v5213 = vld [vmem:[%s10 + $0x140] sm:$0xff]
    %v5214 = vld [vmem:[%s10 + $0x148] sm:$0xff]
    %v5215 = vld [vmem:[%s10 + $0x150] sm:$0xff]
    %v5216 = vld [vmem:[%s10 + $0x158] sm:$0xff]
    %v5217 = vld [vmem:[%s10 + $0x160] sm:$0xff]
    %v5218 = vld [vmem:[%s10 + $0x168] sm:$0xff]
    %v5219 = vld [vmem:[%s10 + $0x170] sm:$0xff]
    %v5220 = vld [vmem:[%s10 + $0x178] sm:$0xff]
    %v5221 = vld [vmem:[%s10 + $0x180] sm:$0xff]
    %v5222 = vld [vmem:[%s10 + $0x188] sm:$0xff]
    %v5223 = vld [vmem:[%s10 + $0x190] sm:$0xff]
    %v5224 = vld [vmem:[%s10 + $0x198] sm:$0xff]
    %v5225 = vld [vmem:[%s10 + $0x1a0] sm:$0xff]
    %v5226 = vld [vmem:[%s10 + $0x1a8] sm:$0xff]
    %v5227 = vld [vmem:[%s10 + $0x1b0] sm:$0xff]
    %v5228 = vld [vmem:[%s10 + $0x1b8] sm:$0xff]
    %v5229 = vld [vmem:[%s10 + $0x1c0] sm:$0xff]
    %v5230 = vld [vmem:[%s10 + $0x1c8] sm:$0xff]
    %v5231 = vld [vmem:[%s10 + $0x1d0] sm:$0xff]
    %v5232 = vld [vmem:[%s10 + $0x1d8] sm:$0xff]
    %v5233 = vld [vmem:[%s10 + $0x1e0] sm:$0xff]
    %v5234 = vld [vmem:[%s10 + $0x1e8] sm:$0xff]
    %v5235 = vld [vmem:[%s10 + $0x1f0] sm:$0xff]
    %v5236 = vld [vmem:[%s10 + $0x1f8] sm:$0xff]
    %v5237 = vld [vmem:[%s11] sm:$0x1]
    %5238 = vmatprep.subr.mxu0 0.0
    %5239 = vmatpush1.msra.mxu0 %v5173
    %5240 = vmatprep.subr.mxu0 0.0
    %5241 = vmatpush1.msra.mxu0 %v5174
    %5242 = vmatprep.subr.mxu0 0.0
    %5243 = vmatpush1.msra.mxu0 %v5175
    %5244 = vmatprep.subr.mxu0 0.0
    %5245 = vmatpush1.msra.mxu0 %v5176
    %5246 = vmatprep.subr.mxu0 0.0
    %5247 = vmatpush1.msra.mxu0 %v5177
    %5248 = vmatprep.subr.mxu0 0.0
    %5249 = vmatpush1.msra.mxu0 %v5178
    %5250 = vmatprep.subr.mxu0 0.0
    %5251 = vmatpush1.msra.mxu0 %v5179
    %5252 = vmatprep.subr.mxu0 0.0
    %5253 = vmatpush1.msra.mxu0 %v5180
    %5254 = vmatprep.subr.mxu0 0.0
    %5255 = vmatpush1.msra.mxu0 %v5181
    %5256 = vmatprep.subr.mxu0 0.0
    %5257 = vmatpush1.msra.mxu0 %v5182
    %5258 = vmatprep.subr.mxu0 0.0
    %5259 = vmatpush1.msra.mxu0 %v5183
    %5260 = vmatprep.subr.mxu0 0.0
    %5261 = vmatpush1.msra.mxu0 %v5184
    %5262 = vmatprep.subr.mxu0 0.0
    %5263 = vmatpush1.msra.mxu0 %v5185
    %5264 = vmatprep.subr.mxu0 0.0
    %5265 = vmatpush1.msra.mxu0 %v5186
    %5266 = vmatprep.subr.mxu0 0.0
    %5267 = vmatpush1.msra.mxu0 %v5187
    %5268 = vmatprep.subr.mxu0 0.0
    %5269 = vmatpush1.msra.mxu0 %v5188
    %5270 = vmatprep.subr.mxu0 0.0
    %5271 = vmatpush1.msra.mxu0 %v5189
    %5272 = vmatprep.subr.mxu0 0.0
    %5273 = vmatpush1.msra.mxu0 %v5190
    %5274 = vmatprep.subr.mxu0 0.0
    %5275 = vmatpush1.msra.mxu0 %v5191
    %5276 = vmatprep.subr.mxu0 0.0
    %5277 = vmatpush1.msra.mxu0 %v5192
    %5278 = vmatprep.subr.mxu0 0.0
    %5279 = vmatpush1.msra.mxu0 %v5193
    %5280 = vmatprep.subr.mxu0 0.0
    %5281 = vmatpush1.msra.mxu0 %v5194
    %5282 = vmatprep.subr.mxu0 0.0
    %5283 = vmatpush1.msra.mxu0 %v5195
    %5284 = vmatprep.subr.mxu0 0.0
    %5285 = vmatpush1.msra.mxu0 %v5196
    %5286 = vmatprep.subr.mxu0 0.0
    %5287 = vmatpush1.msra.mxu0 %v5197
    %5288 = vmatprep.subr.mxu0 0.0
    %5289 = vmatpush1.msra.mxu0 %v5198
    %5290 = vmatprep.subr.mxu0 0.0
    %5291 = vmatpush1.msra.mxu0 %v5199
    %5292 = vmatprep.subr.mxu0 0.0
    %5293 = vmatpush1.msra.mxu0 %v5200
    %5294 = vmatprep.subr.mxu0 0.0
    %5295 = vmatpush1.msra.mxu0 %v5201
    %5296 = vmatprep.subr.mxu0 0.0
    %5297 = vmatpush1.msra.mxu0 %v5202
    %5298 = vmatprep.subr.mxu0 0.0
    %5299 = vmatpush1.msra.mxu0 %v5203
    %5300 = vmatprep.subr.mxu0 0.0
    %5301 = vmatpush1.msra.mxu0 %v5204
    %5302 = vmatprep.mubr.f32.mxu0 %v5170
    %5303 = vmatmul.mubr.f32.gmra.mrb[0].mxu0 %v5169
    %v5304 = vpop.f32.mrb[0].mxu0
    %v5305 = vadd.f32 %v5237, %v5304
    %v5306 = vpop.f32.mrb[0].mxu0
    %5307 = vdwg.mxu0
    %5308 = vmatprep.subr.mxu0 0.0
    %5309 = vmatpush1.msra.mxu0 %v5205
    %5310 = vmatprep.subr.mxu0 0.0
    %5311 = vmatpush1.msra.mxu0 %v5206
    %5312 = vmatprep.subr.mxu0 0.0
    %5313 = vmatpush1.msra.mxu0 %v5207
    %5314 = vmatprep.subr.mxu0 0.0
    %5315 = vmatpush1.msra.mxu0 %v5208
    %5316 = vmatprep.subr.mxu0 0.0
    %5317 = vmatpush1.msra.mxu0 %v5209
    %5318 = vmatprep.subr.mxu0 0.0
    %5319 = vmatpush1.msra.mxu0 %v5210
    %5320 = vmatprep.subr.mxu0 0.0
    %5321 = vmatpush1.msra.mxu0 %v5211
    %5322 = vmatprep.subr.mxu0 0.0
    %5323 = vmatpush1.msra.mxu0 %v5212
    %5324 = vmatprep.subr.mxu0 0.0
    %5325 = vmatpush1.msra.mxu0 %v5213
    %5326 = vmatprep.subr.mxu0 0.0
    %5327 = vmatpush1.msra.mxu0 %v5214
    %5328 = vmatprep.subr.mxu0 0.0
    %5329 = vmatpush1.msra.mxu0 %v5215
    %5330 = vmatprep.subr.mxu0 0.0
    %5331 = vmatpush1.msra.mxu0 %v5216
    %5332 = vmatprep.subr.mxu0 0.0
    %5333 = vmatpush1.msra.mxu0 %v5217
    %5334 = vmatprep.subr.mxu0 0.0
    %5335 = vmatpush1.msra.mxu0 %v5218
    %5336 = vmatprep.subr.mxu0 0.0
    %5337 = vmatpush1.msra.mxu0 %v5219
    %5338 = vmatprep.subr.mxu0 0.0
    %5339 = vmatpush1.msra.mxu0 %v5220
    %5340 = vmatprep.subr.mxu0 0.0
    %5341 = vmatpush1.msra.mxu0 %v5221
    %5342 = vmatprep.subr.mxu0 0.0
    %5343 = vmatpush1.msra.mxu0 %v5222
    %5344 = vmatprep.subr.mxu0 0.0
    %5345 = vmatpush1.msra.mxu0 %v5223
    %5346 = vmatprep.subr.mxu0 0.0
    %5347 = vmatpush1.msra.mxu0 %v5224
    %5348 = vmatprep.subr.mxu0 0.0
    %5349 = vmatpush1.msra.mxu0 %v5225
    %5350 = vmatprep.subr.mxu0 0.0
    %5351 = vmatpush1.msra.mxu0 %v5226
    %5352 = vmatprep.subr.mxu0 0.0
    %5353 = vmatpush1.msra.mxu0 %v5227
    %5354 = vmatprep.subr.mxu0 0.0
    %5355 = vmatpush1.msra.mxu0 %v5228
    %5356 = vmatprep.subr.mxu0 0.0
    %5357 = vmatpush1.msra.mxu0 %v5229
    %5358 = vmatprep.subr.mxu0 0.0
    %5359 = vmatpush1.msra.mxu0 %v5230
    %5360 = vmatprep.subr.mxu0 0.0
    %5361 = vmatpush1.msra.mxu0 %v5231
    %5362 = vmatprep.subr.mxu0 0.0
    %5363 = vmatpush1.msra.mxu0 %v5232
    %5364 = vmatprep.subr.mxu0 0.0
    %5365 = vmatpush1.msra.mxu0 %v5233
    %5366 = vmatprep.subr.mxu0 0.0
    %5367 = vmatpush1.msra.mxu0 %v5234
    %5368 = vmatprep.subr.mxu0 0.0
    %5369 = vmatpush1.msra.mxu0 %v5235
    %5370 = vmatprep.subr.mxu0 0.0
    %5371 = vmatpush1.msra.mxu0 %v5236
    %5372 = vmatprep.mubr.f32.mxu0 %v5172
    %5373 = vmatmul.mubr.f32.gmra.mrb[0].mxu0 %v5171
    %v5374 = vpop.f32.mrb[0].mxu0
    %v5375 = vadd.f32 %v5305, %v5374
    %v5376 = vpop.f32.mrb[0].mxu0
    %5377 = vdwg.mxu0
    %v5378 = vtanh.pop %v5375
    %v5379 = vld [vmem:[#allocation14] sm:$0xff]
    %v5380 = vld [vmem:[#allocation14 + $0x8] sm:$0xff]
    %v5381 = vld [vmem:[#allocation14 + $0x10] sm:$0xff]
    %v5382 = vld [vmem:[#allocation14 + $0x18] sm:$0xff]
    %v5383 = vld [vmem:[#allocation14 + $0x20] sm:$0xff]
    %v5384 = vld [vmem:[#allocation14 + $0x28] sm:$0xff]
    %v5385 = vld [vmem:[#allocation14 + $0x30] sm:$0xff]
    %v5386 = vld [vmem:[#allocation14 + $0x38] sm:$0xff]
    %v5387 = vld [vmem:[#allocation14 + $0x40] sm:$0xff]
    %v5388 = vld [vmem:[#allocation14 + $0x48] sm:$0xff]
    %v5389 = vld [vmem:[#allocation14 + $0x50] sm:$0xff]
    %v5390 = vld [vmem:[#allocation14 + $0x58] sm:$0xff]
    %v5391 = vld [vmem:[#allocation14 + $0x60] sm:$0xff]
    %v5392 = vld [vmem:[#allocation14 + $0x68] sm:$0xff]
    %v5393 = vld [vmem:[#allocation14 + $0x70] sm:$0xff]
    %v5394 = vld [vmem:[#allocation14 + $0x78] sm:$0xff]
    %v5395 = vld [vmem:[#allocation14 + $0x80] sm:$0xff]
    %v5396 = vld [vmem:[#allocation14 + $0x88] sm:$0xff]
    %v5397 = vld [vmem:[#allocation14 + $0x90] sm:$0xff]
    %v5398 = vld [vmem:[#allocation14 + $0x98] sm:$0xff]
    %v5399 = vld [vmem:[#allocation14 + $0xa0] sm:$0xff]
    %v5400 = vld [vmem:[#allocation14 + $0xa8] sm:$0xff]
    %v5401 = vld [vmem:[#allocation14 + $0xb0] sm:$0xff]
    %v5402 = vld [vmem:[#allocation14 + $0xb8] sm:$0xff]
    %v5403 = vld [vmem:[#allocation14 + $0xc0] sm:$0xff]
    %v5404 = vld [vmem:[#allocation14 + $0xc8] sm:$0xff]
    %v5405 = vld [vmem:[#allocation14 + $0xd0] sm:$0xff]
    %v5406 = vld [vmem:[#allocation14 + $0xd8] sm:$0xff]
    %v5407 = vld [vmem:[#allocation14 + $0xe0] sm:$0xff]
    %v5408 = vld [vmem:[#allocation14 + $0xe8] sm:$0xff]
    %v5409 = vld [vmem:[#allocation14 + $0xf0] sm:$0xff]
    %v5410 = vld [vmem:[#allocation14 + $0xf8] sm:$0xff]
    %v5411 = vld [vmem:[#allocation14 + $0x100] sm:$0xff]
    %v5412 = vld [vmem:[#allocation14 + $0x108] sm:$0xff]
    %v5413 = vld [vmem:[#allocation14 + $0x110] sm:$0xff]
    %v5414 = vld [vmem:[#allocation14 + $0x118] sm:$0xff]
    %v5415 = vld [vmem:[#allocation14 + $0x120] sm:$0xff]
    %v5416 = vld [vmem:[#allocation14 + $0x128] sm:$0xff]
    %v5417 = vld [vmem:[#allocation14 + $0x130] sm:$0xff]
    %v5418 = vld [vmem:[#allocation14 + $0x138] sm:$0xff]
    %v5419 = vld [vmem:[#allocation14 + $0x140] sm:$0xff]
    %v5420 = vld [vmem:[#allocation14 + $0x148] sm:$0xff]
    %v5421 = vld [vmem:[#allocation14 + $0x150] sm:$0xff]
    %v5422 = vld [vmem:[#allocation14 + $0x158] sm:$0xff]
    %v5423 = vld [vmem:[#allocation14 + $0x160] sm:$0xff]
    %v5424 = vld [vmem:[#allocation14 + $0x168] sm:$0xff]
    %v5425 = vld [vmem:[#allocation14 + $0x170] sm:$0xff]
    %v5426 = vld [vmem:[#allocation14 + $0x178] sm:$0xff]
    %v5427 = vld [vmem:[#allocation14 + $0x180] sm:$0xff]
    %v5428 = vld [vmem:[#allocation14 + $0x188] sm:$0xff]
    %v5429 = vld [vmem:[#allocation14 + $0x190] sm:$0xff]
    %v5430 = vld [vmem:[#allocation14 + $0x198] sm:$0xff]
    %v5431 = vld [vmem:[#allocation14 + $0x1a0] sm:$0xff]
    %v5432 = vld [vmem:[#allocation14 + $0x1a8] sm:$0xff]
    %v5433 = vld [vmem:[#allocation14 + $0x1b0] sm:$0xff]
    %v5434 = vld [vmem:[#allocation14 + $0x1b8] sm:$0xff]
    %v5435 = vld [vmem:[#allocation14 + $0x1c0] sm:$0xff]
    %v5436 = vld [vmem:[#allocation14 + $0x1c8] sm:$0xff]
    %v5437 = vld [vmem:[#allocation14 + $0x1d0] sm:$0xff]
    %v5438 = vld [vmem:[#allocation14 + $0x1d8] sm:$0xff]
    %v5439 = vld [vmem:[#allocation14 + $0x1e0] sm:$0xff]
    %v5440 = vld [vmem:[#allocation14 + $0x1e8] sm:$0xff]
    %v5441 = vld [vmem:[#allocation14 + $0x1f0] sm:$0xff]
    %v5442 = vld [vmem:[#allocation14 + $0x1f8] sm:$0xff]
    %v5443 = vld [vmem:[%s13] sm:$0x1]
    %v5445 = vlaneseq
    %v5446 = vshrl.u32 %v5445, 7
    %v5447 = vsub.s32 0, %v5446
    %v5448 = vrot.slane %v5443, %v5447
    %5450 = vmatprep.subr.mxu0 0.0
    %5451 = vmatpush1.msra.mxu0 %v5379
    %5452 = vmatprep.subr.mxu0 0.0
    %5453 = vmatpush1.msra.mxu0 %v5380
    %5454 = vmatprep.subr.mxu0 0.0
    %5455 = vmatpush1.msra.mxu0 %v5381
    %5456 = vmatprep.subr.mxu0 0.0
    %5457 = vmatpush1.msra.mxu0 %v5382
    %5458 = vmatprep.subr.mxu0 0.0
    %5459 = vmatpush1.msra.mxu0 %v5383
    %5460 = vmatprep.subr.mxu0 0.0
    %5461 = vmatpush1.msra.mxu0 %v5384
    %5462 = vmatprep.subr.mxu0 0.0
    %5463 = vmatpush1.msra.mxu0 %v5385
    %5464 = vmatprep.subr.mxu0 0.0
    %5465 = vmatpush1.msra.mxu0 %v5386
    %5466 = vmatprep.subr.mxu0 0.0
    %5467 = vmatpush1.msra.mxu0 %v5387
    %5468 = vmatprep.subr.mxu0 0.0
    %5469 = vmatpush1.msra.mxu0 %v5388
    %5470 = vmatprep.subr.mxu0 0.0
    %5471 = vmatpush1.msra.mxu0 %v5389
    %5472 = vmatprep.subr.mxu0 0.0
    %5473 = vmatpush1.msra.mxu0 %v5390
    %5474 = vmatprep.subr.mxu0 0.0
    %5475 = vmatpush1.msra.mxu0 %v5391
    %5476 = vmatprep.subr.mxu0 0.0
    %5477 = vmatpush1.msra.mxu0 %v5392
    %5478 = vmatprep.subr.mxu0 0.0
    %5479 = vmatpush1.msra.mxu0 %v5393
    %5480 = vmatprep.subr.mxu0 0.0
    %5481 = vmatpush1.msra.mxu0 %v5394
    %5482 = vmatprep.subr.mxu0 0.0
    %5483 = vmatpush1.msra.mxu0 %v5395
    %5484 = vmatprep.subr.mxu0 0.0
    %5485 = vmatpush1.msra.mxu0 %v5396
    %5486 = vmatprep.subr.mxu0 0.0
    %5487 = vmatpush1.msra.mxu0 %v5397
    %5488 = vmatprep.subr.mxu0 0.0
    %5489 = vmatpush1.msra.mxu0 %v5398
    %5490 = vmatprep.subr.mxu0 0.0
    %5491 = vmatpush1.msra.mxu0 %v5399
    %5492 = vmatprep.subr.mxu0 0.0
    %5493 = vmatpush1.msra.mxu0 %v5400
    %5494 = vmatprep.subr.mxu0 0.0
    %5495 = vmatpush1.msra.mxu0 %v5401
    %5496 = vmatprep.subr.mxu0 0.0
    %5497 = vmatpush1.msra.mxu0 %v5402
    %5498 = vmatprep.subr.mxu0 0.0
    %5499 = vmatpush1.msra.mxu0 %v5403
    %5500 = vmatprep.subr.mxu0 0.0
    %5501 = vmatpush1.msra.mxu0 %v5404
    %5502 = vmatprep.subr.mxu0 0.0
    %5503 = vmatpush1.msra.mxu0 %v5405
    %5504 = vmatprep.subr.mxu0 0.0
    %5505 = vmatpush1.msra.mxu0 %v5406
    %5506 = vmatprep.subr.mxu0 0.0
    %5507 = vmatpush1.msra.mxu0 %v5407
    %5508 = vmatprep.subr.mxu0 0.0
    %5509 = vmatpush1.msra.mxu0 %v5408
    %5510 = vmatprep.subr.mxu0 0.0
    %5511 = vmatpush1.msra.mxu0 %v5409
    %5512 = vmatprep.subr.mxu0 0.0
    %5513 = vmatpush1.msra.mxu0 %v5410
    %5514 = vmatprep.mubr.f32.mxu0 %v5135
    %5515 = vmatmul.mubr.f32.gmra.mrb[0].mxu0 %v5131
    %v5516 = vpop.f32.mrb[0].mxu0
    %v5517 = vadd.f32 %v5448, %v5516
    %v5518 = vpop.f32.mrb[0].mxu0
    %5519 = vdwg.mxu0
    %5520 = vmatprep.subr.mxu0 0.0
    %5521 = vmatpush1.msra.mxu0 %v5411
    %5522 = vmatprep.subr.mxu0 0.0
    %5523 = vmatpush1.msra.mxu0 %v5412
    %5524 = vmatprep.subr.mxu0 0.0
    %5525 = vmatpush1.msra.mxu0 %v5413
    %5526 = vmatprep.subr.mxu0 0.0
    %5527 = vmatpush1.msra.mxu0 %v5414
    %5528 = vmatprep.subr.mxu0 0.0
    %5529 = vmatpush1.msra.mxu0 %v5415
    %5530 = vmatprep.subr.mxu0 0.0
    %5531 = vmatpush1.msra.mxu0 %v5416
    %5532 = vmatprep.subr.mxu0 0.0
    %5533 = vmatpush1.msra.mxu0 %v5417
    %5534 = vmatprep.subr.mxu0 0.0
    %5535 = vmatpush1.msra.mxu0 %v5418
    %5536 = vmatprep.subr.mxu0 0.0
    %5537 = vmatpush1.msra.mxu0 %v5419
    %5538 = vmatprep.subr.mxu0 0.0
    %5539 = vmatpush1.msra.mxu0 %v5420
    %5540 = vmatprep.subr.mxu0 0.0
    %5541 = vmatpush1.msra.mxu0 %v5421
    %5542 = vmatprep.subr.mxu0 0.0
    %5543 = vmatpush1.msra.mxu0 %v5422
    %5544 = vmatprep.subr.mxu0 0.0
    %5545 = vmatpush1.msra.mxu0 %v5423
    %5546 = vmatprep.subr.mxu0 0.0
    %5547 = vmatpush1.msra.mxu0 %v5424
    %5548 = vmatprep.subr.mxu0 0.0
    %5549 = vmatpush1.msra.mxu0 %v5425
    %5550 = vmatprep.subr.mxu0 0.0
    %5551 = vmatpush1.msra.mxu0 %v5426
    %5552 = vmatprep.subr.mxu0 0.0
    %5553 = vmatpush1.msra.mxu0 %v5427
    %5554 = vmatprep.subr.mxu0 0.0
    %5555 = vmatpush1.msra.mxu0 %v5428
    %5556 = vmatprep.subr.mxu0 0.0
    %5557 = vmatpush1.msra.mxu0 %v5429
    %5558 = vmatprep.subr.mxu0 0.0
    %5559 = vmatpush1.msra.mxu0 %v5430
    %5560 = vmatprep.subr.mxu0 0.0
    %5561 = vmatpush1.msra.mxu0 %v5431
    %5562 = vmatprep.subr.mxu0 0.0
    %5563 = vmatpush1.msra.mxu0 %v5432
    %5564 = vmatprep.subr.mxu0 0.0
    %5565 = vmatpush1.msra.mxu0 %v5433
    %5566 = vmatprep.subr.mxu0 0.0
    %5567 = vmatpush1.msra.mxu0 %v5434
    %5568 = vmatprep.subr.mxu0 0.0
    %5569 = vmatpush1.msra.mxu0 %v5435
    %5570 = vmatprep.subr.mxu0 0.0
    %5571 = vmatpush1.msra.mxu0 %v5436
    %5572 = vmatprep.subr.mxu0 0.0
    %5573 = vmatpush1.msra.mxu0 %v5437
    %5574 = vmatprep.subr.mxu0 0.0
    %5575 = vmatpush1.msra.mxu0 %v5438
    %5576 = vmatprep.subr.mxu0 0.0
    %5577 = vmatpush1.msra.mxu0 %v5439
    %5578 = vmatprep.subr.mxu0 0.0
    %5579 = vmatpush1.msra.mxu0 %v5440
    %5580 = vmatprep.subr.mxu0 0.0
    %5581 = vmatpush1.msra.mxu0 %v5441
    %5582 = vmatprep.subr.mxu0 0.0
    %5583 = vmatpush1.msra.mxu0 %v5442
    %5584 = vmatprep.mubr.f32.mxu0 %v5136
    %5585 = vmatmul.mubr.f32.gmra.mrb[0].mxu0 %v5132
    %v5586 = vpop.f32.mrb[0].mxu0
    %v5587 = vadd.f32 %v5517, %v5586
    %v5588 = vpop.f32.mrb[0].mxu0
    %5589 = vdwg.mxu0
    %v5590 = vtanh.pop %v5587
    %5591 = vst [vmem:[#allocation5] sm:$0xf] %v5590
    %v5592 = vld [vmem:[#allocation16] sm:$0xff]
    %v5593 = vld [vmem:[#allocation16 + $0x8] sm:$0xff]
    %v5594 = vld [vmem:[#allocation16 + $0x10] sm:$0xff]
    %v5595 = vld [vmem:[#allocation16 + $0x18] sm:$0xff]
    %v5596 = vld [vmem:[#allocation16 + $0x20] sm:$0xff]
    %v5597 = vld [vmem:[#allocation16 + $0x28] sm:$0xff]
    %v5598 = vld [vmem:[#allocation16 + $0x30] sm:$0xff]
    %v5599 = vld [vmem:[#allocation16 + $0x38] sm:$0xff]
    %v5600 = vld [vmem:[#allocation16 + $0x40] sm:$0xff]
    %v5601 = vld [vmem:[#allocation16 + $0x48] sm:$0xff]
    %v5602 = vld [vmem:[#allocation16 + $0x50] sm:$0xff]
    %v5603 = vld [vmem:[#allocation16 + $0x58] sm:$0xff]
    %v5604 = vld [vmem:[#allocation16 + $0x60] sm:$0xff]
    %v5605 = vld [vmem:[#allocation16 + $0x68] sm:$0xff]
    %v5606 = vld [vmem:[#allocation16 + $0x70] sm:$0xff]
    %v5607 = vld [vmem:[#allocation16 + $0x78] sm:$0xff]
    %5608 = vmatprep.subr.mxu0 0.0
    %5609 = vmatpush1.msra.mxu0 %v5592
    %5610 = vmatprep.subr.mxu0 0.0
    %5611 = vmatpush1.msra.mxu0 %v5593
    %5612 = vmatprep.subr.mxu0 0.0
    %5613 = vmatpush1.msra.mxu0 %v5594
    %5614 = vmatprep.subr.mxu0 0.0
    %5615 = vmatpush1.msra.mxu0 %v5595
    %5616 = vmatprep.subr.mxu0 0.0
    %5617 = vmatpush1.msra.mxu0 %v5596
    %5618 = vmatprep.subr.mxu0 0.0
    %5619 = vmatpush1.msra.mxu0 %v5597
    %5620 = vmatprep.subr.mxu0 0.0
    %5621 = vmatpush1.msra.mxu0 %v5598
    %5622 = vmatprep.subr.mxu0 0.0
    %5623 = vmatpush1.msra.mxu0 %v5599
    %5624 = vmatprep.subr.mxu0 0.0
    %5625 = vmatpush1.msra.mxu0 %v5600
    %5626 = vmatprep.subr.mxu0 0.0
    %5627 = vmatpush1.msra.mxu0 %v5601
    %5628 = vmatprep.subr.mxu0 0.0
    %5629 = vmatpush1.msra.mxu0 %v5602
    %5630 = vmatprep.subr.mxu0 0.0
    %5631 = vmatpush1.msra.mxu0 %v5603
    %5632 = vmatprep.subr.mxu0 0.0
    %5633 = vmatpush1.msra.mxu0 %v5604
    %5634 = vmatprep.subr.mxu0 0.0
    %5635 = vmatpush1.msra.mxu0 %v5605
    %5636 = vmatprep.subr.mxu0 0.0
    %5637 = vmatpush1.msra.mxu0 %v5606
    %5638 = vmatprep.subr.mxu0 0.0
    %5639 = vmatpush1.msra.mxu0 %v5607
    %5640 = vmatprep.subr.mxu0 0.0
    %5641 = vmatpush1.msra.mxu0 0.0
    %5642 = vmatprep.subr.mxu0 0.0
    %5643 = vmatpush1.msra.mxu0 0.0
    %5644 = vmatprep.subr.mxu0 0.0
    %5645 = vmatpush1.msra.mxu0 0.0
    %5646 = vmatprep.subr.mxu0 0.0
    %5647 = vmatpush1.msra.mxu0 0.0
    %5648 = vmatprep.subr.mxu0 0.0
    %5649 = vmatpush1.msra.mxu0 0.0
    %5650 = vmatprep.subr.mxu0 0.0
    %5651 = vmatpush1.msra.mxu0 0.0
    %5652 = vmatprep.subr.mxu0 0.0
    %5653 = vmatpush1.msra.mxu0 0.0
    %5654 = vmatprep.subr.mxu0 0.0
    %5655 = vmatpush1.msra.mxu0 0.0
    %5656 = vmatprep.subr.mxu0 0.0
    %5657 = vmatpush1.msra.mxu0 0.0
    %5658 = vmatprep.subr.mxu0 0.0
    %5659 = vmatpush1.msra.mxu0 0.0
    %5660 = vmatprep.subr.mxu0 0.0
    %5661 = vmatpush1.msra.mxu0 0.0
    %5662 = vmatprep.subr.mxu0 0.0
    %5663 = vmatpush1.msra.mxu0 0.0
    %5664 = vmatprep.subr.mxu0 0.0
    %5665 = vmatpush1.msra.mxu0 0.0
    %5666 = vmatprep.subr.mxu0 0.0
    %5667 = vmatpush1.msra.mxu0 0.0
    %5668 = vmatprep.subr.mxu0 0.0
    %5669 = vmatpush1.msra.mxu0 0.0
    %5670 = vmatprep.subr.mxu0 0.0
    %5671 = vmatpush1.msra.mxu0 0.0
    %5672 = vmatprep.mubr.f32.mxu0 0.0
    %5673 = vmatmul.mubr.f32.gmra.mrb[0].mxu0 %v5590
    %v5674 = vpop.f32.mrb[0].mxu0
    %v5675 = vadd.f32 0.0, %v5674
    %v5676 = vpop.f32.mrb[0].mxu0
    %5677 = vdwg.mxu0
    %5678 = vst [vmem:[#allocation6] sm:$0xf] %v5675
    %v5679 = vld [vmem:[%s14] sm:$0x1]
    %v5681 = vlaneseq
    %v5682 = vshrl.u32 %v5681, 7
    %v5683 = vsub.s32 0, %v5682
    %v5684 = vrot.slane %v5679, %v5683
    %v5686 = vmul.f32 %v5590, %v5684
    %v5687 = vsel %vm5139, %v5686, 0.0
    %5688 = vadd.xlane.f32.xlu0 %v5687
    %v5689 = vpop.xlane.xlu0 %5688
    %v5690 = vld [vmem:[%s15] sm:$0xff]
    %v5691 = vld [vmem:[%s15 + $0x8] sm:$0xff]
    %v5692 = vld [vmem:[%s15 + $0x10] sm:$0xff]
    %v5693 = vld [vmem:[%s15 + $0x18] sm:$0xff]
    %v5694 = vld [vmem:[%s15 + $0x20] sm:$0xff]
    %v5695 = vld [vmem:[%s15 + $0x28] sm:$0xff]
    %v5696 = vld [vmem:[%s15 + $0x30] sm:$0xff]
    %v5697 = vld [vmem:[%s15 + $0x38] sm:$0xff]
    %v5698 = vld [vmem:[%s15 + $0x40] sm:$0xff]
    %v5699 = vld [vmem:[%s15 + $0x48] sm:$0xff]
    %v5700 = vld [vmem:[%s15 + $0x50] sm:$0xff]
    %v5701 = vld [vmem:[%s15 + $0x58] sm:$0xff]
    %v5702 = vld [vmem:[%s15 + $0x60] sm:$0xff]
    %v5703 = vld [vmem:[%s15 + $0x68] sm:$0xff]
    %v5704 = vld [vmem:[%s15 + $0x70] sm:$0xff]
    %v5705 = vld [vmem:[%s15 + $0x78] sm:$0xff]
    %5706 = vmatprep.subr.mxu0 0.0
    %5707 = vmatpush1.msra.mxu0 %v5690
    %5708 = vmatprep.subr.mxu0 0.0
    %5709 = vmatpush1.msra.mxu0 %v5691
    %5710 = vmatprep.subr.mxu0 0.0
    %5711 = vmatpush1.msra.mxu0 %v5692
    %5712 = vmatprep.subr.mxu0 0.0
    %5713 = vmatpush1.msra.mxu0 %v5693
    %5714 = vmatprep.subr.mxu0 0.0
    %5715 = vmatpush1.msra.mxu0 %v5694
    %5716 = vmatprep.subr.mxu0 0.0
    %5717 = vmatpush1.msra.mxu0 %v5695
    %5718 = vmatprep.subr.mxu0 0.0
    %5719 = vmatpush1.msra.mxu0 %v5696
    %5720 = vmatprep.subr.mxu0 0.0
    %5721 = vmatpush1.msra.mxu0 %v5697
    %5722 = vmatprep.subr.mxu0 0.0
    %5723 = vmatpush1.msra.mxu0 %v5698
    %5724 = vmatprep.subr.mxu0 0.0
    %5725 = vmatpush1.msra.mxu0 %v5699
    %5726 = vmatprep.subr.mxu0 0.0
    %5727 = vmatpush1.msra.mxu0 %v5700
    %5728 = vmatprep.subr.mxu0 0.0
    %5729 = vmatpush1.msra.mxu0 %v5701
    %5730 = vmatprep.subr.mxu0 0.0
    %5731 = vmatpush1.msra.mxu0 %v5702
    %5732 = vmatprep.subr.mxu0 0.0
    %5733 = vmatpush1.msra.mxu0 %v5703
    %5734 = vmatprep.subr.mxu0 0.0
    %5735 = vmatpush1.msra.mxu0 %v5704
    %5736 = vmatprep.subr.mxu0 0.0
    %5737 = vmatpush1.msra.mxu0 %v5705
    %5738 = vmatprep.subr.mxu0 0.0
    %5739 = vmatpush1.msra.mxu0 0.0
    %5740 = vmatprep.subr.mxu0 0.0
    %5741 = vmatpush1.msra.mxu0 0.0
    %5742 = vmatprep.subr.mxu0 0.0
    %5743 = vmatpush1.msra.mxu0 0.0
    %5744 = vmatprep.subr.mxu0 0.0
    %5745 = vmatpush1.msra.mxu0 0.0
    %5746 = vmatprep.subr.mxu0 0.0
    %5747 = vmatpush1.msra.mxu0 0.0
    %5748 = vmatprep.subr.mxu0 0.0
    %5749 = vmatpush1.msra.mxu0 0.0
    %5750 = vmatprep.subr.mxu0 0.0
    %5751 = vmatpush1.msra.mxu0 0.0
    %5752 = vmatprep.subr.mxu0 0.0
    %5753 = vmatpush1.msra.mxu0 0.0
    %5754 = vmatprep.subr.mxu0 0.0
    %5755 = vmatpush1.msra.mxu0 0.0
    %5756 = vmatprep.subr.mxu0 0.0
    %5757 = vmatpush1.msra.mxu0 0.0
    %5758 = vmatprep.subr.mxu0 0.0
    %5759 = vmatpush1.msra.mxu0 0.0
    %5760 = vmatprep.subr.mxu0 0.0
    %5761 = vmatpush1.msra.mxu0 0.0
    %5762 = vmatprep.subr.mxu0 0.0
    %5763 = vmatpush1.msra.mxu0 0.0
    %5764 = vmatprep.subr.mxu0 0.0
    %5765 = vmatpush1.msra.mxu0 0.0
    %5766 = vmatprep.subr.mxu0 0.0
    %5767 = vmatpush1.msra.mxu0 0.0
    %5768 = vmatprep.subr.mxu0 0.0
    %5769 = vmatpush1.msra.mxu0 0.0
    %5770 = vmatprep.mubr.f32.mxu0 0.0
    %5771 = vmatmul.mubr.f32.gmra.mrb[0].mxu0 %v5590
    %v5772 = vpop.f32.mrb[0].mxu0
    %v5773 = vadd.f32 0.0, %v5772
    %v5774 = vpop.f32.mrb[0].mxu0
    %5775 = vdwg.mxu0
    %v5776 = vlaneseq
    %v5777 = vshrl.u32 %v5776, 7
    %v5778 = vsub.s32 0, %v5777
    %v5779 = vrot.slane %v5378, %v5778
    %v5780 = vmul.f32 %v5773, %v5779
    %v5781 = vsel %vm5139, %v5780, 0.0
    %5782 = vadd.xlane.f32.xlu0 %v5781
    %v5783 = vpop.xlane.xlu0 %5782
    %v5784 = vld [vmem:[%s1] sm:$0xf]
    %v5785 = vld [vmem:[%s17] sm:$0x1]
    %v5787 = vlaneseq
    %v5788 = vshrl.u32 %v5787, 7
    %v5789 = vsub.s32 0, %v5788
    %v5790 = vrot.slane %v5785, %v5789
    %v5792 = vmul.f32 %v5784, %v5790
    %v5793 = vsel %vm5139, %v5792, 0.0
    %5794 = vadd.xlane.f32.xlu0 %v5793
    %v5795 = vpop.xlane.xlu0 %5794
    %v5796 = vadd.f32 %v5689, %v5783
    %v5797 = vadd.f32 %v5796, %v5795
    %v5798 = vld [vmem:[#allocation8] sm:$0x1]
    %v5800 = vlaneseq
    %v5801 = vshrl.u32 %v5800, 7
    %v5802 = vsub.s32 0, %v5801
    %v5803 = vrot.slane %v5798, %v5802
    %v5805 = vadd.f32 %v5797, %v5803
    %vm5806 = vcmask 3072
    %5807 = vst.msk [vmem:[#allocation7] sm:$0xf] %vm5806, %v5805
    %v5808 = vlaneseq
    %v5809 = vand.u32 %v5808, 127
    %v5810 = vld [vmem:[#allocation5] sm:$0x1]
    %v5811 = vld [vmem:[#allocation6] sm:$0x1]
    %v5812 = vld [vmem:[#allocation7] sm:$0x1]
    %v5813 = vmul.f32 %v5811, 0.0
    %vm5814 = vcmask 1040384
    %v5815 = vsel %vm5814, %v5813, 0.0
    %5816 = vadd.xlane.f32.xlu0 %v5815
    %v5817 = vpop.xlane.xlu0 %5816
    %v5818 = vsub.f32 0.0, %v5817
    %v5819 = vadd.f32 %v5812, %v5818
    %v5820 = vxor.u32 %v5819, 2147483648
    %v5821 = vmul.f32 %v5820, 1.442695
    %v5822 = vpow.pop %v5821
    %v5823 = vadd.f32 %v5822, 1.0
    %v5824 = vrcp.pop %v5823
    %v5825 = vmul.f32 1.0, %v5824
    %5827 = vset.pattern.permute.xlu0 0
    %5828 = vperm.xlu0 %5827, %v5825
    %v5829 = vpop.permute.xlu0 %5828
    %v5831 = vmul.f32 %v5810, %v5829
    %v5832 = vadd.f32 %v5831, 0.0
    %vm5833 = vcmp.eq.s32.totalorder %v5809, 0
    %v5834 = vsel %vm5833, %v5829, 0.0
    %v5835 = vld [vmem:[#allocation5 + $0x1] sm:$0x1]
    %v5836 = vld [vmem:[#allocation6 + $0x1] sm:$0x1]
    %v5837 = vld [vmem:[#allocation7 + $0x1] sm:$0x1]
    %v5838 = vtanh.pop %v5832
    %v5839 = vmul.f32 %v5836, %v5838
    %v5840 = vsel %vm5814, %v5839, 0.0
    %5841 = vadd.xlane.f32.xlu0 %v5840
    %v5842 = vpop.xlane.xlu0 %5841
    %v5843 = vsub.f32 0.0, %v5842
    %v5844 = vadd.f32 %v5837, %v5843
    %v5845 = vxor.u32 %v5844, 2147483648
    %v5846 = vmul.f32 %v5845, 1.442695
    %v5847 = vpow.pop %v5846
    %v5848 = vadd.f32 %v5847, 1.0
    %v5849 = vrcp.pop %v5848
    %v5850 = vmul.f32 1.0, %v5849
    %5852 = vset.pattern.permute.xlu0 0
    %5853 = vperm.xlu0 %5852, %v5850
    %v5854 = vpop.permute.xlu0 %5853
    %v5856 = vmul.f32 %v5835, %v5854
    %v5857 = vadd.f32 %v5832, %v5856
    %vm5858 = vcmp.eq.s32.totalorder %v5809, 1
    %v5859 = vsel %vm5858, %v5854, %v5834
    %v5860 = vld [vmem:[#allocation5 + $0x2] sm:$0x1]
    %v5861 = vld [vmem:[#allocation6 + $0x2] sm:$0x1]
    %v5862 = vld [vmem:[#allocation7 + $0x2] sm:$0x1]
    %v5863 = vtanh.pop %v5857
    %v5864 = vmul.f32 %v5861, %v5863
    %v5865 = vsel %vm5814, %v5864, 0.0
    %5866 = vadd.xlane.f32.xlu0 %v5865
    %v5867 = vpop.xlane.xlu0 %5866
    %v5868 = vsub.f32 0.0, %v5867
    %v5869 = vadd.f32 %v5862, %v5868
    %v5870 = vxor.u32 %v5869, 2147483648
    %v5871 = vmul.f32 %v5870, 1.442695
    %v5872 = vpow.pop %v5871
    %v5873 = vadd.f32 %v5872, 1.0
    %v5874 = vrcp.pop %v5873
    %v5875 = vmul.f32 1.0, %v5874
    %5877 = vset.pattern.permute.xlu0 0
    %5878 = vperm.xlu0 %5877, %v5875
    %v5879 = vpop.permute.xlu0 %5878
    %v5881 = vmul.f32 %v5860, %v5879
    %v5882 = vadd.f32 %v5857, %v5881
    %vm5883 = vcmp.eq.s32.totalorder %v5809, 2
    %v5884 = vsel %vm5883, %v5879, %v5859
    %v5885 = vld [vmem:[#allocation6 + $0x3] sm:$0x1]
    %v5886 = vld [vmem:[#allocation7 + $0x3] sm:$0x1]
    %v5887 = vtanh.pop %v5882
    %v5888 = vmul.f32 %v5885, %v5887
    %v5889 = vsel %vm5814, %v5888, 0.0
    %5890 = vadd.xlane.f32.xlu0 %v5889
    %v5891 = vpop.xlane.xlu0 %5890
    %v5892 = vsub.f32 0.0, %v5891
    %v5893 = vadd.f32 %v5886, %v5892
    %v5894 = vxor.u32 %v5893, 2147483648
    %v5895 = vmul.f32 %v5894, 1.442695
    %v5896 = vpow.pop %v5895
    %v5897 = vadd.f32 %v5896, 1.0
    %v5898 = vrcp.pop %v5897
    %v5899 = vmul.f32 1.0, %v5898
    %vm5900 = vcmp.eq.s32.totalorder %v5809, 3
    %5902 = vset.pattern.permute.xlu0 0
    %5903 = vperm.xlu0 %5902, %v5899
    %v5904 = vpop.permute.xlu0 %5903
    %v5906 = vsel %vm5900, %v5904, %v5884
    %5907 = vst [vmem:[%s19] sm:$0x1] %v5906
    // Predicated region
    $region98: #{summarunner_forward.3} parent=1 // pred_check
      _
    $region99: #{summarunner_forward.3} parent=1 // pred_check_branch
      %5909 = sbr.rel (0) target = $region101
    $region100: #{summarunner_forward.3} parent=1 // pred_region
      _
    $region101: #{summarunner_forward.3} parent=1 // pred_fallthru
      _
    // Predicated region
    $region102: #{summarunner_forward.3} parent=1 // pred_check
      _
    $region103: #{summarunner_forward.3} parent=1 // pred_check_branch
      %5911 = sbr.rel (0) target = $region105
    $region104: #{summarunner_forward.3} parent=1 // pred_region
      _
    $region105: #{summarunner_forward.3} parent=1 // pred_fallthru
      _
    %5912 = vsyncpa [#allocation10], 1
    %5913 = vsyncpa [#allocation12], 1
    %5914 = vsyncpa [#allocation15], 1

</llo_original>
